<compile_context>
chip_gen: v5e
topology: v5e:2x2
jax: 0.10.0
libtpu: 0.0.40
codegen_flags: <defaults>
</compile_context>

<pallas_src>
import math

import jax
import jax.numpy as jnp
from jax.experimental import pallas as pl
from jax.experimental.pallas import tpu as pltpu


# --------------------------------------------------------------------------
# Fused kernel factory: all TemporalBlocks + transferLayer + Fourier-KAN head
# --------------------------------------------------------------------------
def _make_fused_kernel(block_meta, *, B, T, G, P, c_out):
    """block_meta: tuple of (has_downsample, dilation) per TemporalBlock."""

    def kernel(*refs):
        idx = 0
        x_ref = refs[idx]; idx += 1       # (B*T, Cin)  flat batch*time activations
        tmod_ref = refs[idx]; idx += 1    # (B*T, 1)    int32 local time index t = row % T
        kvec_ref = refs[idx]; idx += 1    # (G*T, 1)    f32 harmonic index (g+1)
        blk_refs = []
        for has_down, _ in block_meta:
            n = 6 if has_down else 4
            blk_refs.append(refs[idx:idx + n]); idx += n
        wt_ref, bt_ref, ccos_ref, csin_ref, kb_ref = refs[idx:idx + 5]; idx += 5
        o_ref = refs[idx]                 # (B, P, c_out)

        tmod = tmod_ref[...]              # (B*T, 1)
        h = x_ref[...]                    # (B*T, Cin)

        # ---------------- TCN stack (batch folded into matmul M) ----------------
        for (has_down, d), wrefs in zip(block_meta, blk_refs):
            if has_down:
                w1_ref, b1_ref, w2_ref, b2_ref, wd_ref, bd_ref = wrefs
            else:
                w1_ref, b1_ref, w2_ref, b2_ref = wrefs

            def cconv(v, w_ref, b_ref, d=d):
                # causal dilated conv1d (kernel_size=2):
                #   out[b,t] = v[b,t-d] @ W[0] + v[b,t] @ W[1] + bias,  v[b, t<0] = 0
                # Shift = sublane rotation of the flat (B*T, C) slab; rows with local
                # t < d (the only rows that wrap across a batch boundary) are exactly
                # the causally-padded rows, so the mask zeroes them.
                vs = pltpu.roll(v, shift=d, axis=0)          # vs[i] = v[i - d]
                vs = jnp.where(tmod >= d, vs, 0.0)
                out = jnp.dot(vs, w_ref[0], preferred_element_type=jnp.float32)
                out = out + jnp.dot(v, w_ref[1], preferred_element_type=jnp.float32)
                return out + b_ref[...]

            h1 = jnp.maximum(cconv(h, w1_ref, b1_ref), 0.0)    # relu1 (dropout = id)
            h2 = jnp.maximum(cconv(h1, w2_ref, b2_ref), 0.0)   # relu2 (dropout = id)
            if has_down:
                res = jnp.dot(h, wd_ref[...],
                              preferred_element_type=jnp.float32) + bd_ref[...]
            else:
                res = h
            h = jnp.maximum(h2 + res, 0.0)

        # ---------------- transferLayer + Fourier-KAN head ----------------------
        z = jnp.dot(h, wt_ref[...], preferred_element_type=jnp.float32) + bt_ref[...]  # (B*T, c_out)
        kvec = kvec_ref[...]              # (G*T, 1)
        ccos = ccos_ref[...]              # (P, G*T)  host-side flattened (g-major, t-minor)
        csin = csin_ref[...]              # (P, G*T)
        kb = kb_ref[...]                  # (P, 1)

        for b in range(B):                # static unroll; B is small
            zb = z[b * T:(b + 1) * T, :]                   # (T, c_out)
            cols = []
            for co in range(c_out):
                zc = zb[:, co:co + 1]                      # (T, 1)
                zrep = jnp.concatenate([zc] * G, axis=0)   # (G*T, 1)
                ang = kvec * zrep                          # (g+1) * z[t]
                y = (jnp.dot(ccos, jnp.cos(ang), preferred_element_type=jnp.float32)
                     + jnp.dot(csin, jnp.sin(ang), preferred_element_type=jnp.float32)
                     + kb)                                 # (P, 1)
                cols.append(y)
            out_b = cols[0] if c_out == 1 else jnp.concatenate(cols, axis=1)  # (P, c_out)
            o_ref[b] = out_b.astype(o_ref.dtype)

    return kernel


# --------------------------------------------------------------------------
# Wrapper: single pallas_call for the full forward
# --------------------------------------------------------------------------
def tcn_fftkan_forward(x, params):
    B, T, Cin = x.shape
    blocks = params["blocks"]
    block_meta = tuple(("wd" in blk, blk["dilation"]) for blk in blocks)

    wt, bt = params["wt"], params["bt"]
    c_last, c_out = wt.shape
    ccos, csin, kb = params["ccos"], params["csin"], params["kbias"]
    G, P, Tc = ccos.shape
    assert Tc == T

    # Host-side (free) layout prep: fold batch into M, flatten KAN coefficients
    # to (P, G*T) so the head is two matmuls per (batch, channel).
    x2 = x.reshape(B * T, Cin)
    tmod = (jnp.arange(B * T, dtype=jnp.int32) % T).reshape(B * T, 1)
    kvec = (jnp.arange(G * T, dtype=jnp.int32) // T + 1).astype(jnp.float32)
    kvec = kvec.reshape(G * T, 1)
    ccos_f = jnp.transpose(ccos, (1, 0, 2)).reshape(P, G * T)
    csin_f = jnp.transpose(csin, (1, 0, 2)).reshape(P, G * T)

    inputs = [x2, tmod, kvec]
    in_specs = [
        pl.BlockSpec((B * T, Cin), lambda i: (0, 0)),
        pl.BlockSpec((B * T, 1), lambda i: (0, 0)),
        pl.BlockSpec((G * T, 1), lambda i: (0, 0)),
    ]
    for blk in blocks:
        cin, cout = blk["w1"].shape[1], blk["w1"].shape[2]
        inputs += [blk["w1"], blk["b1"], blk["w2"], blk["b2"]]
        in_specs += [
            pl.BlockSpec((2, cin, cout), lambda i: (0, 0, 0)),
            pl.BlockSpec((1, cout), lambda i: (0, 0)),
            pl.BlockSpec((2, cout, cout), lambda i: (0, 0, 0)),
            pl.BlockSpec((1, cout), lambda i: (0, 0)),
        ]
        if "wd" in blk:
            inputs += [blk["wd"], blk["bd"]]
            in_specs += [
                pl.BlockSpec((cin, cout), lambda i: (0, 0)),
                pl.BlockSpec((1, cout), lambda i: (0, 0)),
            ]
    inputs += [wt, bt, ccos_f, csin_f, kb]
    in_specs += [
        pl.BlockSpec((c_last, c_out), lambda i: (0, 0)),
        pl.BlockSpec((1, c_out), lambda i: (0, 0)),
        pl.BlockSpec((P, G * T), lambda i: (0, 0)),
        pl.BlockSpec((P, G * T), lambda i: (0, 0)),
        pl.BlockSpec((P, 1), lambda i: (0, 0)),
    ]

    kern = _make_fused_kernel(block_meta, B=B, T=T, G=G, P=P, c_out=c_out)
    out = pl.pallas_call(
        kern,
        out_shape=jax.ShapeDtypeStruct((B, P, c_out), jnp.float32),
        grid=(1,),
        in_specs=in_specs,
        out_specs=pl.BlockSpec((B, P, c_out), lambda i: (0, 0, 0)),
        compiler_params=pltpu.CompilerParams(
            dimension_semantics=("arbitrary",)),
    )(*inputs)

    if c_out == 1:
        out = out[:, :, 0]              # matches the torch c_out == 1 path
    return out


# --------------------------------------------------------------------------
# Deterministic parameter init (synthetic; weight_norm folded, conv ~N(0,0.01))
# --------------------------------------------------------------------------
def init_params(key, *, num_inputs, num_channels, kernel_size, c_out, seq_len,
                pred_len, gridsize):
    assert kernel_size == 2, "kernel implements kernel_size=2 (module default)"
    keys = list(jax.random.split(key, 8 * len(num_channels) + 8))
    it = iter(keys)
    nk = lambda: next(it)

    blocks = []
    for i, cout in enumerate(num_channels):
        cin = num_inputs if i == 0 else num_channels[i - 1]
        blk = {
            "w1": 0.01 * jax.random.normal(nk(), (kernel_size, cin, cout), jnp.float32),
            "b1": 0.05 * jax.random.normal(nk(), (1, cout), jnp.float32),
            "w2": 0.01 * jax.random.normal(nk(), (kernel_size, cout, cout), jnp.float32),
            "b2": 0.05 * jax.random.normal(nk(), (1, cout), jnp.float32),
            "dilation": 2 ** i,
        }
        if cin != cout:  # downsample 1x1 conv
            blk["wd"] = 0.01 * jax.random.normal(nk(), (cin, cout), jnp.float32)
            blk["bd"] = 0.05 * jax.random.normal(nk(), (1, cout), jnp.float32)
        blocks.append(blk)

    params = {"blocks": blocks}
    params["wt"] = 0.1 * jax.random.normal(nk(), (num_channels[-1], c_out), jnp.float32)
    params["bt"] = 0.1 * jax.random.normal(nk(), (1, c_out), jnp.float32)
    coeff = jax.random.normal(nk(), (2, pred_len, seq_len, gridsize), jnp.float32)
    coeff = coeff / (math.sqrt(seq_len) * math.sqrt(gridsize))
    params["ccos"] = jnp.transpose(coeff[0], (2, 0, 1))   # (G, pred_len, seq_len)
    params["csin"] = jnp.transpose(coeff[1], (2, 0, 1))
    params["kbias"] = jnp.zeros((pred_len, 1), jnp.float32)
    return params


# --------------------------------------------------------------------------
# Pure-JAX reference (mirrors the PyTorch forward in eval mode)
# --------------------------------------------------------------------------
def reference_forward(x, params):
    h = x
    for blk in params["blocks"]:
        d = blk["dilation"]
        T = h.shape[1]

        def cconv(v, w, b):
            vs = jnp.pad(v, ((0, 0), (d, 0), (0, 0)))[:, :T]
            return (jnp.einsum("btc,co->bto", vs, w[0])
                    + jnp.einsum("btc,co->bto", v, w[1]) + b)

        h1 = jax.nn.relu(cconv(h, blk["w1"], blk["b1"]))
        h2 = jax.nn.relu(cconv(h1, blk["w2"], blk["b2"]))
        res = (jnp.einsum("btc,co->bto", h, blk["wd"]) + blk["bd"]
               if "wd" in blk else h)
        h = jax.nn.relu(h2 + res)

    z = jnp.einsum("btc,co->bto", h, params["wt"]) + params["bt"]   # (B,T,c_out)
    ccos, csin = params["ccos"], params["csin"]                      # (G,P,T)
    G = ccos.shape[0]
    karr = jnp.arange(1, G + 1, dtype=jnp.float32)
    outs = []
    for co in range(z.shape[-1]):
        z1 = z[:, :, co]                                             # (B, T)
        ang = karr[None, :, None] * z1[:, None, :]                   # (B, G, T)
        y = (jnp.einsum("bgt,got->bo", jnp.cos(ang), ccos)
             + jnp.einsum("bgt,got->bo", jnp.sin(ang), csin)
             + params["kbias"][:, 0][None, :])
        outs.append(y)
    return outs[0] if len(outs) == 1 else jnp.stack(outs, axis=2)


if __name__ == "__main__":
    B, seq_len, num_inputs = 2, 32, 4
    num_channels = [8, 8]          # block0: 4->8 (downsample), block1: 8->8 (identity)
    kernel_size, c_out, pred_len, gridsize = 2, 1, 1, 3

    key = jax.random.PRNGKey(0)
    k_p, k_x = jax.random.split(key)
    params = init_params(k_p, num_inputs=num_inputs, num_channels=num_channels,
                         kernel_size=kernel_size, c_out=c_out, seq_len=seq_len,
                         pred_len=pred_len, gridsize=gridsize)
    x = jax.random.normal(k_x, (B, seq_len, num_inputs), jnp.float32)

    out = jax.block_until_ready(tcn_fftkan_forward(x, params))
    ref = jax.block_until_ready(reference_forward(x, params))

    assert out.shape == (B, pred_len), out.shape
    assert jnp.allclose(out, ref, atol=1e-4, rtol=1e-4)
    print("KERNEL_OK")
</pallas_src>

<mosaic_0001>
module attributes {stable_mosaic.version = 11 : i64} {
  func.func @kernel(%arg0: i32, %arg1: memref<64x4xf32, #tpu.memory_space<vmem>>, %arg2: memref<64x1xi32, #tpu.memory_space<vmem>>, %arg3: memref<96x1xf32, #tpu.memory_space<vmem>>, %arg4: memref<2x4x8xf32, #tpu.memory_space<vmem>>, %arg5: memref<1x8xf32, #tpu.memory_space<vmem>>, %arg6: memref<2x8x8xf32, #tpu.memory_space<vmem>>, %arg7: memref<1x8xf32, #tpu.memory_space<vmem>>, %arg8: memref<4x8xf32, #tpu.memory_space<vmem>>, %arg9: memref<1x8xf32, #tpu.memory_space<vmem>>, %arg10: memref<2x8x8xf32, #tpu.memory_space<vmem>>, %arg11: memref<1x8xf32, #tpu.memory_space<vmem>>, %arg12: memref<2x8x8xf32, #tpu.memory_space<vmem>>, %arg13: memref<1x8xf32, #tpu.memory_space<vmem>>, %arg14: memref<8x1xf32, #tpu.memory_space<vmem>>, %arg15: memref<1x1xf32, #tpu.memory_space<vmem>>, %arg16: memref<1x96xf32, #tpu.memory_space<vmem>>, %arg17: memref<1x96xf32, #tpu.memory_space<vmem>>, %arg18: memref<1x1xf32, #tpu.memory_space<vmem>>, %arg19: memref<2x1x1xf32, #tpu.memory_space<vmem>>) attributes {dimension_semantics = [#tpu.dimension_semantics<arbitrary>], iteration_bounds = array<i64: 1>, scalar_prefetch = 0 : i64, scratch_operands = 0 : i64, tpu.core_type = #tpu.core_type<tc>, window_params = [{pipeline_mode = #tpu.pipeline_mode<synchronous>, transform_indices = @transform_0, window_bounds = array<i64: 64, 4>}, {pipeline_mode = #tpu.pipeline_mode<synchronous>, transform_indices = @transform_1, window_bounds = array<i64: 64, 1>}, {pipeline_mode = #tpu.pipeline_mode<synchronous>, transform_indices = @transform_2, window_bounds = array<i64: 96, 1>}, {pipeline_mode = #tpu.pipeline_mode<synchronous>, transform_indices = @transform_3, window_bounds = array<i64: 2, 4, 8>}, {pipeline_mode = #tpu.pipeline_mode<synchronous>, transform_indices = @transform_4, window_bounds = array<i64: 1, 8>}, {pipeline_mode = #tpu.pipeline_mode<synchronous>, transform_indices = @transform_5, window_bounds = array<i64: 2, 8, 8>}, {pipeline_mode = #tpu.pipeline_mode<synchronous>, transform_indices = @transform_6, window_bounds = array<i64: 1, 8>}, {pipeline_mode = #tpu.pipeline_mode<synchronous>, transform_indices = @transform_7, window_bounds = array<i64: 4, 8>}, {pipeline_mode = #tpu.pipeline_mode<synchronous>, transform_indices = @transform_8, window_bounds = array<i64: 1, 8>}, {pipeline_mode = #tpu.pipeline_mode<synchronous>, transform_indices = @transform_9, window_bounds = array<i64: 2, 8, 8>}, {pipeline_mode = #tpu.pipeline_mode<synchronous>, transform_indices = @transform_10, window_bounds = array<i64: 1, 8>}, {pipeline_mode = #tpu.pipeline_mode<synchronous>, transform_indices = @transform_11, window_bounds = array<i64: 2, 8, 8>}, {pipeline_mode = #tpu.pipeline_mode<synchronous>, transform_indices = @transform_12, window_bounds = array<i64: 1, 8>}, {pipeline_mode = #tpu.pipeline_mode<synchronous>, transform_indices = @transform_13, window_bounds = array<i64: 8, 1>}, {pipeline_mode = #tpu.pipeline_mode<synchronous>, transform_indices = @transform_14, window_bounds = array<i64: 1, 1>}, {pipeline_mode = #tpu.pipeline_mode<synchronous>, transform_indices = @transform_15, window_bounds = array<i64: 1, 96>}, {pipeline_mode = #tpu.pipeline_mode<synchronous>, transform_indices = @transform_16, window_bounds = array<i64: 1, 96>}, {pipeline_mode = #tpu.pipeline_mode<synchronous>, transform_indices = @transform_17, window_bounds = array<i64: 1, 1>}, {pipeline_mode = #tpu.pipeline_mode<synchronous>, transform_indices = @transform_18, window_bounds = array<i64: 2, 1, 1>}]} {
    %c0 = arith.constant 0 : index
    %c0_0 = arith.constant 0 : index
    %0 = vector.load %arg2[%c0, %c0_0] : memref<64x1xi32, #tpu.memory_space<vmem>>, vector<64x1xi32>
    %c0_1 = arith.constant 0 : index
    %c0_2 = arith.constant 0 : index
    %1 = vector.load %arg1[%c0_1, %c0_2] : memref<64x4xf32, #tpu.memory_space<vmem>>, vector<64x4xf32>
    %c1_i32 = arith.constant 1 : i32
    %2 = tpu.dynamic_rotate %1 by %c1_i32 dim 0 : vector<64x4xf32>, i32 -> vector<64x4xf32>
    %c1_i32_3 = arith.constant 1 : i32
    %3 = vector.broadcast %c1_i32_3 : i32 to vector<64x1xi32>
    %4 = arith.cmpi sge, %0, %3 : vector<64x1xi32>
    %cst = arith.constant 0.000000e+00 : f32
    %5 = vector.shape_cast %4 : vector<64x1xi1> to vector<64x1xi1>
    %6 = vector.broadcast %5 : vector<64x1xi1> to vector<64x4xi1>
    %7 = vector.broadcast %cst : f32 to vector<64x4xf32>
    %8 = arith.select %6, %2, %7 : vector<64x4xi1>, vector<64x4xf32>
    %c0_4 = arith.constant 0 : index
    %c0_5 = arith.constant 0 : index
    %c0_6 = arith.constant 0 : index
    %9 = vector.load %arg4[%c0_4, %c0_5, %c0_6] : memref<2x4x8xf32, #tpu.memory_space<vmem>>, vector<1x4x8xf32>
    %10 = vector.shape_cast %9 : vector<1x4x8xf32> to vector<4x8xf32>
    %cst_7 = arith.constant dense<0.000000e+00> : vector<64x8xf32>
    %11 = tpu.matmul %8, %10, %cst_7 {dimension_numbers = #tpu.dot_dimension_numbers<[1], [0], [0], [1], [0, 0, 1, 1], [], []>} : vector<64x4xf32>, vector<4x8xf32>, vector<64x8xf32> -> vector<64x8xf32>
    %c1 = arith.constant 1 : index
    %c0_8 = arith.constant 0 : index
    %c0_9 = arith.constant 0 : index
    %12 = vector.load %arg4[%c1, %c0_8, %c0_9] : memref<2x4x8xf32, #tpu.memory_space<vmem>>, vector<1x4x8xf32>
    %13 = vector.shape_cast %12 : vector<1x4x8xf32> to vector<4x8xf32>
    %cst_10 = arith.constant dense<0.000000e+00> : vector<64x8xf32>
    %14 = tpu.matmul %1, %13, %cst_10 {dimension_numbers = #tpu.dot_dimension_numbers<[1], [0], [0], [1], [0, 0, 1, 1], [], []>} : vector<64x4xf32>, vector<4x8xf32>, vector<64x8xf32> -> vector<64x8xf32>
    %15 = arith.addf %11, %14 : vector<64x8xf32>
    %c0_11 = arith.constant 0 : index
    %c0_12 = arith.constant 0 : index
    %16 = vector.load %arg5[%c0_11, %c0_12] : memref<1x8xf32, #tpu.memory_space<vmem>>, vector<1x8xf32>
    %17 = vector.broadcast %16 : vector<1x8xf32> to vector<64x8xf32>
    %18 = arith.addf %15, %17 : vector<64x8xf32>
    %cst_13 = arith.constant 0.000000e+00 : f32
    %19 = vector.broadcast %cst_13 : f32 to vector<64x8xf32>
    %20 = arith.maximumf %18, %19 : vector<64x8xf32>
    %c1_i32_14 = arith.constant 1 : i32
    %21 = tpu.dynamic_rotate %20 by %c1_i32_14 dim 0 : vector<64x8xf32>, i32 -> vector<64x8xf32>
    %c1_i32_15 = arith.constant 1 : i32
    %22 = vector.broadcast %c1_i32_15 : i32 to vector<64x1xi32>
    %23 = arith.cmpi sge, %0, %22 : vector<64x1xi32>
    %cst_16 = arith.constant 0.000000e+00 : f32
    %24 = vector.shape_cast %23 : vector<64x1xi1> to vector<64x1xi1>
    %25 = vector.broadcast %24 : vector<64x1xi1> to vector<64x8xi1>
    %26 = vector.broadcast %cst_16 : f32 to vector<64x8xf32>
    %27 = arith.select %25, %21, %26 : vector<64x8xi1>, vector<64x8xf32>
    %c0_17 = arith.constant 0 : index
    %c0_18 = arith.constant 0 : index
    %c0_19 = arith.constant 0 : index
    %28 = vector.load %arg6[%c0_17, %c0_18, %c0_19] : memref<2x8x8xf32, #tpu.memory_space<vmem>>, vector<1x8x8xf32>
    %29 = vector.shape_cast %28 : vector<1x8x8xf32> to vector<8x8xf32>
    %cst_20 = arith.constant dense<0.000000e+00> : vector<64x8xf32>
    %30 = tpu.matmul %27, %29, %cst_20 {dimension_numbers = #tpu.dot_dimension_numbers<[1], [0], [0], [1], [0, 0, 1, 1], [], []>} : vector<64x8xf32>, vector<8x8xf32>, vector<64x8xf32> -> vector<64x8xf32>
    %c1_21 = arith.constant 1 : index
    %c0_22 = arith.constant 0 : index
    %c0_23 = arith.constant 0 : index
    %31 = vector.load %arg6[%c1_21, %c0_22, %c0_23] : memref<2x8x8xf32, #tpu.memory_space<vmem>>, vector<1x8x8xf32>
    %32 = vector.shape_cast %31 : vector<1x8x8xf32> to vector<8x8xf32>
    %cst_24 = arith.constant dense<0.000000e+00> : vector<64x8xf32>
    %33 = tpu.matmul %20, %32, %cst_24 {dimension_numbers = #tpu.dot_dimension_numbers<[1], [0], [0], [1], [0, 0, 1, 1], [], []>} : vector<64x8xf32>, vector<8x8xf32>, vector<64x8xf32> -> vector<64x8xf32>
    %34 = arith.addf %30, %33 : vector<64x8xf32>
    %c0_25 = arith.constant 0 : index
    %c0_26 = arith.constant 0 : index
    %35 = vector.load %arg7[%c0_25, %c0_26] : memref<1x8xf32, #tpu.memory_space<vmem>>, vector<1x8xf32>
    %36 = vector.broadcast %35 : vector<1x8xf32> to vector<64x8xf32>
    %37 = arith.addf %34, %36 : vector<64x8xf32>
    %cst_27 = arith.constant 0.000000e+00 : f32
    %38 = vector.broadcast %cst_27 : f32 to vector<64x8xf32>
    %39 = arith.maximumf %37, %38 : vector<64x8xf32>
    %c0_28 = arith.constant 0 : index
    %c0_29 = arith.constant 0 : index
    %40 = vector.load %arg8[%c0_28, %c0_29] : memref<4x8xf32, #tpu.memory_space<vmem>>, vector<4x8xf32>
    %cst_30 = arith.constant dense<0.000000e+00> : vector<64x8xf32>
    %41 = tpu.matmul %1, %40, %cst_30 {dimension_numbers = #tpu.dot_dimension_numbers<[1], [0], [0], [1], [0, 0, 1, 1], [], []>} : vector<64x4xf32>, vector<4x8xf32>, vector<64x8xf32> -> vector<64x8xf32>
    %c0_31 = arith.constant 0 : index
    %c0_32 = arith.constant 0 : index
    %42 = vector.load %arg9[%c0_31, %c0_32] : memref<1x8xf32, #tpu.memory_space<vmem>>, vector<1x8xf32>
    %43 = vector.broadcast %42 : vector<1x8xf32> to vector<64x8xf32>
    %44 = arith.addf %41, %43 : vector<64x8xf32>
    %45 = arith.addf %39, %44 : vector<64x8xf32>
    %cst_33 = arith.constant 0.000000e+00 : f32
    %46 = vector.broadcast %cst_33 : f32 to vector<64x8xf32>
    %47 = arith.maximumf %45, %46 : vector<64x8xf32>
    %c2_i32 = arith.constant 2 : i32
    %48 = tpu.dynamic_rotate %47 by %c2_i32 dim 0 : vector<64x8xf32>, i32 -> vector<64x8xf32>
    %c2_i32_34 = arith.constant 2 : i32
    %49 = vector.broadcast %c2_i32_34 : i32 to vector<64x1xi32>
    %50 = arith.cmpi sge, %0, %49 : vector<64x1xi32>
    %cst_35 = arith.constant 0.000000e+00 : f32
    %51 = vector.shape_cast %50 : vector<64x1xi1> to vector<64x1xi1>
    %52 = vector.broadcast %51 : vector<64x1xi1> to vector<64x8xi1>
    %53 = vector.broadcast %cst_35 : f32 to vector<64x8xf32>
    %54 = arith.select %52, %48, %53 : vector<64x8xi1>, vector<64x8xf32>
    %c0_36 = arith.constant 0 : index
    %c0_37 = arith.constant 0 : index
    %c0_38 = arith.constant 0 : index
    %55 = vector.load %arg10[%c0_36, %c0_37, %c0_38] : memref<2x8x8xf32, #tpu.memory_space<vmem>>, vector<1x8x8xf32>
    %56 = vector.shape_cast %55 : vector<1x8x8xf32> to vector<8x8xf32>
    %cst_39 = arith.constant dense<0.000000e+00> : vector<64x8xf32>
    %57 = tpu.matmul %54, %56, %cst_39 {dimension_numbers = #tpu.dot_dimension_numbers<[1], [0], [0], [1], [0, 0, 1, 1], [], []>} : vector<64x8xf32>, vector<8x8xf32>, vector<64x8xf32> -> vector<64x8xf32>
    %c1_40 = arith.constant 1 : index
    %c0_41 = arith.constant 0 : index
    %c0_42 = arith.constant 0 : index
    %58 = vector.load %arg10[%c1_40, %c0_41, %c0_42] : memref<2x8x8xf32, #tpu.memory_space<vmem>>, vector<1x8x8xf32>
    %59 = vector.shape_cast %58 : vector<1x8x8xf32> to vector<8x8xf32>
    %cst_43 = arith.constant dense<0.000000e+00> : vector<64x8xf32>
    %60 = tpu.matmul %47, %59, %cst_43 {dimension_numbers = #tpu.dot_dimension_numbers<[1], [0], [0], [1], [0, 0, 1, 1], [], []>} : vector<64x8xf32>, vector<8x8xf32>, vector<64x8xf32> -> vector<64x8xf32>
    %61 = arith.addf %57, %60 : vector<64x8xf32>
    %c0_44 = arith.constant 0 : index
    %c0_45 = arith.constant 0 : index
    %62 = vector.load %arg11[%c0_44, %c0_45] : memref<1x8xf32, #tpu.memory_space<vmem>>, vector<1x8xf32>
    %63 = vector.broadcast %62 : vector<1x8xf32> to vector<64x8xf32>
    %64 = arith.addf %61, %63 : vector<64x8xf32>
    %cst_46 = arith.constant 0.000000e+00 : f32
    %65 = vector.broadcast %cst_46 : f32 to vector<64x8xf32>
    %66 = arith.maximumf %64, %65 : vector<64x8xf32>
    %c2_i32_47 = arith.constant 2 : i32
    %67 = tpu.dynamic_rotate %66 by %c2_i32_47 dim 0 : vector<64x8xf32>, i32 -> vector<64x8xf32>
    %c2_i32_48 = arith.constant 2 : i32
    %68 = vector.broadcast %c2_i32_48 : i32 to vector<64x1xi32>
    %69 = arith.cmpi sge, %0, %68 : vector<64x1xi32>
    %cst_49 = arith.constant 0.000000e+00 : f32
    %70 = vector.shape_cast %69 : vector<64x1xi1> to vector<64x1xi1>
    %71 = vector.broadcast %70 : vector<64x1xi1> to vector<64x8xi1>
    %72 = vector.broadcast %cst_49 : f32 to vector<64x8xf32>
    %73 = arith.select %71, %67, %72 : vector<64x8xi1>, vector<64x8xf32>
    %c0_50 = arith.constant 0 : index
    %c0_51 = arith.constant 0 : index
    %c0_52 = arith.constant 0 : index
    %74 = vector.load %arg12[%c0_50, %c0_51, %c0_52] : memref<2x8x8xf32, #tpu.memory_space<vmem>>, vector<1x8x8xf32>
    %75 = vector.shape_cast %74 : vector<1x8x8xf32> to vector<8x8xf32>
    %cst_53 = arith.constant dense<0.000000e+00> : vector<64x8xf32>
    %76 = tpu.matmul %73, %75, %cst_53 {dimension_numbers = #tpu.dot_dimension_numbers<[1], [0], [0], [1], [0, 0, 1, 1], [], []>} : vector<64x8xf32>, vector<8x8xf32>, vector<64x8xf32> -> vector<64x8xf32>
    %c1_54 = arith.constant 1 : index
    %c0_55 = arith.constant 0 : index
    %c0_56 = arith.constant 0 : index
    %77 = vector.load %arg12[%c1_54, %c0_55, %c0_56] : memref<2x8x8xf32, #tpu.memory_space<vmem>>, vector<1x8x8xf32>
    %78 = vector.shape_cast %77 : vector<1x8x8xf32> to vector<8x8xf32>
    %cst_57 = arith.constant dense<0.000000e+00> : vector<64x8xf32>
    %79 = tpu.matmul %66, %78, %cst_57 {dimension_numbers = #tpu.dot_dimension_numbers<[1], [0], [0], [1], [0, 0, 1, 1], [], []>} : vector<64x8xf32>, vector<8x8xf32>, vector<64x8xf32> -> vector<64x8xf32>
    %80 = arith.addf %76, %79 : vector<64x8xf32>
    %c0_58 = arith.constant 0 : index
    %c0_59 = arith.constant 0 : index
    %81 = vector.load %arg13[%c0_58, %c0_59] : memref<1x8xf32, #tpu.memory_space<vmem>>, vector<1x8xf32>
    %82 = vector.broadcast %81 : vector<1x8xf32> to vector<64x8xf32>
    %83 = arith.addf %80, %82 : vector<64x8xf32>
    %cst_60 = arith.constant 0.000000e+00 : f32
    %84 = vector.broadcast %cst_60 : f32 to vector<64x8xf32>
    %85 = arith.maximumf %83, %84 : vector<64x8xf32>
    %86 = arith.addf %85, %47 : vector<64x8xf32>
    %cst_61 = arith.constant 0.000000e+00 : f32
    %87 = vector.broadcast %cst_61 : f32 to vector<64x8xf32>
    %88 = arith.maximumf %86, %87 : vector<64x8xf32>
    %c0_62 = arith.constant 0 : index
    %c0_63 = arith.constant 0 : index
    %89 = vector.load %arg14[%c0_62, %c0_63] : memref<8x1xf32, #tpu.memory_space<vmem>>, vector<8x1xf32>
    %cst_64 = arith.constant dense<0.000000e+00> : vector<64x1xf32>
    %90 = tpu.matmul %88, %89, %cst_64 {dimension_numbers = #tpu.dot_dimension_numbers<[1], [0], [0], [1], [0, 0, 1, 1], [], []>} : vector<64x8xf32>, vector<8x1xf32>, vector<64x1xf32> -> vector<64x1xf32>
    %c0_65 = arith.constant 0 : index
    %c0_66 = arith.constant 0 : index
    %91 = vector.load %arg15[%c0_65, %c0_66] : memref<1x1xf32, #tpu.memory_space<vmem>>, vector<1x1xf32>
    %92 = vector.broadcast %91 : vector<1x1xf32> to vector<64x1xf32>
    %93 = arith.addf %90, %92 : vector<64x1xf32>
    %c0_67 = arith.constant 0 : index
    %c0_68 = arith.constant 0 : index
    %94 = vector.load %arg3[%c0_67, %c0_68] : memref<96x1xf32, #tpu.memory_space<vmem>>, vector<96x1xf32>
    %c0_69 = arith.constant 0 : index
    %c0_70 = arith.constant 0 : index
    %95 = vector.load %arg16[%c0_69, %c0_70] : memref<1x96xf32, #tpu.memory_space<vmem>>, vector<1x96xf32>
    %c0_71 = arith.constant 0 : index
    %c0_72 = arith.constant 0 : index
    %96 = vector.load %arg17[%c0_71, %c0_72] : memref<1x96xf32, #tpu.memory_space<vmem>>, vector<1x96xf32>
    %c0_73 = arith.constant 0 : index
    %c0_74 = arith.constant 0 : index
    %97 = vector.load %arg18[%c0_73, %c0_74] : memref<1x1xf32, #tpu.memory_space<vmem>>, vector<1x1xf32>
    %98 = vector.extract_strided_slice %93 {offsets = [0, 0], sizes = [32, 1], strides = [1, 1]} : vector<64x1xf32> to vector<32x1xf32>
    %99 = tpu.concatenate %98, %98, %98 in 0 : vector<32x1xf32>, vector<32x1xf32>, vector<32x1xf32> -> vector<96x1xf32>
    %100 = arith.mulf %94, %99 : vector<96x1xf32>
    %101 = math.cos %100 : vector<96x1xf32>
    %cst_75 = arith.constant dense<0.000000e+00> : vector<1x1xf32>
    %102 = tpu.matmul %95, %101, %cst_75 {dimension_numbers = #tpu.dot_dimension_numbers<[1], [0], [0], [1], [0, 0, 1, 1], [], []>} : vector<1x96xf32>, vector<96x1xf32>, vector<1x1xf32> -> vector<1x1xf32>
    %103 = math.sin %100 : vector<96x1xf32>
    %cst_76 = arith.constant dense<0.000000e+00> : vector<1x1xf32>
    %104 = tpu.matmul %96, %103, %cst_76 {dimension_numbers = #tpu.dot_dimension_numbers<[1], [0], [0], [1], [0, 0, 1, 1], [], []>} : vector<1x96xf32>, vector<96x1xf32>, vector<1x1xf32> -> vector<1x1xf32>
    %105 = arith.addf %102, %104 : vector<1x1xf32>
    %106 = arith.addf %105, %97 : vector<1x1xf32>
    %c0_77 = arith.constant 0 : index
    %c0_78 = arith.constant 0 : index
    %c0_79 = arith.constant 0 : index
    %107 = vector.load %arg19[%c0_77, %c0_78, %c0_79] : memref<2x1x1xf32, #tpu.memory_space<vmem>>, vector<1x1x1xf32>
    %108 = vector.shape_cast %107 : vector<1x1x1xf32> to vector<1x1xf32>
    %109 = vector.shape_cast %106 : vector<1x1xf32> to vector<1x1x1xf32>
    tpu.vector_store %arg19[%c0_77, %c0_78, %c0_79], %109 {strides = array<i32>} : memref<2x1x1xf32, #tpu.memory_space<vmem>>, vector<1x1x1xf32>,
    %110 = vector.extract_strided_slice %93 {offsets = [32, 0], sizes = [32, 1], strides = [1, 1]} : vector<64x1xf32> to vector<32x1xf32>
    %111 = tpu.concatenate %110, %110, %110 in 0 : vector<32x1xf32>, vector<32x1xf32>, vector<32x1xf32> -> vector<96x1xf32>
    %112 = arith.mulf %94, %111 : vector<96x1xf32>
    %113 = math.cos %112 : vector<96x1xf32>
    %cst_80 = arith.constant dense<0.000000e+00> : vector<1x1xf32>
    %114 = tpu.matmul %95, %113, %cst_80 {dimension_numbers = #tpu.dot_dimension_numbers<[1], [0], [0], [1], [0, 0, 1, 1], [], []>} : vector<1x96xf32>, vector<96x1xf32>, vector<1x1xf32> -> vector<1x1xf32>
    %115 = math.sin %112 : vector<96x1xf32>
    %cst_81 = arith.constant dense<0.000000e+00> : vector<1x1xf32>
    %116 = tpu.matmul %96, %115, %cst_81 {dimension_numbers = #tpu.dot_dimension_numbers<[1], [0], [0], [1], [0, 0, 1, 1], [], []>} : vector<1x96xf32>, vector<96x1xf32>, vector<1x1xf32> -> vector<1x1xf32>
    %117 = arith.addf %114, %116 : vector<1x1xf32>
    %118 = arith.addf %117, %97 : vector<1x1xf32>
    %c1_82 = arith.constant 1 : index
    %c0_83 = arith.constant 0 : index
    %c0_84 = arith.constant 0 : index
    %119 = vector.load %arg19[%c1_82, %c0_83, %c0_84] : memref<2x1x1xf32, #tpu.memory_space<vmem>>, vector<1x1x1xf32>
    %120 = vector.shape_cast %119 : vector<1x1x1xf32> to vector<1x1xf32>
    %121 = vector.shape_cast %118 : vector<1x1xf32> to vector<1x1x1xf32>
    tpu.vector_store %arg19[%c1_82, %c0_83, %c0_84], %121 {strides = array<i32>} : memref<2x1x1xf32, #tpu.memory_space<vmem>>, vector<1x1x1xf32>,
    return
  }
  func.func @transform_0(%arg0: i32) -> (i32, i32) {
    %c0_i32 = arith.constant 0 : i32
    %c0_i32_0 = arith.constant 0 : i32
    %c0_i32_1 = arith.constant 0 : i32
    return %c0_i32, %c0_i32_0 : i32, i32
  }
  func.func @transform_1(%arg0: i32) -> (i32, i32) {
    %c0_i32 = arith.constant 0 : i32
    %c0_i32_0 = arith.constant 0 : i32
    %c0_i32_1 = arith.constant 0 : i32
    return %c0_i32, %c0_i32_0 : i32, i32
  }
  func.func @transform_2(%arg0: i32) -> (i32, i32) {
    %c0_i32 = arith.constant 0 : i32
    %c0_i32_0 = arith.constant 0 : i32
    %c0_i32_1 = arith.constant 0 : i32
    return %c0_i32, %c0_i32_0 : i32, i32
  }
  func.func @transform_3(%arg0: i32) -> (i32, i32, i32) {
    %c0_i32 = arith.constant 0 : i32
    %c0_i32_0 = arith.constant 0 : i32
    %c0_i32_1 = arith.constant 0 : i32
    %c0_i32_2 = arith.constant 0 : i32
    return %c0_i32, %c0_i32_0, %c0_i32_1 : i32, i32, i32
  }
  func.func @transform_4(%arg0: i32) -> (i32, i32) {
    %c0_i32 = arith.constant 0 : i32
    %c0_i32_0 = arith.constant 0 : i32
    %c0_i32_1 = arith.constant 0 : i32
    return %c0_i32, %c0_i32_0 : i32, i32
  }
  func.func @transform_5(%arg0: i32) -> (i32, i32, i32) {
    %c0_i32 = arith.constant 0 : i32
    %c0_i32_0 = arith.constant 0 : i32
    %c0_i32_1 = arith.constant 0 : i32
    %c0_i32_2 = arith.constant 0 : i32
    return %c0_i32, %c0_i32_0, %c0_i32_1 : i32, i32, i32
  }
  func.func @transform_6(%arg0: i32) -> (i32, i32) {
    %c0_i32 = arith.constant 0 : i32
    %c0_i32_0 = arith.constant 0 : i32
    %c0_i32_1 = arith.constant 0 : i32
    return %c0_i32, %c0_i32_0 : i32, i32
  }
  func.func @transform_7(%arg0: i32) -> (i32, i32) {
    %c0_i32 = arith.constant 0 : i32
    %c0_i32_0 = arith.constant 0 : i32
    %c0_i32_1 = arith.constant 0 : i32
    return %c0_i32, %c0_i32_0 : i32, i32
  }
  func.func @transform_8(%arg0: i32) -> (i32, i32) {
    %c0_i32 = arith.constant 0 : i32
    %c0_i32_0 = arith.constant 0 : i32
    %c0_i32_1 = arith.constant 0 : i32
    return %c0_i32, %c0_i32_0 : i32, i32
  }
  func.func @transform_9(%arg0: i32) -> (i32, i32, i32) {
    %c0_i32 = arith.constant 0 : i32
    %c0_i32_0 = arith.constant 0 : i32
    %c0_i32_1 = arith.constant 0 : i32
    %c0_i32_2 = arith.constant 0 : i32
    return %c0_i32, %c0_i32_0, %c0_i32_1 : i32, i32, i32
  }
  func.func @transform_10(%arg0: i32) -> (i32, i32) {
    %c0_i32 = arith.constant 0 : i32
    %c0_i32_0 = arith.constant 0 : i32
    %c0_i32_1 = arith.constant 0 : i32
    return %c0_i32, %c0_i32_0 : i32, i32
  }
  func.func @transform_11(%arg0: i32) -> (i32, i32, i32) {
    %c0_i32 = arith.constant 0 : i32
    %c0_i32_0 = arith.constant 0 : i32
    %c0_i32_1 = arith.constant 0 : i32
    %c0_i32_2 = arith.constant 0 : i32
    return %c0_i32, %c0_i32_0, %c0_i32_1 : i32, i32, i32
  }
  func.func @transform_12(%arg0: i32) -> (i32, i32) {
    %c0_i32 = arith.constant 0 : i32
    %c0_i32_0 = arith.constant 0 : i32
    %c0_i32_1 = arith.constant 0 : i32
    return %c0_i32, %c0_i32_0 : i32, i32
  }
  func.func @transform_13(%arg0: i32) -> (i32, i32) {
    %c0_i32 = arith.constant 0 : i32
    %c0_i32_0 = arith.constant 0 : i32
    %c0_i32_1 = arith.constant 0 : i32
    return %c0_i32, %c0_i32_0 : i32, i32
  }
  func.func @transform_14(%arg0: i32) -> (i32, i32) {
    %c0_i32 = arith.constant 0 : i32
    %c0_i32_0 = arith.constant 0 : i32
    %c0_i32_1 = arith.constant 0 : i32
    return %c0_i32, %c0_i32_0 : i32, i32
  }
  func.func @transform_15(%arg0: i32) -> (i32, i32) {
    %c0_i32 = arith.constant 0 : i32
    %c0_i32_0 = arith.constant 0 : i32
    %c0_i32_1 = arith.constant 0 : i32
    return %c0_i32, %c0_i32_0 : i32, i32
  }
  func.func @transform_16(%arg0: i32) -> (i32, i32) {
    %c0_i32 = arith.constant 0 : i32
    %c0_i32_0 = arith.constant 0 : i32
    %c0_i32_1 = arith.constant 0 : i32
    return %c0_i32, %c0_i32_0 : i32, i32
  }
  func.func @transform_17(%arg0: i32) -> (i32, i32) {
    %c0_i32 = arith.constant 0 : i32
    %c0_i32_0 = arith.constant 0 : i32
    %c0_i32_1 = arith.constant 0 : i32
    return %c0_i32, %c0_i32_0 : i32, i32
  }
  func.func @transform_18(%arg0: i32) -> (i32, i32, i32) {
    %c0_i32 = arith.constant 0 : i32
    %c0_i32_0 = arith.constant 0 : i32
    %c0_i32_1 = arith.constant 0 : i32
    %c0_i32_2 = arith.constant 0 : i32
    return %c0_i32, %c0_i32_0, %c0_i32_1 : i32, i32, i32
  }
}

</mosaic_0001>

<llo_original>
// kernel: tpu_custom_call.1
$region0: #{tpu_custom_call.1}
  #allocation0 [shape = 'u32[]', space=smem, size = 0x4, offset = 0x4, fixed_abs, tag = 'smem constant byte address 0x4 - core index']
  #allocation1 [shape = 'u32[72,128]{1,0:T(1,128)}', space=vmem, size = 0x9000, scoped, tag = 'internal scratch']
  #allocation2 [shape = 'f32[1,1]{1,0:T(1,128)S(1)}', space=vmem, size = 0x200, scoped, tag = 'scoped memory for tpu_custom_call.1']
  #allocation3 [shape = 'f32[1,1]{1,0:T(1,128)S(1)}', space=vmem, size = 0x200, scoped, tag = 'scoped memory for tpu_custom_call.1']
  %s0 = inlined_call_operand.vmem [shape: f32[64,4], index: 0, kind: input, shape index: {}]
  %s1 = inlined_call_operand.vmem [shape: s32[64,1], index: 1, kind: input, shape index: {}]
  %s2 = inlined_call_operand.vmem [shape: f32[96,1], index: 2, kind: input, shape index: {}]
  %s3 = inlined_call_operand.vmem [shape: f32[2,4,8], index: 3, kind: input, shape index: {}]
  %s4 = inlined_call_operand.vmem [shape: f32[1,8], index: 4, kind: input, shape index: {}]
  %s5 = inlined_call_operand.vmem [shape: f32[2,8,8], index: 5, kind: input, shape index: {}]
  %s6 = inlined_call_operand.vmem [shape: f32[1,8], index: 6, kind: input, shape index: {}]
  %s7 = inlined_call_operand.vmem [shape: f32[4,8], index: 7, kind: input, shape index: {}]
  %s8 = inlined_call_operand.vmem [shape: f32[1,8], index: 8, kind: input, shape index: {}]
  %s9 = inlined_call_operand.vmem [shape: f32[2,8,8], index: 9, kind: input, shape index: {}]
  %s10 = inlined_call_operand.vmem [shape: f32[1,8], index: 10, kind: input, shape index: {}]
  %s11 = inlined_call_operand.vmem [shape: f32[2,8,8], index: 11, kind: input, shape index: {}]
  %s12 = inlined_call_operand.vmem [shape: f32[1,8], index: 12, kind: input, shape index: {}]
  %s13 = inlined_call_operand.vmem [shape: f32[8,1], index: 13, kind: input, shape index: {}]
  %s14 = inlined_call_operand.<no memory space> [shape: f32[1,1], index: 14, kind: input, shape index: {}]
  %s15 = inlined_call_operand.vmem [shape: f32[1,96], index: 15, kind: input, shape index: {}]
  %s16 = inlined_call_operand.vmem [shape: f32[1,96], index: 16, kind: input, shape index: {}]
  %s17 = inlined_call_operand.<no memory space> [shape: f32[1,1], index: 17, kind: input, shape index: {}]
  %s18 = inlined_call_operand.vmem [shape: f32[2,1,1], index: 18, kind: output, shape index: {}]
  %s19 = sld [smem:[#allocation0]]
  $region82: #{tpu_custom_call.1} parent=0
    _
  %s21 = ssub.s32 1, %s19
  %s22 = scalar_select 0, %s21, %s19
  %v23 = vstv %s14
  %24 = vst [vmem:[#allocation2] sm:$0x1] %v23
  %v25 = vstv %s17
  %26 = vst [vmem:[#allocation3] sm:$0x1] %v25
  // Predicated region
  $region2: #{tpu_custom_call.1} parent=0 // pred_check
    _
  $region3: #{tpu_custom_call.1} parent=0 // pred_check_branch
    %28 = sbr.rel (0) target = $region5
  $region4: #{tpu_custom_call.1} parent=0 // pred_region
    _
  $region5: #{tpu_custom_call.1} parent=0 // pred_fallthru
    _
  // Predicated region
  $region6: #{tpu_custom_call.1} parent=0 // pred_check
    _
  $region7: #{tpu_custom_call.1} parent=0 // pred_check_branch
    %30 = sbr.rel (0) target = $region9
  $region8: #{tpu_custom_call.1} parent=0 // pred_region
    _
  $region9: #{tpu_custom_call.1} parent=0 // pred_fallthru
    _
  // Predicated region
  $region10: #{tpu_custom_call.1} parent=0 // pred_check
    _
  $region11: #{tpu_custom_call.1} parent=0 // pred_check_branch
    %32 = sbr.rel (0) target = $region13
  $region12: #{tpu_custom_call.1} parent=0 // pred_region
    _
  $region13: #{tpu_custom_call.1} parent=0 // pred_fallthru
    _
  // Predicated region
  $region14: #{tpu_custom_call.1} parent=0 // pred_check
    _
  $region15: #{tpu_custom_call.1} parent=0 // pred_check_branch
    %34 = sbr.rel (0) target = $region17
  $region16: #{tpu_custom_call.1} parent=0 // pred_region
    _
  $region17: #{tpu_custom_call.1} parent=0 // pred_fallthru
    _
  // Predicated region
  $region18: #{tpu_custom_call.1} parent=0 // pred_check
    _
  $region19: #{tpu_custom_call.1} parent=0 // pred_check_branch
    %36 = sbr.rel (0) target = $region21
  $region20: #{tpu_custom_call.1} parent=0 // pred_region
    _
  $region21: #{tpu_custom_call.1} parent=0 // pred_fallthru
    _
  // Predicated region
  $region22: #{tpu_custom_call.1} parent=0 // pred_check
    _
  $region23: #{tpu_custom_call.1} parent=0 // pred_check_branch
    %38 = sbr.rel (0) target = $region25
  $region24: #{tpu_custom_call.1} parent=0 // pred_region
    _
  $region25: #{tpu_custom_call.1} parent=0 // pred_fallthru
    _
  // Predicated region
  $region26: #{tpu_custom_call.1} parent=0 // pred_check
    _
  $region27: #{tpu_custom_call.1} parent=0 // pred_check_branch
    %40 = sbr.rel (0) target = $region29
  $region28: #{tpu_custom_call.1} parent=0 // pred_region
    _
  $region29: #{tpu_custom_call.1} parent=0 // pred_fallthru
    _
  // Predicated region
  $region30: #{tpu_custom_call.1} parent=0 // pred_check
    _
  $region31: #{tpu_custom_call.1} parent=0 // pred_check_branch
    %42 = sbr.rel (0) target = $region33
  $region32: #{tpu_custom_call.1} parent=0 // pred_region
    _
  $region33: #{tpu_custom_call.1} parent=0 // pred_fallthru
    _
  // Predicated region
  $region34: #{tpu_custom_call.1} parent=0 // pred_check
    _
  $region35: #{tpu_custom_call.1} parent=0 // pred_check_branch
    %44 = sbr.rel (0) target = $region37
  $region36: #{tpu_custom_call.1} parent=0 // pred_region
    _
  $region37: #{tpu_custom_call.1} parent=0 // pred_fallthru
    _
  // Predicated region
  $region38: #{tpu_custom_call.1} parent=0 // pred_check
    _
  $region39: #{tpu_custom_call.1} parent=0 // pred_check_branch
    %46 = sbr.rel (0) target = $region41
  $region40: #{tpu_custom_call.1} parent=0 // pred_region
    _
  $region41: #{tpu_custom_call.1} parent=0 // pred_fallthru
    _
  // Predicated region
  $region42: #{tpu_custom_call.1} parent=0 // pred_check
    _
  $region43: #{tpu_custom_call.1} parent=0 // pred_check_branch
    %48 = sbr.rel (0) target = $region45
  $region44: #{tpu_custom_call.1} parent=0 // pred_region
    _
  $region45: #{tpu_custom_call.1} parent=0 // pred_fallthru
    _
  // Predicated region
  $region46: #{tpu_custom_call.1} parent=0 // pred_check
    _
  $region47: #{tpu_custom_call.1} parent=0 // pred_check_branch
    %50 = sbr.rel (0) target = $region49
  $region48: #{tpu_custom_call.1} parent=0 // pred_region
    _
  $region49: #{tpu_custom_call.1} parent=0 // pred_fallthru
    _
  // Predicated region
  $region50: #{tpu_custom_call.1} parent=0 // pred_check
    _
  $region51: #{tpu_custom_call.1} parent=0 // pred_check_branch
    %52 = sbr.rel (0) target = $region53
  $region52: #{tpu_custom_call.1} parent=0 // pred_region
    _
  $region53: #{tpu_custom_call.1} parent=0 // pred_fallthru
    _
  // Predicated region
  $region54: #{tpu_custom_call.1} parent=0 // pred_check
    _
  $region55: #{tpu_custom_call.1} parent=0 // pred_check_branch
    %54 = sbr.rel (0) target = $region57
  $region56: #{tpu_custom_call.1} parent=0 // pred_region
    _
  $region57: #{tpu_custom_call.1} parent=0 // pred_fallthru
    _
  // Predicated region
  $region58: #{tpu_custom_call.1} parent=0 // pred_check
    _
  $region59: #{tpu_custom_call.1} parent=0 // pred_check_branch
    %56 = sbr.rel (0) target = $region61
  $region60: #{tpu_custom_call.1} parent=0 // pred_region
    _
  $region61: #{tpu_custom_call.1} parent=0 // pred_fallthru
    _
  // Predicated region
  $region62: #{tpu_custom_call.1} parent=0 // pred_check
    _
  $region63: #{tpu_custom_call.1} parent=0 // pred_check_branch
    %58 = sbr.rel (0) target = $region65
  $region64: #{tpu_custom_call.1} parent=0 // pred_region
    _
  $region65: #{tpu_custom_call.1} parent=0 // pred_fallthru
    _
  // Predicated region
  $region66: #{tpu_custom_call.1} parent=0 // pred_check
    _
  $region67: #{tpu_custom_call.1} parent=0 // pred_check_branch
    %60 = sbr.rel (0) target = $region69
  $region68: #{tpu_custom_call.1} parent=0 // pred_region
    _
  $region69: #{tpu_custom_call.1} parent=0 // pred_fallthru
    _
  // Predicated region
  $region70: #{tpu_custom_call.1} parent=0 // pred_check
    _
  $region71: #{tpu_custom_call.1} parent=0 // pred_check_branch
    %62 = sbr.rel (0) target = $region73
  $region72: #{tpu_custom_call.1} parent=0 // pred_region
    _
  $region73: #{tpu_custom_call.1} parent=0 // pred_fallthru
    _
  %v63 = vld [vmem:[%s1] sm:$0xff]
  %v64 = vld [vmem:[%s1 + $0x8] sm:$0xff]
  %v65 = vld [vmem:[%s1 + $0x10] sm:$0xff]
  %v66 = vld [vmem:[%s1 + $0x18] sm:$0xff]
  %v67 = vld [vmem:[%s1 + $0x20] sm:$0xff]
  %v68 = vld [vmem:[%s1 + $0x28] sm:$0xff]
  %v69 = vld [vmem:[%s1 + $0x30] sm:$0xff]
  %v70 = vld [vmem:[%s1 + $0x38] sm:$0xff]
  %v71 = vld [vmem:[%s0] sm:$0xff]
  %v72 = vld [vmem:[%s0 + $0x8] sm:$0xff]
  %v73 = vld [vmem:[%s0 + $0x10] sm:$0xff]
  %v74 = vld [vmem:[%s0 + $0x18] sm:$0xff]
  %v75 = vld [vmem:[%s0 + $0x20] sm:$0xff]
  %v76 = vld [vmem:[%s0 + $0x28] sm:$0xff]
  %v77 = vld [vmem:[%s0 + $0x30] sm:$0xff]
  %v78 = vld [vmem:[%s0 + $0x38] sm:$0xff]
  %v79 = vrot.slane %v71, 7
  %v80 = vrot.slane %v72, 7
  %v81 = vrot.slane %v73, 7
  %v82 = vrot.slane %v74, 7
  %v83 = vrot.slane %v75, 7
  %v84 = vrot.slane %v76, 7
  %v85 = vrot.slane %v77, 7
  %v86 = vrot.slane %v78, 7
  %v87 = vlaneseq
  %v88 = vshrl.u32 %v87, 7
  %vm89 = vcmp.lt.s32.totalorder %v88, 1
  %v90 = vsel %vm89, %v85, %v86
  %v91 = vsel %vm89, %v84, %v85
  %v92 = vsel %vm89, %v83, %v84
  %v93 = vsel %vm89, %v82, %v83
  %v94 = vsel %vm89, %v81, %v82
  %v95 = vsel %vm89, %v80, %v81
  %v96 = vsel %vm89, %v79, %v80
  %v97 = vsel %vm89, %v86, %v79
  %vm98 = vcmp.ge.s32.totalorder %v63, 1
  %vm99 = vcmp.ge.s32.totalorder %v64, 1
  %vm100 = vcmp.ge.s32.totalorder %v65, 1
  %vm101 = vcmp.ge.s32.totalorder %v66, 1
  %vm102 = vcmp.ge.s32.totalorder %v67, 1
  %vm103 = vcmp.ge.s32.totalorder %v68, 1
  %vm104 = vcmp.ge.s32.totalorder %v69, 1
  %vm105 = vcmp.ge.s32.totalorder %v70, 1
  %v106 = vsel %vm98, 1, 0
  %v107 = vsel %vm99, 1, 0
  %v108 = vsel %vm100, 1, 0
  %v109 = vsel %vm101, 1, 0
  %v110 = vsel %vm102, 1, 0
  %v111 = vsel %vm103, 1, 0
  %v112 = vsel %vm104, 1, 0
  %v113 = vsel %vm105, 1, 0
  %114 = vset.pattern.permute.xlu0 0
  %115 = vperm.xlu0 %114, %v106
  %v116 = vpop.permute.xlu0 %115
  %117 = vset.pattern.permute.xlu0 0
  %118 = vperm.xlu0 %117, %v107
  %v119 = vpop.permute.xlu0 %118
  %120 = vset.pattern.permute.xlu0 0
  %121 = vperm.xlu0 %120, %v108
  %v122 = vpop.permute.xlu0 %121
  %123 = vset.pattern.permute.xlu0 0
  %124 = vperm.xlu0 %123, %v109
  %v125 = vpop.permute.xlu0 %124
  %126 = vset.pattern.permute.xlu0 0
  %127 = vperm.xlu0 %126, %v110
  %v128 = vpop.permute.xlu0 %127
  %129 = vset.pattern.permute.xlu0 0
  %130 = vperm.xlu0 %129, %v111
  %v131 = vpop.permute.xlu0 %130
  %132 = vset.pattern.permute.xlu0 0
  %133 = vperm.xlu0 %132, %v112
  %v134 = vpop.permute.xlu0 %133
  %135 = vset.pattern.permute.xlu0 0
  %136 = vperm.xlu0 %135, %v113
  %v137 = vpop.permute.xlu0 %136
  %vm138 = vcmp.eq.s32.totalorder %v116, 1
  %vm139 = vcmp.eq.s32.totalorder %v119, 1
  %vm140 = vcmp.eq.s32.totalorder %v122, 1
  %vm141 = vcmp.eq.s32.totalorder %v125, 1
  %vm142 = vcmp.eq.s32.totalorder %v128, 1
  %vm143 = vcmp.eq.s32.totalorder %v131, 1
  %vm144 = vcmp.eq.s32.totalorder %v134, 1
  %vm145 = vcmp.eq.s32.totalorder %v137, 1
  %v146 = vsel %vm138, %v97, 0.0
  %v147 = vsel %vm139, %v96, 0.0
  %v148 = vsel %vm140, %v95, 0.0
  %v149 = vsel %vm141, %v94, 0.0
  %v150 = vsel %vm142, %v93, 0.0
  %v151 = vsel %vm143, %v92, 0.0
  %v152 = vsel %vm144, %v91, 0.0
  %v153 = vsel %vm145, %v90, 0.0
  %v154 = vld [vmem:[%s3] sm:$0xf]
  %s155 = scalar_lea.vmem %s3, 4
  %v156 = vld [vmem:[%s155] sm:$0xf]
  %vm157 = vcmask 31744
  %v159 = vsel %vm157, %v71, 0
  %v162 = vsel %vm157, %v72, 0
  %v165 = vsel %vm157, %v73, 0
  %v168 = vsel %vm157, %v74, 0
  %v171 = vsel %vm157, %v75, 0
  %v174 = vsel %vm157, %v76, 0
  %v177 = vsel %vm157, %v77, 0
  %v180 = vsel %vm157, %v78, 0
  %vm182 = vcmask 1043456
  %v184 = vsel %vm182, %v156, 0
  %186 = vmatpush.msra.mxu0 0.0
  %187 = vmatpush.msra.mxu0 0.0
  %188 = vmatpush.msra.mxu0 0.0
  %189 = vmatpush.msra.mxu0 0.0
  %190 = vmatpush.msra.mxu0 0.0
  %191 = vmatpush.msra.mxu0 0.0
  %192 = vmatpush.msra.mxu0 0.0
  %193 = vmatpush.msra.mxu0 0.0
  %194 = vmatpush.msra.mxu0 0.0
  %195 = vmatpush.msra.mxu0 0.0
  %196 = vmatpush.msra.mxu0 0.0
  %197 = vmatpush.msra.mxu0 0.0
  %198 = vmatpush.msra.mxu0 0.0
  %199 = vmatpush.msra.mxu0 0.0
  %200 = vmatpush.msra.mxu0 0.0
  %201 = vmatpush.msra.mxu0 %v184
  %202 = vmatmul.f32.gmra.mxu0 %v159
  %v203 = vpop.f32.mrf.mxu0
  %v204 = vadd.f32 0.0, %v203
  %205 = vmatmul.f32.gmra.mxu0 %v162
  %v206 = vpop.f32.mrf.mxu0
  %v207 = vadd.f32 0.0, %v206
  %208 = vmatmul.f32.gmra.mxu0 %v165
  %v209 = vpop.f32.mrf.mxu0
  %v210 = vadd.f32 0.0, %v209
  %211 = vmatmul.f32.gmra.mxu0 %v168
  %v212 = vpop.f32.mrf.mxu0
  %v213 = vadd.f32 0.0, %v212
  %214 = vmatmul.f32.gmra.mxu0 %v171
  %v215 = vpop.f32.mrf.mxu0
  %v216 = vadd.f32 0.0, %v215
  %217 = vmatmul.f32.gmra.mxu0 %v174
  %v218 = vpop.f32.mrf.mxu0
  %v219 = vadd.f32 0.0, %v218
  %220 = vmatmul.f32.gmra.mxu0 %v177
  %v221 = vpop.f32.mrf.mxu0
  %v222 = vadd.f32 0.0, %v221
  %223 = vmatmul.f32.gmra.mxu0 %v180
  %v224 = vpop.f32.mrf.mxu0
  %v225 = vadd.f32 0.0, %v224
  %226 = vdwg.mxu0
  %v228 = vsel %vm157, %v146, 0
  %v231 = vsel %vm157, %v147, 0
  %v234 = vsel %vm157, %v148, 0
  %v237 = vsel %vm157, %v149, 0
  %v240 = vsel %vm157, %v150, 0
  %v243 = vsel %vm157, %v151, 0
  %v246 = vsel %vm157, %v152, 0
  %v249 = vsel %vm157, %v153, 0
  %v252 = vsel %vm182, %v154, 0
  %254 = vmatpush.msra.mxu0 0.0
  %255 = vmatpush.msra.mxu0 0.0
  %256 = vmatpush.msra.mxu0 0.0
  %257 = vmatpush.msra.mxu0 0.0
  %258 = vmatpush.msra.mxu0 0.0
  %259 = vmatpush.msra.mxu0 0.0
  %260 = vmatpush.msra.mxu0 0.0
  %261 = vmatpush.msra.mxu0 0.0
  %262 = vmatpush.msra.mxu0 0.0
  %263 = vmatpush.msra.mxu0 0.0
  %264 = vmatpush.msra.mxu0 0.0
  %265 = vmatpush.msra.mxu0 0.0
  %266 = vmatpush.msra.mxu0 0.0
  %267 = vmatpush.msra.mxu0 0.0
  %268 = vmatpush.msra.mxu0 0.0
  %269 = vmatpush.msra.mxu0 %v252
  %270 = vmatmul.f32.gmra.mxu0 %v228
  %v271 = vpop.f32.mrf.mxu0
  %v272 = vadd.f32 %v204, %v271
  %273 = vmatmul.f32.gmra.mxu0 %v231
  %v274 = vpop.f32.mrf.mxu0
  %v275 = vadd.f32 %v207, %v274
  %276 = vmatmul.f32.gmra.mxu0 %v234
  %v277 = vpop.f32.mrf.mxu0
  %v278 = vadd.f32 %v210, %v277
  %279 = vmatmul.f32.gmra.mxu0 %v237
  %v280 = vpop.f32.mrf.mxu0
  %v281 = vadd.f32 %v213, %v280
  %282 = vmatmul.f32.gmra.mxu0 %v240
  %v283 = vpop.f32.mrf.mxu0
  %v284 = vadd.f32 %v216, %v283
  %285 = vmatmul.f32.gmra.mxu0 %v243
  %v286 = vpop.f32.mrf.mxu0
  %v287 = vadd.f32 %v219, %v286
  %288 = vmatmul.f32.gmra.mxu0 %v246
  %v289 = vpop.f32.mrf.mxu0
  %v290 = vadd.f32 %v222, %v289
  %291 = vmatmul.f32.gmra.mxu0 %v249
  %v292 = vpop.f32.mrf.mxu0
  %v293 = vadd.f32 %v225, %v292
  %294 = vdwg.mxu0
  %v295 = vld [vmem:[%s4] sm:$0x1]
  %v297 = vperm.slane %v295, 0
  %v299 = vadd.f32 %v272, %v297
  %v300 = vadd.f32 %v275, %v297
  %v301 = vadd.f32 %v278, %v297
  %v302 = vadd.f32 %v281, %v297
  %v303 = vadd.f32 %v284, %v297
  %v304 = vadd.f32 %v287, %v297
  %v305 = vadd.f32 %v290, %v297
  %v306 = vadd.f32 %v293, %v297
  %v307 = vmax.f32 %v299, 0.0
  %v308 = vmax.f32 %v300, 0.0
  %v309 = vmax.f32 %v301, 0.0
  %v310 = vmax.f32 %v302, 0.0
  %v311 = vmax.f32 %v303, 0.0
  %v312 = vmax.f32 %v304, 0.0
  %v313 = vmax.f32 %v305, 0.0
  %v314 = vmax.f32 %v306, 0.0
  %v315 = vrot.slane %v307, 7
  %v316 = vrot.slane %v308, 7
  %v317 = vrot.slane %v309, 7
  %v318 = vrot.slane %v310, 7
  %v319 = vrot.slane %v311, 7
  %v320 = vrot.slane %v312, 7
  %v321 = vrot.slane %v313, 7
  %v322 = vrot.slane %v314, 7
  %v323 = vsel %vm89, %v321, %v322
  %v324 = vsel %vm89, %v320, %v321
  %v325 = vsel %vm89, %v319, %v320
  %v326 = vsel %vm89, %v318, %v319
  %v327 = vsel %vm89, %v317, %v318
  %v328 = vsel %vm89, %v316, %v317
  %v329 = vsel %vm89, %v315, %v316
  %v330 = vsel %vm89, %v322, %v315
  %v331 = vsel %vm138, %v330, 0.0
  %v332 = vsel %vm139, %v329, 0.0
  %v333 = vsel %vm140, %v328, 0.0
  %v334 = vsel %vm141, %v327, 0.0
  %v335 = vsel %vm142, %v326, 0.0
  %v336 = vsel %vm143, %v325, 0.0
  %v337 = vsel %vm144, %v324, 0.0
  %v338 = vsel %vm145, %v323, 0.0
  %v339 = vld [vmem:[%s5] sm:$0xff]
  %s340 = scalar_lea.vmem %s5, 8
  %v341 = vld [vmem:[%s340] sm:$0xff]
  %vm342 = vcmask 64512
  %v344 = vsel %vm342, %v307, 0
  %v347 = vsel %vm342, %v308, 0
  %v350 = vsel %vm342, %v309, 0
  %v353 = vsel %vm342, %v310, 0
  %v356 = vsel %vm342, %v311, 0
  %v359 = vsel %vm342, %v312, 0
  %v362 = vsel %vm342, %v313, 0
  %v365 = vsel %vm342, %v314, 0
  %367 = vmatpush.msra.mxu0 0.0
  %368 = vmatpush.msra.mxu0 0.0
  %369 = vmatpush.msra.mxu0 0.0
  %370 = vmatpush.msra.mxu0 0.0
  %371 = vmatpush.msra.mxu0 0.0
  %372 = vmatpush.msra.mxu0 0.0
  %373 = vmatpush.msra.mxu0 0.0
  %374 = vmatpush.msra.mxu0 0.0
  %375 = vmatpush.msra.mxu0 0.0
  %376 = vmatpush.msra.mxu0 0.0
  %377 = vmatpush.msra.mxu0 0.0
  %378 = vmatpush.msra.mxu0 0.0
  %379 = vmatpush.msra.mxu0 0.0
  %380 = vmatpush.msra.mxu0 0.0
  %381 = vmatpush.msra.mxu0 0.0
  %382 = vmatpush.msra.mxu0 %v341
  %383 = vmatmul.f32.gmra.mxu0 %v344
  %v384 = vpop.f32.mrf.mxu0
  %v385 = vadd.f32 0.0, %v384
  %386 = vmatmul.f32.gmra.mxu0 %v347
  %v387 = vpop.f32.mrf.mxu0
  %v388 = vadd.f32 0.0, %v387
  %389 = vmatmul.f32.gmra.mxu0 %v350
  %v390 = vpop.f32.mrf.mxu0
  %v391 = vadd.f32 0.0, %v390
  %392 = vmatmul.f32.gmra.mxu0 %v353
  %v393 = vpop.f32.mrf.mxu0
  %v394 = vadd.f32 0.0, %v393
  %395 = vmatmul.f32.gmra.mxu0 %v356
  %v396 = vpop.f32.mrf.mxu0
  %v397 = vadd.f32 0.0, %v396
  %398 = vmatmul.f32.gmra.mxu0 %v359
  %v399 = vpop.f32.mrf.mxu0
  %v400 = vadd.f32 0.0, %v399
  %401 = vmatmul.f32.gmra.mxu0 %v362
  %v402 = vpop.f32.mrf.mxu0
  %v403 = vadd.f32 0.0, %v402
  %404 = vmatmul.f32.gmra.mxu0 %v365
  %v405 = vpop.f32.mrf.mxu0
  %v406 = vadd.f32 0.0, %v405
  %407 = vdwg.mxu0
  %v409 = vsel %vm342, %v331, 0
  %v412 = vsel %vm342, %v332, 0
  %v415 = vsel %vm342, %v333, 0
  %v418 = vsel %vm342, %v334, 0
  %v421 = vsel %vm342, %v335, 0
  %v424 = vsel %vm342, %v336, 0
  %v427 = vsel %vm342, %v337, 0
  %v430 = vsel %vm342, %v338, 0
  %432 = vmatpush.msra.mxu0 0.0
  %433 = vmatpush.msra.mxu0 0.0
  %434 = vmatpush.msra.mxu0 0.0
  %435 = vmatpush.msra.mxu0 0.0
  %436 = vmatpush.msra.mxu0 0.0
  %437 = vmatpush.msra.mxu0 0.0
  %438 = vmatpush.msra.mxu0 0.0
  %439 = vmatpush.msra.mxu0 0.0
  %440 = vmatpush.msra.mxu0 0.0
  %441 = vmatpush.msra.mxu0 0.0
  %442 = vmatpush.msra.mxu0 0.0
  %443 = vmatpush.msra.mxu0 0.0
  %444 = vmatpush.msra.mxu0 0.0
  %445 = vmatpush.msra.mxu0 0.0
  %446 = vmatpush.msra.mxu0 0.0
  %447 = vmatpush.msra.mxu0 %v339
  %448 = vmatmul.f32.gmra.mxu0 %v409
  %v449 = vpop.f32.mrf.mxu0
  %v450 = vadd.f32 %v385, %v449
  %451 = vmatmul.f32.gmra.mxu0 %v412
  %v452 = vpop.f32.mrf.mxu0
  %v453 = vadd.f32 %v388, %v452
  %454 = vmatmul.f32.gmra.mxu0 %v415
  %v455 = vpop.f32.mrf.mxu0
  %v456 = vadd.f32 %v391, %v455
  %457 = vmatmul.f32.gmra.mxu0 %v418
  %v458 = vpop.f32.mrf.mxu0
  %v459 = vadd.f32 %v394, %v458
  %460 = vmatmul.f32.gmra.mxu0 %v421
  %v461 = vpop.f32.mrf.mxu0
  %v462 = vadd.f32 %v397, %v461
  %463 = vmatmul.f32.gmra.mxu0 %v424
  %v464 = vpop.f32.mrf.mxu0
  %v465 = vadd.f32 %v400, %v464
  %466 = vmatmul.f32.gmra.mxu0 %v427
  %v467 = vpop.f32.mrf.mxu0
  %v468 = vadd.f32 %v403, %v467
  %469 = vmatmul.f32.gmra.mxu0 %v430
  %v470 = vpop.f32.mrf.mxu0
  %v471 = vadd.f32 %v406, %v470
  %472 = vdwg.mxu0
  %v473 = vld [vmem:[%s6] sm:$0x1]
  %v475 = vperm.slane %v473, 0
  %v477 = vadd.f32 %v450, %v475
  %v478 = vadd.f32 %v453, %v475
  %v479 = vadd.f32 %v456, %v475
  %v480 = vadd.f32 %v459, %v475
  %v481 = vadd.f32 %v462, %v475
  %v482 = vadd.f32 %v465, %v475
  %v483 = vadd.f32 %v468, %v475
  %v484 = vadd.f32 %v471, %v475
  %v485 = vmax.f32 %v477, 0.0
  %v486 = vmax.f32 %v478, 0.0
  %v487 = vmax.f32 %v479, 0.0
  %v488 = vmax.f32 %v480, 0.0
  %v489 = vmax.f32 %v481, 0.0
  %v490 = vmax.f32 %v482, 0.0
  %v491 = vmax.f32 %v483, 0.0
  %v492 = vmax.f32 %v484, 0.0
  %v493 = vld [vmem:[%s7] sm:$0xf]
  %v494 = vld [vmem:[%s8] sm:$0x1]
  %v496 = vperm.slane %v494, 0
  %v499 = vsel %vm182, %v493, 0
  %501 = vmatpush.msra.mxu0 0.0
  %502 = vmatpush.msra.mxu0 0.0
  %503 = vmatpush.msra.mxu0 0.0
  %504 = vmatpush.msra.mxu0 0.0
  %505 = vmatpush.msra.mxu0 0.0
  %506 = vmatpush.msra.mxu0 0.0
  %507 = vmatpush.msra.mxu0 0.0
  %508 = vmatpush.msra.mxu0 0.0
  %509 = vmatpush.msra.mxu0 0.0
  %510 = vmatpush.msra.mxu0 0.0
  %511 = vmatpush.msra.mxu0 0.0
  %512 = vmatpush.msra.mxu0 0.0
  %513 = vmatpush.msra.mxu0 0.0
  %514 = vmatpush.msra.mxu0 0.0
  %515 = vmatpush.msra.mxu0 0.0
  %516 = vmatpush.msra.mxu0 %v499
  %517 = vmatmul.f32.gmra.mxu0 %v159
  %v518 = vpop.f32.mrf.mxu0
  %v519 = vadd.f32 %v496, %v518
  %520 = vmatmul.f32.gmra.mxu0 %v162
  %v521 = vpop.f32.mrf.mxu0
  %v522 = vadd.f32 %v496, %v521
  %523 = vmatmul.f32.gmra.mxu0 %v165
  %v524 = vpop.f32.mrf.mxu0
  %v525 = vadd.f32 %v496, %v524
  %526 = vmatmul.f32.gmra.mxu0 %v168
  %v527 = vpop.f32.mrf.mxu0
  %v528 = vadd.f32 %v496, %v527
  %529 = vmatmul.f32.gmra.mxu0 %v171
  %v530 = vpop.f32.mrf.mxu0
  %v531 = vadd.f32 %v496, %v530
  %532 = vmatmul.f32.gmra.mxu0 %v174
  %v533 = vpop.f32.mrf.mxu0
  %v534 = vadd.f32 %v496, %v533
  %535 = vmatmul.f32.gmra.mxu0 %v177
  %v536 = vpop.f32.mrf.mxu0
  %v537 = vadd.f32 %v496, %v536
  %538 = vmatmul.f32.gmra.mxu0 %v180
  %v539 = vpop.f32.mrf.mxu0
  %v540 = vadd.f32 %v496, %v539
  %541 = vdwg.mxu0
  %v542 = vadd.f32 %v485, %v519
  %v543 = vadd.f32 %v486, %v522
  %v544 = vadd.f32 %v487, %v525
  %v545 = vadd.f32 %v488, %v528
  %v546 = vadd.f32 %v489, %v531
  %v547 = vadd.f32 %v490, %v534
  %v548 = vadd.f32 %v491, %v537
  %v549 = vadd.f32 %v492, %v540
  %v550 = vmax.f32 %v542, 0.0
  %v551 = vmax.f32 %v543, 0.0
  %v552 = vmax.f32 %v544, 0.0
  %v553 = vmax.f32 %v545, 0.0
  %v554 = vmax.f32 %v546, 0.0
  %v555 = vmax.f32 %v547, 0.0
  %v556 = vmax.f32 %v548, 0.0
  %v557 = vmax.f32 %v549, 0.0
  %v558 = vrot.slane %v550, 6
  %v559 = vrot.slane %v551, 6
  %v560 = vrot.slane %v552, 6
  %v561 = vrot.slane %v553, 6
  %v562 = vrot.slane %v554, 6
  %v563 = vrot.slane %v555, 6
  %v564 = vrot.slane %v556, 6
  %v565 = vrot.slane %v557, 6
  %vm566 = vcmp.lt.s32.totalorder %v88, 2
  %v567 = vsel %vm566, %v564, %v565
  %v568 = vsel %vm566, %v563, %v564
  %v569 = vsel %vm566, %v562, %v563
  %v570 = vsel %vm566, %v561, %v562
  %v571 = vsel %vm566, %v560, %v561
  %v572 = vsel %vm566, %v559, %v560
  %v573 = vsel %vm566, %v558, %v559
  %v574 = vsel %vm566, %v565, %v558
  %vm575 = vcmp.ge.s32.totalorder %v63, 2
  %vm576 = vcmp.ge.s32.totalorder %v64, 2
  %vm577 = vcmp.ge.s32.totalorder %v65, 2
  %vm578 = vcmp.ge.s32.totalorder %v66, 2
  %vm579 = vcmp.ge.s32.totalorder %v67, 2
  %vm580 = vcmp.ge.s32.totalorder %v68, 2
  %vm581 = vcmp.ge.s32.totalorder %v69, 2
  %vm582 = vcmp.ge.s32.totalorder %v70, 2
  %v583 = vsel %vm575, 1, 0
  %v584 = vsel %vm576, 1, 0
  %v585 = vsel %vm577, 1, 0
  %v586 = vsel %vm578, 1, 0
  %v587 = vsel %vm579, 1, 0
  %v588 = vsel %vm580, 1, 0
  %v589 = vsel %vm581, 1, 0
  %v590 = vsel %vm582, 1, 0
  %591 = vset.pattern.permute.xlu0 0
  %592 = vperm.xlu0 %591, %v583
  %v593 = vpop.permute.xlu0 %592
  %594 = vset.pattern.permute.xlu0 0
  %595 = vperm.xlu0 %594, %v584
  %v596 = vpop.permute.xlu0 %595
  %597 = vset.pattern.permute.xlu0 0
  %598 = vperm.xlu0 %597, %v585
  %v599 = vpop.permute.xlu0 %598
  %600 = vset.pattern.permute.xlu0 0
  %601 = vperm.xlu0 %600, %v586
  %v602 = vpop.permute.xlu0 %601
  %603 = vset.pattern.permute.xlu0 0
  %604 = vperm.xlu0 %603, %v587
  %v605 = vpop.permute.xlu0 %604
  %606 = vset.pattern.permute.xlu0 0
  %607 = vperm.xlu0 %606, %v588
  %v608 = vpop.permute.xlu0 %607
  %609 = vset.pattern.permute.xlu0 0
  %610 = vperm.xlu0 %609, %v589
  %v611 = vpop.permute.xlu0 %610
  %612 = vset.pattern.permute.xlu0 0
  %613 = vperm.xlu0 %612, %v590
  %v614 = vpop.permute.xlu0 %613
  %vm615 = vcmp.eq.s32.totalorder %v593, 1
  %vm616 = vcmp.eq.s32.totalorder %v596, 1
  %vm617 = vcmp.eq.s32.totalorder %v599, 1
  %vm618 = vcmp.eq.s32.totalorder %v602, 1
  %vm619 = vcmp.eq.s32.totalorder %v605, 1
  %vm620 = vcmp.eq.s32.totalorder %v608, 1
  %vm621 = vcmp.eq.s32.totalorder %v611, 1
  %vm622 = vcmp.eq.s32.totalorder %v614, 1
  %v623 = vsel %vm615, %v574, 0.0
  %v624 = vsel %vm616, %v573, 0.0
  %v625 = vsel %vm617, %v572, 0.0
  %v626 = vsel %vm618, %v571, 0.0
  %v627 = vsel %vm619, %v570, 0.0
  %v628 = vsel %vm620, %v569, 0.0
  %v629 = vsel %vm621, %v568, 0.0
  %v630 = vsel %vm622, %v567, 0.0
  %v631 = vld [vmem:[%s9] sm:$0xff]
  %s632 = scalar_lea.vmem %s9, 8
  %v633 = vld [vmem:[%s632] sm:$0xff]
  %v635 = vsel %vm342, %v550, 0
  %v638 = vsel %vm342, %v551, 0
  %v641 = vsel %vm342, %v552, 0
  %v644 = vsel %vm342, %v553, 0
  %v647 = vsel %vm342, %v554, 0
  %v650 = vsel %vm342, %v555, 0
  %v653 = vsel %vm342, %v556, 0
  %v656 = vsel %vm342, %v557, 0
  %658 = vmatpush.msra.mxu0 0.0
  %659 = vmatpush.msra.mxu0 0.0
  %660 = vmatpush.msra.mxu0 0.0
  %661 = vmatpush.msra.mxu0 0.0
  %662 = vmatpush.msra.mxu0 0.0
  %663 = vmatpush.msra.mxu0 0.0
  %664 = vmatpush.msra.mxu0 0.0
  %665 = vmatpush.msra.mxu0 0.0
  %666 = vmatpush.msra.mxu0 0.0
  %667 = vmatpush.msra.mxu0 0.0
  %668 = vmatpush.msra.mxu0 0.0
  %669 = vmatpush.msra.mxu0 0.0
  %670 = vmatpush.msra.mxu0 0.0
  %671 = vmatpush.msra.mxu0 0.0
  %672 = vmatpush.msra.mxu0 0.0
  %673 = vmatpush.msra.mxu0 %v633
  %674 = vmatmul.f32.gmra.mxu0 %v635
  %v675 = vpop.f32.mrf.mxu0
  %v676 = vadd.f32 0.0, %v675
  %677 = vmatmul.f32.gmra.mxu0 %v638
  %v678 = vpop.f32.mrf.mxu0
  %v679 = vadd.f32 0.0, %v678
  %680 = vmatmul.f32.gmra.mxu0 %v641
  %v681 = vpop.f32.mrf.mxu0
  %v682 = vadd.f32 0.0, %v681
  %683 = vmatmul.f32.gmra.mxu0 %v644
  %v684 = vpop.f32.mrf.mxu0
  %v685 = vadd.f32 0.0, %v684
  %686 = vmatmul.f32.gmra.mxu0 %v647
  %v687 = vpop.f32.mrf.mxu0
  %v688 = vadd.f32 0.0, %v687
  %689 = vmatmul.f32.gmra.mxu0 %v650
  %v690 = vpop.f32.mrf.mxu0
  %v691 = vadd.f32 0.0, %v690
  %692 = vmatmul.f32.gmra.mxu0 %v653
  %v693 = vpop.f32.mrf.mxu0
  %v694 = vadd.f32 0.0, %v693
  %695 = vmatmul.f32.gmra.mxu0 %v656
  %v696 = vpop.f32.mrf.mxu0
  %v697 = vadd.f32 0.0, %v696
  %698 = vdwg.mxu0
  %v700 = vsel %vm342, %v623, 0
  %v703 = vsel %vm342, %v624, 0
  %v706 = vsel %vm342, %v625, 0
  %v709 = vsel %vm342, %v626, 0
  %v712 = vsel %vm342, %v627, 0
  %v715 = vsel %vm342, %v628, 0
  %v718 = vsel %vm342, %v629, 0
  %v721 = vsel %vm342, %v630, 0
  %723 = vmatpush.msra.mxu0 0.0
  %724 = vmatpush.msra.mxu0 0.0
  %725 = vmatpush.msra.mxu0 0.0
  %726 = vmatpush.msra.mxu0 0.0
  %727 = vmatpush.msra.mxu0 0.0
  %728 = vmatpush.msra.mxu0 0.0
  %729 = vmatpush.msra.mxu0 0.0
  %730 = vmatpush.msra.mxu0 0.0
  %731 = vmatpush.msra.mxu0 0.0
  %732 = vmatpush.msra.mxu0 0.0
  %733 = vmatpush.msra.mxu0 0.0
  %734 = vmatpush.msra.mxu0 0.0
  %735 = vmatpush.msra.mxu0 0.0
  %736 = vmatpush.msra.mxu0 0.0
  %737 = vmatpush.msra.mxu0 0.0
  %738 = vmatpush.msra.mxu0 %v631
  %739 = vmatmul.f32.gmra.mxu0 %v700
  %v740 = vpop.f32.mrf.mxu0
  %v741 = vadd.f32 %v676, %v740
  %742 = vmatmul.f32.gmra.mxu0 %v703
  %v743 = vpop.f32.mrf.mxu0
  %v744 = vadd.f32 %v679, %v743
  %745 = vmatmul.f32.gmra.mxu0 %v706
  %v746 = vpop.f32.mrf.mxu0
  %v747 = vadd.f32 %v682, %v746
  %748 = vmatmul.f32.gmra.mxu0 %v709
  %v749 = vpop.f32.mrf.mxu0
  %v750 = vadd.f32 %v685, %v749
  %751 = vmatmul.f32.gmra.mxu0 %v712
  %v752 = vpop.f32.mrf.mxu0
  %v753 = vadd.f32 %v688, %v752
  %754 = vmatmul.f32.gmra.mxu0 %v715
  %v755 = vpop.f32.mrf.mxu0
  %v756 = vadd.f32 %v691, %v755
  %757 = vmatmul.f32.gmra.mxu0 %v718
  %v758 = vpop.f32.mrf.mxu0
  %v759 = vadd.f32 %v694, %v758
  %760 = vmatmul.f32.gmra.mxu0 %v721
  %v761 = vpop.f32.mrf.mxu0
  %v762 = vadd.f32 %v697, %v761
  %763 = vdwg.mxu0
  %v764 = vld [vmem:[%s10] sm:$0x1]
  %v766 = vperm.slane %v764, 0
  %v768 = vadd.f32 %v741, %v766
  %v769 = vadd.f32 %v744, %v766
  %v770 = vadd.f32 %v747, %v766
  %v771 = vadd.f32 %v750, %v766
  %v772 = vadd.f32 %v753, %v766
  %v773 = vadd.f32 %v756, %v766
  %v774 = vadd.f32 %v759, %v766
  %v775 = vadd.f32 %v762, %v766
  %v776 = vmax.f32 %v768, 0.0
  %v777 = vmax.f32 %v769, 0.0
  %v778 = vmax.f32 %v770, 0.0
  %v779 = vmax.f32 %v771, 0.0
  %v780 = vmax.f32 %v772, 0.0
  %v781 = vmax.f32 %v773, 0.0
  %v782 = vmax.f32 %v774, 0.0
  %v783 = vmax.f32 %v775, 0.0
  %v784 = vrot.slane %v776, 6
  %v785 = vrot.slane %v777, 6
  %v786 = vrot.slane %v778, 6
  %v787 = vrot.slane %v779, 6
  %v788 = vrot.slane %v780, 6
  %v789 = vrot.slane %v781, 6
  %v790 = vrot.slane %v782, 6
  %v791 = vrot.slane %v783, 6
  %v792 = vsel %vm566, %v790, %v791
  %v793 = vsel %vm566, %v789, %v790
  %v794 = vsel %vm566, %v788, %v789
  %v795 = vsel %vm566, %v787, %v788
  %v796 = vsel %vm566, %v786, %v787
  %v797 = vsel %vm566, %v785, %v786
  %v798 = vsel %vm566, %v784, %v785
  %v799 = vsel %vm566, %v791, %v784
  %v800 = vsel %vm615, %v799, 0.0
  %v801 = vsel %vm616, %v798, 0.0
  %v802 = vsel %vm617, %v797, 0.0
  %v803 = vsel %vm618, %v796, 0.0
  %v804 = vsel %vm619, %v795, 0.0
  %v805 = vsel %vm620, %v794, 0.0
  %v806 = vsel %vm621, %v793, 0.0
  %v807 = vsel %vm622, %v792, 0.0
  %v808 = vld [vmem:[%s11] sm:$0xff]
  %s809 = scalar_lea.vmem %s11, 8
  %v810 = vld [vmem:[%s809] sm:$0xff]
  %v812 = vsel %vm342, %v776, 0
  %v815 = vsel %vm342, %v777, 0
  %v818 = vsel %vm342, %v778, 0
  %v821 = vsel %vm342, %v779, 0
  %v824 = vsel %vm342, %v780, 0
  %v827 = vsel %vm342, %v781, 0
  %v830 = vsel %vm342, %v782, 0
  %v833 = vsel %vm342, %v783, 0
  %835 = vmatpush.msra.mxu0 0.0
  %836 = vmatpush.msra.mxu0 0.0
  %837 = vmatpush.msra.mxu0 0.0
  %838 = vmatpush.msra.mxu0 0.0
  %839 = vmatpush.msra.mxu0 0.0
  %840 = vmatpush.msra.mxu0 0.0
  %841 = vmatpush.msra.mxu0 0.0
  %842 = vmatpush.msra.mxu0 0.0
  %843 = vmatpush.msra.mxu0 0.0
  %844 = vmatpush.msra.mxu0 0.0
  %845 = vmatpush.msra.mxu0 0.0
  %846 = vmatpush.msra.mxu0 0.0
  %847 = vmatpush.msra.mxu0 0.0
  %848 = vmatpush.msra.mxu0 0.0
  %849 = vmatpush.msra.mxu0 0.0
  %850 = vmatpush.msra.mxu0 %v810
  %851 = vmatmul.f32.gmra.mxu0 %v812
  %v852 = vpop.f32.mrf.mxu0
  %v853 = vadd.f32 0.0, %v852
  %854 = vmatmul.f32.gmra.mxu0 %v815
  %v855 = vpop.f32.mrf.mxu0
  %v856 = vadd.f32 0.0, %v855
  %857 = vmatmul.f32.gmra.mxu0 %v818
  %v858 = vpop.f32.mrf.mxu0
  %v859 = vadd.f32 0.0, %v858
  %860 = vmatmul.f32.gmra.mxu0 %v821
  %v861 = vpop.f32.mrf.mxu0
  %v862 = vadd.f32 0.0, %v861
  %863 = vmatmul.f32.gmra.mxu0 %v824
  %v864 = vpop.f32.mrf.mxu0
  %v865 = vadd.f32 0.0, %v864
  %866 = vmatmul.f32.gmra.mxu0 %v827
  %v867 = vpop.f32.mrf.mxu0
  %v868 = vadd.f32 0.0, %v867
  %869 = vmatmul.f32.gmra.mxu0 %v830
  %v870 = vpop.f32.mrf.mxu0
  %v871 = vadd.f32 0.0, %v870
  %872 = vmatmul.f32.gmra.mxu0 %v833
  %v873 = vpop.f32.mrf.mxu0
  %v874 = vadd.f32 0.0, %v873
  %875 = vdwg.mxu0
  %v877 = vsel %vm342, %v800, 0
  %v880 = vsel %vm342, %v801, 0
  %v883 = vsel %vm342, %v802, 0
  %v886 = vsel %vm342, %v803, 0
  %v889 = vsel %vm342, %v804, 0
  %v892 = vsel %vm342, %v805, 0
  %v895 = vsel %vm342, %v806, 0
  %v898 = vsel %vm342, %v807, 0
  %900 = vmatpush.msra.mxu0 0.0
  %901 = vmatpush.msra.mxu0 0.0
  %902 = vmatpush.msra.mxu0 0.0
  %903 = vmatpush.msra.mxu0 0.0
  %904 = vmatpush.msra.mxu0 0.0
  %905 = vmatpush.msra.mxu0 0.0
  %906 = vmatpush.msra.mxu0 0.0
  %907 = vmatpush.msra.mxu0 0.0
  %908 = vmatpush.msra.mxu0 0.0
  %909 = vmatpush.msra.mxu0 0.0
  %910 = vmatpush.msra.mxu0 0.0
  %911 = vmatpush.msra.mxu0 0.0
  %912 = vmatpush.msra.mxu0 0.0
  %913 = vmatpush.msra.mxu0 0.0
  %914 = vmatpush.msra.mxu0 0.0
  %915 = vmatpush.msra.mxu0 %v808
  %916 = vmatmul.f32.gmra.mxu0 %v877
  %v917 = vpop.f32.mrf.mxu0
  %v918 = vadd.f32 %v853, %v917
  %919 = vmatmul.f32.gmra.mxu0 %v880
  %v920 = vpop.f32.mrf.mxu0
  %v921 = vadd.f32 %v856, %v920
  %922 = vmatmul.f32.gmra.mxu0 %v883
  %v923 = vpop.f32.mrf.mxu0
  %v924 = vadd.f32 %v859, %v923
  %925 = vmatmul.f32.gmra.mxu0 %v886
  %v926 = vpop.f32.mrf.mxu0
  %v927 = vadd.f32 %v862, %v926
  %928 = vmatmul.f32.gmra.mxu0 %v889
  %v929 = vpop.f32.mrf.mxu0
  %v930 = vadd.f32 %v865, %v929
  %931 = vmatmul.f32.gmra.mxu0 %v892
  %v932 = vpop.f32.mrf.mxu0
  %v933 = vadd.f32 %v868, %v932
  %934 = vmatmul.f32.gmra.mxu0 %v895
  %v935 = vpop.f32.mrf.mxu0
  %v936 = vadd.f32 %v871, %v935
  %937 = vmatmul.f32.gmra.mxu0 %v898
  %v938 = vpop.f32.mrf.mxu0
  %v939 = vadd.f32 %v874, %v938
  %940 = vdwg.mxu0
  %v941 = vld [vmem:[%s12] sm:$0x1]
  %v943 = vperm.slane %v941, 0
  %v945 = vadd.f32 %v918, %v943
  %v946 = vadd.f32 %v921, %v943
  %v947 = vadd.f32 %v924, %v943
  %v948 = vadd.f32 %v927, %v943
  %v949 = vadd.f32 %v930, %v943
  %v950 = vadd.f32 %v933, %v943
  %v951 = vadd.f32 %v936, %v943
  %v952 = vadd.f32 %v939, %v943
  %v953 = vmax.f32 %v945, 0.0
  %v954 = vmax.f32 %v946, 0.0
  %v955 = vmax.f32 %v947, 0.0
  %v956 = vmax.f32 %v948, 0.0
  %v957 = vmax.f32 %v949, 0.0
  %v958 = vmax.f32 %v950, 0.0
  %v959 = vmax.f32 %v951, 0.0
  %v960 = vmax.f32 %v952, 0.0
  %v961 = vadd.f32 %v953, %v550
  %v962 = vadd.f32 %v954, %v551
  %v963 = vadd.f32 %v955, %v552
  %v964 = vadd.f32 %v956, %v553
  %v965 = vadd.f32 %v957, %v554
  %v966 = vadd.f32 %v958, %v555
  %v967 = vadd.f32 %v959, %v556
  %v968 = vadd.f32 %v960, %v557
  %v969 = vmax.f32 %v961, 0.0
  %v970 = vmax.f32 %v962, 0.0
  %v971 = vmax.f32 %v963, 0.0
  %v972 = vmax.f32 %v964, 0.0
  %v973 = vmax.f32 %v965, 0.0
  %v974 = vmax.f32 %v966, 0.0
  %v975 = vmax.f32 %v967, 0.0
  %v976 = vmax.f32 %v968, 0.0
  %v977 = vld [vmem:[%s13] sm:$0xff]
  %v978 = vld [vmem:[#allocation2] sm:$0x1]
  %v980 = vperm.slane %v978, 0
  %v983 = vsel %vm342, %v969, 0
  %v986 = vsel %vm342, %v970, 0
  %v989 = vsel %vm342, %v971, 0
  %v992 = vsel %vm342, %v972, 0
  %v995 = vsel %vm342, %v973, 0
  %v998 = vsel %vm342, %v974, 0
  %v1001 = vsel %vm342, %v975, 0
  %v1004 = vsel %vm342, %v976, 0
  %1006 = vmatpush.msra.mxu0 0.0
  %1007 = vmatpush.msra.mxu0 0.0
  %1008 = vmatpush.msra.mxu0 0.0
  %1009 = vmatpush.msra.mxu0 0.0
  %1010 = vmatpush.msra.mxu0 0.0
  %1011 = vmatpush.msra.mxu0 0.0
  %1012 = vmatpush.msra.mxu0 0.0
  %1013 = vmatpush.msra.mxu0 0.0
  %1014 = vmatpush.msra.mxu0 0.0
  %1015 = vmatpush.msra.mxu0 0.0
  %1016 = vmatpush.msra.mxu0 0.0
  %1017 = vmatpush.msra.mxu0 0.0
  %1018 = vmatpush.msra.mxu0 0.0
  %1019 = vmatpush.msra.mxu0 0.0
  %1020 = vmatpush.msra.mxu0 0.0
  %1021 = vmatpush.msra.mxu0 %v977
  %1022 = vmatmul.f32.gmra.mxu0 %v983
  %v1023 = vpop.f32.mrf.mxu0
  %v1024 = vadd.f32 %v980, %v1023
  %1025 = vmatmul.f32.gmra.mxu0 %v986
  %v1026 = vpop.f32.mrf.mxu0
  %v1027 = vadd.f32 %v980, %v1026
  %1028 = vmatmul.f32.gmra.mxu0 %v989
  %v1029 = vpop.f32.mrf.mxu0
  %v1030 = vadd.f32 %v980, %v1029
  %1031 = vmatmul.f32.gmra.mxu0 %v992
  %v1032 = vpop.f32.mrf.mxu0
  %v1033 = vadd.f32 %v980, %v1032
  %1034 = vmatmul.f32.gmra.mxu0 %v995
  %v1035 = vpop.f32.mrf.mxu0
  %v1036 = vadd.f32 %v980, %v1035
  %1037 = vmatmul.f32.gmra.mxu0 %v998
  %v1038 = vpop.f32.mrf.mxu0
  %v1039 = vadd.f32 %v980, %v1038
  %1040 = vmatmul.f32.gmra.mxu0 %v1001
  %v1041 = vpop.f32.mrf.mxu0
  %v1042 = vadd.f32 %v980, %v1041
  %1043 = vmatmul.f32.gmra.mxu0 %v1004
  %v1044 = vpop.f32.mrf.mxu0
  %v1045 = vadd.f32 %v980, %v1044
  %1046 = vdwg.mxu0
  %v1047 = vld [vmem:[%s2] sm:$0xff]
  %v1048 = vld [vmem:[%s2 + $0x8] sm:$0xff]
  %v1049 = vld [vmem:[%s2 + $0x10] sm:$0xff]
  %v1050 = vld [vmem:[%s2 + $0x18] sm:$0xff]
  %v1051 = vld [vmem:[%s2 + $0x20] sm:$0xff]
  %v1052 = vld [vmem:[%s2 + $0x28] sm:$0xff]
  %v1053 = vld [vmem:[%s2 + $0x30] sm:$0xff]
  %v1054 = vld [vmem:[%s2 + $0x38] sm:$0xff]
  %v1055 = vld [vmem:[%s2 + $0x40] sm:$0xff]
  %v1056 = vld [vmem:[%s2 + $0x48] sm:$0xff]
  %v1057 = vld [vmem:[%s2 + $0x50] sm:$0xff]
  %v1058 = vld [vmem:[%s2 + $0x58] sm:$0xff]
  %v1059 = vld [vmem:[%s15] sm:$0x1]
  %v1060 = vld [vmem:[%s16] sm:$0x1]
  %v1061 = vld [vmem:[#allocation3] sm:$0x1]
  %v1062 = vmul.f32 %v1047, %v1024
  %v1063 = vmul.f32 %v1048, %v1027
  %v1064 = vmul.f32 %v1049, %v1030
  %v1065 = vmul.f32 %v1050, %v1033
  %v1066 = vmul.f32 %v1051, %v1024
  %v1067 = vmul.f32 %v1052, %v1027
  %v1068 = vmul.f32 %v1053, %v1030
  %v1069 = vmul.f32 %v1054, %v1033
  %v1070 = vmul.f32 %v1055, %v1024
  %v1071 = vmul.f32 %v1056, %v1027
  %v1072 = vmul.f32 %v1057, %v1030
  %v1073 = vmul.f32 %v1058, %v1033
  %v1074 = vand.u32 2147483647, %v1062
  %vm1075 = vcmp.le.f32.partialorder %v1074, 0.7853982
  %vm1076 = vcmp.lt.s32.totalorder %v1062, 0
  %v1077 = vand.u32 %v1062, 2139095040
  %v1078 = vshrl.u32 %v1077, 23
  %v1079 = vsub.s32 %v1078, 127
  %v1080 = vand.u32 2147483647, %v1062
  %v1081 = vand.u32 %v1080, 8388607
  %v1082 = vor.u32 %v1081, 8388608
  %v1083 = vsub.s32 0, %v1082
  %v1084 = vadd.s32 %v1079, 1
  %vm1085 = vcmp.gt.s32.totalorder %v1084, 0
  %v1086 = vsel %vm1085, %v1084, 0
  %v1087 = vshrl.u32 %v1086, 5
  %v1088 = vand.u32 %v1086, 31
  %v1089 = vsub.s32 32, %v1088
  %v1090 = vshrl.u32 683565275, %v1089
  %v1091 = vshll.u32 683565275, %v1088
  %v1092 = vshrl.u32 2475754826, %v1089
  %v1093 = vor.u32 %v1091, %v1092
  %v1094 = vshll.u32 2475754826, %v1088
  %v1095 = vshrl.u32 2131351028, %v1089
  %v1096 = vor.u32 %v1094, %v1095
  %v1097 = vshll.u32 2131351028, %v1088
  %v1098 = vshrl.u32 2102212464, %v1089
  %v1099 = vor.u32 %v1097, %v1098
  %v1100 = vshll.u32 2102212464, %v1088
  %v1101 = vshrl.u32 920167782, %v1089
  %v1102 = vor.u32 %v1100, %v1101
  %v1103 = vshll.u32 920167782, %v1088
  %v1104 = vshrl.u32 1326507024, %v1089
  %v1105 = vor.u32 %v1103, %v1104
  %vm1106 = vcmp.lt.s32.totalorder %v1087, 1
  %vm1107 = vcmp.lt.s32.totalorder %v1087, 2
  %vm1108 = vcmp.lt.s32.totalorder %v1087, 3
  %vm1109 = vcmp.lt.s32.totalorder %v1087, 4
  %v1110 = vsel %vm1106, %v1090, %v1093
  %v1111 = vsel %vm1109, %v1099, 2102212464
  %v1112 = vsel %vm1108, %v1096, %v1111
  %v1113 = vsel %vm1107, %v1110, %v1112
  %v1114 = vsel %vm1106, %v1093, %v1096
  %v1115 = vsel %vm1109, %v1102, 920167782
  %v1116 = vsel %vm1108, %v1099, %v1115
  %v1117 = vsel %vm1107, %v1114, %v1116
  %v1118 = vsel %vm1106, %v1096, %v1099
  %v1119 = vsel %vm1109, %v1105, 1326507024
  %v1120 = vsel %vm1108, %v1102, %v1119
  %v1121 = vsel %vm1107, %v1118, %v1120
  %v1122 = vshll.u32 %v1082, 8
  %v1123 = vand.u32 %v1122, 65535
  %v1124 = vshrl.u32 %v1122, 16
  %v1125 = vand.u32 %v1121, 65535
  %v1126 = vshrl.u32 %v1121, 16
  %v1127 = vmul.u32 %v1123, %v1125
  %v1128 = vmul.u32 %v1123, %v1126
  %v1129 = vmul.u32 %v1124, %v1125
  %v1130 = vmul.u32 %v1124, %v1126
  %v1131 = vshll.u32 %v1128, 16
  %v1132 = vshrl.u32 %v1128, 16
  %v1133 = vshll.u32 %v1129, 16
  %v1134 = vshrl.u32 %v1129, 16
  %vm1135 = vc.u32 %v1127, %v1131
  %v1136 = vsel %vm1135, 1, 0
  %v1137 = vadd.s32 %v1127, %v1131
  %v1138 = vadd.s32 %v1130, %v1136
  %vm1139 = vc.u32 %v1137, %v1133
  %v1140 = vsel %vm1139, 1, 0
  %v1141 = vadd.s32 %v1137, %v1133
  %v1142 = vadd.s32 %v1138, %v1140
  %v1143 = vadd.s32 %v1142, %v1132
  %v1144 = vadd.s32 %v1143, %v1134
  %v1145 = vand.u32 %v1122, 65535
  %v1146 = vshrl.u32 %v1122, 16
  %v1147 = vand.u32 %v1117, 65535
  %v1148 = vshrl.u32 %v1117, 16
  %v1149 = vmul.u32 %v1145, %v1147
  %v1150 = vmul.u32 %v1145, %v1148
  %v1151 = vmul.u32 %v1146, %v1147
  %v1152 = vmul.u32 %v1146, %v1148
  %v1153 = vshll.u32 %v1150, 16
  %v1154 = vshrl.u32 %v1150, 16
  %v1155 = vshll.u32 %v1151, 16
  %v1156 = vshrl.u32 %v1151, 16
  %vm1157 = vc.u32 %v1149, %v1153
  %v1158 = vsel %vm1157, 1, 0
  %v1159 = vadd.s32 %v1149, %v1153
  %v1160 = vadd.s32 %v1152, %v1158
  %vm1161 = vc.u32 %v1159, %v1155
  %v1162 = vsel %vm1161, 1, 0
  %v1163 = vadd.s32 %v1159, %v1155
  %v1164 = vadd.s32 %v1160, %v1162
  %v1165 = vadd.s32 %v1164, %v1154
  %v1166 = vadd.s32 %v1165, %v1156
  %v1167 = vmul.u32 %v1122, %v1113
  %v1168 = vadd.s32 %v1144, %v1163
  %vm1169 = vc.u32 %v1144, %v1163
  %v1170 = vadd.s32 %v1166, 1
  %v1171 = vsel %vm1169, %v1170, %v1166
  %v1172 = vadd.s32 %v1167, %v1171
  %v1173 = vadd.s32 %v1172, 536870912
  %v1174 = vshrl.u32 %v1173, 30
  %v1175 = vshll.u32 %v1174, 30
  %v1176 = vsub.s32 %v1172, %v1175
  %vm1177 = vcmp.lt.s32.totalorder %v1176, 0
  %v1178 = vsub.s32 0, %v1176
  %v1179 = vsel %vm1177, %v1178, %v1176
  %v1180 = vclz %v1179
  %v1181 = vsub.s32 %v1180, 2
  %vm1182 = vcmp.gt.s32.totalorder 0, %v1181
  %v1183 = vsel %vm1182, 0, %v1181
  %v1184 = vsub.s32 32, %v1183
  %v1185 = vshll.u32 %v1176, %v1183
  %v1186 = vshrl.u32 %v1168, %v1184
  %v1187 = vor.u32 %v1185, %v1186
  %v1188 = vsub.s32 4294967266, %v1183
  %v1189 = vadd.s32 %v1188, 127
  %v1190 = vshll.u32 %v1189, 23
  %v1191 = vor.u32 4788187, %v1190
  %v1192 = vand.u32 2147483647, %v1191
  %v1194 = vcvt.s32.f32 %v1187
  %v1195 = vmul.f32 %v1194, %v1192
  %v1196 = vxor.u32 %v1195, 2147483648
  %v1197 = vsel %vm1076, %v1196, %v1195
  %v1198 = vsub.s32 4, %v1174
  %v1199 = vsel %vm1076, %v1198, %v1174
  %v1200 = vsel %vm1075, %v1062, %v1197
  %v1201 = vsel %vm1075, 0, %v1199
  %v1202 = vmul.f32 %v1200, %v1200
  %v1203 = vmul.f32 %v1202, -0.001358992
  %v1204 = vadd.f32 %v1203, 0.041655596
  %v1205 = vmul.f32 %v1202, %v1204
  %v1206 = vadd.f32 %v1205, -0.4999988
  %v1207 = vmul.f32 %v1202, %v1206
  %v1208 = vadd.f32 1.0, %v1207
  %v1209 = vmul.f32 %v1200, %v1200
  %v1210 = vmul.f32 %v1209, -0.00019511016
  %v1211 = vadd.f32 %v1210, 0.008332121
  %v1212 = vmul.f32 %v1209, %v1211
  %v1213 = vadd.f32 %v1212, -0.16666654
  %v1214 = vmul.f32 %v1209, %v1213
  %v1215 = vadd.f32 %v1214, 1.0
  %v1216 = vmul.f32 %v1215, %v1200
  %vm1217 = vweird.f32 %v1062
  %v1218 = vand.u32 %v1201, 3
  %vm1219 = vcmp.lt.s32.totalorder %v1218, 2
  %vm1220 = vcmp.eq.s32.totalorder %v1218, 0
  %v1221 = vxor.u32 %v1216, 2147483648
  %v1222 = vsel %vm1220, %v1208, %v1221
  %vm1223 = vcmp.eq.s32.totalorder %v1218, 2
  %v1224 = vxor.u32 %v1208, 2147483648
  %v1225 = vsel %vm1223, %v1224, %v1216
  %v1226 = vsel %vm1219, %v1222, %v1225
  %v1227 = vsel %vm1217, nan, %v1226
  %v1228 = vand.u32 2147483647, %v1063
  %vm1229 = vcmp.le.f32.partialorder %v1228, 0.7853982
  %vm1230 = vcmp.lt.s32.totalorder %v1063, 0
  %v1231 = vand.u32 %v1063, 2139095040
  %v1232 = vshrl.u32 %v1231, 23
  %v1233 = vsub.s32 %v1232, 127
  %v1234 = vand.u32 2147483647, %v1063
  %v1235 = vand.u32 %v1234, 8388607
  %v1236 = vor.u32 %v1235, 8388608
  %v1237 = vsub.s32 0, %v1236
  %v1238 = vadd.s32 %v1233, 1
  %vm1239 = vcmp.gt.s32.totalorder %v1238, 0
  %v1240 = vsel %vm1239, %v1238, 0
  %v1241 = vshrl.u32 %v1240, 5
  %v1242 = vand.u32 %v1240, 31
  %v1243 = vsub.s32 32, %v1242
  %v1244 = vshrl.u32 683565275, %v1243
  %v1245 = vshll.u32 683565275, %v1242
  %v1246 = vshrl.u32 2475754826, %v1243
  %v1247 = vor.u32 %v1245, %v1246
  %v1248 = vshll.u32 2475754826, %v1242
  %v1249 = vshrl.u32 2131351028, %v1243
  %v1250 = vor.u32 %v1248, %v1249
  %v1251 = vshll.u32 2131351028, %v1242
  %v1252 = vshrl.u32 2102212464, %v1243
  %v1253 = vor.u32 %v1251, %v1252
  %v1254 = vshll.u32 2102212464, %v1242
  %v1255 = vshrl.u32 920167782, %v1243
  %v1256 = vor.u32 %v1254, %v1255
  %v1257 = vshll.u32 920167782, %v1242
  %v1258 = vshrl.u32 1326507024, %v1243
  %v1259 = vor.u32 %v1257, %v1258
  %vm1260 = vcmp.lt.s32.totalorder %v1241, 1
  %vm1261 = vcmp.lt.s32.totalorder %v1241, 2
  %vm1262 = vcmp.lt.s32.totalorder %v1241, 3
  %vm1263 = vcmp.lt.s32.totalorder %v1241, 4
  %v1264 = vsel %vm1260, %v1244, %v1247
  %v1265 = vsel %vm1263, %v1253, 2102212464
  %v1266 = vsel %vm1262, %v1250, %v1265
  %v1267 = vsel %vm1261, %v1264, %v1266
  %v1268 = vsel %vm1260, %v1247, %v1250
  %v1269 = vsel %vm1263, %v1256, 920167782
  %v1270 = vsel %vm1262, %v1253, %v1269
  %v1271 = vsel %vm1261, %v1268, %v1270
  %v1272 = vsel %vm1260, %v1250, %v1253
  %v1273 = vsel %vm1263, %v1259, 1326507024
  %v1274 = vsel %vm1262, %v1256, %v1273
  %v1275 = vsel %vm1261, %v1272, %v1274
  %v1276 = vshll.u32 %v1236, 8
  %v1277 = vand.u32 %v1276, 65535
  %v1278 = vshrl.u32 %v1276, 16
  %v1279 = vand.u32 %v1275, 65535
  %v1280 = vshrl.u32 %v1275, 16
  %v1281 = vmul.u32 %v1277, %v1279
  %v1282 = vmul.u32 %v1277, %v1280
  %v1283 = vmul.u32 %v1278, %v1279
  %v1284 = vmul.u32 %v1278, %v1280
  %v1285 = vshll.u32 %v1282, 16
  %v1286 = vshrl.u32 %v1282, 16
  %v1287 = vshll.u32 %v1283, 16
  %v1288 = vshrl.u32 %v1283, 16
  %vm1289 = vc.u32 %v1281, %v1285
  %v1290 = vsel %vm1289, 1, 0
  %v1291 = vadd.s32 %v1281, %v1285
  %v1292 = vadd.s32 %v1284, %v1290
  %vm1293 = vc.u32 %v1291, %v1287
  %v1294 = vsel %vm1293, 1, 0
  %v1295 = vadd.s32 %v1291, %v1287
  %v1296 = vadd.s32 %v1292, %v1294
  %v1297 = vadd.s32 %v1296, %v1286
  %v1298 = vadd.s32 %v1297, %v1288
  %v1299 = vand.u32 %v1276, 65535
  %v1300 = vshrl.u32 %v1276, 16
  %v1301 = vand.u32 %v1271, 65535
  %v1302 = vshrl.u32 %v1271, 16
  %v1303 = vmul.u32 %v1299, %v1301
  %v1304 = vmul.u32 %v1299, %v1302
  %v1305 = vmul.u32 %v1300, %v1301
  %v1306 = vmul.u32 %v1300, %v1302
  %v1307 = vshll.u32 %v1304, 16
  %v1308 = vshrl.u32 %v1304, 16
  %v1309 = vshll.u32 %v1305, 16
  %v1310 = vshrl.u32 %v1305, 16
  %vm1311 = vc.u32 %v1303, %v1307
  %v1312 = vsel %vm1311, 1, 0
  %v1313 = vadd.s32 %v1303, %v1307
  %v1314 = vadd.s32 %v1306, %v1312
  %vm1315 = vc.u32 %v1313, %v1309
  %v1316 = vsel %vm1315, 1, 0
  %v1317 = vadd.s32 %v1313, %v1309
  %v1318 = vadd.s32 %v1314, %v1316
  %v1319 = vadd.s32 %v1318, %v1308
  %v1320 = vadd.s32 %v1319, %v1310
  %v1321 = vmul.u32 %v1276, %v1267
  %v1322 = vadd.s32 %v1298, %v1317
  %vm1323 = vc.u32 %v1298, %v1317
  %v1324 = vadd.s32 %v1320, 1
  %v1325 = vsel %vm1323, %v1324, %v1320
  %v1326 = vadd.s32 %v1321, %v1325
  %v1327 = vadd.s32 %v1326, 536870912
  %v1328 = vshrl.u32 %v1327, 30
  %v1329 = vshll.u32 %v1328, 30
  %v1330 = vsub.s32 %v1326, %v1329
  %vm1331 = vcmp.lt.s32.totalorder %v1330, 0
  %v1332 = vsub.s32 0, %v1330
  %v1333 = vsel %vm1331, %v1332, %v1330
  %v1334 = vclz %v1333
  %v1335 = vsub.s32 %v1334, 2
  %vm1336 = vcmp.gt.s32.totalorder 0, %v1335
  %v1337 = vsel %vm1336, 0, %v1335
  %v1338 = vsub.s32 32, %v1337
  %v1339 = vshll.u32 %v1330, %v1337
  %v1340 = vshrl.u32 %v1322, %v1338
  %v1341 = vor.u32 %v1339, %v1340
  %v1342 = vsub.s32 4294967266, %v1337
  %v1343 = vadd.s32 %v1342, 127
  %v1344 = vshll.u32 %v1343, 23
  %v1345 = vor.u32 4788187, %v1344
  %v1346 = vand.u32 2147483647, %v1345
  %v1348 = vcvt.s32.f32 %v1341
  %v1349 = vmul.f32 %v1348, %v1346
  %v1350 = vxor.u32 %v1349, 2147483648
  %v1351 = vsel %vm1230, %v1350, %v1349
  %v1352 = vsub.s32 4, %v1328
  %v1353 = vsel %vm1230, %v1352, %v1328
  %v1354 = vsel %vm1229, %v1063, %v1351
  %v1355 = vsel %vm1229, 0, %v1353
  %v1356 = vmul.f32 %v1354, %v1354
  %v1357 = vmul.f32 %v1356, -0.001358992
  %v1358 = vadd.f32 %v1357, 0.041655596
  %v1359 = vmul.f32 %v1356, %v1358
  %v1360 = vadd.f32 %v1359, -0.4999988
  %v1361 = vmul.f32 %v1356, %v1360
  %v1362 = vadd.f32 1.0, %v1361
  %v1363 = vmul.f32 %v1354, %v1354
  %v1364 = vmul.f32 %v1363, -0.00019511016
  %v1365 = vadd.f32 %v1364, 0.008332121
  %v1366 = vmul.f32 %v1363, %v1365
  %v1367 = vadd.f32 %v1366, -0.16666654
  %v1368 = vmul.f32 %v1363, %v1367
  %v1369 = vadd.f32 %v1368, 1.0
  %v1370 = vmul.f32 %v1369, %v1354
  %vm1371 = vweird.f32 %v1063
  %v1372 = vand.u32 %v1355, 3
  %vm1373 = vcmp.lt.s32.totalorder %v1372, 2
  %vm1374 = vcmp.eq.s32.totalorder %v1372, 0
  %v1375 = vxor.u32 %v1370, 2147483648
  %v1376 = vsel %vm1374, %v1362, %v1375
  %vm1377 = vcmp.eq.s32.totalorder %v1372, 2
  %v1378 = vxor.u32 %v1362, 2147483648
  %v1379 = vsel %vm1377, %v1378, %v1370
  %v1380 = vsel %vm1373, %v1376, %v1379
  %v1381 = vsel %vm1371, nan, %v1380
  %v1382 = vand.u32 2147483647, %v1064
  %vm1383 = vcmp.le.f32.partialorder %v1382, 0.7853982
  %vm1384 = vcmp.lt.s32.totalorder %v1064, 0
  %v1385 = vand.u32 %v1064, 2139095040
  %v1386 = vshrl.u32 %v1385, 23
  %v1387 = vsub.s32 %v1386, 127
  %v1388 = vand.u32 2147483647, %v1064
  %v1389 = vand.u32 %v1388, 8388607
  %v1390 = vor.u32 %v1389, 8388608
  %v1391 = vsub.s32 0, %v1390
  %v1392 = vadd.s32 %v1387, 1
  %vm1393 = vcmp.gt.s32.totalorder %v1392, 0
  %v1394 = vsel %vm1393, %v1392, 0
  %v1395 = vshrl.u32 %v1394, 5
  %v1396 = vand.u32 %v1394, 31
  %v1397 = vsub.s32 32, %v1396
  %v1398 = vshrl.u32 683565275, %v1397
  %v1399 = vshll.u32 683565275, %v1396
  %v1400 = vshrl.u32 2475754826, %v1397
  %v1401 = vor.u32 %v1399, %v1400
  %v1402 = vshll.u32 2475754826, %v1396
  %v1403 = vshrl.u32 2131351028, %v1397
  %v1404 = vor.u32 %v1402, %v1403
  %v1405 = vshll.u32 2131351028, %v1396
  %v1406 = vshrl.u32 2102212464, %v1397
  %v1407 = vor.u32 %v1405, %v1406
  %v1408 = vshll.u32 2102212464, %v1396
  %v1409 = vshrl.u32 920167782, %v1397
  %v1410 = vor.u32 %v1408, %v1409
  %v1411 = vshll.u32 920167782, %v1396
  %v1412 = vshrl.u32 1326507024, %v1397
  %v1413 = vor.u32 %v1411, %v1412
  %vm1414 = vcmp.lt.s32.totalorder %v1395, 1
  %vm1415 = vcmp.lt.s32.totalorder %v1395, 2
  %vm1416 = vcmp.lt.s32.totalorder %v1395, 3
  %vm1417 = vcmp.lt.s32.totalorder %v1395, 4
  %v1418 = vsel %vm1414, %v1398, %v1401
  %v1419 = vsel %vm1417, %v1407, 2102212464
  %v1420 = vsel %vm1416, %v1404, %v1419
  %v1421 = vsel %vm1415, %v1418, %v1420
  %v1422 = vsel %vm1414, %v1401, %v1404
  %v1423 = vsel %vm1417, %v1410, 920167782
  %v1424 = vsel %vm1416, %v1407, %v1423
  %v1425 = vsel %vm1415, %v1422, %v1424
  %v1426 = vsel %vm1414, %v1404, %v1407
  %v1427 = vsel %vm1417, %v1413, 1326507024
  %v1428 = vsel %vm1416, %v1410, %v1427
  %v1429 = vsel %vm1415, %v1426, %v1428
  %v1430 = vshll.u32 %v1390, 8
  %v1431 = vand.u32 %v1430, 65535
  %v1432 = vshrl.u32 %v1430, 16
  %v1433 = vand.u32 %v1429, 65535
  %v1434 = vshrl.u32 %v1429, 16
  %v1435 = vmul.u32 %v1431, %v1433
  %v1436 = vmul.u32 %v1431, %v1434
  %v1437 = vmul.u32 %v1432, %v1433
  %v1438 = vmul.u32 %v1432, %v1434
  %v1439 = vshll.u32 %v1436, 16
  %v1440 = vshrl.u32 %v1436, 16
  %v1441 = vshll.u32 %v1437, 16
  %v1442 = vshrl.u32 %v1437, 16
  %vm1443 = vc.u32 %v1435, %v1439
  %v1444 = vsel %vm1443, 1, 0
  %v1445 = vadd.s32 %v1435, %v1439
  %v1446 = vadd.s32 %v1438, %v1444
  %vm1447 = vc.u32 %v1445, %v1441
  %v1448 = vsel %vm1447, 1, 0
  %v1449 = vadd.s32 %v1445, %v1441
  %v1450 = vadd.s32 %v1446, %v1448
  %v1451 = vadd.s32 %v1450, %v1440
  %v1452 = vadd.s32 %v1451, %v1442
  %v1453 = vand.u32 %v1430, 65535
  %v1454 = vshrl.u32 %v1430, 16
  %v1455 = vand.u32 %v1425, 65535
  %v1456 = vshrl.u32 %v1425, 16
  %v1457 = vmul.u32 %v1453, %v1455
  %v1458 = vmul.u32 %v1453, %v1456
  %v1459 = vmul.u32 %v1454, %v1455
  %v1460 = vmul.u32 %v1454, %v1456
  %v1461 = vshll.u32 %v1458, 16
  %v1462 = vshrl.u32 %v1458, 16
  %v1463 = vshll.u32 %v1459, 16
  %v1464 = vshrl.u32 %v1459, 16
  %vm1465 = vc.u32 %v1457, %v1461
  %v1466 = vsel %vm1465, 1, 0
  %v1467 = vadd.s32 %v1457, %v1461
  %v1468 = vadd.s32 %v1460, %v1466
  %vm1469 = vc.u32 %v1467, %v1463
  %v1470 = vsel %vm1469, 1, 0
  %v1471 = vadd.s32 %v1467, %v1463
  %v1472 = vadd.s32 %v1468, %v1470
  %v1473 = vadd.s32 %v1472, %v1462
  %v1474 = vadd.s32 %v1473, %v1464
  %v1475 = vmul.u32 %v1430, %v1421
  %v1476 = vadd.s32 %v1452, %v1471
  %vm1477 = vc.u32 %v1452, %v1471
  %v1478 = vadd.s32 %v1474, 1
  %v1479 = vsel %vm1477, %v1478, %v1474
  %v1480 = vadd.s32 %v1475, %v1479
  %v1481 = vadd.s32 %v1480, 536870912
  %v1482 = vshrl.u32 %v1481, 30
  %v1483 = vshll.u32 %v1482, 30
  %v1484 = vsub.s32 %v1480, %v1483
  %vm1485 = vcmp.lt.s32.totalorder %v1484, 0
  %v1486 = vsub.s32 0, %v1484
  %v1487 = vsel %vm1485, %v1486, %v1484
  %v1488 = vclz %v1487
  %v1489 = vsub.s32 %v1488, 2
  %vm1490 = vcmp.gt.s32.totalorder 0, %v1489
  %v1491 = vsel %vm1490, 0, %v1489
  %v1492 = vsub.s32 32, %v1491
  %v1493 = vshll.u32 %v1484, %v1491
  %v1494 = vshrl.u32 %v1476, %v1492
  %v1495 = vor.u32 %v1493, %v1494
  %v1496 = vsub.s32 4294967266, %v1491
  %v1497 = vadd.s32 %v1496, 127
  %v1498 = vshll.u32 %v1497, 23
  %v1499 = vor.u32 4788187, %v1498
  %v1500 = vand.u32 2147483647, %v1499
  %v1502 = vcvt.s32.f32 %v1495
  %v1503 = vmul.f32 %v1502, %v1500
  %v1504 = vxor.u32 %v1503, 2147483648
  %v1505 = vsel %vm1384, %v1504, %v1503
  %v1506 = vsub.s32 4, %v1482
  %v1507 = vsel %vm1384, %v1506, %v1482
  %v1508 = vsel %vm1383, %v1064, %v1505
  %v1509 = vsel %vm1383, 0, %v1507
  %v1510 = vmul.f32 %v1508, %v1508
  %v1511 = vmul.f32 %v1510, -0.001358992
  %v1512 = vadd.f32 %v1511, 0.041655596
  %v1513 = vmul.f32 %v1510, %v1512
  %v1514 = vadd.f32 %v1513, -0.4999988
  %v1515 = vmul.f32 %v1510, %v1514
  %v1516 = vadd.f32 1.0, %v1515
  %v1517 = vmul.f32 %v1508, %v1508
  %v1518 = vmul.f32 %v1517, -0.00019511016
  %v1519 = vadd.f32 %v1518, 0.008332121
  %v1520 = vmul.f32 %v1517, %v1519
  %v1521 = vadd.f32 %v1520, -0.16666654
  %v1522 = vmul.f32 %v1517, %v1521
  %v1523 = vadd.f32 %v1522, 1.0
  %v1524 = vmul.f32 %v1523, %v1508
  %vm1525 = vweird.f32 %v1064
  %v1526 = vand.u32 %v1509, 3
  %vm1527 = vcmp.lt.s32.totalorder %v1526, 2
  %vm1528 = vcmp.eq.s32.totalorder %v1526, 0
  %v1529 = vxor.u32 %v1524, 2147483648
  %v1530 = vsel %vm1528, %v1516, %v1529
  %vm1531 = vcmp.eq.s32.totalorder %v1526, 2
  %v1532 = vxor.u32 %v1516, 2147483648
  %v1533 = vsel %vm1531, %v1532, %v1524
  %v1534 = vsel %vm1527, %v1530, %v1533
  %v1535 = vsel %vm1525, nan, %v1534
  %v1536 = vand.u32 2147483647, %v1065
  %vm1537 = vcmp.le.f32.partialorder %v1536, 0.7853982
  %vm1538 = vcmp.lt.s32.totalorder %v1065, 0
  %v1539 = vand.u32 %v1065, 2139095040
  %v1540 = vshrl.u32 %v1539, 23
  %v1541 = vsub.s32 %v1540, 127
  %v1542 = vand.u32 2147483647, %v1065
  %v1543 = vand.u32 %v1542, 8388607
  %v1544 = vor.u32 %v1543, 8388608
  %v1545 = vsub.s32 0, %v1544
  %v1546 = vadd.s32 %v1541, 1
  %vm1547 = vcmp.gt.s32.totalorder %v1546, 0
  %v1548 = vsel %vm1547, %v1546, 0
  %v1549 = vshrl.u32 %v1548, 5
  %v1550 = vand.u32 %v1548, 31
  %v1551 = vsub.s32 32, %v1550
  %v1552 = vshrl.u32 683565275, %v1551
  %v1553 = vshll.u32 683565275, %v1550
  %v1554 = vshrl.u32 2475754826, %v1551
  %v1555 = vor.u32 %v1553, %v1554
  %v1556 = vshll.u32 2475754826, %v1550
  %v1557 = vshrl.u32 2131351028, %v1551
  %v1558 = vor.u32 %v1556, %v1557
  %v1559 = vshll.u32 2131351028, %v1550
  %v1560 = vshrl.u32 2102212464, %v1551
  %v1561 = vor.u32 %v1559, %v1560
  %v1562 = vshll.u32 2102212464, %v1550
  %v1563 = vshrl.u32 920167782, %v1551
  %v1564 = vor.u32 %v1562, %v1563
  %v1565 = vshll.u32 920167782, %v1550
  %v1566 = vshrl.u32 1326507024, %v1551
  %v1567 = vor.u32 %v1565, %v1566
  %vm1568 = vcmp.lt.s32.totalorder %v1549, 1
  %vm1569 = vcmp.lt.s32.totalorder %v1549, 2
  %vm1570 = vcmp.lt.s32.totalorder %v1549, 3
  %vm1571 = vcmp.lt.s32.totalorder %v1549, 4
  %v1572 = vsel %vm1568, %v1552, %v1555
  %v1573 = vsel %vm1571, %v1561, 2102212464
  %v1574 = vsel %vm1570, %v1558, %v1573
  %v1575 = vsel %vm1569, %v1572, %v1574
  %v1576 = vsel %vm1568, %v1555, %v1558
  %v1577 = vsel %vm1571, %v1564, 920167782
  %v1578 = vsel %vm1570, %v1561, %v1577
  %v1579 = vsel %vm1569, %v1576, %v1578
  %v1580 = vsel %vm1568, %v1558, %v1561
  %v1581 = vsel %vm1571, %v1567, 1326507024
  %v1582 = vsel %vm1570, %v1564, %v1581
  %v1583 = vsel %vm1569, %v1580, %v1582
  %v1584 = vshll.u32 %v1544, 8
  %v1585 = vand.u32 %v1584, 65535
  %v1586 = vshrl.u32 %v1584, 16
  %v1587 = vand.u32 %v1583, 65535
  %v1588 = vshrl.u32 %v1583, 16
  %v1589 = vmul.u32 %v1585, %v1587
  %v1590 = vmul.u32 %v1585, %v1588
  %v1591 = vmul.u32 %v1586, %v1587
  %v1592 = vmul.u32 %v1586, %v1588
  %v1593 = vshll.u32 %v1590, 16
  %v1594 = vshrl.u32 %v1590, 16
  %v1595 = vshll.u32 %v1591, 16
  %v1596 = vshrl.u32 %v1591, 16
  %vm1597 = vc.u32 %v1589, %v1593
  %v1598 = vsel %vm1597, 1, 0
  %v1599 = vadd.s32 %v1589, %v1593
  %v1600 = vadd.s32 %v1592, %v1598
  %vm1601 = vc.u32 %v1599, %v1595
  %v1602 = vsel %vm1601, 1, 0
  %v1603 = vadd.s32 %v1599, %v1595
  %v1604 = vadd.s32 %v1600, %v1602
  %v1605 = vadd.s32 %v1604, %v1594
  %v1606 = vadd.s32 %v1605, %v1596
  %v1607 = vand.u32 %v1584, 65535
  %v1608 = vshrl.u32 %v1584, 16
  %v1609 = vand.u32 %v1579, 65535
  %v1610 = vshrl.u32 %v1579, 16
  %v1611 = vmul.u32 %v1607, %v1609
  %v1612 = vmul.u32 %v1607, %v1610
  %v1613 = vmul.u32 %v1608, %v1609
  %v1614 = vmul.u32 %v1608, %v1610
  %v1615 = vshll.u32 %v1612, 16
  %v1616 = vshrl.u32 %v1612, 16
  %v1617 = vshll.u32 %v1613, 16
  %v1618 = vshrl.u32 %v1613, 16
  %vm1619 = vc.u32 %v1611, %v1615
  %v1620 = vsel %vm1619, 1, 0
  %v1621 = vadd.s32 %v1611, %v1615
  %v1622 = vadd.s32 %v1614, %v1620
  %vm1623 = vc.u32 %v1621, %v1617
  %v1624 = vsel %vm1623, 1, 0
  %v1625 = vadd.s32 %v1621, %v1617
  %v1626 = vadd.s32 %v1622, %v1624
  %v1627 = vadd.s32 %v1626, %v1616
  %v1628 = vadd.s32 %v1627, %v1618
  %v1629 = vmul.u32 %v1584, %v1575
  %v1630 = vadd.s32 %v1606, %v1625
  %vm1631 = vc.u32 %v1606, %v1625
  %v1632 = vadd.s32 %v1628, 1
  %v1633 = vsel %vm1631, %v1632, %v1628
  %v1634 = vadd.s32 %v1629, %v1633
  %v1635 = vadd.s32 %v1634, 536870912
  %v1636 = vshrl.u32 %v1635, 30
  %v1637 = vshll.u32 %v1636, 30
  %v1638 = vsub.s32 %v1634, %v1637
  %vm1639 = vcmp.lt.s32.totalorder %v1638, 0
  %v1640 = vsub.s32 0, %v1638
  %v1641 = vsel %vm1639, %v1640, %v1638
  %v1642 = vclz %v1641
  %v1643 = vsub.s32 %v1642, 2
  %vm1644 = vcmp.gt.s32.totalorder 0, %v1643
  %v1645 = vsel %vm1644, 0, %v1643
  %v1646 = vsub.s32 32, %v1645
  %v1647 = vshll.u32 %v1638, %v1645
  %v1648 = vshrl.u32 %v1630, %v1646
  %v1649 = vor.u32 %v1647, %v1648
  %v1650 = vsub.s32 4294967266, %v1645
  %v1651 = vadd.s32 %v1650, 127
  %v1652 = vshll.u32 %v1651, 23
  %v1653 = vor.u32 4788187, %v1652
  %v1654 = vand.u32 2147483647, %v1653
  %v1656 = vcvt.s32.f32 %v1649
  %v1657 = vmul.f32 %v1656, %v1654
  %v1658 = vxor.u32 %v1657, 2147483648
  %v1659 = vsel %vm1538, %v1658, %v1657
  %v1660 = vsub.s32 4, %v1636
  %v1661 = vsel %vm1538, %v1660, %v1636
  %v1662 = vsel %vm1537, %v1065, %v1659
  %v1663 = vsel %vm1537, 0, %v1661
  %v1664 = vmul.f32 %v1662, %v1662
  %v1665 = vmul.f32 %v1664, -0.001358992
  %v1666 = vadd.f32 %v1665, 0.041655596
  %v1667 = vmul.f32 %v1664, %v1666
  %v1668 = vadd.f32 %v1667, -0.4999988
  %v1669 = vmul.f32 %v1664, %v1668
  %v1670 = vadd.f32 1.0, %v1669
  %v1671 = vmul.f32 %v1662, %v1662
  %v1672 = vmul.f32 %v1671, -0.00019511016
  %v1673 = vadd.f32 %v1672, 0.008332121
  %v1674 = vmul.f32 %v1671, %v1673
  %v1675 = vadd.f32 %v1674, -0.16666654
  %v1676 = vmul.f32 %v1671, %v1675
  %v1677 = vadd.f32 %v1676, 1.0
  %v1678 = vmul.f32 %v1677, %v1662
  %vm1679 = vweird.f32 %v1065
  %v1680 = vand.u32 %v1663, 3
  %vm1681 = vcmp.lt.s32.totalorder %v1680, 2
  %vm1682 = vcmp.eq.s32.totalorder %v1680, 0
  %v1683 = vxor.u32 %v1678, 2147483648
  %v1684 = vsel %vm1682, %v1670, %v1683
  %vm1685 = vcmp.eq.s32.totalorder %v1680, 2
  %v1686 = vxor.u32 %v1670, 2147483648
  %v1687 = vsel %vm1685, %v1686, %v1678
  %v1688 = vsel %vm1681, %v1684, %v1687
  %v1689 = vsel %vm1679, nan, %v1688
  %v1690 = vand.u32 2147483647, %v1066
  %vm1691 = vcmp.le.f32.partialorder %v1690, 0.7853982
  %vm1692 = vcmp.lt.s32.totalorder %v1066, 0
  %v1693 = vand.u32 %v1066, 2139095040
  %v1694 = vshrl.u32 %v1693, 23
  %v1695 = vsub.s32 %v1694, 127
  %v1696 = vand.u32 2147483647, %v1066
  %v1697 = vand.u32 %v1696, 8388607
  %v1698 = vor.u32 %v1697, 8388608
  %v1699 = vsub.s32 0, %v1698
  %v1700 = vadd.s32 %v1695, 1
  %vm1701 = vcmp.gt.s32.totalorder %v1700, 0
  %v1702 = vsel %vm1701, %v1700, 0
  %v1703 = vshrl.u32 %v1702, 5
  %v1704 = vand.u32 %v1702, 31
  %v1705 = vsub.s32 32, %v1704
  %v1706 = vshrl.u32 683565275, %v1705
  %v1707 = vshll.u32 683565275, %v1704
  %v1708 = vshrl.u32 2475754826, %v1705
  %v1709 = vor.u32 %v1707, %v1708
  %v1710 = vshll.u32 2475754826, %v1704
  %v1711 = vshrl.u32 2131351028, %v1705
  %v1712 = vor.u32 %v1710, %v1711
  %v1713 = vshll.u32 2131351028, %v1704
  %v1714 = vshrl.u32 2102212464, %v1705
  %v1715 = vor.u32 %v1713, %v1714
  %v1716 = vshll.u32 2102212464, %v1704
  %v1717 = vshrl.u32 920167782, %v1705
  %v1718 = vor.u32 %v1716, %v1717
  %v1719 = vshll.u32 920167782, %v1704
  %v1720 = vshrl.u32 1326507024, %v1705
  %v1721 = vor.u32 %v1719, %v1720
  %vm1722 = vcmp.lt.s32.totalorder %v1703, 1
  %vm1723 = vcmp.lt.s32.totalorder %v1703, 2
  %vm1724 = vcmp.lt.s32.totalorder %v1703, 3
  %vm1725 = vcmp.lt.s32.totalorder %v1703, 4
  %v1726 = vsel %vm1722, %v1706, %v1709
  %v1727 = vsel %vm1725, %v1715, 2102212464
  %v1728 = vsel %vm1724, %v1712, %v1727
  %v1729 = vsel %vm1723, %v1726, %v1728
  %v1730 = vsel %vm1722, %v1709, %v1712
  %v1731 = vsel %vm1725, %v1718, 920167782
  %v1732 = vsel %vm1724, %v1715, %v1731
  %v1733 = vsel %vm1723, %v1730, %v1732
  %v1734 = vsel %vm1722, %v1712, %v1715
  %v1735 = vsel %vm1725, %v1721, 1326507024
  %v1736 = vsel %vm1724, %v1718, %v1735
  %v1737 = vsel %vm1723, %v1734, %v1736
  %v1738 = vshll.u32 %v1698, 8
  %v1739 = vand.u32 %v1738, 65535
  %v1740 = vshrl.u32 %v1738, 16
  %v1741 = vand.u32 %v1737, 65535
  %v1742 = vshrl.u32 %v1737, 16
  %v1743 = vmul.u32 %v1739, %v1741
  %v1744 = vmul.u32 %v1739, %v1742
  %v1745 = vmul.u32 %v1740, %v1741
  %v1746 = vmul.u32 %v1740, %v1742
  %v1747 = vshll.u32 %v1744, 16
  %v1748 = vshrl.u32 %v1744, 16
  %v1749 = vshll.u32 %v1745, 16
  %v1750 = vshrl.u32 %v1745, 16
  %vm1751 = vc.u32 %v1743, %v1747
  %v1752 = vsel %vm1751, 1, 0
  %v1753 = vadd.s32 %v1743, %v1747
  %v1754 = vadd.s32 %v1746, %v1752
  %vm1755 = vc.u32 %v1753, %v1749
  %v1756 = vsel %vm1755, 1, 0
  %v1757 = vadd.s32 %v1753, %v1749
  %v1758 = vadd.s32 %v1754, %v1756
  %v1759 = vadd.s32 %v1758, %v1748
  %v1760 = vadd.s32 %v1759, %v1750
  %v1761 = vand.u32 %v1738, 65535
  %v1762 = vshrl.u32 %v1738, 16
  %v1763 = vand.u32 %v1733, 65535
  %v1764 = vshrl.u32 %v1733, 16
  %v1765 = vmul.u32 %v1761, %v1763
  %v1766 = vmul.u32 %v1761, %v1764
  %v1767 = vmul.u32 %v1762, %v1763
  %v1768 = vmul.u32 %v1762, %v1764
  %v1769 = vshll.u32 %v1766, 16
  %v1770 = vshrl.u32 %v1766, 16
  %v1771 = vshll.u32 %v1767, 16
  %v1772 = vshrl.u32 %v1767, 16
  %vm1773 = vc.u32 %v1765, %v1769
  %v1774 = vsel %vm1773, 1, 0
  %v1775 = vadd.s32 %v1765, %v1769
  %v1776 = vadd.s32 %v1768, %v1774
  %vm1777 = vc.u32 %v1775, %v1771
  %v1778 = vsel %vm1777, 1, 0
  %v1779 = vadd.s32 %v1775, %v1771
  %v1780 = vadd.s32 %v1776, %v1778
  %v1781 = vadd.s32 %v1780, %v1770
  %v1782 = vadd.s32 %v1781, %v1772
  %v1783 = vmul.u32 %v1738, %v1729
  %v1784 = vadd.s32 %v1760, %v1779
  %vm1785 = vc.u32 %v1760, %v1779
  %v1786 = vadd.s32 %v1782, 1
  %v1787 = vsel %vm1785, %v1786, %v1782
  %v1788 = vadd.s32 %v1783, %v1787
  %v1789 = vadd.s32 %v1788, 536870912
  %v1790 = vshrl.u32 %v1789, 30
  %v1791 = vshll.u32 %v1790, 30
  %v1792 = vsub.s32 %v1788, %v1791
  %vm1793 = vcmp.lt.s32.totalorder %v1792, 0
  %v1794 = vsub.s32 0, %v1792
  %v1795 = vsel %vm1793, %v1794, %v1792
  %v1796 = vclz %v1795
  %v1797 = vsub.s32 %v1796, 2
  %vm1798 = vcmp.gt.s32.totalorder 0, %v1797
  %v1799 = vsel %vm1798, 0, %v1797
  %v1800 = vsub.s32 32, %v1799
  %v1801 = vshll.u32 %v1792, %v1799
  %v1802 = vshrl.u32 %v1784, %v1800
  %v1803 = vor.u32 %v1801, %v1802
  %v1804 = vsub.s32 4294967266, %v1799
  %v1805 = vadd.s32 %v1804, 127
  %v1806 = vshll.u32 %v1805, 23
  %v1807 = vor.u32 4788187, %v1806
  %v1808 = vand.u32 2147483647, %v1807
  %v1810 = vcvt.s32.f32 %v1803
  %v1811 = vmul.f32 %v1810, %v1808
  %v1812 = vxor.u32 %v1811, 2147483648
  %v1813 = vsel %vm1692, %v1812, %v1811
  %v1814 = vsub.s32 4, %v1790
  %v1815 = vsel %vm1692, %v1814, %v1790
  %v1816 = vsel %vm1691, %v1066, %v1813
  %v1817 = vsel %vm1691, 0, %v1815
  %v1818 = vmul.f32 %v1816, %v1816
  %v1819 = vmul.f32 %v1818, -0.001358992
  %v1820 = vadd.f32 %v1819, 0.041655596
  %v1821 = vmul.f32 %v1818, %v1820
  %v1822 = vadd.f32 %v1821, -0.4999988
  %v1823 = vmul.f32 %v1818, %v1822
  %v1824 = vadd.f32 1.0, %v1823
  %v1825 = vmul.f32 %v1816, %v1816
  %v1826 = vmul.f32 %v1825, -0.00019511016
  %v1827 = vadd.f32 %v1826, 0.008332121
  %v1828 = vmul.f32 %v1825, %v1827
  %v1829 = vadd.f32 %v1828, -0.16666654
  %v1830 = vmul.f32 %v1825, %v1829
  %v1831 = vadd.f32 %v1830, 1.0
  %v1832 = vmul.f32 %v1831, %v1816
  %vm1833 = vweird.f32 %v1066
  %v1834 = vand.u32 %v1817, 3
  %vm1835 = vcmp.lt.s32.totalorder %v1834, 2
  %vm1836 = vcmp.eq.s32.totalorder %v1834, 0
  %v1837 = vxor.u32 %v1832, 2147483648
  %v1838 = vsel %vm1836, %v1824, %v1837
  %vm1839 = vcmp.eq.s32.totalorder %v1834, 2
  %v1840 = vxor.u32 %v1824, 2147483648
  %v1841 = vsel %vm1839, %v1840, %v1832
  %v1842 = vsel %vm1835, %v1838, %v1841
  %v1843 = vsel %vm1833, nan, %v1842
  %v1844 = vand.u32 2147483647, %v1067
  %vm1845 = vcmp.le.f32.partialorder %v1844, 0.7853982
  %vm1846 = vcmp.lt.s32.totalorder %v1067, 0
  %v1847 = vand.u32 %v1067, 2139095040
  %v1848 = vshrl.u32 %v1847, 23
  %v1849 = vsub.s32 %v1848, 127
  %v1850 = vand.u32 2147483647, %v1067
  %v1851 = vand.u32 %v1850, 8388607
  %v1852 = vor.u32 %v1851, 8388608
  %v1853 = vsub.s32 0, %v1852
  %v1854 = vadd.s32 %v1849, 1
  %vm1855 = vcmp.gt.s32.totalorder %v1854, 0
  %v1856 = vsel %vm1855, %v1854, 0
  %v1857 = vshrl.u32 %v1856, 5
  %v1858 = vand.u32 %v1856, 31
  %v1859 = vsub.s32 32, %v1858
  %v1860 = vshrl.u32 683565275, %v1859
  %v1861 = vshll.u32 683565275, %v1858
  %v1862 = vshrl.u32 2475754826, %v1859
  %v1863 = vor.u32 %v1861, %v1862
  %v1864 = vshll.u32 2475754826, %v1858
  %v1865 = vshrl.u32 2131351028, %v1859
  %v1866 = vor.u32 %v1864, %v1865
  %v1867 = vshll.u32 2131351028, %v1858
  %v1868 = vshrl.u32 2102212464, %v1859
  %v1869 = vor.u32 %v1867, %v1868
  %v1870 = vshll.u32 2102212464, %v1858
  %v1871 = vshrl.u32 920167782, %v1859
  %v1872 = vor.u32 %v1870, %v1871
  %v1873 = vshll.u32 920167782, %v1858
  %v1874 = vshrl.u32 1326507024, %v1859
  %v1875 = vor.u32 %v1873, %v1874
  %vm1876 = vcmp.lt.s32.totalorder %v1857, 1
  %vm1877 = vcmp.lt.s32.totalorder %v1857, 2
  %vm1878 = vcmp.lt.s32.totalorder %v1857, 3
  %vm1879 = vcmp.lt.s32.totalorder %v1857, 4
  %v1880 = vsel %vm1876, %v1860, %v1863
  %v1881 = vsel %vm1879, %v1869, 2102212464
  %v1882 = vsel %vm1878, %v1866, %v1881
  %v1883 = vsel %vm1877, %v1880, %v1882
  %v1884 = vsel %vm1876, %v1863, %v1866
  %v1885 = vsel %vm1879, %v1872, 920167782
  %v1886 = vsel %vm1878, %v1869, %v1885
  %v1887 = vsel %vm1877, %v1884, %v1886
  %v1888 = vsel %vm1876, %v1866, %v1869
  %v1889 = vsel %vm1879, %v1875, 1326507024
  %v1890 = vsel %vm1878, %v1872, %v1889
  %v1891 = vsel %vm1877, %v1888, %v1890
  %v1892 = vshll.u32 %v1852, 8
  %v1893 = vand.u32 %v1892, 65535
  %v1894 = vshrl.u32 %v1892, 16
  %v1895 = vand.u32 %v1891, 65535
  %v1896 = vshrl.u32 %v1891, 16
  %v1897 = vmul.u32 %v1893, %v1895
  %v1898 = vmul.u32 %v1893, %v1896
  %v1899 = vmul.u32 %v1894, %v1895
  %v1900 = vmul.u32 %v1894, %v1896
  %v1901 = vshll.u32 %v1898, 16
  %v1902 = vshrl.u32 %v1898, 16
  %v1903 = vshll.u32 %v1899, 16
  %v1904 = vshrl.u32 %v1899, 16
  %vm1905 = vc.u32 %v1897, %v1901
  %v1906 = vsel %vm1905, 1, 0
  %v1907 = vadd.s32 %v1897, %v1901
  %v1908 = vadd.s32 %v1900, %v1906
  %vm1909 = vc.u32 %v1907, %v1903
  %v1910 = vsel %vm1909, 1, 0
  %v1911 = vadd.s32 %v1907, %v1903
  %v1912 = vadd.s32 %v1908, %v1910
  %v1913 = vadd.s32 %v1912, %v1902
  %v1914 = vadd.s32 %v1913, %v1904
  %v1915 = vand.u32 %v1892, 65535
  %v1916 = vshrl.u32 %v1892, 16
  %v1917 = vand.u32 %v1887, 65535
  %v1918 = vshrl.u32 %v1887, 16
  %v1919 = vmul.u32 %v1915, %v1917
  %v1920 = vmul.u32 %v1915, %v1918
  %v1921 = vmul.u32 %v1916, %v1917
  %v1922 = vmul.u32 %v1916, %v1918
  %v1923 = vshll.u32 %v1920, 16
  %v1924 = vshrl.u32 %v1920, 16
  %v1925 = vshll.u32 %v1921, 16
  %v1926 = vshrl.u32 %v1921, 16
  %vm1927 = vc.u32 %v1919, %v1923
  %v1928 = vsel %vm1927, 1, 0
  %v1929 = vadd.s32 %v1919, %v1923
  %v1930 = vadd.s32 %v1922, %v1928
  %vm1931 = vc.u32 %v1929, %v1925
  %v1932 = vsel %vm1931, 1, 0
  %v1933 = vadd.s32 %v1929, %v1925
  %v1934 = vadd.s32 %v1930, %v1932
  %v1935 = vadd.s32 %v1934, %v1924
  %v1936 = vadd.s32 %v1935, %v1926
  %v1937 = vmul.u32 %v1892, %v1883
  %v1938 = vadd.s32 %v1914, %v1933
  %vm1939 = vc.u32 %v1914, %v1933
  %v1940 = vadd.s32 %v1936, 1
  %v1941 = vsel %vm1939, %v1940, %v1936
  %v1942 = vadd.s32 %v1937, %v1941
  %v1943 = vadd.s32 %v1942, 536870912
  %v1944 = vshrl.u32 %v1943, 30
  %v1945 = vshll.u32 %v1944, 30
  %v1946 = vsub.s32 %v1942, %v1945
  %vm1947 = vcmp.lt.s32.totalorder %v1946, 0
  %v1948 = vsub.s32 0, %v1946
  %v1949 = vsel %vm1947, %v1948, %v1946
  %v1950 = vclz %v1949
  %v1951 = vsub.s32 %v1950, 2
  %vm1952 = vcmp.gt.s32.totalorder 0, %v1951
  %v1953 = vsel %vm1952, 0, %v1951
  %v1954 = vsub.s32 32, %v1953
  %v1955 = vshll.u32 %v1946, %v1953
  %v1956 = vshrl.u32 %v1938, %v1954
  %v1957 = vor.u32 %v1955, %v1956
  %v1958 = vsub.s32 4294967266, %v1953
  %v1959 = vadd.s32 %v1958, 127
  %v1960 = vshll.u32 %v1959, 23
  %v1961 = vor.u32 4788187, %v1960
  %v1962 = vand.u32 2147483647, %v1961
  %v1964 = vcvt.s32.f32 %v1957
  %v1965 = vmul.f32 %v1964, %v1962
  %v1966 = vxor.u32 %v1965, 2147483648
  %v1967 = vsel %vm1846, %v1966, %v1965
  %v1968 = vsub.s32 4, %v1944
  %v1969 = vsel %vm1846, %v1968, %v1944
  %v1970 = vsel %vm1845, %v1067, %v1967
  %v1971 = vsel %vm1845, 0, %v1969
  %v1972 = vmul.f32 %v1970, %v1970
  %v1973 = vmul.f32 %v1972, -0.001358992
  %v1974 = vadd.f32 %v1973, 0.041655596
  %v1975 = vmul.f32 %v1972, %v1974
  %v1976 = vadd.f32 %v1975, -0.4999988
  %v1977 = vmul.f32 %v1972, %v1976
  %v1978 = vadd.f32 1.0, %v1977
  %v1979 = vmul.f32 %v1970, %v1970
  %v1980 = vmul.f32 %v1979, -0.00019511016
  %v1981 = vadd.f32 %v1980, 0.008332121
  %v1982 = vmul.f32 %v1979, %v1981
  %v1983 = vadd.f32 %v1982, -0.16666654
  %v1984 = vmul.f32 %v1979, %v1983
  %v1985 = vadd.f32 %v1984, 1.0
  %v1986 = vmul.f32 %v1985, %v1970
  %vm1987 = vweird.f32 %v1067
  %v1988 = vand.u32 %v1971, 3
  %vm1989 = vcmp.lt.s32.totalorder %v1988, 2
  %vm1990 = vcmp.eq.s32.totalorder %v1988, 0
  %v1991 = vxor.u32 %v1986, 2147483648
  %v1992 = vsel %vm1990, %v1978, %v1991
  %vm1993 = vcmp.eq.s32.totalorder %v1988, 2
  %v1994 = vxor.u32 %v1978, 2147483648
  %v1995 = vsel %vm1993, %v1994, %v1986
  %v1996 = vsel %vm1989, %v1992, %v1995
  %v1997 = vsel %vm1987, nan, %v1996
  %v1998 = vand.u32 2147483647, %v1068
  %vm1999 = vcmp.le.f32.partialorder %v1998, 0.7853982
  %vm2000 = vcmp.lt.s32.totalorder %v1068, 0
  %v2001 = vand.u32 %v1068, 2139095040
  %v2002 = vshrl.u32 %v2001, 23
  %v2003 = vsub.s32 %v2002, 127
  %v2004 = vand.u32 2147483647, %v1068
  %v2005 = vand.u32 %v2004, 8388607
  %v2006 = vor.u32 %v2005, 8388608
  %v2007 = vsub.s32 0, %v2006
  %v2008 = vadd.s32 %v2003, 1
  %vm2009 = vcmp.gt.s32.totalorder %v2008, 0
  %v2010 = vsel %vm2009, %v2008, 0
  %v2011 = vshrl.u32 %v2010, 5
  %v2012 = vand.u32 %v2010, 31
  %v2013 = vsub.s32 32, %v2012
  %v2014 = vshrl.u32 683565275, %v2013
  %v2015 = vshll.u32 683565275, %v2012
  %v2016 = vshrl.u32 2475754826, %v2013
  %v2017 = vor.u32 %v2015, %v2016
  %v2018 = vshll.u32 2475754826, %v2012
  %v2019 = vshrl.u32 2131351028, %v2013
  %v2020 = vor.u32 %v2018, %v2019
  %v2021 = vshll.u32 2131351028, %v2012
  %v2022 = vshrl.u32 2102212464, %v2013
  %v2023 = vor.u32 %v2021, %v2022
  %v2024 = vshll.u32 2102212464, %v2012
  %v2025 = vshrl.u32 920167782, %v2013
  %v2026 = vor.u32 %v2024, %v2025
  %v2027 = vshll.u32 920167782, %v2012
  %v2028 = vshrl.u32 1326507024, %v2013
  %v2029 = vor.u32 %v2027, %v2028
  %vm2030 = vcmp.lt.s32.totalorder %v2011, 1
  %vm2031 = vcmp.lt.s32.totalorder %v2011, 2
  %vm2032 = vcmp.lt.s32.totalorder %v2011, 3
  %vm2033 = vcmp.lt.s32.totalorder %v2011, 4
  %v2034 = vsel %vm2030, %v2014, %v2017
  %v2035 = vsel %vm2033, %v2023, 2102212464
  %v2036 = vsel %vm2032, %v2020, %v2035
  %v2037 = vsel %vm2031, %v2034, %v2036
  %v2038 = vsel %vm2030, %v2017, %v2020
  %v2039 = vsel %vm2033, %v2026, 920167782
  %v2040 = vsel %vm2032, %v2023, %v2039
  %v2041 = vsel %vm2031, %v2038, %v2040
  %v2042 = vsel %vm2030, %v2020, %v2023
  %v2043 = vsel %vm2033, %v2029, 1326507024
  %v2044 = vsel %vm2032, %v2026, %v2043
  %v2045 = vsel %vm2031, %v2042, %v2044
  %v2046 = vshll.u32 %v2006, 8
  %v2047 = vand.u32 %v2046, 65535
  %v2048 = vshrl.u32 %v2046, 16
  %v2049 = vand.u32 %v2045, 65535
  %v2050 = vshrl.u32 %v2045, 16
  %v2051 = vmul.u32 %v2047, %v2049
  %v2052 = vmul.u32 %v2047, %v2050
  %v2053 = vmul.u32 %v2048, %v2049
  %v2054 = vmul.u32 %v2048, %v2050
  %v2055 = vshll.u32 %v2052, 16
  %v2056 = vshrl.u32 %v2052, 16
  %v2057 = vshll.u32 %v2053, 16
  %v2058 = vshrl.u32 %v2053, 16
  %vm2059 = vc.u32 %v2051, %v2055
  %v2060 = vsel %vm2059, 1, 0
  %v2061 = vadd.s32 %v2051, %v2055
  %v2062 = vadd.s32 %v2054, %v2060
  %vm2063 = vc.u32 %v2061, %v2057
  %v2064 = vsel %vm2063, 1, 0
  %v2065 = vadd.s32 %v2061, %v2057
  %v2066 = vadd.s32 %v2062, %v2064
  %v2067 = vadd.s32 %v2066, %v2056
  %v2068 = vadd.s32 %v2067, %v2058
  %v2069 = vand.u32 %v2046, 65535
  %v2070 = vshrl.u32 %v2046, 16
  %v2071 = vand.u32 %v2041, 65535
  %v2072 = vshrl.u32 %v2041, 16
  %v2073 = vmul.u32 %v2069, %v2071
  %v2074 = vmul.u32 %v2069, %v2072
  %v2075 = vmul.u32 %v2070, %v2071
  %v2076 = vmul.u32 %v2070, %v2072
  %v2077 = vshll.u32 %v2074, 16
  %v2078 = vshrl.u32 %v2074, 16
  %v2079 = vshll.u32 %v2075, 16
  %v2080 = vshrl.u32 %v2075, 16
  %vm2081 = vc.u32 %v2073, %v2077
  %v2082 = vsel %vm2081, 1, 0
  %v2083 = vadd.s32 %v2073, %v2077
  %v2084 = vadd.s32 %v2076, %v2082
  %vm2085 = vc.u32 %v2083, %v2079
  %v2086 = vsel %vm2085, 1, 0
  %v2087 = vadd.s32 %v2083, %v2079
  %v2088 = vadd.s32 %v2084, %v2086
  %v2089 = vadd.s32 %v2088, %v2078
  %v2090 = vadd.s32 %v2089, %v2080
  %v2091 = vmul.u32 %v2046, %v2037
  %v2092 = vadd.s32 %v2068, %v2087
  %vm2093 = vc.u32 %v2068, %v2087
  %v2094 = vadd.s32 %v2090, 1
  %v2095 = vsel %vm2093, %v2094, %v2090
  %v2096 = vadd.s32 %v2091, %v2095
  %v2097 = vadd.s32 %v2096, 536870912
  %v2098 = vshrl.u32 %v2097, 30
  %v2099 = vshll.u32 %v2098, 30
  %v2100 = vsub.s32 %v2096, %v2099
  %vm2101 = vcmp.lt.s32.totalorder %v2100, 0
  %v2102 = vsub.s32 0, %v2100
  %v2103 = vsel %vm2101, %v2102, %v2100
  %v2104 = vclz %v2103
  %v2105 = vsub.s32 %v2104, 2
  %vm2106 = vcmp.gt.s32.totalorder 0, %v2105
  %v2107 = vsel %vm2106, 0, %v2105
  %v2108 = vsub.s32 32, %v2107
  %v2109 = vshll.u32 %v2100, %v2107
  %v2110 = vshrl.u32 %v2092, %v2108
  %v2111 = vor.u32 %v2109, %v2110
  %v2112 = vsub.s32 4294967266, %v2107
  %v2113 = vadd.s32 %v2112, 127
  %v2114 = vshll.u32 %v2113, 23
  %v2115 = vor.u32 4788187, %v2114
  %v2116 = vand.u32 2147483647, %v2115
  %v2118 = vcvt.s32.f32 %v2111
  %v2119 = vmul.f32 %v2118, %v2116
  %v2120 = vxor.u32 %v2119, 2147483648
  %v2121 = vsel %vm2000, %v2120, %v2119
  %v2122 = vsub.s32 4, %v2098
  %v2123 = vsel %vm2000, %v2122, %v2098
  %v2124 = vsel %vm1999, %v1068, %v2121
  %v2125 = vsel %vm1999, 0, %v2123
  %v2126 = vmul.f32 %v2124, %v2124
  %v2127 = vmul.f32 %v2126, -0.001358992
  %v2128 = vadd.f32 %v2127, 0.041655596
  %v2129 = vmul.f32 %v2126, %v2128
  %v2130 = vadd.f32 %v2129, -0.4999988
  %v2131 = vmul.f32 %v2126, %v2130
  %v2132 = vadd.f32 1.0, %v2131
  %v2133 = vmul.f32 %v2124, %v2124
  %v2134 = vmul.f32 %v2133, -0.00019511016
  %v2135 = vadd.f32 %v2134, 0.008332121
  %v2136 = vmul.f32 %v2133, %v2135
  %v2137 = vadd.f32 %v2136, -0.16666654
  %v2138 = vmul.f32 %v2133, %v2137
  %v2139 = vadd.f32 %v2138, 1.0
  %v2140 = vmul.f32 %v2139, %v2124
  %vm2141 = vweird.f32 %v1068
  %v2142 = vand.u32 %v2125, 3
  %vm2143 = vcmp.lt.s32.totalorder %v2142, 2
  %vm2144 = vcmp.eq.s32.totalorder %v2142, 0
  %v2145 = vxor.u32 %v2140, 2147483648
  %v2146 = vsel %vm2144, %v2132, %v2145
  %vm2147 = vcmp.eq.s32.totalorder %v2142, 2
  %v2148 = vxor.u32 %v2132, 2147483648
  %v2149 = vsel %vm2147, %v2148, %v2140
  %v2150 = vsel %vm2143, %v2146, %v2149
  %v2151 = vsel %vm2141, nan, %v2150
  %v2152 = vand.u32 2147483647, %v1069
  %vm2153 = vcmp.le.f32.partialorder %v2152, 0.7853982
  %vm2154 = vcmp.lt.s32.totalorder %v1069, 0
  %v2155 = vand.u32 %v1069, 2139095040
  %v2156 = vshrl.u32 %v2155, 23
  %v2157 = vsub.s32 %v2156, 127
  %v2158 = vand.u32 2147483647, %v1069
  %v2159 = vand.u32 %v2158, 8388607
  %v2160 = vor.u32 %v2159, 8388608
  %v2161 = vsub.s32 0, %v2160
  %v2162 = vadd.s32 %v2157, 1
  %vm2163 = vcmp.gt.s32.totalorder %v2162, 0
  %v2164 = vsel %vm2163, %v2162, 0
  %v2165 = vshrl.u32 %v2164, 5
  %v2166 = vand.u32 %v2164, 31
  %v2167 = vsub.s32 32, %v2166
  %v2168 = vshrl.u32 683565275, %v2167
  %v2169 = vshll.u32 683565275, %v2166
  %v2170 = vshrl.u32 2475754826, %v2167
  %v2171 = vor.u32 %v2169, %v2170
  %v2172 = vshll.u32 2475754826, %v2166
  %v2173 = vshrl.u32 2131351028, %v2167
  %v2174 = vor.u32 %v2172, %v2173
  %v2175 = vshll.u32 2131351028, %v2166
  %v2176 = vshrl.u32 2102212464, %v2167
  %v2177 = vor.u32 %v2175, %v2176
  %v2178 = vshll.u32 2102212464, %v2166
  %v2179 = vshrl.u32 920167782, %v2167
  %v2180 = vor.u32 %v2178, %v2179
  %v2181 = vshll.u32 920167782, %v2166
  %v2182 = vshrl.u32 1326507024, %v2167
  %v2183 = vor.u32 %v2181, %v2182
  %vm2184 = vcmp.lt.s32.totalorder %v2165, 1
  %vm2185 = vcmp.lt.s32.totalorder %v2165, 2
  %vm2186 = vcmp.lt.s32.totalorder %v2165, 3
  %vm2187 = vcmp.lt.s32.totalorder %v2165, 4
  %v2188 = vsel %vm2184, %v2168, %v2171
  %v2189 = vsel %vm2187, %v2177, 2102212464
  %v2190 = vsel %vm2186, %v2174, %v2189
  %v2191 = vsel %vm2185, %v2188, %v2190
  %v2192 = vsel %vm2184, %v2171, %v2174
  %v2193 = vsel %vm2187, %v2180, 920167782
  %v2194 = vsel %vm2186, %v2177, %v2193
  %v2195 = vsel %vm2185, %v2192, %v2194
  %v2196 = vsel %vm2184, %v2174, %v2177
  %v2197 = vsel %vm2187, %v2183, 1326507024
  %v2198 = vsel %vm2186, %v2180, %v2197
  %v2199 = vsel %vm2185, %v2196, %v2198
  %v2200 = vshll.u32 %v2160, 8
  %v2201 = vand.u32 %v2200, 65535
  %v2202 = vshrl.u32 %v2200, 16
  %v2203 = vand.u32 %v2199, 65535
  %v2204 = vshrl.u32 %v2199, 16
  %v2205 = vmul.u32 %v2201, %v2203
  %v2206 = vmul.u32 %v2201, %v2204
  %v2207 = vmul.u32 %v2202, %v2203
  %v2208 = vmul.u32 %v2202, %v2204
  %v2209 = vshll.u32 %v2206, 16
  %v2210 = vshrl.u32 %v2206, 16
  %v2211 = vshll.u32 %v2207, 16
  %v2212 = vshrl.u32 %v2207, 16
  %vm2213 = vc.u32 %v2205, %v2209
  %v2214 = vsel %vm2213, 1, 0
  %v2215 = vadd.s32 %v2205, %v2209
  %v2216 = vadd.s32 %v2208, %v2214
  %vm2217 = vc.u32 %v2215, %v2211
  %v2218 = vsel %vm2217, 1, 0
  %v2219 = vadd.s32 %v2215, %v2211
  %v2220 = vadd.s32 %v2216, %v2218
  %v2221 = vadd.s32 %v2220, %v2210
  %v2222 = vadd.s32 %v2221, %v2212
  %v2223 = vand.u32 %v2200, 65535
  %v2224 = vshrl.u32 %v2200, 16
  %v2225 = vand.u32 %v2195, 65535
  %v2226 = vshrl.u32 %v2195, 16
  %v2227 = vmul.u32 %v2223, %v2225
  %v2228 = vmul.u32 %v2223, %v2226
  %v2229 = vmul.u32 %v2224, %v2225
  %v2230 = vmul.u32 %v2224, %v2226
  %v2231 = vshll.u32 %v2228, 16
  %v2232 = vshrl.u32 %v2228, 16
  %v2233 = vshll.u32 %v2229, 16
  %v2234 = vshrl.u32 %v2229, 16
  %vm2235 = vc.u32 %v2227, %v2231
  %v2236 = vsel %vm2235, 1, 0
  %v2237 = vadd.s32 %v2227, %v2231
  %v2238 = vadd.s32 %v2230, %v2236
  %vm2239 = vc.u32 %v2237, %v2233
  %v2240 = vsel %vm2239, 1, 0
  %v2241 = vadd.s32 %v2237, %v2233
  %v2242 = vadd.s32 %v2238, %v2240
  %v2243 = vadd.s32 %v2242, %v2232
  %v2244 = vadd.s32 %v2243, %v2234
  %v2245 = vmul.u32 %v2200, %v2191
  %v2246 = vadd.s32 %v2222, %v2241
  %vm2247 = vc.u32 %v2222, %v2241
  %v2248 = vadd.s32 %v2244, 1
  %v2249 = vsel %vm2247, %v2248, %v2244
  %v2250 = vadd.s32 %v2245, %v2249
  %v2251 = vadd.s32 %v2250, 536870912
  %v2252 = vshrl.u32 %v2251, 30
  %v2253 = vshll.u32 %v2252, 30
  %v2254 = vsub.s32 %v2250, %v2253
  %vm2255 = vcmp.lt.s32.totalorder %v2254, 0
  %v2256 = vsub.s32 0, %v2254
  %v2257 = vsel %vm2255, %v2256, %v2254
  %v2258 = vclz %v2257
  %v2259 = vsub.s32 %v2258, 2
  %vm2260 = vcmp.gt.s32.totalorder 0, %v2259
  %v2261 = vsel %vm2260, 0, %v2259
  %v2262 = vsub.s32 32, %v2261
  %v2263 = vshll.u32 %v2254, %v2261
  %v2264 = vshrl.u32 %v2246, %v2262
  %v2265 = vor.u32 %v2263, %v2264
  %v2266 = vsub.s32 4294967266, %v2261
  %v2267 = vadd.s32 %v2266, 127
  %v2268 = vshll.u32 %v2267, 23
  %v2269 = vor.u32 4788187, %v2268
  %v2270 = vand.u32 2147483647, %v2269
  %v2272 = vcvt.s32.f32 %v2265
  %v2273 = vmul.f32 %v2272, %v2270
  %v2274 = vxor.u32 %v2273, 2147483648
  %v2275 = vsel %vm2154, %v2274, %v2273
  %v2276 = vsub.s32 4, %v2252
  %v2277 = vsel %vm2154, %v2276, %v2252
  %v2278 = vsel %vm2153, %v1069, %v2275
  %v2279 = vsel %vm2153, 0, %v2277
  %v2280 = vmul.f32 %v2278, %v2278
  %v2281 = vmul.f32 %v2280, -0.001358992
  %v2282 = vadd.f32 %v2281, 0.041655596
  %v2283 = vmul.f32 %v2280, %v2282
  %v2284 = vadd.f32 %v2283, -0.4999988
  %v2285 = vmul.f32 %v2280, %v2284
  %v2286 = vadd.f32 1.0, %v2285
  %v2287 = vmul.f32 %v2278, %v2278
  %v2288 = vmul.f32 %v2287, -0.00019511016
  %v2289 = vadd.f32 %v2288, 0.008332121
  %v2290 = vmul.f32 %v2287, %v2289
  %v2291 = vadd.f32 %v2290, -0.16666654
  %v2292 = vmul.f32 %v2287, %v2291
  %v2293 = vadd.f32 %v2292, 1.0
  %v2294 = vmul.f32 %v2293, %v2278
  %vm2295 = vweird.f32 %v1069
  %v2296 = vand.u32 %v2279, 3
  %vm2297 = vcmp.lt.s32.totalorder %v2296, 2
  %vm2298 = vcmp.eq.s32.totalorder %v2296, 0
  %v2299 = vxor.u32 %v2294, 2147483648
  %v2300 = vsel %vm2298, %v2286, %v2299
  %vm2301 = vcmp.eq.s32.totalorder %v2296, 2
  %v2302 = vxor.u32 %v2286, 2147483648
  %v2303 = vsel %vm2301, %v2302, %v2294
  %v2304 = vsel %vm2297, %v2300, %v2303
  %v2305 = vsel %vm2295, nan, %v2304
  %v2306 = vand.u32 2147483647, %v1070
  %vm2307 = vcmp.le.f32.partialorder %v2306, 0.7853982
  %vm2308 = vcmp.lt.s32.totalorder %v1070, 0
  %v2309 = vand.u32 %v1070, 2139095040
  %v2310 = vshrl.u32 %v2309, 23
  %v2311 = vsub.s32 %v2310, 127
  %v2312 = vand.u32 2147483647, %v1070
  %v2313 = vand.u32 %v2312, 8388607
  %v2314 = vor.u32 %v2313, 8388608
  %v2315 = vsub.s32 0, %v2314
  %v2316 = vadd.s32 %v2311, 1
  %vm2317 = vcmp.gt.s32.totalorder %v2316, 0
  %v2318 = vsel %vm2317, %v2316, 0
  %v2319 = vshrl.u32 %v2318, 5
  %v2320 = vand.u32 %v2318, 31
  %v2321 = vsub.s32 32, %v2320
  %v2322 = vshrl.u32 683565275, %v2321
  %v2323 = vshll.u32 683565275, %v2320
  %v2324 = vshrl.u32 2475754826, %v2321
  %v2325 = vor.u32 %v2323, %v2324
  %v2326 = vshll.u32 2475754826, %v2320
  %v2327 = vshrl.u32 2131351028, %v2321
  %v2328 = vor.u32 %v2326, %v2327
  %v2329 = vshll.u32 2131351028, %v2320
  %v2330 = vshrl.u32 2102212464, %v2321
  %v2331 = vor.u32 %v2329, %v2330
  %v2332 = vshll.u32 2102212464, %v2320
  %v2333 = vshrl.u32 920167782, %v2321
  %v2334 = vor.u32 %v2332, %v2333
  %v2335 = vshll.u32 920167782, %v2320
  %v2336 = vshrl.u32 1326507024, %v2321
  %v2337 = vor.u32 %v2335, %v2336
  %vm2338 = vcmp.lt.s32.totalorder %v2319, 1
  %vm2339 = vcmp.lt.s32.totalorder %v2319, 2
  %vm2340 = vcmp.lt.s32.totalorder %v2319, 3
  %vm2341 = vcmp.lt.s32.totalorder %v2319, 4
  %v2342 = vsel %vm2338, %v2322, %v2325
  %v2343 = vsel %vm2341, %v2331, 2102212464
  %v2344 = vsel %vm2340, %v2328, %v2343
  %v2345 = vsel %vm2339, %v2342, %v2344
  %v2346 = vsel %vm2338, %v2325, %v2328
  %v2347 = vsel %vm2341, %v2334, 920167782
  %v2348 = vsel %vm2340, %v2331, %v2347
  %v2349 = vsel %vm2339, %v2346, %v2348
  %v2350 = vsel %vm2338, %v2328, %v2331
  %v2351 = vsel %vm2341, %v2337, 1326507024
  %v2352 = vsel %vm2340, %v2334, %v2351
  %v2353 = vsel %vm2339, %v2350, %v2352
  %v2354 = vshll.u32 %v2314, 8
  %v2355 = vand.u32 %v2354, 65535
  %v2356 = vshrl.u32 %v2354, 16
  %v2357 = vand.u32 %v2353, 65535
  %v2358 = vshrl.u32 %v2353, 16
  %v2359 = vmul.u32 %v2355, %v2357
  %v2360 = vmul.u32 %v2355, %v2358
  %v2361 = vmul.u32 %v2356, %v2357
  %v2362 = vmul.u32 %v2356, %v2358
  %v2363 = vshll.u32 %v2360, 16
  %v2364 = vshrl.u32 %v2360, 16
  %v2365 = vshll.u32 %v2361, 16
  %v2366 = vshrl.u32 %v2361, 16
  %vm2367 = vc.u32 %v2359, %v2363
  %v2368 = vsel %vm2367, 1, 0
  %v2369 = vadd.s32 %v2359, %v2363
  %v2370 = vadd.s32 %v2362, %v2368
  %vm2371 = vc.u32 %v2369, %v2365
  %v2372 = vsel %vm2371, 1, 0
  %v2373 = vadd.s32 %v2369, %v2365
  %v2374 = vadd.s32 %v2370, %v2372
  %v2375 = vadd.s32 %v2374, %v2364
  %v2376 = vadd.s32 %v2375, %v2366
  %v2377 = vand.u32 %v2354, 65535
  %v2378 = vshrl.u32 %v2354, 16
  %v2379 = vand.u32 %v2349, 65535
  %v2380 = vshrl.u32 %v2349, 16
  %v2381 = vmul.u32 %v2377, %v2379
  %v2382 = vmul.u32 %v2377, %v2380
  %v2383 = vmul.u32 %v2378, %v2379
  %v2384 = vmul.u32 %v2378, %v2380
  %v2385 = vshll.u32 %v2382, 16
  %v2386 = vshrl.u32 %v2382, 16
  %v2387 = vshll.u32 %v2383, 16
  %v2388 = vshrl.u32 %v2383, 16
  %vm2389 = vc.u32 %v2381, %v2385
  %v2390 = vsel %vm2389, 1, 0
  %v2391 = vadd.s32 %v2381, %v2385
  %v2392 = vadd.s32 %v2384, %v2390
  %vm2393 = vc.u32 %v2391, %v2387
  %v2394 = vsel %vm2393, 1, 0
  %v2395 = vadd.s32 %v2391, %v2387
  %v2396 = vadd.s32 %v2392, %v2394
  %v2397 = vadd.s32 %v2396, %v2386
  %v2398 = vadd.s32 %v2397, %v2388
  %v2399 = vmul.u32 %v2354, %v2345
  %v2400 = vadd.s32 %v2376, %v2395
  %vm2401 = vc.u32 %v2376, %v2395
  %v2402 = vadd.s32 %v2398, 1
  %v2403 = vsel %vm2401, %v2402, %v2398
  %v2404 = vadd.s32 %v2399, %v2403
  %v2405 = vadd.s32 %v2404, 536870912
  %v2406 = vshrl.u32 %v2405, 30
  %v2407 = vshll.u32 %v2406, 30
  %v2408 = vsub.s32 %v2404, %v2407
  %vm2409 = vcmp.lt.s32.totalorder %v2408, 0
  %v2410 = vsub.s32 0, %v2408
  %v2411 = vsel %vm2409, %v2410, %v2408
  %v2412 = vclz %v2411
  %v2413 = vsub.s32 %v2412, 2
  %vm2414 = vcmp.gt.s32.totalorder 0, %v2413
  %v2415 = vsel %vm2414, 0, %v2413
  %v2416 = vsub.s32 32, %v2415
  %v2417 = vshll.u32 %v2408, %v2415
  %v2418 = vshrl.u32 %v2400, %v2416
  %v2419 = vor.u32 %v2417, %v2418
  %v2420 = vsub.s32 4294967266, %v2415
  %v2421 = vadd.s32 %v2420, 127
  %v2422 = vshll.u32 %v2421, 23
  %v2423 = vor.u32 4788187, %v2422
  %v2424 = vand.u32 2147483647, %v2423
  %v2426 = vcvt.s32.f32 %v2419
  %v2427 = vmul.f32 %v2426, %v2424
  %v2428 = vxor.u32 %v2427, 2147483648
  %v2429 = vsel %vm2308, %v2428, %v2427
  %v2430 = vsub.s32 4, %v2406
  %v2431 = vsel %vm2308, %v2430, %v2406
  %v2432 = vsel %vm2307, %v1070, %v2429
  %v2433 = vsel %vm2307, 0, %v2431
  %v2434 = vmul.f32 %v2432, %v2432
  %v2435 = vmul.f32 %v2434, -0.001358992
  %v2436 = vadd.f32 %v2435, 0.041655596
  %v2437 = vmul.f32 %v2434, %v2436
  %v2438 = vadd.f32 %v2437, -0.4999988
  %v2439 = vmul.f32 %v2434, %v2438
  %v2440 = vadd.f32 1.0, %v2439
  %v2441 = vmul.f32 %v2432, %v2432
  %v2442 = vmul.f32 %v2441, -0.00019511016
  %v2443 = vadd.f32 %v2442, 0.008332121
  %v2444 = vmul.f32 %v2441, %v2443
  %v2445 = vadd.f32 %v2444, -0.16666654
  %v2446 = vmul.f32 %v2441, %v2445
  %v2447 = vadd.f32 %v2446, 1.0
  %v2448 = vmul.f32 %v2447, %v2432
  %vm2449 = vweird.f32 %v1070
  %v2450 = vand.u32 %v2433, 3
  %vm2451 = vcmp.lt.s32.totalorder %v2450, 2
  %vm2452 = vcmp.eq.s32.totalorder %v2450, 0
  %v2453 = vxor.u32 %v2448, 2147483648
  %v2454 = vsel %vm2452, %v2440, %v2453
  %vm2455 = vcmp.eq.s32.totalorder %v2450, 2
  %v2456 = vxor.u32 %v2440, 2147483648
  %v2457 = vsel %vm2455, %v2456, %v2448
  %v2458 = vsel %vm2451, %v2454, %v2457
  %v2459 = vsel %vm2449, nan, %v2458
  %v2460 = vand.u32 2147483647, %v1071
  %vm2461 = vcmp.le.f32.partialorder %v2460, 0.7853982
  %vm2462 = vcmp.lt.s32.totalorder %v1071, 0
  %v2463 = vand.u32 %v1071, 2139095040
  %v2464 = vshrl.u32 %v2463, 23
  %v2465 = vsub.s32 %v2464, 127
  %v2466 = vand.u32 2147483647, %v1071
  %v2467 = vand.u32 %v2466, 8388607
  %v2468 = vor.u32 %v2467, 8388608
  %v2469 = vsub.s32 0, %v2468
  %v2470 = vadd.s32 %v2465, 1
  %vm2471 = vcmp.gt.s32.totalorder %v2470, 0
  %v2472 = vsel %vm2471, %v2470, 0
  %v2473 = vshrl.u32 %v2472, 5
  %v2474 = vand.u32 %v2472, 31
  %v2475 = vsub.s32 32, %v2474
  %v2476 = vshrl.u32 683565275, %v2475
  %v2477 = vshll.u32 683565275, %v2474
  %v2478 = vshrl.u32 2475754826, %v2475
  %v2479 = vor.u32 %v2477, %v2478
  %v2480 = vshll.u32 2475754826, %v2474
  %v2481 = vshrl.u32 2131351028, %v2475
  %v2482 = vor.u32 %v2480, %v2481
  %v2483 = vshll.u32 2131351028, %v2474
  %v2484 = vshrl.u32 2102212464, %v2475
  %v2485 = vor.u32 %v2483, %v2484
  %v2486 = vshll.u32 2102212464, %v2474
  %v2487 = vshrl.u32 920167782, %v2475
  %v2488 = vor.u32 %v2486, %v2487
  %v2489 = vshll.u32 920167782, %v2474
  %v2490 = vshrl.u32 1326507024, %v2475
  %v2491 = vor.u32 %v2489, %v2490
  %vm2492 = vcmp.lt.s32.totalorder %v2473, 1
  %vm2493 = vcmp.lt.s32.totalorder %v2473, 2
  %vm2494 = vcmp.lt.s32.totalorder %v2473, 3
  %vm2495 = vcmp.lt.s32.totalorder %v2473, 4
  %v2496 = vsel %vm2492, %v2476, %v2479
  %v2497 = vsel %vm2495, %v2485, 2102212464
  %v2498 = vsel %vm2494, %v2482, %v2497
  %v2499 = vsel %vm2493, %v2496, %v2498
  %v2500 = vsel %vm2492, %v2479, %v2482
  %v2501 = vsel %vm2495, %v2488, 920167782
  %v2502 = vsel %vm2494, %v2485, %v2501
  %v2503 = vsel %vm2493, %v2500, %v2502
  %v2504 = vsel %vm2492, %v2482, %v2485
  %v2505 = vsel %vm2495, %v2491, 1326507024
  %v2506 = vsel %vm2494, %v2488, %v2505
  %v2507 = vsel %vm2493, %v2504, %v2506
  %v2508 = vshll.u32 %v2468, 8
  %v2509 = vand.u32 %v2508, 65535
  %v2510 = vshrl.u32 %v2508, 16
  %v2511 = vand.u32 %v2507, 65535
  %v2512 = vshrl.u32 %v2507, 16
  %v2513 = vmul.u32 %v2509, %v2511
  %v2514 = vmul.u32 %v2509, %v2512
  %v2515 = vmul.u32 %v2510, %v2511
  %v2516 = vmul.u32 %v2510, %v2512
  %v2517 = vshll.u32 %v2514, 16
  %v2518 = vshrl.u32 %v2514, 16
  %v2519 = vshll.u32 %v2515, 16
  %v2520 = vshrl.u32 %v2515, 16
  %vm2521 = vc.u32 %v2513, %v2517
  %v2522 = vsel %vm2521, 1, 0
  %v2523 = vadd.s32 %v2513, %v2517
  %v2524 = vadd.s32 %v2516, %v2522
  %vm2525 = vc.u32 %v2523, %v2519
  %v2526 = vsel %vm2525, 1, 0
  %v2527 = vadd.s32 %v2523, %v2519
  %v2528 = vadd.s32 %v2524, %v2526
  %v2529 = vadd.s32 %v2528, %v2518
  %v2530 = vadd.s32 %v2529, %v2520
  %v2531 = vand.u32 %v2508, 65535
  %v2532 = vshrl.u32 %v2508, 16
  %v2533 = vand.u32 %v2503, 65535
  %v2534 = vshrl.u32 %v2503, 16
  %v2535 = vmul.u32 %v2531, %v2533
  %v2536 = vmul.u32 %v2531, %v2534
  %v2537 = vmul.u32 %v2532, %v2533
  %v2538 = vmul.u32 %v2532, %v2534
  %v2539 = vshll.u32 %v2536, 16
  %v2540 = vshrl.u32 %v2536, 16
  %v2541 = vshll.u32 %v2537, 16
  %v2542 = vshrl.u32 %v2537, 16
  %vm2543 = vc.u32 %v2535, %v2539
  %v2544 = vsel %vm2543, 1, 0
  %v2545 = vadd.s32 %v2535, %v2539
  %v2546 = vadd.s32 %v2538, %v2544
  %vm2547 = vc.u32 %v2545, %v2541
  %v2548 = vsel %vm2547, 1, 0
  %v2549 = vadd.s32 %v2545, %v2541
  %v2550 = vadd.s32 %v2546, %v2548
  %v2551 = vadd.s32 %v2550, %v2540
  %v2552 = vadd.s32 %v2551, %v2542
  %v2553 = vmul.u32 %v2508, %v2499
  %v2554 = vadd.s32 %v2530, %v2549
  %vm2555 = vc.u32 %v2530, %v2549
  %v2556 = vadd.s32 %v2552, 1
  %v2557 = vsel %vm2555, %v2556, %v2552
  %v2558 = vadd.s32 %v2553, %v2557
  %v2559 = vadd.s32 %v2558, 536870912
  %v2560 = vshrl.u32 %v2559, 30
  %v2561 = vshll.u32 %v2560, 30
  %v2562 = vsub.s32 %v2558, %v2561
  %vm2563 = vcmp.lt.s32.totalorder %v2562, 0
  %v2564 = vsub.s32 0, %v2562
  %v2565 = vsel %vm2563, %v2564, %v2562
  %v2566 = vclz %v2565
  %v2567 = vsub.s32 %v2566, 2
  %vm2568 = vcmp.gt.s32.totalorder 0, %v2567
  %v2569 = vsel %vm2568, 0, %v2567
  %v2570 = vsub.s32 32, %v2569
  %v2571 = vshll.u32 %v2562, %v2569
  %v2572 = vshrl.u32 %v2554, %v2570
  %v2573 = vor.u32 %v2571, %v2572
  %v2574 = vsub.s32 4294967266, %v2569
  %v2575 = vadd.s32 %v2574, 127
  %v2576 = vshll.u32 %v2575, 23
  %v2577 = vor.u32 4788187, %v2576
  %v2578 = vand.u32 2147483647, %v2577
  %v2580 = vcvt.s32.f32 %v2573
  %v2581 = vmul.f32 %v2580, %v2578
  %v2582 = vxor.u32 %v2581, 2147483648
  %v2583 = vsel %vm2462, %v2582, %v2581
  %v2584 = vsub.s32 4, %v2560
  %v2585 = vsel %vm2462, %v2584, %v2560
  %v2586 = vsel %vm2461, %v1071, %v2583
  %v2587 = vsel %vm2461, 0, %v2585
  %v2588 = vmul.f32 %v2586, %v2586
  %v2589 = vmul.f32 %v2588, -0.001358992
  %v2590 = vadd.f32 %v2589, 0.041655596
  %v2591 = vmul.f32 %v2588, %v2590
  %v2592 = vadd.f32 %v2591, -0.4999988
  %v2593 = vmul.f32 %v2588, %v2592
  %v2594 = vadd.f32 1.0, %v2593
  %v2595 = vmul.f32 %v2586, %v2586
  %v2596 = vmul.f32 %v2595, -0.00019511016
  %v2597 = vadd.f32 %v2596, 0.008332121
  %v2598 = vmul.f32 %v2595, %v2597
  %v2599 = vadd.f32 %v2598, -0.16666654
  %v2600 = vmul.f32 %v2595, %v2599
  %v2601 = vadd.f32 %v2600, 1.0
  %v2602 = vmul.f32 %v2601, %v2586
  %vm2603 = vweird.f32 %v1071
  %v2604 = vand.u32 %v2587, 3
  %vm2605 = vcmp.lt.s32.totalorder %v2604, 2
  %vm2606 = vcmp.eq.s32.totalorder %v2604, 0
  %v2607 = vxor.u32 %v2602, 2147483648
  %v2608 = vsel %vm2606, %v2594, %v2607
  %vm2609 = vcmp.eq.s32.totalorder %v2604, 2
  %v2610 = vxor.u32 %v2594, 2147483648
  %v2611 = vsel %vm2609, %v2610, %v2602
  %v2612 = vsel %vm2605, %v2608, %v2611
  %v2613 = vsel %vm2603, nan, %v2612
  %v2614 = vand.u32 2147483647, %v1072
  %vm2615 = vcmp.le.f32.partialorder %v2614, 0.7853982
  %vm2616 = vcmp.lt.s32.totalorder %v1072, 0
  %v2617 = vand.u32 %v1072, 2139095040
  %v2618 = vshrl.u32 %v2617, 23
  %v2619 = vsub.s32 %v2618, 127
  %v2620 = vand.u32 2147483647, %v1072
  %v2621 = vand.u32 %v2620, 8388607
  %v2622 = vor.u32 %v2621, 8388608
  %v2623 = vsub.s32 0, %v2622
  %v2624 = vadd.s32 %v2619, 1
  %vm2625 = vcmp.gt.s32.totalorder %v2624, 0
  %v2626 = vsel %vm2625, %v2624, 0
  %v2627 = vshrl.u32 %v2626, 5
  %v2628 = vand.u32 %v2626, 31
  %v2629 = vsub.s32 32, %v2628
  %v2630 = vshrl.u32 683565275, %v2629
  %v2631 = vshll.u32 683565275, %v2628
  %v2632 = vshrl.u32 2475754826, %v2629
  %v2633 = vor.u32 %v2631, %v2632
  %v2634 = vshll.u32 2475754826, %v2628
  %v2635 = vshrl.u32 2131351028, %v2629
  %v2636 = vor.u32 %v2634, %v2635
  %v2637 = vshll.u32 2131351028, %v2628
  %v2638 = vshrl.u32 2102212464, %v2629
  %v2639 = vor.u32 %v2637, %v2638
  %v2640 = vshll.u32 2102212464, %v2628
  %v2641 = vshrl.u32 920167782, %v2629
  %v2642 = vor.u32 %v2640, %v2641
  %v2643 = vshll.u32 920167782, %v2628
  %v2644 = vshrl.u32 1326507024, %v2629
  %v2645 = vor.u32 %v2643, %v2644
  %vm2646 = vcmp.lt.s32.totalorder %v2627, 1
  %vm2647 = vcmp.lt.s32.totalorder %v2627, 2
  %vm2648 = vcmp.lt.s32.totalorder %v2627, 3
  %vm2649 = vcmp.lt.s32.totalorder %v2627, 4
  %v2650 = vsel %vm2646, %v2630, %v2633
  %v2651 = vsel %vm2649, %v2639, 2102212464
  %v2652 = vsel %vm2648, %v2636, %v2651
  %v2653 = vsel %vm2647, %v2650, %v2652
  %v2654 = vsel %vm2646, %v2633, %v2636
  %v2655 = vsel %vm2649, %v2642, 920167782
  %v2656 = vsel %vm2648, %v2639, %v2655
  %v2657 = vsel %vm2647, %v2654, %v2656
  %v2658 = vsel %vm2646, %v2636, %v2639
  %v2659 = vsel %vm2649, %v2645, 1326507024
  %v2660 = vsel %vm2648, %v2642, %v2659
  %v2661 = vsel %vm2647, %v2658, %v2660
  %v2662 = vshll.u32 %v2622, 8
  %v2663 = vand.u32 %v2662, 65535
  %v2664 = vshrl.u32 %v2662, 16
  %v2665 = vand.u32 %v2661, 65535
  %v2666 = vshrl.u32 %v2661, 16
  %v2667 = vmul.u32 %v2663, %v2665
  %v2668 = vmul.u32 %v2663, %v2666
  %v2669 = vmul.u32 %v2664, %v2665
  %v2670 = vmul.u32 %v2664, %v2666
  %v2671 = vshll.u32 %v2668, 16
  %v2672 = vshrl.u32 %v2668, 16
  %v2673 = vshll.u32 %v2669, 16
  %v2674 = vshrl.u32 %v2669, 16
  %vm2675 = vc.u32 %v2667, %v2671
  %v2676 = vsel %vm2675, 1, 0
  %v2677 = vadd.s32 %v2667, %v2671
  %v2678 = vadd.s32 %v2670, %v2676
  %vm2679 = vc.u32 %v2677, %v2673
  %v2680 = vsel %vm2679, 1, 0
  %v2681 = vadd.s32 %v2677, %v2673
  %v2682 = vadd.s32 %v2678, %v2680
  %v2683 = vadd.s32 %v2682, %v2672
  %v2684 = vadd.s32 %v2683, %v2674
  %v2685 = vand.u32 %v2662, 65535
  %v2686 = vshrl.u32 %v2662, 16
  %v2687 = vand.u32 %v2657, 65535
  %v2688 = vshrl.u32 %v2657, 16
  %v2689 = vmul.u32 %v2685, %v2687
  %v2690 = vmul.u32 %v2685, %v2688
  %v2691 = vmul.u32 %v2686, %v2687
  %v2692 = vmul.u32 %v2686, %v2688
  %v2693 = vshll.u32 %v2690, 16
  %v2694 = vshrl.u32 %v2690, 16
  %v2695 = vshll.u32 %v2691, 16
  %v2696 = vshrl.u32 %v2691, 16
  %vm2697 = vc.u32 %v2689, %v2693
  %v2698 = vsel %vm2697, 1, 0
  %v2699 = vadd.s32 %v2689, %v2693
  %v2700 = vadd.s32 %v2692, %v2698
  %vm2701 = vc.u32 %v2699, %v2695
  %v2702 = vsel %vm2701, 1, 0
  %v2703 = vadd.s32 %v2699, %v2695
  %v2704 = vadd.s32 %v2700, %v2702
  %v2705 = vadd.s32 %v2704, %v2694
  %v2706 = vadd.s32 %v2705, %v2696
  %v2707 = vmul.u32 %v2662, %v2653
  %v2708 = vadd.s32 %v2684, %v2703
  %vm2709 = vc.u32 %v2684, %v2703
  %v2710 = vadd.s32 %v2706, 1
  %v2711 = vsel %vm2709, %v2710, %v2706
  %v2712 = vadd.s32 %v2707, %v2711
  %v2713 = vadd.s32 %v2712, 536870912
  %v2714 = vshrl.u32 %v2713, 30
  %v2715 = vshll.u32 %v2714, 30
  %v2716 = vsub.s32 %v2712, %v2715
  %vm2717 = vcmp.lt.s32.totalorder %v2716, 0
  %v2718 = vsub.s32 0, %v2716
  %v2719 = vsel %vm2717, %v2718, %v2716
  %v2720 = vclz %v2719
  %v2721 = vsub.s32 %v2720, 2
  %vm2722 = vcmp.gt.s32.totalorder 0, %v2721
  %v2723 = vsel %vm2722, 0, %v2721
  %v2724 = vsub.s32 32, %v2723
  %v2725 = vshll.u32 %v2716, %v2723
  %v2726 = vshrl.u32 %v2708, %v2724
  %v2727 = vor.u32 %v2725, %v2726
  %v2728 = vsub.s32 4294967266, %v2723
  %v2729 = vadd.s32 %v2728, 127
  %v2730 = vshll.u32 %v2729, 23
  %v2731 = vor.u32 4788187, %v2730
  %v2732 = vand.u32 2147483647, %v2731
  %v2734 = vcvt.s32.f32 %v2727
  %v2735 = vmul.f32 %v2734, %v2732
  %v2736 = vxor.u32 %v2735, 2147483648
  %v2737 = vsel %vm2616, %v2736, %v2735
  %v2738 = vsub.s32 4, %v2714
  %v2739 = vsel %vm2616, %v2738, %v2714
  %v2740 = vsel %vm2615, %v1072, %v2737
  %v2741 = vsel %vm2615, 0, %v2739
  %v2742 = vmul.f32 %v2740, %v2740
  %v2743 = vmul.f32 %v2742, -0.001358992
  %v2744 = vadd.f32 %v2743, 0.041655596
  %v2745 = vmul.f32 %v2742, %v2744
  %v2746 = vadd.f32 %v2745, -0.4999988
  %v2747 = vmul.f32 %v2742, %v2746
  %v2748 = vadd.f32 1.0, %v2747
  %v2749 = vmul.f32 %v2740, %v2740
  %v2750 = vmul.f32 %v2749, -0.00019511016
  %v2751 = vadd.f32 %v2750, 0.008332121
  %v2752 = vmul.f32 %v2749, %v2751
  %v2753 = vadd.f32 %v2752, -0.16666654
  %v2754 = vmul.f32 %v2749, %v2753
  %v2755 = vadd.f32 %v2754, 1.0
  %v2756 = vmul.f32 %v2755, %v2740
  %vm2757 = vweird.f32 %v1072
  %v2758 = vand.u32 %v2741, 3
  %vm2759 = vcmp.lt.s32.totalorder %v2758, 2
  %vm2760 = vcmp.eq.s32.totalorder %v2758, 0
  %v2761 = vxor.u32 %v2756, 2147483648
  %v2762 = vsel %vm2760, %v2748, %v2761
  %vm2763 = vcmp.eq.s32.totalorder %v2758, 2
  %v2764 = vxor.u32 %v2748, 2147483648
  %v2765 = vsel %vm2763, %v2764, %v2756
  %v2766 = vsel %vm2759, %v2762, %v2765
  %v2767 = vsel %vm2757, nan, %v2766
  %v2768 = vand.u32 2147483647, %v1073
  %vm2769 = vcmp.le.f32.partialorder %v2768, 0.7853982
  %vm2770 = vcmp.lt.s32.totalorder %v1073, 0
  %v2771 = vand.u32 %v1073, 2139095040
  %v2772 = vshrl.u32 %v2771, 23
  %v2773 = vsub.s32 %v2772, 127
  %v2774 = vand.u32 2147483647, %v1073
  %v2775 = vand.u32 %v2774, 8388607
  %v2776 = vor.u32 %v2775, 8388608
  %v2777 = vsub.s32 0, %v2776
  %v2778 = vadd.s32 %v2773, 1
  %vm2779 = vcmp.gt.s32.totalorder %v2778, 0
  %v2780 = vsel %vm2779, %v2778, 0
  %v2781 = vshrl.u32 %v2780, 5
  %v2782 = vand.u32 %v2780, 31
  %v2783 = vsub.s32 32, %v2782
  %v2784 = vshrl.u32 683565275, %v2783
  %v2785 = vshll.u32 683565275, %v2782
  %v2786 = vshrl.u32 2475754826, %v2783
  %v2787 = vor.u32 %v2785, %v2786
  %v2788 = vshll.u32 2475754826, %v2782
  %v2789 = vshrl.u32 2131351028, %v2783
  %v2790 = vor.u32 %v2788, %v2789
  %v2791 = vshll.u32 2131351028, %v2782
  %v2792 = vshrl.u32 2102212464, %v2783
  %v2793 = vor.u32 %v2791, %v2792
  %v2794 = vshll.u32 2102212464, %v2782
  %v2795 = vshrl.u32 920167782, %v2783
  %v2796 = vor.u32 %v2794, %v2795
  %v2797 = vshll.u32 920167782, %v2782
  %v2798 = vshrl.u32 1326507024, %v2783
  %v2799 = vor.u32 %v2797, %v2798
  %vm2800 = vcmp.lt.s32.totalorder %v2781, 1
  %vm2801 = vcmp.lt.s32.totalorder %v2781, 2
  %vm2802 = vcmp.lt.s32.totalorder %v2781, 3
  %vm2803 = vcmp.lt.s32.totalorder %v2781, 4
  %v2804 = vsel %vm2800, %v2784, %v2787
  %v2805 = vsel %vm2803, %v2793, 2102212464
  %v2806 = vsel %vm2802, %v2790, %v2805
  %v2807 = vsel %vm2801, %v2804, %v2806
  %v2808 = vsel %vm2800, %v2787, %v2790
  %v2809 = vsel %vm2803, %v2796, 920167782
  %v2810 = vsel %vm2802, %v2793, %v2809
  %v2811 = vsel %vm2801, %v2808, %v2810
  %v2812 = vsel %vm2800, %v2790, %v2793
  %v2813 = vsel %vm2803, %v2799, 1326507024
  %v2814 = vsel %vm2802, %v2796, %v2813
  %v2815 = vsel %vm2801, %v2812, %v2814
  %v2816 = vshll.u32 %v2776, 8
  %v2817 = vand.u32 %v2816, 65535
  %v2818 = vshrl.u32 %v2816, 16
  %v2819 = vand.u32 %v2815, 65535
  %v2820 = vshrl.u32 %v2815, 16
  %v2821 = vmul.u32 %v2817, %v2819
  %v2822 = vmul.u32 %v2817, %v2820
  %v2823 = vmul.u32 %v2818, %v2819
  %v2824 = vmul.u32 %v2818, %v2820
  %v2825 = vshll.u32 %v2822, 16
  %v2826 = vshrl.u32 %v2822, 16
  %v2827 = vshll.u32 %v2823, 16
  %v2828 = vshrl.u32 %v2823, 16
  %vm2829 = vc.u32 %v2821, %v2825
  %v2830 = vsel %vm2829, 1, 0
  %v2831 = vadd.s32 %v2821, %v2825
  %v2832 = vadd.s32 %v2824, %v2830
  %vm2833 = vc.u32 %v2831, %v2827
  %v2834 = vsel %vm2833, 1, 0
  %v2835 = vadd.s32 %v2831, %v2827
  %v2836 = vadd.s32 %v2832, %v2834
  %v2837 = vadd.s32 %v2836, %v2826
  %v2838 = vadd.s32 %v2837, %v2828
  %v2839 = vand.u32 %v2816, 65535
  %v2840 = vshrl.u32 %v2816, 16
  %v2841 = vand.u32 %v2811, 65535
  %v2842 = vshrl.u32 %v2811, 16
  %v2843 = vmul.u32 %v2839, %v2841
  %v2844 = vmul.u32 %v2839, %v2842
  %v2845 = vmul.u32 %v2840, %v2841
  %v2846 = vmul.u32 %v2840, %v2842
  %v2847 = vshll.u32 %v2844, 16
  %v2848 = vshrl.u32 %v2844, 16
  %v2849 = vshll.u32 %v2845, 16
  %v2850 = vshrl.u32 %v2845, 16
  %vm2851 = vc.u32 %v2843, %v2847
  %v2852 = vsel %vm2851, 1, 0
  %v2853 = vadd.s32 %v2843, %v2847
  %v2854 = vadd.s32 %v2846, %v2852
  %vm2855 = vc.u32 %v2853, %v2849
  %v2856 = vsel %vm2855, 1, 0
  %v2857 = vadd.s32 %v2853, %v2849
  %v2858 = vadd.s32 %v2854, %v2856
  %v2859 = vadd.s32 %v2858, %v2848
  %v2860 = vadd.s32 %v2859, %v2850
  %v2861 = vmul.u32 %v2816, %v2807
  %v2862 = vadd.s32 %v2838, %v2857
  %vm2863 = vc.u32 %v2838, %v2857
  %v2864 = vadd.s32 %v2860, 1
  %v2865 = vsel %vm2863, %v2864, %v2860
  %v2866 = vadd.s32 %v2861, %v2865
  %v2867 = vadd.s32 %v2866, 536870912
  %v2868 = vshrl.u32 %v2867, 30
  %v2869 = vshll.u32 %v2868, 30
  %v2870 = vsub.s32 %v2866, %v2869
  %vm2871 = vcmp.lt.s32.totalorder %v2870, 0
  %v2872 = vsub.s32 0, %v2870
  %v2873 = vsel %vm2871, %v2872, %v2870
  %v2874 = vclz %v2873
  %v2875 = vsub.s32 %v2874, 2
  %vm2876 = vcmp.gt.s32.totalorder 0, %v2875
  %v2877 = vsel %vm2876, 0, %v2875
  %v2878 = vsub.s32 32, %v2877
  %v2879 = vshll.u32 %v2870, %v2877
  %v2880 = vshrl.u32 %v2862, %v2878
  %v2881 = vor.u32 %v2879, %v2880
  %v2882 = vsub.s32 4294967266, %v2877
  %v2883 = vadd.s32 %v2882, 127
  %v2884 = vshll.u32 %v2883, 23
  %v2885 = vor.u32 4788187, %v2884
  %v2886 = vand.u32 2147483647, %v2885
  %v2888 = vcvt.s32.f32 %v2881
  %v2889 = vmul.f32 %v2888, %v2886
  %v2890 = vxor.u32 %v2889, 2147483648
  %v2891 = vsel %vm2770, %v2890, %v2889
  %v2892 = vsub.s32 4, %v2868
  %v2893 = vsel %vm2770, %v2892, %v2868
  %v2894 = vsel %vm2769, %v1073, %v2891
  %v2895 = vsel %vm2769, 0, %v2893
  %v2896 = vmul.f32 %v2894, %v2894
  %v2897 = vmul.f32 %v2896, -0.001358992
  %v2898 = vadd.f32 %v2897, 0.041655596
  %v2899 = vmul.f32 %v2896, %v2898
  %v2900 = vadd.f32 %v2899, -0.4999988
  %v2901 = vmul.f32 %v2896, %v2900
  %v2902 = vadd.f32 1.0, %v2901
  %v2903 = vmul.f32 %v2894, %v2894
  %v2904 = vmul.f32 %v2903, -0.00019511016
  %v2905 = vadd.f32 %v2904, 0.008332121
  %v2906 = vmul.f32 %v2903, %v2905
  %v2907 = vadd.f32 %v2906, -0.16666654
  %v2908 = vmul.f32 %v2903, %v2907
  %v2909 = vadd.f32 %v2908, 1.0
  %v2910 = vmul.f32 %v2909, %v2894
  %vm2911 = vweird.f32 %v1073
  %v2912 = vand.u32 %v2895, 3
  %vm2913 = vcmp.lt.s32.totalorder %v2912, 2
  %vm2914 = vcmp.eq.s32.totalorder %v2912, 0
  %v2915 = vxor.u32 %v2910, 2147483648
  %v2916 = vsel %vm2914, %v2902, %v2915
  %vm2917 = vcmp.eq.s32.totalorder %v2912, 2
  %v2918 = vxor.u32 %v2902, 2147483648
  %v2919 = vsel %vm2917, %v2918, %v2910
  %v2920 = vsel %vm2913, %v2916, %v2919
  %v2921 = vsel %vm2911, nan, %v2920
  %v2922 = vand.u32 2147483647, %v1062
  %vm2923 = vcmp.le.f32.partialorder %v2922, 0.7853982
  %vm2924 = vcmp.lt.s32.totalorder %v1062, 0
  %v2925 = vand.u32 %v1062, 2139095040
  %v2926 = vshrl.u32 %v2925, 23
  %v2927 = vsub.s32 %v2926, 127
  %v2928 = vand.u32 2147483647, %v1062
  %v2929 = vand.u32 %v2928, 8388607
  %v2930 = vor.u32 %v2929, 8388608
  %v2931 = vsub.s32 0, %v2930
  %v2932 = vadd.s32 %v2927, 1
  %vm2933 = vcmp.gt.s32.totalorder %v2932, 0
  %v2934 = vsel %vm2933, %v2932, 0
  %v2935 = vshrl.u32 %v2934, 5
  %v2936 = vand.u32 %v2934, 31
  %v2937 = vsub.s32 32, %v2936
  %v2938 = vshrl.u32 683565275, %v2937
  %v2939 = vshll.u32 683565275, %v2936
  %v2940 = vshrl.u32 2475754826, %v2937
  %v2941 = vor.u32 %v2939, %v2940
  %v2942 = vshll.u32 2475754826, %v2936
  %v2943 = vshrl.u32 2131351028, %v2937
  %v2944 = vor.u32 %v2942, %v2943
  %v2945 = vshll.u32 2131351028, %v2936
  %v2946 = vshrl.u32 2102212464, %v2937
  %v2947 = vor.u32 %v2945, %v2946
  %v2948 = vshll.u32 2102212464, %v2936
  %v2949 = vshrl.u32 920167782, %v2937
  %v2950 = vor.u32 %v2948, %v2949
  %v2951 = vshll.u32 920167782, %v2936
  %v2952 = vshrl.u32 1326507024, %v2937
  %v2953 = vor.u32 %v2951, %v2952
  %vm2954 = vcmp.lt.s32.totalorder %v2935, 1
  %vm2955 = vcmp.lt.s32.totalorder %v2935, 2
  %vm2956 = vcmp.lt.s32.totalorder %v2935, 3
  %vm2957 = vcmp.lt.s32.totalorder %v2935, 4
  %v2958 = vsel %vm2954, %v2938, %v2941
  %v2959 = vsel %vm2957, %v2947, 2102212464
  %v2960 = vsel %vm2956, %v2944, %v2959
  %v2961 = vsel %vm2955, %v2958, %v2960
  %v2962 = vsel %vm2954, %v2941, %v2944
  %v2963 = vsel %vm2957, %v2950, 920167782
  %v2964 = vsel %vm2956, %v2947, %v2963
  %v2965 = vsel %vm2955, %v2962, %v2964
  %v2966 = vsel %vm2954, %v2944, %v2947
  %v2967 = vsel %vm2957, %v2953, 1326507024
  %v2968 = vsel %vm2956, %v2950, %v2967
  %v2969 = vsel %vm2955, %v2966, %v2968
  %v2970 = vshll.u32 %v2930, 8
  %v2971 = vand.u32 %v2970, 65535
  %v2972 = vshrl.u32 %v2970, 16
  %v2973 = vand.u32 %v2969, 65535
  %v2974 = vshrl.u32 %v2969, 16
  %v2975 = vmul.u32 %v2971, %v2973
  %v2976 = vmul.u32 %v2971, %v2974
  %v2977 = vmul.u32 %v2972, %v2973
  %v2978 = vmul.u32 %v2972, %v2974
  %v2979 = vshll.u32 %v2976, 16
  %v2980 = vshrl.u32 %v2976, 16
  %v2981 = vshll.u32 %v2977, 16
  %v2982 = vshrl.u32 %v2977, 16
  %vm2983 = vc.u32 %v2975, %v2979
  %v2984 = vsel %vm2983, 1, 0
  %v2985 = vadd.s32 %v2975, %v2979
  %v2986 = vadd.s32 %v2978, %v2984
  %vm2987 = vc.u32 %v2985, %v2981
  %v2988 = vsel %vm2987, 1, 0
  %v2989 = vadd.s32 %v2985, %v2981
  %v2990 = vadd.s32 %v2986, %v2988
  %v2991 = vadd.s32 %v2990, %v2980
  %v2992 = vadd.s32 %v2991, %v2982
  %v2993 = vand.u32 %v2970, 65535
  %v2994 = vshrl.u32 %v2970, 16
  %v2995 = vand.u32 %v2965, 65535
  %v2996 = vshrl.u32 %v2965, 16
  %v2997 = vmul.u32 %v2993, %v2995
  %v2998 = vmul.u32 %v2993, %v2996
  %v2999 = vmul.u32 %v2994, %v2995
  %v3000 = vmul.u32 %v2994, %v2996
  %v3001 = vshll.u32 %v2998, 16
  %v3002 = vshrl.u32 %v2998, 16
  %v3003 = vshll.u32 %v2999, 16
  %v3004 = vshrl.u32 %v2999, 16
  %vm3005 = vc.u32 %v2997, %v3001
  %v3006 = vsel %vm3005, 1, 0
  %v3007 = vadd.s32 %v2997, %v3001
  %v3008 = vadd.s32 %v3000, %v3006
  %vm3009 = vc.u32 %v3007, %v3003
  %v3010 = vsel %vm3009, 1, 0
  %v3011 = vadd.s32 %v3007, %v3003
  %v3012 = vadd.s32 %v3008, %v3010
  %v3013 = vadd.s32 %v3012, %v3002
  %v3014 = vadd.s32 %v3013, %v3004
  %v3015 = vmul.u32 %v2970, %v2961
  %v3016 = vadd.s32 %v2992, %v3011
  %vm3017 = vc.u32 %v2992, %v3011
  %v3018 = vadd.s32 %v3014, 1
  %v3019 = vsel %vm3017, %v3018, %v3014
  %v3020 = vadd.s32 %v3015, %v3019
  %v3021 = vadd.s32 %v3020, 536870912
  %v3022 = vshrl.u32 %v3021, 30
  %v3023 = vshll.u32 %v3022, 30
  %v3024 = vsub.s32 %v3020, %v3023
  %vm3025 = vcmp.lt.s32.totalorder %v3024, 0
  %v3026 = vsub.s32 0, %v3024
  %v3027 = vsel %vm3025, %v3026, %v3024
  %v3028 = vclz %v3027
  %v3029 = vsub.s32 %v3028, 2
  %vm3030 = vcmp.gt.s32.totalorder 0, %v3029
  %v3031 = vsel %vm3030, 0, %v3029
  %v3032 = vsub.s32 32, %v3031
  %v3033 = vshll.u32 %v3024, %v3031
  %v3034 = vshrl.u32 %v3016, %v3032
  %v3035 = vor.u32 %v3033, %v3034
  %v3036 = vsub.s32 4294967266, %v3031
  %v3037 = vadd.s32 %v3036, 127
  %v3038 = vshll.u32 %v3037, 23
  %v3039 = vor.u32 4788187, %v3038
  %v3040 = vand.u32 2147483647, %v3039
  %v3042 = vcvt.s32.f32 %v3035
  %v3043 = vmul.f32 %v3042, %v3040
  %v3044 = vxor.u32 %v3043, 2147483648
  %v3045 = vsel %vm2924, %v3044, %v3043
  %v3046 = vsub.s32 4, %v3022
  %v3047 = vsel %vm2924, %v3046, %v3022
  %v3048 = vsel %vm2923, %v1062, %v3045
  %v3049 = vsel %vm2923, 0, %v3047
  %v3050 = vmul.f32 %v3048, %v3048
  %v3051 = vmul.f32 %v3050, -0.001358992
  %v3052 = vadd.f32 %v3051, 0.041655596
  %v3053 = vmul.f32 %v3050, %v3052
  %v3054 = vadd.f32 %v3053, -0.4999988
  %v3055 = vmul.f32 %v3050, %v3054
  %v3056 = vadd.f32 1.0, %v3055
  %v3057 = vmul.f32 %v3048, %v3048
  %v3058 = vmul.f32 %v3057, -0.00019511016
  %v3059 = vadd.f32 %v3058, 0.008332121
  %v3060 = vmul.f32 %v3057, %v3059
  %v3061 = vadd.f32 %v3060, -0.16666654
  %v3062 = vmul.f32 %v3057, %v3061
  %v3063 = vadd.f32 %v3062, 1.0
  %v3064 = vmul.f32 %v3063, %v3048
  %vm3065 = vweird.f32 %v1062
  %v3066 = vadd.s32 %v3049, 3
  %v3067 = vand.u32 %v3066, 3
  %vm3068 = vcmp.lt.s32.totalorder %v3067, 2
  %vm3069 = vcmp.eq.s32.totalorder %v3067, 0
  %v3070 = vxor.u32 %v3064, 2147483648
  %v3071 = vsel %vm3069, %v3056, %v3070
  %vm3072 = vcmp.eq.s32.totalorder %v3067, 2
  %v3073 = vxor.u32 %v3056, 2147483648
  %v3074 = vsel %vm3072, %v3073, %v3064
  %v3075 = vsel %vm3068, %v3071, %v3074
  %v3076 = vsel %vm3065, nan, %v3075
  %v3077 = vand.u32 2147483647, %v1063
  %vm3078 = vcmp.le.f32.partialorder %v3077, 0.7853982
  %vm3079 = vcmp.lt.s32.totalorder %v1063, 0
  %v3080 = vand.u32 %v1063, 2139095040
  %v3081 = vshrl.u32 %v3080, 23
  %v3082 = vsub.s32 %v3081, 127
  %v3083 = vand.u32 2147483647, %v1063
  %v3084 = vand.u32 %v3083, 8388607
  %v3085 = vor.u32 %v3084, 8388608
  %v3086 = vsub.s32 0, %v3085
  %v3087 = vadd.s32 %v3082, 1
  %vm3088 = vcmp.gt.s32.totalorder %v3087, 0
  %v3089 = vsel %vm3088, %v3087, 0
  %v3090 = vshrl.u32 %v3089, 5
  %v3091 = vand.u32 %v3089, 31
  %v3092 = vsub.s32 32, %v3091
  %v3093 = vshrl.u32 683565275, %v3092
  %v3094 = vshll.u32 683565275, %v3091
  %v3095 = vshrl.u32 2475754826, %v3092
  %v3096 = vor.u32 %v3094, %v3095
  %v3097 = vshll.u32 2475754826, %v3091
  %v3098 = vshrl.u32 2131351028, %v3092
  %v3099 = vor.u32 %v3097, %v3098
  %v3100 = vshll.u32 2131351028, %v3091
  %v3101 = vshrl.u32 2102212464, %v3092
  %v3102 = vor.u32 %v3100, %v3101
  %v3103 = vshll.u32 2102212464, %v3091
  %v3104 = vshrl.u32 920167782, %v3092
  %v3105 = vor.u32 %v3103, %v3104
  %v3106 = vshll.u32 920167782, %v3091
  %v3107 = vshrl.u32 1326507024, %v3092
  %v3108 = vor.u32 %v3106, %v3107
  %vm3109 = vcmp.lt.s32.totalorder %v3090, 1
  %vm3110 = vcmp.lt.s32.totalorder %v3090, 2
  %vm3111 = vcmp.lt.s32.totalorder %v3090, 3
  %vm3112 = vcmp.lt.s32.totalorder %v3090, 4
  %v3113 = vsel %vm3109, %v3093, %v3096
  %v3114 = vsel %vm3112, %v3102, 2102212464
  %v3115 = vsel %vm3111, %v3099, %v3114
  %v3116 = vsel %vm3110, %v3113, %v3115
  %v3117 = vsel %vm3109, %v3096, %v3099
  %v3118 = vsel %vm3112, %v3105, 920167782
  %v3119 = vsel %vm3111, %v3102, %v3118
  %v3120 = vsel %vm3110, %v3117, %v3119
  %v3121 = vsel %vm3109, %v3099, %v3102
  %v3122 = vsel %vm3112, %v3108, 1326507024
  %v3123 = vsel %vm3111, %v3105, %v3122
  %v3124 = vsel %vm3110, %v3121, %v3123
  %v3125 = vshll.u32 %v3085, 8
  %v3126 = vand.u32 %v3125, 65535
  %v3127 = vshrl.u32 %v3125, 16
  %v3128 = vand.u32 %v3124, 65535
  %v3129 = vshrl.u32 %v3124, 16
  %v3130 = vmul.u32 %v3126, %v3128
  %v3131 = vmul.u32 %v3126, %v3129
  %v3132 = vmul.u32 %v3127, %v3128
  %v3133 = vmul.u32 %v3127, %v3129
  %v3134 = vshll.u32 %v3131, 16
  %v3135 = vshrl.u32 %v3131, 16
  %v3136 = vshll.u32 %v3132, 16
  %v3137 = vshrl.u32 %v3132, 16
  %vm3138 = vc.u32 %v3130, %v3134
  %v3139 = vsel %vm3138, 1, 0
  %v3140 = vadd.s32 %v3130, %v3134
  %v3141 = vadd.s32 %v3133, %v3139
  %vm3142 = vc.u32 %v3140, %v3136
  %v3143 = vsel %vm3142, 1, 0
  %v3144 = vadd.s32 %v3140, %v3136
  %v3145 = vadd.s32 %v3141, %v3143
  %v3146 = vadd.s32 %v3145, %v3135
  %v3147 = vadd.s32 %v3146, %v3137
  %v3148 = vand.u32 %v3125, 65535
  %v3149 = vshrl.u32 %v3125, 16
  %v3150 = vand.u32 %v3120, 65535
  %v3151 = vshrl.u32 %v3120, 16
  %v3152 = vmul.u32 %v3148, %v3150
  %v3153 = vmul.u32 %v3148, %v3151
  %v3154 = vmul.u32 %v3149, %v3150
  %v3155 = vmul.u32 %v3149, %v3151
  %v3156 = vshll.u32 %v3153, 16
  %v3157 = vshrl.u32 %v3153, 16
  %v3158 = vshll.u32 %v3154, 16
  %v3159 = vshrl.u32 %v3154, 16
  %vm3160 = vc.u32 %v3152, %v3156
  %v3161 = vsel %vm3160, 1, 0
  %v3162 = vadd.s32 %v3152, %v3156
  %v3163 = vadd.s32 %v3155, %v3161
  %vm3164 = vc.u32 %v3162, %v3158
  %v3165 = vsel %vm3164, 1, 0
  %v3166 = vadd.s32 %v3162, %v3158
  %v3167 = vadd.s32 %v3163, %v3165
  %v3168 = vadd.s32 %v3167, %v3157
  %v3169 = vadd.s32 %v3168, %v3159
  %v3170 = vmul.u32 %v3125, %v3116
  %v3171 = vadd.s32 %v3147, %v3166
  %vm3172 = vc.u32 %v3147, %v3166
  %v3173 = vadd.s32 %v3169, 1
  %v3174 = vsel %vm3172, %v3173, %v3169
  %v3175 = vadd.s32 %v3170, %v3174
  %v3176 = vadd.s32 %v3175, 536870912
  %v3177 = vshrl.u32 %v3176, 30
  %v3178 = vshll.u32 %v3177, 30
  %v3179 = vsub.s32 %v3175, %v3178
  %vm3180 = vcmp.lt.s32.totalorder %v3179, 0
  %v3181 = vsub.s32 0, %v3179
  %v3182 = vsel %vm3180, %v3181, %v3179
  %v3183 = vclz %v3182
  %v3184 = vsub.s32 %v3183, 2
  %vm3185 = vcmp.gt.s32.totalorder 0, %v3184
  %v3186 = vsel %vm3185, 0, %v3184
  %v3187 = vsub.s32 32, %v3186
  %v3188 = vshll.u32 %v3179, %v3186
  %v3189 = vshrl.u32 %v3171, %v3187
  %v3190 = vor.u32 %v3188, %v3189
  %v3191 = vsub.s32 4294967266, %v3186
  %v3192 = vadd.s32 %v3191, 127
  %v3193 = vshll.u32 %v3192, 23
  %v3194 = vor.u32 4788187, %v3193
  %v3195 = vand.u32 2147483647, %v3194
  %v3197 = vcvt.s32.f32 %v3190
  %v3198 = vmul.f32 %v3197, %v3195
  %v3199 = vxor.u32 %v3198, 2147483648
  %v3200 = vsel %vm3079, %v3199, %v3198
  %v3201 = vsub.s32 4, %v3177
  %v3202 = vsel %vm3079, %v3201, %v3177
  %v3203 = vsel %vm3078, %v1063, %v3200
  %v3204 = vsel %vm3078, 0, %v3202
  %v3205 = vmul.f32 %v3203, %v3203
  %v3206 = vmul.f32 %v3205, -0.001358992
  %v3207 = vadd.f32 %v3206, 0.041655596
  %v3208 = vmul.f32 %v3205, %v3207
  %v3209 = vadd.f32 %v3208, -0.4999988
  %v3210 = vmul.f32 %v3205, %v3209
  %v3211 = vadd.f32 1.0, %v3210
  %v3212 = vmul.f32 %v3203, %v3203
  %v3213 = vmul.f32 %v3212, -0.00019511016
  %v3214 = vadd.f32 %v3213, 0.008332121
  %v3215 = vmul.f32 %v3212, %v3214
  %v3216 = vadd.f32 %v3215, -0.16666654
  %v3217 = vmul.f32 %v3212, %v3216
  %v3218 = vadd.f32 %v3217, 1.0
  %v3219 = vmul.f32 %v3218, %v3203
  %vm3220 = vweird.f32 %v1063
  %v3221 = vadd.s32 %v3204, 3
  %v3222 = vand.u32 %v3221, 3
  %vm3223 = vcmp.lt.s32.totalorder %v3222, 2
  %vm3224 = vcmp.eq.s32.totalorder %v3222, 0
  %v3225 = vxor.u32 %v3219, 2147483648
  %v3226 = vsel %vm3224, %v3211, %v3225
  %vm3227 = vcmp.eq.s32.totalorder %v3222, 2
  %v3228 = vxor.u32 %v3211, 2147483648
  %v3229 = vsel %vm3227, %v3228, %v3219
  %v3230 = vsel %vm3223, %v3226, %v3229
  %v3231 = vsel %vm3220, nan, %v3230
  %v3232 = vand.u32 2147483647, %v1064
  %vm3233 = vcmp.le.f32.partialorder %v3232, 0.7853982
  %vm3234 = vcmp.lt.s32.totalorder %v1064, 0
  %v3235 = vand.u32 %v1064, 2139095040
  %v3236 = vshrl.u32 %v3235, 23
  %v3237 = vsub.s32 %v3236, 127
  %v3238 = vand.u32 2147483647, %v1064
  %v3239 = vand.u32 %v3238, 8388607
  %v3240 = vor.u32 %v3239, 8388608
  %v3241 = vsub.s32 0, %v3240
  %v3242 = vadd.s32 %v3237, 1
  %vm3243 = vcmp.gt.s32.totalorder %v3242, 0
  %v3244 = vsel %vm3243, %v3242, 0
  %v3245 = vshrl.u32 %v3244, 5
  %v3246 = vand.u32 %v3244, 31
  %v3247 = vsub.s32 32, %v3246
  %v3248 = vshrl.u32 683565275, %v3247
  %v3249 = vshll.u32 683565275, %v3246
  %v3250 = vshrl.u32 2475754826, %v3247
  %v3251 = vor.u32 %v3249, %v3250
  %v3252 = vshll.u32 2475754826, %v3246
  %v3253 = vshrl.u32 2131351028, %v3247
  %v3254 = vor.u32 %v3252, %v3253
  %v3255 = vshll.u32 2131351028, %v3246
  %v3256 = vshrl.u32 2102212464, %v3247
  %v3257 = vor.u32 %v3255, %v3256
  %v3258 = vshll.u32 2102212464, %v3246
  %v3259 = vshrl.u32 920167782, %v3247
  %v3260 = vor.u32 %v3258, %v3259
  %v3261 = vshll.u32 920167782, %v3246
  %v3262 = vshrl.u32 1326507024, %v3247
  %v3263 = vor.u32 %v3261, %v3262
  %vm3264 = vcmp.lt.s32.totalorder %v3245, 1
  %vm3265 = vcmp.lt.s32.totalorder %v3245, 2
  %vm3266 = vcmp.lt.s32.totalorder %v3245, 3
  %vm3267 = vcmp.lt.s32.totalorder %v3245, 4
  %v3268 = vsel %vm3264, %v3248, %v3251
  %v3269 = vsel %vm3267, %v3257, 2102212464
  %v3270 = vsel %vm3266, %v3254, %v3269
  %v3271 = vsel %vm3265, %v3268, %v3270
  %v3272 = vsel %vm3264, %v3251, %v3254
  %v3273 = vsel %vm3267, %v3260, 920167782
  %v3274 = vsel %vm3266, %v3257, %v3273
  %v3275 = vsel %vm3265, %v3272, %v3274
  %v3276 = vsel %vm3264, %v3254, %v3257
  %v3277 = vsel %vm3267, %v3263, 1326507024
  %v3278 = vsel %vm3266, %v3260, %v3277
  %v3279 = vsel %vm3265, %v3276, %v3278
  %v3280 = vshll.u32 %v3240, 8
  %v3281 = vand.u32 %v3280, 65535
  %v3282 = vshrl.u32 %v3280, 16
  %v3283 = vand.u32 %v3279, 65535
  %v3284 = vshrl.u32 %v3279, 16
  %v3285 = vmul.u32 %v3281, %v3283
  %v3286 = vmul.u32 %v3281, %v3284
  %v3287 = vmul.u32 %v3282, %v3283
  %v3288 = vmul.u32 %v3282, %v3284
  %v3289 = vshll.u32 %v3286, 16
  %v3290 = vshrl.u32 %v3286, 16
  %v3291 = vshll.u32 %v3287, 16
  %v3292 = vshrl.u32 %v3287, 16
  %vm3293 = vc.u32 %v3285, %v3289
  %v3294 = vsel %vm3293, 1, 0
  %v3295 = vadd.s32 %v3285, %v3289
  %v3296 = vadd.s32 %v3288, %v3294
  %vm3297 = vc.u32 %v3295, %v3291
  %v3298 = vsel %vm3297, 1, 0
  %v3299 = vadd.s32 %v3295, %v3291
  %v3300 = vadd.s32 %v3296, %v3298
  %v3301 = vadd.s32 %v3300, %v3290
  %v3302 = vadd.s32 %v3301, %v3292
  %v3303 = vand.u32 %v3280, 65535
  %v3304 = vshrl.u32 %v3280, 16
  %v3305 = vand.u32 %v3275, 65535
  %v3306 = vshrl.u32 %v3275, 16
  %v3307 = vmul.u32 %v3303, %v3305
  %v3308 = vmul.u32 %v3303, %v3306
  %v3309 = vmul.u32 %v3304, %v3305
  %v3310 = vmul.u32 %v3304, %v3306
  %v3311 = vshll.u32 %v3308, 16
  %v3312 = vshrl.u32 %v3308, 16
  %v3313 = vshll.u32 %v3309, 16
  %v3314 = vshrl.u32 %v3309, 16
  %vm3315 = vc.u32 %v3307, %v3311
  %v3316 = vsel %vm3315, 1, 0
  %v3317 = vadd.s32 %v3307, %v3311
  %v3318 = vadd.s32 %v3310, %v3316
  %vm3319 = vc.u32 %v3317, %v3313
  %v3320 = vsel %vm3319, 1, 0
  %v3321 = vadd.s32 %v3317, %v3313
  %v3322 = vadd.s32 %v3318, %v3320
  %v3323 = vadd.s32 %v3322, %v3312
  %v3324 = vadd.s32 %v3323, %v3314
  %v3325 = vmul.u32 %v3280, %v3271
  %v3326 = vadd.s32 %v3302, %v3321
  %vm3327 = vc.u32 %v3302, %v3321
  %v3328 = vadd.s32 %v3324, 1
  %v3329 = vsel %vm3327, %v3328, %v3324
  %v3330 = vadd.s32 %v3325, %v3329
  %v3331 = vadd.s32 %v3330, 536870912
  %v3332 = vshrl.u32 %v3331, 30
  %v3333 = vshll.u32 %v3332, 30
  %v3334 = vsub.s32 %v3330, %v3333
  %vm3335 = vcmp.lt.s32.totalorder %v3334, 0
  %v3336 = vsub.s32 0, %v3334
  %v3337 = vsel %vm3335, %v3336, %v3334
  %v3338 = vclz %v3337
  %v3339 = vsub.s32 %v3338, 2
  %vm3340 = vcmp.gt.s32.totalorder 0, %v3339
  %v3341 = vsel %vm3340, 0, %v3339
  %v3342 = vsub.s32 32, %v3341
  %v3343 = vshll.u32 %v3334, %v3341
  %v3344 = vshrl.u32 %v3326, %v3342
  %v3345 = vor.u32 %v3343, %v3344
  %v3346 = vsub.s32 4294967266, %v3341
  %v3347 = vadd.s32 %v3346, 127
  %v3348 = vshll.u32 %v3347, 23
  %v3349 = vor.u32 4788187, %v3348
  %v3350 = vand.u32 2147483647, %v3349
  %v3352 = vcvt.s32.f32 %v3345
  %v3353 = vmul.f32 %v3352, %v3350
  %v3354 = vxor.u32 %v3353, 2147483648
  %v3355 = vsel %vm3234, %v3354, %v3353
  %v3356 = vsub.s32 4, %v3332
  %v3357 = vsel %vm3234, %v3356, %v3332
  %v3358 = vsel %vm3233, %v1064, %v3355
  %v3359 = vsel %vm3233, 0, %v3357
  %v3360 = vmul.f32 %v3358, %v3358
  %v3361 = vmul.f32 %v3360, -0.001358992
  %v3362 = vadd.f32 %v3361, 0.041655596
  %v3363 = vmul.f32 %v3360, %v3362
  %v3364 = vadd.f32 %v3363, -0.4999988
  %v3365 = vmul.f32 %v3360, %v3364
  %v3366 = vadd.f32 1.0, %v3365
  %v3367 = vmul.f32 %v3358, %v3358
  %v3368 = vmul.f32 %v3367, -0.00019511016
  %v3369 = vadd.f32 %v3368, 0.008332121
  %v3370 = vmul.f32 %v3367, %v3369
  %v3371 = vadd.f32 %v3370, -0.16666654
  %v3372 = vmul.f32 %v3367, %v3371
  %v3373 = vadd.f32 %v3372, 1.0
  %v3374 = vmul.f32 %v3373, %v3358
  %vm3375 = vweird.f32 %v1064
  %v3376 = vadd.s32 %v3359, 3
  %v3377 = vand.u32 %v3376, 3
  %vm3378 = vcmp.lt.s32.totalorder %v3377, 2
  %vm3379 = vcmp.eq.s32.totalorder %v3377, 0
  %v3380 = vxor.u32 %v3374, 2147483648
  %v3381 = vsel %vm3379, %v3366, %v3380
  %vm3382 = vcmp.eq.s32.totalorder %v3377, 2
  %v3383 = vxor.u32 %v3366, 2147483648
  %v3384 = vsel %vm3382, %v3383, %v3374
  %v3385 = vsel %vm3378, %v3381, %v3384
  %v3386 = vsel %vm3375, nan, %v3385
  %v3387 = vand.u32 2147483647, %v1065
  %vm3388 = vcmp.le.f32.partialorder %v3387, 0.7853982
  %vm3389 = vcmp.lt.s32.totalorder %v1065, 0
  %v3390 = vand.u32 %v1065, 2139095040
  %v3391 = vshrl.u32 %v3390, 23
  %v3392 = vsub.s32 %v3391, 127
  %v3393 = vand.u32 2147483647, %v1065
  %v3394 = vand.u32 %v3393, 8388607
  %v3395 = vor.u32 %v3394, 8388608
  %v3396 = vsub.s32 0, %v3395
  %v3397 = vadd.s32 %v3392, 1
  %vm3398 = vcmp.gt.s32.totalorder %v3397, 0
  %v3399 = vsel %vm3398, %v3397, 0
  %v3400 = vshrl.u32 %v3399, 5
  %v3401 = vand.u32 %v3399, 31
  %v3402 = vsub.s32 32, %v3401
  %v3403 = vshrl.u32 683565275, %v3402
  %v3404 = vshll.u32 683565275, %v3401
  %v3405 = vshrl.u32 2475754826, %v3402
  %v3406 = vor.u32 %v3404, %v3405
  %v3407 = vshll.u32 2475754826, %v3401
  %v3408 = vshrl.u32 2131351028, %v3402
  %v3409 = vor.u32 %v3407, %v3408
  %v3410 = vshll.u32 2131351028, %v3401
  %v3411 = vshrl.u32 2102212464, %v3402
  %v3412 = vor.u32 %v3410, %v3411
  %v3413 = vshll.u32 2102212464, %v3401
  %v3414 = vshrl.u32 920167782, %v3402
  %v3415 = vor.u32 %v3413, %v3414
  %v3416 = vshll.u32 920167782, %v3401
  %v3417 = vshrl.u32 1326507024, %v3402
  %v3418 = vor.u32 %v3416, %v3417
  %vm3419 = vcmp.lt.s32.totalorder %v3400, 1
  %vm3420 = vcmp.lt.s32.totalorder %v3400, 2
  %vm3421 = vcmp.lt.s32.totalorder %v3400, 3
  %vm3422 = vcmp.lt.s32.totalorder %v3400, 4
  %v3423 = vsel %vm3419, %v3403, %v3406
  %v3424 = vsel %vm3422, %v3412, 2102212464
  %v3425 = vsel %vm3421, %v3409, %v3424
  %v3426 = vsel %vm3420, %v3423, %v3425
  %v3427 = vsel %vm3419, %v3406, %v3409
  %v3428 = vsel %vm3422, %v3415, 920167782
  %v3429 = vsel %vm3421, %v3412, %v3428
  %v3430 = vsel %vm3420, %v3427, %v3429
  %v3431 = vsel %vm3419, %v3409, %v3412
  %v3432 = vsel %vm3422, %v3418, 1326507024
  %v3433 = vsel %vm3421, %v3415, %v3432
  %v3434 = vsel %vm3420, %v3431, %v3433
  %v3435 = vshll.u32 %v3395, 8
  %v3436 = vand.u32 %v3435, 65535
  %v3437 = vshrl.u32 %v3435, 16
  %v3438 = vand.u32 %v3434, 65535
  %v3439 = vshrl.u32 %v3434, 16
  %v3440 = vmul.u32 %v3436, %v3438
  %v3441 = vmul.u32 %v3436, %v3439
  %v3442 = vmul.u32 %v3437, %v3438
  %v3443 = vmul.u32 %v3437, %v3439
  %v3444 = vshll.u32 %v3441, 16
  %v3445 = vshrl.u32 %v3441, 16
  %v3446 = vshll.u32 %v3442, 16
  %v3447 = vshrl.u32 %v3442, 16
  %vm3448 = vc.u32 %v3440, %v3444
  %v3449 = vsel %vm3448, 1, 0
  %v3450 = vadd.s32 %v3440, %v3444
  %v3451 = vadd.s32 %v3443, %v3449
  %vm3452 = vc.u32 %v3450, %v3446
  %v3453 = vsel %vm3452, 1, 0
  %v3454 = vadd.s32 %v3450, %v3446
  %v3455 = vadd.s32 %v3451, %v3453
  %v3456 = vadd.s32 %v3455, %v3445
  %v3457 = vadd.s32 %v3456, %v3447
  %v3458 = vand.u32 %v3435, 65535
  %v3459 = vshrl.u32 %v3435, 16
  %v3460 = vand.u32 %v3430, 65535
  %v3461 = vshrl.u32 %v3430, 16
  %v3462 = vmul.u32 %v3458, %v3460
  %v3463 = vmul.u32 %v3458, %v3461
  %v3464 = vmul.u32 %v3459, %v3460
  %v3465 = vmul.u32 %v3459, %v3461
  %v3466 = vshll.u32 %v3463, 16
  %v3467 = vshrl.u32 %v3463, 16
  %v3468 = vshll.u32 %v3464, 16
  %v3469 = vshrl.u32 %v3464, 16
  %vm3470 = vc.u32 %v3462, %v3466
  %v3471 = vsel %vm3470, 1, 0
  %v3472 = vadd.s32 %v3462, %v3466
  %v3473 = vadd.s32 %v3465, %v3471
  %vm3474 = vc.u32 %v3472, %v3468
  %v3475 = vsel %vm3474, 1, 0
  %v3476 = vadd.s32 %v3472, %v3468
  %v3477 = vadd.s32 %v3473, %v3475
  %v3478 = vadd.s32 %v3477, %v3467
  %v3479 = vadd.s32 %v3478, %v3469
  %v3480 = vmul.u32 %v3435, %v3426
  %v3481 = vadd.s32 %v3457, %v3476
  %vm3482 = vc.u32 %v3457, %v3476
  %v3483 = vadd.s32 %v3479, 1
  %v3484 = vsel %vm3482, %v3483, %v3479
  %v3485 = vadd.s32 %v3480, %v3484
  %v3486 = vadd.s32 %v3485, 536870912
  %v3487 = vshrl.u32 %v3486, 30
  %v3488 = vshll.u32 %v3487, 30
  %v3489 = vsub.s32 %v3485, %v3488
  %vm3490 = vcmp.lt.s32.totalorder %v3489, 0
  %v3491 = vsub.s32 0, %v3489
  %v3492 = vsel %vm3490, %v3491, %v3489
  %v3493 = vclz %v3492
  %v3494 = vsub.s32 %v3493, 2
  %vm3495 = vcmp.gt.s32.totalorder 0, %v3494
  %v3496 = vsel %vm3495, 0, %v3494
  %v3497 = vsub.s32 32, %v3496
  %v3498 = vshll.u32 %v3489, %v3496
  %v3499 = vshrl.u32 %v3481, %v3497
  %v3500 = vor.u32 %v3498, %v3499
  %v3501 = vsub.s32 4294967266, %v3496
  %v3502 = vadd.s32 %v3501, 127
  %v3503 = vshll.u32 %v3502, 23
  %v3504 = vor.u32 4788187, %v3503
  %v3505 = vand.u32 2147483647, %v3504
  %v3507 = vcvt.s32.f32 %v3500
  %v3508 = vmul.f32 %v3507, %v3505
  %v3509 = vxor.u32 %v3508, 2147483648
  %v3510 = vsel %vm3389, %v3509, %v3508
  %v3511 = vsub.s32 4, %v3487
  %v3512 = vsel %vm3389, %v3511, %v3487
  %v3513 = vsel %vm3388, %v1065, %v3510
  %v3514 = vsel %vm3388, 0, %v3512
  %v3515 = vmul.f32 %v3513, %v3513
  %v3516 = vmul.f32 %v3515, -0.001358992
  %v3517 = vadd.f32 %v3516, 0.041655596
  %v3518 = vmul.f32 %v3515, %v3517
  %v3519 = vadd.f32 %v3518, -0.4999988
  %v3520 = vmul.f32 %v3515, %v3519
  %v3521 = vadd.f32 1.0, %v3520
  %v3522 = vmul.f32 %v3513, %v3513
  %v3523 = vmul.f32 %v3522, -0.00019511016
  %v3524 = vadd.f32 %v3523, 0.008332121
  %v3525 = vmul.f32 %v3522, %v3524
  %v3526 = vadd.f32 %v3525, -0.16666654
  %v3527 = vmul.f32 %v3522, %v3526
  %v3528 = vadd.f32 %v3527, 1.0
  %v3529 = vmul.f32 %v3528, %v3513
  %vm3530 = vweird.f32 %v1065
  %v3531 = vadd.s32 %v3514, 3
  %v3532 = vand.u32 %v3531, 3
  %vm3533 = vcmp.lt.s32.totalorder %v3532, 2
  %vm3534 = vcmp.eq.s32.totalorder %v3532, 0
  %v3535 = vxor.u32 %v3529, 2147483648
  %v3536 = vsel %vm3534, %v3521, %v3535
  %vm3537 = vcmp.eq.s32.totalorder %v3532, 2
  %v3538 = vxor.u32 %v3521, 2147483648
  %v3539 = vsel %vm3537, %v3538, %v3529
  %v3540 = vsel %vm3533, %v3536, %v3539
  %v3541 = vsel %vm3530, nan, %v3540
  %v3542 = vand.u32 2147483647, %v1066
  %vm3543 = vcmp.le.f32.partialorder %v3542, 0.7853982
  %vm3544 = vcmp.lt.s32.totalorder %v1066, 0
  %v3545 = vand.u32 %v1066, 2139095040
  %v3546 = vshrl.u32 %v3545, 23
  %v3547 = vsub.s32 %v3546, 127
  %v3548 = vand.u32 2147483647, %v1066
  %v3549 = vand.u32 %v3548, 8388607
  %v3550 = vor.u32 %v3549, 8388608
  %v3551 = vsub.s32 0, %v3550
  %v3552 = vadd.s32 %v3547, 1
  %vm3553 = vcmp.gt.s32.totalorder %v3552, 0
  %v3554 = vsel %vm3553, %v3552, 0
  %v3555 = vshrl.u32 %v3554, 5
  %v3556 = vand.u32 %v3554, 31
  %v3557 = vsub.s32 32, %v3556
  %v3558 = vshrl.u32 683565275, %v3557
  %v3559 = vshll.u32 683565275, %v3556
  %v3560 = vshrl.u32 2475754826, %v3557
  %v3561 = vor.u32 %v3559, %v3560
  %v3562 = vshll.u32 2475754826, %v3556
  %v3563 = vshrl.u32 2131351028, %v3557
  %v3564 = vor.u32 %v3562, %v3563
  %v3565 = vshll.u32 2131351028, %v3556
  %v3566 = vshrl.u32 2102212464, %v3557
  %v3567 = vor.u32 %v3565, %v3566
  %v3568 = vshll.u32 2102212464, %v3556
  %v3569 = vshrl.u32 920167782, %v3557
  %v3570 = vor.u32 %v3568, %v3569
  %v3571 = vshll.u32 920167782, %v3556
  %v3572 = vshrl.u32 1326507024, %v3557
  %v3573 = vor.u32 %v3571, %v3572
  %vm3574 = vcmp.lt.s32.totalorder %v3555, 1
  %vm3575 = vcmp.lt.s32.totalorder %v3555, 2
  %vm3576 = vcmp.lt.s32.totalorder %v3555, 3
  %vm3577 = vcmp.lt.s32.totalorder %v3555, 4
  %v3578 = vsel %vm3574, %v3558, %v3561
  %v3579 = vsel %vm3577, %v3567, 2102212464
  %v3580 = vsel %vm3576, %v3564, %v3579
  %v3581 = vsel %vm3575, %v3578, %v3580
  %v3582 = vsel %vm3574, %v3561, %v3564
  %v3583 = vsel %vm3577, %v3570, 920167782
  %v3584 = vsel %vm3576, %v3567, %v3583
  %v3585 = vsel %vm3575, %v3582, %v3584
  %v3586 = vsel %vm3574, %v3564, %v3567
  %v3587 = vsel %vm3577, %v3573, 1326507024
  %v3588 = vsel %vm3576, %v3570, %v3587
  %v3589 = vsel %vm3575, %v3586, %v3588
  %v3590 = vshll.u32 %v3550, 8
  %v3591 = vand.u32 %v3590, 65535
  %v3592 = vshrl.u32 %v3590, 16
  %v3593 = vand.u32 %v3589, 65535
  %v3594 = vshrl.u32 %v3589, 16
  %v3595 = vmul.u32 %v3591, %v3593
  %v3596 = vmul.u32 %v3591, %v3594
  %v3597 = vmul.u32 %v3592, %v3593
  %v3598 = vmul.u32 %v3592, %v3594
  %v3599 = vshll.u32 %v3596, 16
  %v3600 = vshrl.u32 %v3596, 16
  %v3601 = vshll.u32 %v3597, 16
  %v3602 = vshrl.u32 %v3597, 16
  %vm3603 = vc.u32 %v3595, %v3599
  %v3604 = vsel %vm3603, 1, 0
  %v3605 = vadd.s32 %v3595, %v3599
  %v3606 = vadd.s32 %v3598, %v3604
  %vm3607 = vc.u32 %v3605, %v3601
  %v3608 = vsel %vm3607, 1, 0
  %v3609 = vadd.s32 %v3605, %v3601
  %v3610 = vadd.s32 %v3606, %v3608
  %v3611 = vadd.s32 %v3610, %v3600
  %v3612 = vadd.s32 %v3611, %v3602
  %v3613 = vand.u32 %v3590, 65535
  %v3614 = vshrl.u32 %v3590, 16
  %v3615 = vand.u32 %v3585, 65535
  %v3616 = vshrl.u32 %v3585, 16
  %v3617 = vmul.u32 %v3613, %v3615
  %v3618 = vmul.u32 %v3613, %v3616
  %v3619 = vmul.u32 %v3614, %v3615
  %v3620 = vmul.u32 %v3614, %v3616
  %v3621 = vshll.u32 %v3618, 16
  %v3622 = vshrl.u32 %v3618, 16
  %v3623 = vshll.u32 %v3619, 16
  %v3624 = vshrl.u32 %v3619, 16
  %vm3625 = vc.u32 %v3617, %v3621
  %v3626 = vsel %vm3625, 1, 0
  %v3627 = vadd.s32 %v3617, %v3621
  %v3628 = vadd.s32 %v3620, %v3626
  %vm3629 = vc.u32 %v3627, %v3623
  %v3630 = vsel %vm3629, 1, 0
  %v3631 = vadd.s32 %v3627, %v3623
  %v3632 = vadd.s32 %v3628, %v3630
  %v3633 = vadd.s32 %v3632, %v3622
  %v3634 = vadd.s32 %v3633, %v3624
  %v3635 = vmul.u32 %v3590, %v3581
  %v3636 = vadd.s32 %v3612, %v3631
  %vm3637 = vc.u32 %v3612, %v3631
  %v3638 = vadd.s32 %v3634, 1
  %v3639 = vsel %vm3637, %v3638, %v3634
  %v3640 = vadd.s32 %v3635, %v3639
  %v3641 = vadd.s32 %v3640, 536870912
  %v3642 = vshrl.u32 %v3641, 30
  %v3643 = vshll.u32 %v3642, 30
  %v3644 = vsub.s32 %v3640, %v3643
  %vm3645 = vcmp.lt.s32.totalorder %v3644, 0
  %v3646 = vsub.s32 0, %v3644
  %v3647 = vsel %vm3645, %v3646, %v3644
  %v3648 = vclz %v3647
  %v3649 = vsub.s32 %v3648, 2
  %vm3650 = vcmp.gt.s32.totalorder 0, %v3649
  %v3651 = vsel %vm3650, 0, %v3649
  %v3652 = vsub.s32 32, %v3651
  %v3653 = vshll.u32 %v3644, %v3651
  %v3654 = vshrl.u32 %v3636, %v3652
  %v3655 = vor.u32 %v3653, %v3654
  %v3656 = vsub.s32 4294967266, %v3651
  %v3657 = vadd.s32 %v3656, 127
  %v3658 = vshll.u32 %v3657, 23
  %v3659 = vor.u32 4788187, %v3658
  %v3660 = vand.u32 2147483647, %v3659
  %v3662 = vcvt.s32.f32 %v3655
  %v3663 = vmul.f32 %v3662, %v3660
  %v3664 = vxor.u32 %v3663, 2147483648
  %v3665 = vsel %vm3544, %v3664, %v3663
  %v3666 = vsub.s32 4, %v3642
  %v3667 = vsel %vm3544, %v3666, %v3642
  %v3668 = vsel %vm3543, %v1066, %v3665
  %v3669 = vsel %vm3543, 0, %v3667
  %v3670 = vmul.f32 %v3668, %v3668
  %v3671 = vmul.f32 %v3670, -0.001358992
  %v3672 = vadd.f32 %v3671, 0.041655596
  %v3673 = vmul.f32 %v3670, %v3672
  %v3674 = vadd.f32 %v3673, -0.4999988
  %v3675 = vmul.f32 %v3670, %v3674
  %v3676 = vadd.f32 1.0, %v3675
  %v3677 = vmul.f32 %v3668, %v3668
  %v3678 = vmul.f32 %v3677, -0.00019511016
  %v3679 = vadd.f32 %v3678, 0.008332121
  %v3680 = vmul.f32 %v3677, %v3679
  %v3681 = vadd.f32 %v3680, -0.16666654
  %v3682 = vmul.f32 %v3677, %v3681
  %v3683 = vadd.f32 %v3682, 1.0
  %v3684 = vmul.f32 %v3683, %v3668
  %vm3685 = vweird.f32 %v1066
  %v3686 = vadd.s32 %v3669, 3
  %v3687 = vand.u32 %v3686, 3
  %vm3688 = vcmp.lt.s32.totalorder %v3687, 2
  %vm3689 = vcmp.eq.s32.totalorder %v3687, 0
  %v3690 = vxor.u32 %v3684, 2147483648
  %v3691 = vsel %vm3689, %v3676, %v3690
  %vm3692 = vcmp.eq.s32.totalorder %v3687, 2
  %v3693 = vxor.u32 %v3676, 2147483648
  %v3694 = vsel %vm3692, %v3693, %v3684
  %v3695 = vsel %vm3688, %v3691, %v3694
  %v3696 = vsel %vm3685, nan, %v3695
  %v3697 = vand.u32 2147483647, %v1067
  %vm3698 = vcmp.le.f32.partialorder %v3697, 0.7853982
  %vm3699 = vcmp.lt.s32.totalorder %v1067, 0
  %v3700 = vand.u32 %v1067, 2139095040
  %v3701 = vshrl.u32 %v3700, 23
  %v3702 = vsub.s32 %v3701, 127
  %v3703 = vand.u32 2147483647, %v1067
  %v3704 = vand.u32 %v3703, 8388607
  %v3705 = vor.u32 %v3704, 8388608
  %v3706 = vsub.s32 0, %v3705
  %v3707 = vadd.s32 %v3702, 1
  %vm3708 = vcmp.gt.s32.totalorder %v3707, 0
  %v3709 = vsel %vm3708, %v3707, 0
  %v3710 = vshrl.u32 %v3709, 5
  %v3711 = vand.u32 %v3709, 31
  %v3712 = vsub.s32 32, %v3711
  %v3713 = vshrl.u32 683565275, %v3712
  %v3714 = vshll.u32 683565275, %v3711
  %v3715 = vshrl.u32 2475754826, %v3712
  %v3716 = vor.u32 %v3714, %v3715
  %v3717 = vshll.u32 2475754826, %v3711
  %v3718 = vshrl.u32 2131351028, %v3712
  %v3719 = vor.u32 %v3717, %v3718
  %v3720 = vshll.u32 2131351028, %v3711
  %v3721 = vshrl.u32 2102212464, %v3712
  %v3722 = vor.u32 %v3720, %v3721
  %v3723 = vshll.u32 2102212464, %v3711
  %v3724 = vshrl.u32 920167782, %v3712
  %v3725 = vor.u32 %v3723, %v3724
  %v3726 = vshll.u32 920167782, %v3711
  %v3727 = vshrl.u32 1326507024, %v3712
  %v3728 = vor.u32 %v3726, %v3727
  %vm3729 = vcmp.lt.s32.totalorder %v3710, 1
  %vm3730 = vcmp.lt.s32.totalorder %v3710, 2
  %vm3731 = vcmp.lt.s32.totalorder %v3710, 3
  %vm3732 = vcmp.lt.s32.totalorder %v3710, 4
  %v3733 = vsel %vm3729, %v3713, %v3716
  %v3734 = vsel %vm3732, %v3722, 2102212464
  %v3735 = vsel %vm3731, %v3719, %v3734
  %v3736 = vsel %vm3730, %v3733, %v3735
  %v3737 = vsel %vm3729, %v3716, %v3719
  %v3738 = vsel %vm3732, %v3725, 920167782
  %v3739 = vsel %vm3731, %v3722, %v3738
  %v3740 = vsel %vm3730, %v3737, %v3739
  %v3741 = vsel %vm3729, %v3719, %v3722
  %v3742 = vsel %vm3732, %v3728, 1326507024
  %v3743 = vsel %vm3731, %v3725, %v3742
  %v3744 = vsel %vm3730, %v3741, %v3743
  %v3745 = vshll.u32 %v3705, 8
  %v3746 = vand.u32 %v3745, 65535
  %v3747 = vshrl.u32 %v3745, 16
  %v3748 = vand.u32 %v3744, 65535
  %v3749 = vshrl.u32 %v3744, 16
  %v3750 = vmul.u32 %v3746, %v3748
  %v3751 = vmul.u32 %v3746, %v3749
  %v3752 = vmul.u32 %v3747, %v3748
  %v3753 = vmul.u32 %v3747, %v3749
  %v3754 = vshll.u32 %v3751, 16
  %v3755 = vshrl.u32 %v3751, 16
  %v3756 = vshll.u32 %v3752, 16
  %v3757 = vshrl.u32 %v3752, 16
  %vm3758 = vc.u32 %v3750, %v3754
  %v3759 = vsel %vm3758, 1, 0
  %v3760 = vadd.s32 %v3750, %v3754
  %v3761 = vadd.s32 %v3753, %v3759
  %vm3762 = vc.u32 %v3760, %v3756
  %v3763 = vsel %vm3762, 1, 0
  %v3764 = vadd.s32 %v3760, %v3756
  %v3765 = vadd.s32 %v3761, %v3763
  %v3766 = vadd.s32 %v3765, %v3755
  %v3767 = vadd.s32 %v3766, %v3757
  %v3768 = vand.u32 %v3745, 65535
  %v3769 = vshrl.u32 %v3745, 16
  %v3770 = vand.u32 %v3740, 65535
  %v3771 = vshrl.u32 %v3740, 16
  %v3772 = vmul.u32 %v3768, %v3770
  %v3773 = vmul.u32 %v3768, %v3771
  %v3774 = vmul.u32 %v3769, %v3770
  %v3775 = vmul.u32 %v3769, %v3771
  %v3776 = vshll.u32 %v3773, 16
  %v3777 = vshrl.u32 %v3773, 16
  %v3778 = vshll.u32 %v3774, 16
  %v3779 = vshrl.u32 %v3774, 16
  %vm3780 = vc.u32 %v3772, %v3776
  %v3781 = vsel %vm3780, 1, 0
  %v3782 = vadd.s32 %v3772, %v3776
  %v3783 = vadd.s32 %v3775, %v3781
  %vm3784 = vc.u32 %v3782, %v3778
  %v3785 = vsel %vm3784, 1, 0
  %v3786 = vadd.s32 %v3782, %v3778
  %v3787 = vadd.s32 %v3783, %v3785
  %v3788 = vadd.s32 %v3787, %v3777
  %v3789 = vadd.s32 %v3788, %v3779
  %v3790 = vmul.u32 %v3745, %v3736
  %v3791 = vadd.s32 %v3767, %v3786
  %vm3792 = vc.u32 %v3767, %v3786
  %v3793 = vadd.s32 %v3789, 1
  %v3794 = vsel %vm3792, %v3793, %v3789
  %v3795 = vadd.s32 %v3790, %v3794
  %v3796 = vadd.s32 %v3795, 536870912
  %v3797 = vshrl.u32 %v3796, 30
  %v3798 = vshll.u32 %v3797, 30
  %v3799 = vsub.s32 %v3795, %v3798
  %vm3800 = vcmp.lt.s32.totalorder %v3799, 0
  %v3801 = vsub.s32 0, %v3799
  %v3802 = vsel %vm3800, %v3801, %v3799
  %v3803 = vclz %v3802
  %v3804 = vsub.s32 %v3803, 2
  %vm3805 = vcmp.gt.s32.totalorder 0, %v3804
  %v3806 = vsel %vm3805, 0, %v3804
  %v3807 = vsub.s32 32, %v3806
  %v3808 = vshll.u32 %v3799, %v3806
  %v3809 = vshrl.u32 %v3791, %v3807
  %v3810 = vor.u32 %v3808, %v3809
  %v3811 = vsub.s32 4294967266, %v3806
  %v3812 = vadd.s32 %v3811, 127
  %v3813 = vshll.u32 %v3812, 23
  %v3814 = vor.u32 4788187, %v3813
  %v3815 = vand.u32 2147483647, %v3814
  %v3817 = vcvt.s32.f32 %v3810
  %v3818 = vmul.f32 %v3817, %v3815
  %v3819 = vxor.u32 %v3818, 2147483648
  %v3820 = vsel %vm3699, %v3819, %v3818
  %v3821 = vsub.s32 4, %v3797
  %v3822 = vsel %vm3699, %v3821, %v3797
  %v3823 = vsel %vm3698, %v1067, %v3820
  %v3824 = vsel %vm3698, 0, %v3822
  %v3825 = vmul.f32 %v3823, %v3823
  %v3826 = vmul.f32 %v3825, -0.001358992
  %v3827 = vadd.f32 %v3826, 0.041655596
  %v3828 = vmul.f32 %v3825, %v3827
  %v3829 = vadd.f32 %v3828, -0.4999988
  %v3830 = vmul.f32 %v3825, %v3829
  %v3831 = vadd.f32 1.0, %v3830
  %v3832 = vmul.f32 %v3823, %v3823
  %v3833 = vmul.f32 %v3832, -0.00019511016
  %v3834 = vadd.f32 %v3833, 0.008332121
  %v3835 = vmul.f32 %v3832, %v3834
  %v3836 = vadd.f32 %v3835, -0.16666654
  %v3837 = vmul.f32 %v3832, %v3836
  %v3838 = vadd.f32 %v3837, 1.0
  %v3839 = vmul.f32 %v3838, %v3823
  %vm3840 = vweird.f32 %v1067
  %v3841 = vadd.s32 %v3824, 3
  %v3842 = vand.u32 %v3841, 3
  %vm3843 = vcmp.lt.s32.totalorder %v3842, 2
  %vm3844 = vcmp.eq.s32.totalorder %v3842, 0
  %v3845 = vxor.u32 %v3839, 2147483648
  %v3846 = vsel %vm3844, %v3831, %v3845
  %vm3847 = vcmp.eq.s32.totalorder %v3842, 2
  %v3848 = vxor.u32 %v3831, 2147483648
  %v3849 = vsel %vm3847, %v3848, %v3839
  %v3850 = vsel %vm3843, %v3846, %v3849
  %v3851 = vsel %vm3840, nan, %v3850
  %v3852 = vand.u32 2147483647, %v1068
  %vm3853 = vcmp.le.f32.partialorder %v3852, 0.7853982
  %vm3854 = vcmp.lt.s32.totalorder %v1068, 0
  %v3855 = vand.u32 %v1068, 2139095040
  %v3856 = vshrl.u32 %v3855, 23
  %v3857 = vsub.s32 %v3856, 127
  %v3858 = vand.u32 2147483647, %v1068
  %v3859 = vand.u32 %v3858, 8388607
  %v3860 = vor.u32 %v3859, 8388608
  %v3861 = vsub.s32 0, %v3860
  %v3862 = vadd.s32 %v3857, 1
  %vm3863 = vcmp.gt.s32.totalorder %v3862, 0
  %v3864 = vsel %vm3863, %v3862, 0
  %v3865 = vshrl.u32 %v3864, 5
  %v3866 = vand.u32 %v3864, 31
  %v3867 = vsub.s32 32, %v3866
  %v3868 = vshrl.u32 683565275, %v3867
  %v3869 = vshll.u32 683565275, %v3866
  %v3870 = vshrl.u32 2475754826, %v3867
  %v3871 = vor.u32 %v3869, %v3870
  %v3872 = vshll.u32 2475754826, %v3866
  %v3873 = vshrl.u32 2131351028, %v3867
  %v3874 = vor.u32 %v3872, %v3873
  %v3875 = vshll.u32 2131351028, %v3866
  %v3876 = vshrl.u32 2102212464, %v3867
  %v3877 = vor.u32 %v3875, %v3876
  %v3878 = vshll.u32 2102212464, %v3866
  %v3879 = vshrl.u32 920167782, %v3867
  %v3880 = vor.u32 %v3878, %v3879
  %v3881 = vshll.u32 920167782, %v3866
  %v3882 = vshrl.u32 1326507024, %v3867
  %v3883 = vor.u32 %v3881, %v3882
  %vm3884 = vcmp.lt.s32.totalorder %v3865, 1
  %vm3885 = vcmp.lt.s32.totalorder %v3865, 2
  %vm3886 = vcmp.lt.s32.totalorder %v3865, 3
  %vm3887 = vcmp.lt.s32.totalorder %v3865, 4
  %v3888 = vsel %vm3884, %v3868, %v3871
  %v3889 = vsel %vm3887, %v3877, 2102212464
  %v3890 = vsel %vm3886, %v3874, %v3889
  %v3891 = vsel %vm3885, %v3888, %v3890
  %v3892 = vsel %vm3884, %v3871, %v3874
  %v3893 = vsel %vm3887, %v3880, 920167782
  %v3894 = vsel %vm3886, %v3877, %v3893
  %v3895 = vsel %vm3885, %v3892, %v3894
  %v3896 = vsel %vm3884, %v3874, %v3877
  %v3897 = vsel %vm3887, %v3883, 1326507024
  %v3898 = vsel %vm3886, %v3880, %v3897
  %v3899 = vsel %vm3885, %v3896, %v3898
  %v3900 = vshll.u32 %v3860, 8
  %v3901 = vand.u32 %v3900, 65535
  %v3902 = vshrl.u32 %v3900, 16
  %v3903 = vand.u32 %v3899, 65535
  %v3904 = vshrl.u32 %v3899, 16
  %v3905 = vmul.u32 %v3901, %v3903
  %v3906 = vmul.u32 %v3901, %v3904
  %v3907 = vmul.u32 %v3902, %v3903
  %v3908 = vmul.u32 %v3902, %v3904
  %v3909 = vshll.u32 %v3906, 16
  %v3910 = vshrl.u32 %v3906, 16
  %v3911 = vshll.u32 %v3907, 16
  %v3912 = vshrl.u32 %v3907, 16
  %vm3913 = vc.u32 %v3905, %v3909
  %v3914 = vsel %vm3913, 1, 0
  %v3915 = vadd.s32 %v3905, %v3909
  %v3916 = vadd.s32 %v3908, %v3914
  %vm3917 = vc.u32 %v3915, %v3911
  %v3918 = vsel %vm3917, 1, 0
  %v3919 = vadd.s32 %v3915, %v3911
  %v3920 = vadd.s32 %v3916, %v3918
  %v3921 = vadd.s32 %v3920, %v3910
  %v3922 = vadd.s32 %v3921, %v3912
  %v3923 = vand.u32 %v3900, 65535
  %v3924 = vshrl.u32 %v3900, 16
  %v3925 = vand.u32 %v3895, 65535
  %v3926 = vshrl.u32 %v3895, 16
  %v3927 = vmul.u32 %v3923, %v3925
  %v3928 = vmul.u32 %v3923, %v3926
  %v3929 = vmul.u32 %v3924, %v3925
  %v3930 = vmul.u32 %v3924, %v3926
  %v3931 = vshll.u32 %v3928, 16
  %v3932 = vshrl.u32 %v3928, 16
  %v3933 = vshll.u32 %v3929, 16
  %v3934 = vshrl.u32 %v3929, 16
  %vm3935 = vc.u32 %v3927, %v3931
  %v3936 = vsel %vm3935, 1, 0
  %v3937 = vadd.s32 %v3927, %v3931
  %v3938 = vadd.s32 %v3930, %v3936
  %vm3939 = vc.u32 %v3937, %v3933
  %v3940 = vsel %vm3939, 1, 0
  %v3941 = vadd.s32 %v3937, %v3933
  %v3942 = vadd.s32 %v3938, %v3940
  %v3943 = vadd.s32 %v3942, %v3932
  %v3944 = vadd.s32 %v3943, %v3934
  %v3945 = vmul.u32 %v3900, %v3891
  %v3946 = vadd.s32 %v3922, %v3941
  %vm3947 = vc.u32 %v3922, %v3941
  %v3948 = vadd.s32 %v3944, 1
  %v3949 = vsel %vm3947, %v3948, %v3944
  %v3950 = vadd.s32 %v3945, %v3949
  %v3951 = vadd.s32 %v3950, 536870912
  %v3952 = vshrl.u32 %v3951, 30
  %v3953 = vshll.u32 %v3952, 30
  %v3954 = vsub.s32 %v3950, %v3953
  %vm3955 = vcmp.lt.s32.totalorder %v3954, 0
  %v3956 = vsub.s32 0, %v3954
  %v3957 = vsel %vm3955, %v3956, %v3954
  %v3958 = vclz %v3957
  %v3959 = vsub.s32 %v3958, 2
  %vm3960 = vcmp.gt.s32.totalorder 0, %v3959
  %v3961 = vsel %vm3960, 0, %v3959
  %v3962 = vsub.s32 32, %v3961
  %v3963 = vshll.u32 %v3954, %v3961
  %v3964 = vshrl.u32 %v3946, %v3962
  %v3965 = vor.u32 %v3963, %v3964
  %v3966 = vsub.s32 4294967266, %v3961
  %v3967 = vadd.s32 %v3966, 127
  %v3968 = vshll.u32 %v3967, 23
  %v3969 = vor.u32 4788187, %v3968
  %v3970 = vand.u32 2147483647, %v3969
  %v3972 = vcvt.s32.f32 %v3965
  %v3973 = vmul.f32 %v3972, %v3970
  %v3974 = vxor.u32 %v3973, 2147483648
  %v3975 = vsel %vm3854, %v3974, %v3973
  %v3976 = vsub.s32 4, %v3952
  %v3977 = vsel %vm3854, %v3976, %v3952
  %v3978 = vsel %vm3853, %v1068, %v3975
  %v3979 = vsel %vm3853, 0, %v3977
  %v3980 = vmul.f32 %v3978, %v3978
  %v3981 = vmul.f32 %v3980, -0.001358992
  %v3982 = vadd.f32 %v3981, 0.041655596
  %v3983 = vmul.f32 %v3980, %v3982
  %v3984 = vadd.f32 %v3983, -0.4999988
  %v3985 = vmul.f32 %v3980, %v3984
  %v3986 = vadd.f32 1.0, %v3985
  %v3987 = vmul.f32 %v3978, %v3978
  %v3988 = vmul.f32 %v3987, -0.00019511016
  %v3989 = vadd.f32 %v3988, 0.008332121
  %v3990 = vmul.f32 %v3987, %v3989
  %v3991 = vadd.f32 %v3990, -0.16666654
  %v3992 = vmul.f32 %v3987, %v3991
  %v3993 = vadd.f32 %v3992, 1.0
  %v3994 = vmul.f32 %v3993, %v3978
  %vm3995 = vweird.f32 %v1068
  %v3996 = vadd.s32 %v3979, 3
  %v3997 = vand.u32 %v3996, 3
  %vm3998 = vcmp.lt.s32.totalorder %v3997, 2
  %vm3999 = vcmp.eq.s32.totalorder %v3997, 0
  %v4000 = vxor.u32 %v3994, 2147483648
  %v4001 = vsel %vm3999, %v3986, %v4000
  %vm4002 = vcmp.eq.s32.totalorder %v3997, 2
  %v4003 = vxor.u32 %v3986, 2147483648
  %v4004 = vsel %vm4002, %v4003, %v3994
  %v4005 = vsel %vm3998, %v4001, %v4004
  %v4006 = vsel %vm3995, nan, %v4005
  %v4007 = vand.u32 2147483647, %v1069
  %vm4008 = vcmp.le.f32.partialorder %v4007, 0.7853982
  %vm4009 = vcmp.lt.s32.totalorder %v1069, 0
  %v4010 = vand.u32 %v1069, 2139095040
  %v4011 = vshrl.u32 %v4010, 23
  %v4012 = vsub.s32 %v4011, 127
  %v4013 = vand.u32 2147483647, %v1069
  %v4014 = vand.u32 %v4013, 8388607
  %v4015 = vor.u32 %v4014, 8388608
  %v4016 = vsub.s32 0, %v4015
  %v4017 = vadd.s32 %v4012, 1
  %vm4018 = vcmp.gt.s32.totalorder %v4017, 0
  %v4019 = vsel %vm4018, %v4017, 0
  %v4020 = vshrl.u32 %v4019, 5
  %v4021 = vand.u32 %v4019, 31
  %v4022 = vsub.s32 32, %v4021
  %v4023 = vshrl.u32 683565275, %v4022
  %v4024 = vshll.u32 683565275, %v4021
  %v4025 = vshrl.u32 2475754826, %v4022
  %v4026 = vor.u32 %v4024, %v4025
  %v4027 = vshll.u32 2475754826, %v4021
  %v4028 = vshrl.u32 2131351028, %v4022
  %v4029 = vor.u32 %v4027, %v4028
  %v4030 = vshll.u32 2131351028, %v4021
  %v4031 = vshrl.u32 2102212464, %v4022
  %v4032 = vor.u32 %v4030, %v4031
  %v4033 = vshll.u32 2102212464, %v4021
  %v4034 = vshrl.u32 920167782, %v4022
  %v4035 = vor.u32 %v4033, %v4034
  %v4036 = vshll.u32 920167782, %v4021
  %v4037 = vshrl.u32 1326507024, %v4022
  %v4038 = vor.u32 %v4036, %v4037
  %vm4039 = vcmp.lt.s32.totalorder %v4020, 1
  %vm4040 = vcmp.lt.s32.totalorder %v4020, 2
  %vm4041 = vcmp.lt.s32.totalorder %v4020, 3
  %vm4042 = vcmp.lt.s32.totalorder %v4020, 4
  %v4043 = vsel %vm4039, %v4023, %v4026
  %v4044 = vsel %vm4042, %v4032, 2102212464
  %v4045 = vsel %vm4041, %v4029, %v4044
  %v4046 = vsel %vm4040, %v4043, %v4045
  %v4047 = vsel %vm4039, %v4026, %v4029
  %v4048 = vsel %vm4042, %v4035, 920167782
  %v4049 = vsel %vm4041, %v4032, %v4048
  %v4050 = vsel %vm4040, %v4047, %v4049
  %v4051 = vsel %vm4039, %v4029, %v4032
  %v4052 = vsel %vm4042, %v4038, 1326507024
  %v4053 = vsel %vm4041, %v4035, %v4052
  %v4054 = vsel %vm4040, %v4051, %v4053
  %v4055 = vshll.u32 %v4015, 8
  %v4056 = vand.u32 %v4055, 65535
  %v4057 = vshrl.u32 %v4055, 16
  %v4058 = vand.u32 %v4054, 65535
  %v4059 = vshrl.u32 %v4054, 16
  %v4060 = vmul.u32 %v4056, %v4058
  %v4061 = vmul.u32 %v4056, %v4059
  %v4062 = vmul.u32 %v4057, %v4058
  %v4063 = vmul.u32 %v4057, %v4059
  %v4064 = vshll.u32 %v4061, 16
  %v4065 = vshrl.u32 %v4061, 16
  %v4066 = vshll.u32 %v4062, 16
  %v4067 = vshrl.u32 %v4062, 16
  %vm4068 = vc.u32 %v4060, %v4064
  %v4069 = vsel %vm4068, 1, 0
  %v4070 = vadd.s32 %v4060, %v4064
  %v4071 = vadd.s32 %v4063, %v4069
  %vm4072 = vc.u32 %v4070, %v4066
  %v4073 = vsel %vm4072, 1, 0
  %v4074 = vadd.s32 %v4070, %v4066
  %v4075 = vadd.s32 %v4071, %v4073
  %v4076 = vadd.s32 %v4075, %v4065
  %v4077 = vadd.s32 %v4076, %v4067
  %v4078 = vand.u32 %v4055, 65535
  %v4079 = vshrl.u32 %v4055, 16
  %v4080 = vand.u32 %v4050, 65535
  %v4081 = vshrl.u32 %v4050, 16
  %v4082 = vmul.u32 %v4078, %v4080
  %v4083 = vmul.u32 %v4078, %v4081
  %v4084 = vmul.u32 %v4079, %v4080
  %v4085 = vmul.u32 %v4079, %v4081
  %v4086 = vshll.u32 %v4083, 16
  %v4087 = vshrl.u32 %v4083, 16
  %v4088 = vshll.u32 %v4084, 16
  %v4089 = vshrl.u32 %v4084, 16
  %vm4090 = vc.u32 %v4082, %v4086
  %v4091 = vsel %vm4090, 1, 0
  %v4092 = vadd.s32 %v4082, %v4086
  %v4093 = vadd.s32 %v4085, %v4091
  %vm4094 = vc.u32 %v4092, %v4088
  %v4095 = vsel %vm4094, 1, 0
  %v4096 = vadd.s32 %v4092, %v4088
  %v4097 = vadd.s32 %v4093, %v4095
  %v4098 = vadd.s32 %v4097, %v4087
  %v4099 = vadd.s32 %v4098, %v4089
  %v4100 = vmul.u32 %v4055, %v4046
  %v4101 = vadd.s32 %v4077, %v4096
  %vm4102 = vc.u32 %v4077, %v4096
  %v4103 = vadd.s32 %v4099, 1
  %v4104 = vsel %vm4102, %v4103, %v4099
  %v4105 = vadd.s32 %v4100, %v4104
  %v4106 = vadd.s32 %v4105, 536870912
  %v4107 = vshrl.u32 %v4106, 30
  %v4108 = vshll.u32 %v4107, 30
  %v4109 = vsub.s32 %v4105, %v4108
  %vm4110 = vcmp.lt.s32.totalorder %v4109, 0
  %v4111 = vsub.s32 0, %v4109
  %v4112 = vsel %vm4110, %v4111, %v4109
  %v4113 = vclz %v4112
  %v4114 = vsub.s32 %v4113, 2
  %vm4115 = vcmp.gt.s32.totalorder 0, %v4114
  %v4116 = vsel %vm4115, 0, %v4114
  %v4117 = vsub.s32 32, %v4116
  %v4118 = vshll.u32 %v4109, %v4116
  %v4119 = vshrl.u32 %v4101, %v4117
  %v4120 = vor.u32 %v4118, %v4119
  %v4121 = vsub.s32 4294967266, %v4116
  %v4122 = vadd.s32 %v4121, 127
  %v4123 = vshll.u32 %v4122, 23
  %v4124 = vor.u32 4788187, %v4123
  %v4125 = vand.u32 2147483647, %v4124
  %v4127 = vcvt.s32.f32 %v4120
  %v4128 = vmul.f32 %v4127, %v4125
  %v4129 = vxor.u32 %v4128, 2147483648
  %v4130 = vsel %vm4009, %v4129, %v4128
  %v4131 = vsub.s32 4, %v4107
  %v4132 = vsel %vm4009, %v4131, %v4107
  %v4133 = vsel %vm4008, %v1069, %v4130
  %v4134 = vsel %vm4008, 0, %v4132
  %v4135 = vmul.f32 %v4133, %v4133
  %v4136 = vmul.f32 %v4135, -0.001358992
  %v4137 = vadd.f32 %v4136, 0.041655596
  %v4138 = vmul.f32 %v4135, %v4137
  %v4139 = vadd.f32 %v4138, -0.4999988
  %v4140 = vmul.f32 %v4135, %v4139
  %v4141 = vadd.f32 1.0, %v4140
  %v4142 = vmul.f32 %v4133, %v4133
  %v4143 = vmul.f32 %v4142, -0.00019511016
  %v4144 = vadd.f32 %v4143, 0.008332121
  %v4145 = vmul.f32 %v4142, %v4144
  %v4146 = vadd.f32 %v4145, -0.16666654
  %v4147 = vmul.f32 %v4142, %v4146
  %v4148 = vadd.f32 %v4147, 1.0
  %v4149 = vmul.f32 %v4148, %v4133
  %vm4150 = vweird.f32 %v1069
  %v4151 = vadd.s32 %v4134, 3
  %v4152 = vand.u32 %v4151, 3
  %vm4153 = vcmp.lt.s32.totalorder %v4152, 2
  %vm4154 = vcmp.eq.s32.totalorder %v4152, 0
  %v4155 = vxor.u32 %v4149, 2147483648
  %v4156 = vsel %vm4154, %v4141, %v4155
  %vm4157 = vcmp.eq.s32.totalorder %v4152, 2
  %v4158 = vxor.u32 %v4141, 2147483648
  %v4159 = vsel %vm4157, %v4158, %v4149
  %v4160 = vsel %vm4153, %v4156, %v4159
  %v4161 = vsel %vm4150, nan, %v4160
  %v4162 = vand.u32 2147483647, %v1070
  %vm4163 = vcmp.le.f32.partialorder %v4162, 0.7853982
  %vm4164 = vcmp.lt.s32.totalorder %v1070, 0
  %v4165 = vand.u32 %v1070, 2139095040
  %v4166 = vshrl.u32 %v4165, 23
  %v4167 = vsub.s32 %v4166, 127
  %v4168 = vand.u32 2147483647, %v1070
  %v4169 = vand.u32 %v4168, 8388607
  %v4170 = vor.u32 %v4169, 8388608
  %v4171 = vsub.s32 0, %v4170
  %v4172 = vadd.s32 %v4167, 1
  %vm4173 = vcmp.gt.s32.totalorder %v4172, 0
  %v4174 = vsel %vm4173, %v4172, 0
  %v4175 = vshrl.u32 %v4174, 5
  %v4176 = vand.u32 %v4174, 31
  %v4177 = vsub.s32 32, %v4176
  %v4178 = vshrl.u32 683565275, %v4177
  %v4179 = vshll.u32 683565275, %v4176
  %v4180 = vshrl.u32 2475754826, %v4177
  %v4181 = vor.u32 %v4179, %v4180
  %v4182 = vshll.u32 2475754826, %v4176
  %v4183 = vshrl.u32 2131351028, %v4177
  %v4184 = vor.u32 %v4182, %v4183
  %v4185 = vshll.u32 2131351028, %v4176
  %v4186 = vshrl.u32 2102212464, %v4177
  %v4187 = vor.u32 %v4185, %v4186
  %v4188 = vshll.u32 2102212464, %v4176
  %v4189 = vshrl.u32 920167782, %v4177
  %v4190 = vor.u32 %v4188, %v4189
  %v4191 = vshll.u32 920167782, %v4176
  %v4192 = vshrl.u32 1326507024, %v4177
  %v4193 = vor.u32 %v4191, %v4192
  %vm4194 = vcmp.lt.s32.totalorder %v4175, 1
  %vm4195 = vcmp.lt.s32.totalorder %v4175, 2
  %vm4196 = vcmp.lt.s32.totalorder %v4175, 3
  %vm4197 = vcmp.lt.s32.totalorder %v4175, 4
  %v4198 = vsel %vm4194, %v4178, %v4181
  %v4199 = vsel %vm4197, %v4187, 2102212464
  %v4200 = vsel %vm4196, %v4184, %v4199
  %v4201 = vsel %vm4195, %v4198, %v4200
  %v4202 = vsel %vm4194, %v4181, %v4184
  %v4203 = vsel %vm4197, %v4190, 920167782
  %v4204 = vsel %vm4196, %v4187, %v4203
  %v4205 = vsel %vm4195, %v4202, %v4204
  %v4206 = vsel %vm4194, %v4184, %v4187
  %v4207 = vsel %vm4197, %v4193, 1326507024
  %v4208 = vsel %vm4196, %v4190, %v4207
  %v4209 = vsel %vm4195, %v4206, %v4208
  %v4210 = vshll.u32 %v4170, 8
  %v4211 = vand.u32 %v4210, 65535
  %v4212 = vshrl.u32 %v4210, 16
  %v4213 = vand.u32 %v4209, 65535
  %v4214 = vshrl.u32 %v4209, 16
  %v4215 = vmul.u32 %v4211, %v4213
  %v4216 = vmul.u32 %v4211, %v4214
  %v4217 = vmul.u32 %v4212, %v4213
  %v4218 = vmul.u32 %v4212, %v4214
  %v4219 = vshll.u32 %v4216, 16
  %v4220 = vshrl.u32 %v4216, 16
  %v4221 = vshll.u32 %v4217, 16
  %v4222 = vshrl.u32 %v4217, 16
  %vm4223 = vc.u32 %v4215, %v4219
  %v4224 = vsel %vm4223, 1, 0
  %v4225 = vadd.s32 %v4215, %v4219
  %v4226 = vadd.s32 %v4218, %v4224
  %vm4227 = vc.u32 %v4225, %v4221
  %v4228 = vsel %vm4227, 1, 0
  %v4229 = vadd.s32 %v4225, %v4221
  %v4230 = vadd.s32 %v4226, %v4228
  %v4231 = vadd.s32 %v4230, %v4220
  %v4232 = vadd.s32 %v4231, %v4222
  %v4233 = vand.u32 %v4210, 65535
  %v4234 = vshrl.u32 %v4210, 16
  %v4235 = vand.u32 %v4205, 65535
  %v4236 = vshrl.u32 %v4205, 16
  %v4237 = vmul.u32 %v4233, %v4235
  %v4238 = vmul.u32 %v4233, %v4236
  %v4239 = vmul.u32 %v4234, %v4235
  %v4240 = vmul.u32 %v4234, %v4236
  %v4241 = vshll.u32 %v4238, 16
  %v4242 = vshrl.u32 %v4238, 16
  %v4243 = vshll.u32 %v4239, 16
  %v4244 = vshrl.u32 %v4239, 16
  %vm4245 = vc.u32 %v4237, %v4241
  %v4246 = vsel %vm4245, 1, 0
  %v4247 = vadd.s32 %v4237, %v4241
  %v4248 = vadd.s32 %v4240, %v4246
  %vm4249 = vc.u32 %v4247, %v4243
  %v4250 = vsel %vm4249, 1, 0
  %v4251 = vadd.s32 %v4247, %v4243
  %v4252 = vadd.s32 %v4248, %v4250
  %v4253 = vadd.s32 %v4252, %v4242
  %v4254 = vadd.s32 %v4253, %v4244
  %v4255 = vmul.u32 %v4210, %v4201
  %v4256 = vadd.s32 %v4232, %v4251
  %vm4257 = vc.u32 %v4232, %v4251
  %v4258 = vadd.s32 %v4254, 1
  %v4259 = vsel %vm4257, %v4258, %v4254
  %v4260 = vadd.s32 %v4255, %v4259
  %v4261 = vadd.s32 %v4260, 536870912
  %v4262 = vshrl.u32 %v4261, 30
  %v4263 = vshll.u32 %v4262, 30
  %v4264 = vsub.s32 %v4260, %v4263
  %vm4265 = vcmp.lt.s32.totalorder %v4264, 0
  %v4266 = vsub.s32 0, %v4264
  %v4267 = vsel %vm4265, %v4266, %v4264
  %v4268 = vclz %v4267
  %v4269 = vsub.s32 %v4268, 2
  %vm4270 = vcmp.gt.s32.totalorder 0, %v4269
  %v4271 = vsel %vm4270, 0, %v4269
  %v4272 = vsub.s32 32, %v4271
  %v4273 = vshll.u32 %v4264, %v4271
  %v4274 = vshrl.u32 %v4256, %v4272
  %v4275 = vor.u32 %v4273, %v4274
  %v4276 = vsub.s32 4294967266, %v4271
  %v4277 = vadd.s32 %v4276, 127
  %v4278 = vshll.u32 %v4277, 23
  %v4279 = vor.u32 4788187, %v4278
  %v4280 = vand.u32 2147483647, %v4279
  %v4282 = vcvt.s32.f32 %v4275
  %v4283 = vmul.f32 %v4282, %v4280
  %v4284 = vxor.u32 %v4283, 2147483648
  %v4285 = vsel %vm4164, %v4284, %v4283
  %v4286 = vsub.s32 4, %v4262
  %v4287 = vsel %vm4164, %v4286, %v4262
  %v4288 = vsel %vm4163, %v1070, %v4285
  %v4289 = vsel %vm4163, 0, %v4287
  %v4290 = vmul.f32 %v4288, %v4288
  %v4291 = vmul.f32 %v4290, -0.001358992
  %v4292 = vadd.f32 %v4291, 0.041655596
  %v4293 = vmul.f32 %v4290, %v4292
  %v4294 = vadd.f32 %v4293, -0.4999988
  %v4295 = vmul.f32 %v4290, %v4294
  %v4296 = vadd.f32 1.0, %v4295
  %v4297 = vmul.f32 %v4288, %v4288
  %v4298 = vmul.f32 %v4297, -0.00019511016
  %v4299 = vadd.f32 %v4298, 0.008332121
  %v4300 = vmul.f32 %v4297, %v4299
  %v4301 = vadd.f32 %v4300, -0.16666654
  %v4302 = vmul.f32 %v4297, %v4301
  %v4303 = vadd.f32 %v4302, 1.0
  %v4304 = vmul.f32 %v4303, %v4288
  %vm4305 = vweird.f32 %v1070
  %v4306 = vadd.s32 %v4289, 3
  %v4307 = vand.u32 %v4306, 3
  %vm4308 = vcmp.lt.s32.totalorder %v4307, 2
  %vm4309 = vcmp.eq.s32.totalorder %v4307, 0
  %v4310 = vxor.u32 %v4304, 2147483648
  %v4311 = vsel %vm4309, %v4296, %v4310
  %vm4312 = vcmp.eq.s32.totalorder %v4307, 2
  %v4313 = vxor.u32 %v4296, 2147483648
  %v4314 = vsel %vm4312, %v4313, %v4304
  %v4315 = vsel %vm4308, %v4311, %v4314
  %v4316 = vsel %vm4305, nan, %v4315
  %v4317 = vand.u32 2147483647, %v1071
  %vm4318 = vcmp.le.f32.partialorder %v4317, 0.7853982
  %vm4319 = vcmp.lt.s32.totalorder %v1071, 0
  %v4320 = vand.u32 %v1071, 2139095040
  %v4321 = vshrl.u32 %v4320, 23
  %v4322 = vsub.s32 %v4321, 127
  %v4323 = vand.u32 2147483647, %v1071
  %v4324 = vand.u32 %v4323, 8388607
  %v4325 = vor.u32 %v4324, 8388608
  %v4326 = vsub.s32 0, %v4325
  %v4327 = vadd.s32 %v4322, 1
  %vm4328 = vcmp.gt.s32.totalorder %v4327, 0
  %v4329 = vsel %vm4328, %v4327, 0
  %v4330 = vshrl.u32 %v4329, 5
  %v4331 = vand.u32 %v4329, 31
  %v4332 = vsub.s32 32, %v4331
  %v4333 = vshrl.u32 683565275, %v4332
  %v4334 = vshll.u32 683565275, %v4331
  %v4335 = vshrl.u32 2475754826, %v4332
  %v4336 = vor.u32 %v4334, %v4335
  %v4337 = vshll.u32 2475754826, %v4331
  %v4338 = vshrl.u32 2131351028, %v4332
  %v4339 = vor.u32 %v4337, %v4338
  %v4340 = vshll.u32 2131351028, %v4331
  %v4341 = vshrl.u32 2102212464, %v4332
  %v4342 = vor.u32 %v4340, %v4341
  %v4343 = vshll.u32 2102212464, %v4331
  %v4344 = vshrl.u32 920167782, %v4332
  %v4345 = vor.u32 %v4343, %v4344
  %v4346 = vshll.u32 920167782, %v4331
  %v4347 = vshrl.u32 1326507024, %v4332
  %v4348 = vor.u32 %v4346, %v4347
  %vm4349 = vcmp.lt.s32.totalorder %v4330, 1
  %vm4350 = vcmp.lt.s32.totalorder %v4330, 2
  %vm4351 = vcmp.lt.s32.totalorder %v4330, 3
  %vm4352 = vcmp.lt.s32.totalorder %v4330, 4
  %v4353 = vsel %vm4349, %v4333, %v4336
  %v4354 = vsel %vm4352, %v4342, 2102212464
  %v4355 = vsel %vm4351, %v4339, %v4354
  %v4356 = vsel %vm4350, %v4353, %v4355
  %v4357 = vsel %vm4349, %v4336, %v4339
  %v4358 = vsel %vm4352, %v4345, 920167782
  %v4359 = vsel %vm4351, %v4342, %v4358
  %v4360 = vsel %vm4350, %v4357, %v4359
  %v4361 = vsel %vm4349, %v4339, %v4342
  %v4362 = vsel %vm4352, %v4348, 1326507024
  %v4363 = vsel %vm4351, %v4345, %v4362
  %v4364 = vsel %vm4350, %v4361, %v4363
  %v4365 = vshll.u32 %v4325, 8
  %v4366 = vand.u32 %v4365, 65535
  %v4367 = vshrl.u32 %v4365, 16
  %v4368 = vand.u32 %v4364, 65535
  %v4369 = vshrl.u32 %v4364, 16
  %v4370 = vmul.u32 %v4366, %v4368
  %v4371 = vmul.u32 %v4366, %v4369
  %v4372 = vmul.u32 %v4367, %v4368
  %v4373 = vmul.u32 %v4367, %v4369
  %v4374 = vshll.u32 %v4371, 16
  %v4375 = vshrl.u32 %v4371, 16
  %v4376 = vshll.u32 %v4372, 16
  %v4377 = vshrl.u32 %v4372, 16
  %vm4378 = vc.u32 %v4370, %v4374
  %v4379 = vsel %vm4378, 1, 0
  %v4380 = vadd.s32 %v4370, %v4374
  %v4381 = vadd.s32 %v4373, %v4379
  %vm4382 = vc.u32 %v4380, %v4376
  %v4383 = vsel %vm4382, 1, 0
  %v4384 = vadd.s32 %v4380, %v4376
  %v4385 = vadd.s32 %v4381, %v4383
  %v4386 = vadd.s32 %v4385, %v4375
  %v4387 = vadd.s32 %v4386, %v4377
  %v4388 = vand.u32 %v4365, 65535
  %v4389 = vshrl.u32 %v4365, 16
  %v4390 = vand.u32 %v4360, 65535
  %v4391 = vshrl.u32 %v4360, 16
  %v4392 = vmul.u32 %v4388, %v4390
  %v4393 = vmul.u32 %v4388, %v4391
  %v4394 = vmul.u32 %v4389, %v4390
  %v4395 = vmul.u32 %v4389, %v4391
  %v4396 = vshll.u32 %v4393, 16
  %v4397 = vshrl.u32 %v4393, 16
  %v4398 = vshll.u32 %v4394, 16
  %v4399 = vshrl.u32 %v4394, 16
  %vm4400 = vc.u32 %v4392, %v4396
  %v4401 = vsel %vm4400, 1, 0
  %v4402 = vadd.s32 %v4392, %v4396
  %v4403 = vadd.s32 %v4395, %v4401
  %vm4404 = vc.u32 %v4402, %v4398
  %v4405 = vsel %vm4404, 1, 0
  %v4406 = vadd.s32 %v4402, %v4398
  %v4407 = vadd.s32 %v4403, %v4405
  %v4408 = vadd.s32 %v4407, %v4397
  %v4409 = vadd.s32 %v4408, %v4399
  %v4410 = vmul.u32 %v4365, %v4356
  %v4411 = vadd.s32 %v4387, %v4406
  %vm4412 = vc.u32 %v4387, %v4406
  %v4413 = vadd.s32 %v4409, 1
  %v4414 = vsel %vm4412, %v4413, %v4409
  %v4415 = vadd.s32 %v4410, %v4414
  %v4416 = vadd.s32 %v4415, 536870912
  %v4417 = vshrl.u32 %v4416, 30
  %v4418 = vshll.u32 %v4417, 30
  %v4419 = vsub.s32 %v4415, %v4418
  %vm4420 = vcmp.lt.s32.totalorder %v4419, 0
  %v4421 = vsub.s32 0, %v4419
  %v4422 = vsel %vm4420, %v4421, %v4419
  %v4423 = vclz %v4422
  %v4424 = vsub.s32 %v4423, 2
  %vm4425 = vcmp.gt.s32.totalorder 0, %v4424
  %v4426 = vsel %vm4425, 0, %v4424
  %v4427 = vsub.s32 32, %v4426
  %v4428 = vshll.u32 %v4419, %v4426
  %v4429 = vshrl.u32 %v4411, %v4427
  %v4430 = vor.u32 %v4428, %v4429
  %v4431 = vsub.s32 4294967266, %v4426
  %v4432 = vadd.s32 %v4431, 127
  %v4433 = vshll.u32 %v4432, 23
  %v4434 = vor.u32 4788187, %v4433
  %v4435 = vand.u32 2147483647, %v4434
  %v4437 = vcvt.s32.f32 %v4430
  %v4438 = vmul.f32 %v4437, %v4435
  %v4439 = vxor.u32 %v4438, 2147483648
  %v4440 = vsel %vm4319, %v4439, %v4438
  %v4441 = vsub.s32 4, %v4417
  %v4442 = vsel %vm4319, %v4441, %v4417
  %v4443 = vsel %vm4318, %v1071, %v4440
  %v4444 = vsel %vm4318, 0, %v4442
  %v4445 = vmul.f32 %v4443, %v4443
  %v4446 = vmul.f32 %v4445, -0.001358992
  %v4447 = vadd.f32 %v4446, 0.041655596
  %v4448 = vmul.f32 %v4445, %v4447
  %v4449 = vadd.f32 %v4448, -0.4999988
  %v4450 = vmul.f32 %v4445, %v4449
  %v4451 = vadd.f32 1.0, %v4450
  %v4452 = vmul.f32 %v4443, %v4443
  %v4453 = vmul.f32 %v4452, -0.00019511016
  %v4454 = vadd.f32 %v4453, 0.008332121
  %v4455 = vmul.f32 %v4452, %v4454
  %v4456 = vadd.f32 %v4455, -0.16666654
  %v4457 = vmul.f32 %v4452, %v4456
  %v4458 = vadd.f32 %v4457, 1.0
  %v4459 = vmul.f32 %v4458, %v4443
  %vm4460 = vweird.f32 %v1071
  %v4461 = vadd.s32 %v4444, 3
  %v4462 = vand.u32 %v4461, 3
  %vm4463 = vcmp.lt.s32.totalorder %v4462, 2
  %vm4464 = vcmp.eq.s32.totalorder %v4462, 0
  %v4465 = vxor.u32 %v4459, 2147483648
  %v4466 = vsel %vm4464, %v4451, %v4465
  %vm4467 = vcmp.eq.s32.totalorder %v4462, 2
  %v4468 = vxor.u32 %v4451, 2147483648
  %v4469 = vsel %vm4467, %v4468, %v4459
  %v4470 = vsel %vm4463, %v4466, %v4469
  %v4471 = vsel %vm4460, nan, %v4470
  %v4472 = vand.u32 2147483647, %v1072
  %vm4473 = vcmp.le.f32.partialorder %v4472, 0.7853982
  %vm4474 = vcmp.lt.s32.totalorder %v1072, 0
  %v4475 = vand.u32 %v1072, 2139095040
  %v4476 = vshrl.u32 %v4475, 23
  %v4477 = vsub.s32 %v4476, 127
  %v4478 = vand.u32 2147483647, %v1072
  %v4479 = vand.u32 %v4478, 8388607
  %v4480 = vor.u32 %v4479, 8388608
  %v4481 = vsub.s32 0, %v4480
  %v4482 = vadd.s32 %v4477, 1
  %vm4483 = vcmp.gt.s32.totalorder %v4482, 0
  %v4484 = vsel %vm4483, %v4482, 0
  %v4485 = vshrl.u32 %v4484, 5
  %v4486 = vand.u32 %v4484, 31
  %v4487 = vsub.s32 32, %v4486
  %v4488 = vshrl.u32 683565275, %v4487
  %v4489 = vshll.u32 683565275, %v4486
  %v4490 = vshrl.u32 2475754826, %v4487
  %v4491 = vor.u32 %v4489, %v4490
  %v4492 = vshll.u32 2475754826, %v4486
  %v4493 = vshrl.u32 2131351028, %v4487
  %v4494 = vor.u32 %v4492, %v4493
  %v4495 = vshll.u32 2131351028, %v4486
  %v4496 = vshrl.u32 2102212464, %v4487
  %v4497 = vor.u32 %v4495, %v4496
  %v4498 = vshll.u32 2102212464, %v4486
  %v4499 = vshrl.u32 920167782, %v4487
  %v4500 = vor.u32 %v4498, %v4499
  %v4501 = vshll.u32 920167782, %v4486
  %v4502 = vshrl.u32 1326507024, %v4487
  %v4503 = vor.u32 %v4501, %v4502
  %vm4504 = vcmp.lt.s32.totalorder %v4485, 1
  %vm4505 = vcmp.lt.s32.totalorder %v4485, 2
  %vm4506 = vcmp.lt.s32.totalorder %v4485, 3
  %vm4507 = vcmp.lt.s32.totalorder %v4485, 4
  %v4508 = vsel %vm4504, %v4488, %v4491
  %v4509 = vsel %vm4507, %v4497, 2102212464
  %v4510 = vsel %vm4506, %v4494, %v4509
  %v4511 = vsel %vm4505, %v4508, %v4510
  %v4512 = vsel %vm4504, %v4491, %v4494
  %v4513 = vsel %vm4507, %v4500, 920167782
  %v4514 = vsel %vm4506, %v4497, %v4513
  %v4515 = vsel %vm4505, %v4512, %v4514
  %v4516 = vsel %vm4504, %v4494, %v4497
  %v4517 = vsel %vm4507, %v4503, 1326507024
  %v4518 = vsel %vm4506, %v4500, %v4517
  %v4519 = vsel %vm4505, %v4516, %v4518
  %v4520 = vshll.u32 %v4480, 8
  %v4521 = vand.u32 %v4520, 65535
  %v4522 = vshrl.u32 %v4520, 16
  %v4523 = vand.u32 %v4519, 65535
  %v4524 = vshrl.u32 %v4519, 16
  %v4525 = vmul.u32 %v4521, %v4523
  %v4526 = vmul.u32 %v4521, %v4524
  %v4527 = vmul.u32 %v4522, %v4523
  %v4528 = vmul.u32 %v4522, %v4524
  %v4529 = vshll.u32 %v4526, 16
  %v4530 = vshrl.u32 %v4526, 16
  %v4531 = vshll.u32 %v4527, 16
  %v4532 = vshrl.u32 %v4527, 16
  %vm4533 = vc.u32 %v4525, %v4529
  %v4534 = vsel %vm4533, 1, 0
  %v4535 = vadd.s32 %v4525, %v4529
  %v4536 = vadd.s32 %v4528, %v4534
  %vm4537 = vc.u32 %v4535, %v4531
  %v4538 = vsel %vm4537, 1, 0
  %v4539 = vadd.s32 %v4535, %v4531
  %v4540 = vadd.s32 %v4536, %v4538
  %v4541 = vadd.s32 %v4540, %v4530
  %v4542 = vadd.s32 %v4541, %v4532
  %v4543 = vand.u32 %v4520, 65535
  %v4544 = vshrl.u32 %v4520, 16
  %v4545 = vand.u32 %v4515, 65535
  %v4546 = vshrl.u32 %v4515, 16
  %v4547 = vmul.u32 %v4543, %v4545
  %v4548 = vmul.u32 %v4543, %v4546
  %v4549 = vmul.u32 %v4544, %v4545
  %v4550 = vmul.u32 %v4544, %v4546
  %v4551 = vshll.u32 %v4548, 16
  %v4552 = vshrl.u32 %v4548, 16
  %v4553 = vshll.u32 %v4549, 16
  %v4554 = vshrl.u32 %v4549, 16
  %vm4555 = vc.u32 %v4547, %v4551
  %v4556 = vsel %vm4555, 1, 0
  %v4557 = vadd.s32 %v4547, %v4551
  %v4558 = vadd.s32 %v4550, %v4556
  %vm4559 = vc.u32 %v4557, %v4553
  %v4560 = vsel %vm4559, 1, 0
  %v4561 = vadd.s32 %v4557, %v4553
  %v4562 = vadd.s32 %v4558, %v4560
  %v4563 = vadd.s32 %v4562, %v4552
  %v4564 = vadd.s32 %v4563, %v4554
  %v4565 = vmul.u32 %v4520, %v4511
  %v4566 = vadd.s32 %v4542, %v4561
  %vm4567 = vc.u32 %v4542, %v4561
  %v4568 = vadd.s32 %v4564, 1
  %v4569 = vsel %vm4567, %v4568, %v4564
  %v4570 = vadd.s32 %v4565, %v4569
  %v4571 = vadd.s32 %v4570, 536870912
  %v4572 = vshrl.u32 %v4571, 30
  %v4573 = vshll.u32 %v4572, 30
  %v4574 = vsub.s32 %v4570, %v4573
  %vm4575 = vcmp.lt.s32.totalorder %v4574, 0
  %v4576 = vsub.s32 0, %v4574
  %v4577 = vsel %vm4575, %v4576, %v4574
  %v4578 = vclz %v4577
  %v4579 = vsub.s32 %v4578, 2
  %vm4580 = vcmp.gt.s32.totalorder 0, %v4579
  %v4581 = vsel %vm4580, 0, %v4579
  %v4582 = vsub.s32 32, %v4581
  %v4583 = vshll.u32 %v4574, %v4581
  %v4584 = vshrl.u32 %v4566, %v4582
  %v4585 = vor.u32 %v4583, %v4584
  %v4586 = vsub.s32 4294967266, %v4581
  %v4587 = vadd.s32 %v4586, 127
  %v4588 = vshll.u32 %v4587, 23
  %v4589 = vor.u32 4788187, %v4588
  %v4590 = vand.u32 2147483647, %v4589
  %v4592 = vcvt.s32.f32 %v4585
  %v4593 = vmul.f32 %v4592, %v4590
  %v4594 = vxor.u32 %v4593, 2147483648
  %v4595 = vsel %vm4474, %v4594, %v4593
  %v4596 = vsub.s32 4, %v4572
  %v4597 = vsel %vm4474, %v4596, %v4572
  %v4598 = vsel %vm4473, %v1072, %v4595
  %v4599 = vsel %vm4473, 0, %v4597
  %v4600 = vmul.f32 %v4598, %v4598
  %v4601 = vmul.f32 %v4600, -0.001358992
  %v4602 = vadd.f32 %v4601, 0.041655596
  %v4603 = vmul.f32 %v4600, %v4602
  %v4604 = vadd.f32 %v4603, -0.4999988
  %v4605 = vmul.f32 %v4600, %v4604
  %v4606 = vadd.f32 1.0, %v4605
  %v4607 = vmul.f32 %v4598, %v4598
  %v4608 = vmul.f32 %v4607, -0.00019511016
  %v4609 = vadd.f32 %v4608, 0.008332121
  %v4610 = vmul.f32 %v4607, %v4609
  %v4611 = vadd.f32 %v4610, -0.16666654
  %v4612 = vmul.f32 %v4607, %v4611
  %v4613 = vadd.f32 %v4612, 1.0
  %v4614 = vmul.f32 %v4613, %v4598
  %vm4615 = vweird.f32 %v1072
  %v4616 = vadd.s32 %v4599, 3
  %v4617 = vand.u32 %v4616, 3
  %vm4618 = vcmp.lt.s32.totalorder %v4617, 2
  %vm4619 = vcmp.eq.s32.totalorder %v4617, 0
  %v4620 = vxor.u32 %v4614, 2147483648
  %v4621 = vsel %vm4619, %v4606, %v4620
  %vm4622 = vcmp.eq.s32.totalorder %v4617, 2
  %v4623 = vxor.u32 %v4606, 2147483648
  %v4624 = vsel %vm4622, %v4623, %v4614
  %v4625 = vsel %vm4618, %v4621, %v4624
  %v4626 = vsel %vm4615, nan, %v4625
  %v4627 = vand.u32 2147483647, %v1073
  %vm4628 = vcmp.le.f32.partialorder %v4627, 0.7853982
  %vm4629 = vcmp.lt.s32.totalorder %v1073, 0
  %v4630 = vand.u32 %v1073, 2139095040
  %v4631 = vshrl.u32 %v4630, 23
  %v4632 = vsub.s32 %v4631, 127
  %v4633 = vand.u32 2147483647, %v1073
  %v4634 = vand.u32 %v4633, 8388607
  %v4635 = vor.u32 %v4634, 8388608
  %v4636 = vsub.s32 0, %v4635
  %v4637 = vadd.s32 %v4632, 1
  %vm4638 = vcmp.gt.s32.totalorder %v4637, 0
  %v4639 = vsel %vm4638, %v4637, 0
  %v4640 = vshrl.u32 %v4639, 5
  %v4641 = vand.u32 %v4639, 31
  %v4642 = vsub.s32 32, %v4641
  %v4643 = vshrl.u32 683565275, %v4642
  %v4644 = vshll.u32 683565275, %v4641
  %v4645 = vshrl.u32 2475754826, %v4642
  %v4646 = vor.u32 %v4644, %v4645
  %v4647 = vshll.u32 2475754826, %v4641
  %v4648 = vshrl.u32 2131351028, %v4642
  %v4649 = vor.u32 %v4647, %v4648
  %v4650 = vshll.u32 2131351028, %v4641
  %v4651 = vshrl.u32 2102212464, %v4642
  %v4652 = vor.u32 %v4650, %v4651
  %v4653 = vshll.u32 2102212464, %v4641
  %v4654 = vshrl.u32 920167782, %v4642
  %v4655 = vor.u32 %v4653, %v4654
  %v4656 = vshll.u32 920167782, %v4641
  %v4657 = vshrl.u32 1326507024, %v4642
  %v4658 = vor.u32 %v4656, %v4657
  %vm4659 = vcmp.lt.s32.totalorder %v4640, 1
  %vm4660 = vcmp.lt.s32.totalorder %v4640, 2
  %vm4661 = vcmp.lt.s32.totalorder %v4640, 3
  %vm4662 = vcmp.lt.s32.totalorder %v4640, 4
  %v4663 = vsel %vm4659, %v4643, %v4646
  %v4664 = vsel %vm4662, %v4652, 2102212464
  %v4665 = vsel %vm4661, %v4649, %v4664
  %v4666 = vsel %vm4660, %v4663, %v4665
  %v4667 = vsel %vm4659, %v4646, %v4649
  %v4668 = vsel %vm4662, %v4655, 920167782
  %v4669 = vsel %vm4661, %v4652, %v4668
  %v4670 = vsel %vm4660, %v4667, %v4669
  %v4671 = vsel %vm4659, %v4649, %v4652
  %v4672 = vsel %vm4662, %v4658, 1326507024
  %v4673 = vsel %vm4661, %v4655, %v4672
  %v4674 = vsel %vm4660, %v4671, %v4673
  %v4675 = vshll.u32 %v4635, 8
  %v4676 = vand.u32 %v4675, 65535
  %v4677 = vshrl.u32 %v4675, 16
  %v4678 = vand.u32 %v4674, 65535
  %v4679 = vshrl.u32 %v4674, 16
  %v4680 = vmul.u32 %v4676, %v4678
  %v4681 = vmul.u32 %v4676, %v4679
  %v4682 = vmul.u32 %v4677, %v4678
  %v4683 = vmul.u32 %v4677, %v4679
  %v4684 = vshll.u32 %v4681, 16
  %v4685 = vshrl.u32 %v4681, 16
  %v4686 = vshll.u32 %v4682, 16
  %v4687 = vshrl.u32 %v4682, 16
  %vm4688 = vc.u32 %v4680, %v4684
  %v4689 = vsel %vm4688, 1, 0
  %v4690 = vadd.s32 %v4680, %v4684
  %v4691 = vadd.s32 %v4683, %v4689
  %vm4692 = vc.u32 %v4690, %v4686
  %v4693 = vsel %vm4692, 1, 0
  %v4694 = vadd.s32 %v4690, %v4686
  %v4695 = vadd.s32 %v4691, %v4693
  %v4696 = vadd.s32 %v4695, %v4685
  %v4697 = vadd.s32 %v4696, %v4687
  %v4698 = vand.u32 %v4675, 65535
  %v4699 = vshrl.u32 %v4675, 16
  %v4700 = vand.u32 %v4670, 65535
  %v4701 = vshrl.u32 %v4670, 16
  %v4702 = vmul.u32 %v4698, %v4700
  %v4703 = vmul.u32 %v4698, %v4701
  %v4704 = vmul.u32 %v4699, %v4700
  %v4705 = vmul.u32 %v4699, %v4701
  %v4706 = vshll.u32 %v4703, 16
  %v4707 = vshrl.u32 %v4703, 16
  %v4708 = vshll.u32 %v4704, 16
  %v4709 = vshrl.u32 %v4704, 16
  %vm4710 = vc.u32 %v4702, %v4706
  %v4711 = vsel %vm4710, 1, 0
  %v4712 = vadd.s32 %v4702, %v4706
  %v4713 = vadd.s32 %v4705, %v4711
  %vm4714 = vc.u32 %v4712, %v4708
  %v4715 = vsel %vm4714, 1, 0
  %v4716 = vadd.s32 %v4712, %v4708
  %v4717 = vadd.s32 %v4713, %v4715
  %v4718 = vadd.s32 %v4717, %v4707
  %v4719 = vadd.s32 %v4718, %v4709
  %v4720 = vmul.u32 %v4675, %v4666
  %v4721 = vadd.s32 %v4697, %v4716
  %vm4722 = vc.u32 %v4697, %v4716
  %v4723 = vadd.s32 %v4719, 1
  %v4724 = vsel %vm4722, %v4723, %v4719
  %v4725 = vadd.s32 %v4720, %v4724
  %v4726 = vadd.s32 %v4725, 536870912
  %v4727 = vshrl.u32 %v4726, 30
  %v4728 = vshll.u32 %v4727, 30
  %v4729 = vsub.s32 %v4725, %v4728
  %vm4730 = vcmp.lt.s32.totalorder %v4729, 0
  %v4731 = vsub.s32 0, %v4729
  %v4732 = vsel %vm4730, %v4731, %v4729
  %v4733 = vclz %v4732
  %v4734 = vsub.s32 %v4733, 2
  %vm4735 = vcmp.gt.s32.totalorder 0, %v4734
  %v4736 = vsel %vm4735, 0, %v4734
  %v4737 = vsub.s32 32, %v4736
  %v4738 = vshll.u32 %v4729, %v4736
  %v4739 = vshrl.u32 %v4721, %v4737
  %v4740 = vor.u32 %v4738, %v4739
  %v4741 = vsub.s32 4294967266, %v4736
  %v4742 = vadd.s32 %v4741, 127
  %v4743 = vshll.u32 %v4742, 23
  %v4744 = vor.u32 4788187, %v4743
  %v4745 = vand.u32 2147483647, %v4744
  %v4747 = vcvt.s32.f32 %v4740
  %v4748 = vmul.f32 %v4747, %v4745
  %v4749 = vxor.u32 %v4748, 2147483648
  %v4750 = vsel %vm4629, %v4749, %v4748
  %v4751 = vsub.s32 4, %v4727
  %v4752 = vsel %vm4629, %v4751, %v4727
  %v4753 = vsel %vm4628, %v1073, %v4750
  %v4754 = vsel %vm4628, 0, %v4752
  %v4755 = vmul.f32 %v4753, %v4753
  %v4756 = vmul.f32 %v4755, -0.001358992
  %v4757 = vadd.f32 %v4756, 0.041655596
  %v4758 = vmul.f32 %v4755, %v4757
  %v4759 = vadd.f32 %v4758, -0.4999988
  %v4760 = vmul.f32 %v4755, %v4759
  %v4761 = vadd.f32 1.0, %v4760
  %v4762 = vmul.f32 %v4753, %v4753
  %v4763 = vmul.f32 %v4762, -0.00019511016
  %v4764 = vadd.f32 %v4763, 0.008332121
  %v4765 = vmul.f32 %v4762, %v4764
  %v4766 = vadd.f32 %v4765, -0.16666654
  %v4767 = vmul.f32 %v4762, %v4766
  %v4768 = vadd.f32 %v4767, 1.0
  %v4769 = vmul.f32 %v4768, %v4753
  %vm4770 = vweird.f32 %v1073
  %v4771 = vadd.s32 %v4754, 3
  %v4772 = vand.u32 %v4771, 3
  %vm4773 = vcmp.lt.s32.totalorder %v4772, 2
  %vm4774 = vcmp.eq.s32.totalorder %v4772, 0
  %v4775 = vxor.u32 %v4769, 2147483648
  %v4776 = vsel %vm4774, %v4761, %v4775
  %vm4777 = vcmp.eq.s32.totalorder %v4772, 2
  %v4778 = vxor.u32 %v4761, 2147483648
  %v4779 = vsel %vm4777, %v4778, %v4769
  %v4780 = vsel %vm4773, %v4776, %v4779
  %v4781 = vsel %vm4770, nan, %v4780
  %vm4782 = vcmask 785408
  %v4784 = vsel %vm4782, %v1060, 0
  %4786 = vmatpush.msra.mxu0 0.0
  %4787 = vmatpush.msra.mxu0 0.0
  %4788 = vmatpush.msra.mxu0 0.0
  %4789 = vmatpush.msra.mxu0 0.0
  %4790 = vmatpush.msra.mxu0 %v4781
  %4791 = vmatpush.msra.mxu0 %v4626
  %4792 = vmatpush.msra.mxu0 %v4471
  %4793 = vmatpush.msra.mxu0 %v4316
  %4794 = vmatpush.msra.mxu0 %v4161
  %4795 = vmatpush.msra.mxu0 %v4006
  %4796 = vmatpush.msra.mxu0 %v3851
  %4797 = vmatpush.msra.mxu0 %v3696
  %4798 = vmatpush.msra.mxu0 %v3541
  %4799 = vmatpush.msra.mxu0 %v3386
  %4800 = vmatpush.msra.mxu0 %v3231
  %4801 = vmatpush.msra.mxu0 %v3076
  %4802 = vmatmul.f32.gmra.mxu0 %v4784
  %v4803 = vpop.f32.mrf.mxu0
  %v4804 = vadd.f32 0.0, %v4803
  %4805 = vdwg.mxu0
  %v4807 = vsel %vm4782, %v1059, 0
  %4809 = vmatpush.msra.mxu0 0.0
  %4810 = vmatpush.msra.mxu0 0.0
  %4811 = vmatpush.msra.mxu0 0.0
  %4812 = vmatpush.msra.mxu0 0.0
  %4813 = vmatpush.msra.mxu0 %v2921
  %4814 = vmatpush.msra.mxu0 %v2767
  %4815 = vmatpush.msra.mxu0 %v2613
  %4816 = vmatpush.msra.mxu0 %v2459
  %4817 = vmatpush.msra.mxu0 %v2305
  %4818 = vmatpush.msra.mxu0 %v2151
  %4819 = vmatpush.msra.mxu0 %v1997
  %4820 = vmatpush.msra.mxu0 %v1843
  %4821 = vmatpush.msra.mxu0 %v1689
  %4822 = vmatpush.msra.mxu0 %v1535
  %4823 = vmatpush.msra.mxu0 %v1381
  %4824 = vmatpush.msra.mxu0 %v1227
  %4825 = vmatmul.f32.gmra.mxu0 %v4807
  %v4826 = vpop.f32.mrf.mxu0
  %v4827 = vadd.f32 %v4804, %v4826
  %4828 = vdwg.mxu0
  %v4829 = vadd.f32 %v4827, %v1061
  %vm4830 = vcmask 0
  %4831 = vst.msk [vmem:[%s18] sm:$0x1] %vm4830, %v4829
  %v4832 = vmul.f32 %v1047, %v1036
  %v4833 = vmul.f32 %v1048, %v1039
  %v4834 = vmul.f32 %v1049, %v1042
  %v4835 = vmul.f32 %v1050, %v1045
  %v4836 = vmul.f32 %v1051, %v1036
  %v4837 = vmul.f32 %v1052, %v1039
  %v4838 = vmul.f32 %v1053, %v1042
  %v4839 = vmul.f32 %v1054, %v1045
  %v4840 = vmul.f32 %v1055, %v1036
  %v4841 = vmul.f32 %v1056, %v1039
  %v4842 = vmul.f32 %v1057, %v1042
  %v4843 = vmul.f32 %v1058, %v1045
  %v4844 = vand.u32 2147483647, %v4832
  %vm4845 = vcmp.le.f32.partialorder %v4844, 0.7853982
  %vm4846 = vcmp.lt.s32.totalorder %v4832, 0
  %v4847 = vand.u32 %v4832, 2139095040
  %v4848 = vshrl.u32 %v4847, 23
  %v4849 = vsub.s32 %v4848, 127
  %v4850 = vand.u32 2147483647, %v4832
  %v4851 = vand.u32 %v4850, 8388607
  %v4852 = vor.u32 %v4851, 8388608
  %v4853 = vsub.s32 0, %v4852
  %v4854 = vadd.s32 %v4849, 1
  %vm4855 = vcmp.gt.s32.totalorder %v4854, 0
  %v4856 = vsel %vm4855, %v4854, 0
  %v4857 = vshrl.u32 %v4856, 5
  %v4858 = vand.u32 %v4856, 31
  %v4859 = vsub.s32 32, %v4858
  %v4860 = vshrl.u32 683565275, %v4859
  %v4861 = vshll.u32 683565275, %v4858
  %v4862 = vshrl.u32 2475754826, %v4859
  %v4863 = vor.u32 %v4861, %v4862
  %v4864 = vshll.u32 2475754826, %v4858
  %v4865 = vshrl.u32 2131351028, %v4859
  %v4866 = vor.u32 %v4864, %v4865
  %v4867 = vshll.u32 2131351028, %v4858
  %v4868 = vshrl.u32 2102212464, %v4859
  %v4869 = vor.u32 %v4867, %v4868
  %v4870 = vshll.u32 2102212464, %v4858
  %v4871 = vshrl.u32 920167782, %v4859
  %v4872 = vor.u32 %v4870, %v4871
  %v4873 = vshll.u32 920167782, %v4858
  %v4874 = vshrl.u32 1326507024, %v4859
  %v4875 = vor.u32 %v4873, %v4874
  %vm4876 = vcmp.lt.s32.totalorder %v4857, 1
  %vm4877 = vcmp.lt.s32.totalorder %v4857, 2
  %vm4878 = vcmp.lt.s32.totalorder %v4857, 3
  %vm4879 = vcmp.lt.s32.totalorder %v4857, 4
  %v4880 = vsel %vm4876, %v4860, %v4863
  %v4881 = vsel %vm4879, %v4869, 2102212464
  %v4882 = vsel %vm4878, %v4866, %v4881
  %v4883 = vsel %vm4877, %v4880, %v4882
  %v4884 = vsel %vm4876, %v4863, %v4866
  %v4885 = vsel %vm4879, %v4872, 920167782
  %v4886 = vsel %vm4878, %v4869, %v4885
  %v4887 = vsel %vm4877, %v4884, %v4886
  %v4888 = vsel %vm4876, %v4866, %v4869
  %v4889 = vsel %vm4879, %v4875, 1326507024
  %v4890 = vsel %vm4878, %v4872, %v4889
  %v4891 = vsel %vm4877, %v4888, %v4890
  %v4892 = vshll.u32 %v4852, 8
  %v4893 = vand.u32 %v4892, 65535
  %v4894 = vshrl.u32 %v4892, 16
  %v4895 = vand.u32 %v4891, 65535
  %v4896 = vshrl.u32 %v4891, 16
  %v4897 = vmul.u32 %v4893, %v4895
  %v4898 = vmul.u32 %v4893, %v4896
  %v4899 = vmul.u32 %v4894, %v4895
  %v4900 = vmul.u32 %v4894, %v4896
  %v4901 = vshll.u32 %v4898, 16
  %v4902 = vshrl.u32 %v4898, 16
  %v4903 = vshll.u32 %v4899, 16
  %v4904 = vshrl.u32 %v4899, 16
  %vm4905 = vc.u32 %v4897, %v4901
  %v4906 = vsel %vm4905, 1, 0
  %v4907 = vadd.s32 %v4897, %v4901
  %v4908 = vadd.s32 %v4900, %v4906
  %vm4909 = vc.u32 %v4907, %v4903
  %v4910 = vsel %vm4909, 1, 0
  %v4911 = vadd.s32 %v4907, %v4903
  %v4912 = vadd.s32 %v4908, %v4910
  %v4913 = vadd.s32 %v4912, %v4902
  %v4914 = vadd.s32 %v4913, %v4904
  %v4915 = vand.u32 %v4892, 65535
  %v4916 = vshrl.u32 %v4892, 16
  %v4917 = vand.u32 %v4887, 65535
  %v4918 = vshrl.u32 %v4887, 16
  %v4919 = vmul.u32 %v4915, %v4917
  %v4920 = vmul.u32 %v4915, %v4918
  %v4921 = vmul.u32 %v4916, %v4917
  %v4922 = vmul.u32 %v4916, %v4918
  %v4923 = vshll.u32 %v4920, 16
  %v4924 = vshrl.u32 %v4920, 16
  %v4925 = vshll.u32 %v4921, 16
  %v4926 = vshrl.u32 %v4921, 16
  %vm4927 = vc.u32 %v4919, %v4923
  %v4928 = vsel %vm4927, 1, 0
  %v4929 = vadd.s32 %v4919, %v4923
  %v4930 = vadd.s32 %v4922, %v4928
  %vm4931 = vc.u32 %v4929, %v4925
  %v4932 = vsel %vm4931, 1, 0
  %v4933 = vadd.s32 %v4929, %v4925
  %v4934 = vadd.s32 %v4930, %v4932
  %v4935 = vadd.s32 %v4934, %v4924
  %v4936 = vadd.s32 %v4935, %v4926
  %v4937 = vmul.u32 %v4892, %v4883
  %v4938 = vadd.s32 %v4914, %v4933
  %vm4939 = vc.u32 %v4914, %v4933
  %v4940 = vadd.s32 %v4936, 1
  %v4941 = vsel %vm4939, %v4940, %v4936
  %v4942 = vadd.s32 %v4937, %v4941
  %v4943 = vadd.s32 %v4942, 536870912
  %v4944 = vshrl.u32 %v4943, 30
  %v4945 = vshll.u32 %v4944, 30
  %v4946 = vsub.s32 %v4942, %v4945
  %vm4947 = vcmp.lt.s32.totalorder %v4946, 0
  %v4948 = vsub.s32 0, %v4946
  %v4949 = vsel %vm4947, %v4948, %v4946
  %v4950 = vclz %v4949
  %v4951 = vsub.s32 %v4950, 2
  %vm4952 = vcmp.gt.s32.totalorder 0, %v4951
  %v4953 = vsel %vm4952, 0, %v4951
  %v4954 = vsub.s32 32, %v4953
  %v4955 = vshll.u32 %v4946, %v4953
  %v4956 = vshrl.u32 %v4938, %v4954
  %v4957 = vor.u32 %v4955, %v4956
  %v4958 = vsub.s32 4294967266, %v4953
  %v4959 = vadd.s32 %v4958, 127
  %v4960 = vshll.u32 %v4959, 23
  %v4961 = vor.u32 4788187, %v4960
  %v4962 = vand.u32 2147483647, %v4961
  %v4964 = vcvt.s32.f32 %v4957
  %v4965 = vmul.f32 %v4964, %v4962
  %v4966 = vxor.u32 %v4965, 2147483648
  %v4967 = vsel %vm4846, %v4966, %v4965
  %v4968 = vsub.s32 4, %v4944
  %v4969 = vsel %vm4846, %v4968, %v4944
  %v4970 = vsel %vm4845, %v4832, %v4967
  %v4971 = vsel %vm4845, 0, %v4969
  %v4972 = vmul.f32 %v4970, %v4970
  %v4973 = vmul.f32 %v4972, -0.001358992
  %v4974 = vadd.f32 %v4973, 0.041655596
  %v4975 = vmul.f32 %v4972, %v4974
  %v4976 = vadd.f32 %v4975, -0.4999988
  %v4977 = vmul.f32 %v4972, %v4976
  %v4978 = vadd.f32 1.0, %v4977
  %v4979 = vmul.f32 %v4970, %v4970
  %v4980 = vmul.f32 %v4979, -0.00019511016
  %v4981 = vadd.f32 %v4980, 0.008332121
  %v4982 = vmul.f32 %v4979, %v4981
  %v4983 = vadd.f32 %v4982, -0.16666654
  %v4984 = vmul.f32 %v4979, %v4983
  %v4985 = vadd.f32 %v4984, 1.0
  %v4986 = vmul.f32 %v4985, %v4970
  %vm4987 = vweird.f32 %v4832
  %v4988 = vand.u32 %v4971, 3
  %vm4989 = vcmp.lt.s32.totalorder %v4988, 2
  %vm4990 = vcmp.eq.s32.totalorder %v4988, 0
  %v4991 = vxor.u32 %v4986, 2147483648
  %v4992 = vsel %vm4990, %v4978, %v4991
  %vm4993 = vcmp.eq.s32.totalorder %v4988, 2
  %v4994 = vxor.u32 %v4978, 2147483648
  %v4995 = vsel %vm4993, %v4994, %v4986
  %v4996 = vsel %vm4989, %v4992, %v4995
  %v4997 = vsel %vm4987, nan, %v4996
  %v4998 = vand.u32 2147483647, %v4833
  %vm4999 = vcmp.le.f32.partialorder %v4998, 0.7853982
  %vm5000 = vcmp.lt.s32.totalorder %v4833, 0
  %v5001 = vand.u32 %v4833, 2139095040
  %v5002 = vshrl.u32 %v5001, 23
  %v5003 = vsub.s32 %v5002, 127
  %v5004 = vand.u32 2147483647, %v4833
  %v5005 = vand.u32 %v5004, 8388607
  %v5006 = vor.u32 %v5005, 8388608
  %v5007 = vsub.s32 0, %v5006
  %v5008 = vadd.s32 %v5003, 1
  %vm5009 = vcmp.gt.s32.totalorder %v5008, 0
  %v5010 = vsel %vm5009, %v5008, 0
  %v5011 = vshrl.u32 %v5010, 5
  %v5012 = vand.u32 %v5010, 31
  %v5013 = vsub.s32 32, %v5012
  %v5014 = vshrl.u32 683565275, %v5013
  %v5015 = vshll.u32 683565275, %v5012
  %v5016 = vshrl.u32 2475754826, %v5013
  %v5017 = vor.u32 %v5015, %v5016
  %v5018 = vshll.u32 2475754826, %v5012
  %v5019 = vshrl.u32 2131351028, %v5013
  %v5020 = vor.u32 %v5018, %v5019
  %v5021 = vshll.u32 2131351028, %v5012
  %v5022 = vshrl.u32 2102212464, %v5013
  %v5023 = vor.u32 %v5021, %v5022
  %v5024 = vshll.u32 2102212464, %v5012
  %v5025 = vshrl.u32 920167782, %v5013
  %v5026 = vor.u32 %v5024, %v5025
  %v5027 = vshll.u32 920167782, %v5012
  %v5028 = vshrl.u32 1326507024, %v5013
  %v5029 = vor.u32 %v5027, %v5028
  %vm5030 = vcmp.lt.s32.totalorder %v5011, 1
  %vm5031 = vcmp.lt.s32.totalorder %v5011, 2
  %vm5032 = vcmp.lt.s32.totalorder %v5011, 3
  %vm5033 = vcmp.lt.s32.totalorder %v5011, 4
  %v5034 = vsel %vm5030, %v5014, %v5017
  %v5035 = vsel %vm5033, %v5023, 2102212464
  %v5036 = vsel %vm5032, %v5020, %v5035
  %v5037 = vsel %vm5031, %v5034, %v5036
  %v5038 = vsel %vm5030, %v5017, %v5020
  %v5039 = vsel %vm5033, %v5026, 920167782
  %v5040 = vsel %vm5032, %v5023, %v5039
  %v5041 = vsel %vm5031, %v5038, %v5040
  %v5042 = vsel %vm5030, %v5020, %v5023
  %v5043 = vsel %vm5033, %v5029, 1326507024
  %v5044 = vsel %vm5032, %v5026, %v5043
  %v5045 = vsel %vm5031, %v5042, %v5044
  %v5046 = vshll.u32 %v5006, 8
  %v5047 = vand.u32 %v5046, 65535
  %v5048 = vshrl.u32 %v5046, 16
  %v5049 = vand.u32 %v5045, 65535
  %v5050 = vshrl.u32 %v5045, 16
  %v5051 = vmul.u32 %v5047, %v5049
  %v5052 = vmul.u32 %v5047, %v5050
  %v5053 = vmul.u32 %v5048, %v5049
  %v5054 = vmul.u32 %v5048, %v5050
  %v5055 = vshll.u32 %v5052, 16
  %v5056 = vshrl.u32 %v5052, 16
  %v5057 = vshll.u32 %v5053, 16
  %v5058 = vshrl.u32 %v5053, 16
  %vm5059 = vc.u32 %v5051, %v5055
  %v5060 = vsel %vm5059, 1, 0
  %v5061 = vadd.s32 %v5051, %v5055
  %v5062 = vadd.s32 %v5054, %v5060
  %vm5063 = vc.u32 %v5061, %v5057
  %v5064 = vsel %vm5063, 1, 0
  %v5065 = vadd.s32 %v5061, %v5057
  %v5066 = vadd.s32 %v5062, %v5064
  %v5067 = vadd.s32 %v5066, %v5056
  %v5068 = vadd.s32 %v5067, %v5058
  %v5069 = vand.u32 %v5046, 65535
  %v5070 = vshrl.u32 %v5046, 16
  %v5071 = vand.u32 %v5041, 65535
  %v5072 = vshrl.u32 %v5041, 16
  %v5073 = vmul.u32 %v5069, %v5071
  %v5074 = vmul.u32 %v5069, %v5072
  %v5075 = vmul.u32 %v5070, %v5071
  %v5076 = vmul.u32 %v5070, %v5072
  %v5077 = vshll.u32 %v5074, 16
  %v5078 = vshrl.u32 %v5074, 16
  %v5079 = vshll.u32 %v5075, 16
  %v5080 = vshrl.u32 %v5075, 16
  %vm5081 = vc.u32 %v5073, %v5077
  %v5082 = vsel %vm5081, 1, 0
  %v5083 = vadd.s32 %v5073, %v5077
  %v5084 = vadd.s32 %v5076, %v5082
  %vm5085 = vc.u32 %v5083, %v5079
  %v5086 = vsel %vm5085, 1, 0
  %v5087 = vadd.s32 %v5083, %v5079
  %v5088 = vadd.s32 %v5084, %v5086
  %v5089 = vadd.s32 %v5088, %v5078
  %v5090 = vadd.s32 %v5089, %v5080
  %v5091 = vmul.u32 %v5046, %v5037
  %v5092 = vadd.s32 %v5068, %v5087
  %vm5093 = vc.u32 %v5068, %v5087
  %v5094 = vadd.s32 %v5090, 1
  %v5095 = vsel %vm5093, %v5094, %v5090
  %v5096 = vadd.s32 %v5091, %v5095
  %v5097 = vadd.s32 %v5096, 536870912
  %v5098 = vshrl.u32 %v5097, 30
  %v5099 = vshll.u32 %v5098, 30
  %v5100 = vsub.s32 %v5096, %v5099
  %vm5101 = vcmp.lt.s32.totalorder %v5100, 0
  %v5102 = vsub.s32 0, %v5100
  %v5103 = vsel %vm5101, %v5102, %v5100
  %v5104 = vclz %v5103
  %v5105 = vsub.s32 %v5104, 2
  %vm5106 = vcmp.gt.s32.totalorder 0, %v5105
  %v5107 = vsel %vm5106, 0, %v5105
  %v5108 = vsub.s32 32, %v5107
  %v5109 = vshll.u32 %v5100, %v5107
  %v5110 = vshrl.u32 %v5092, %v5108
  %v5111 = vor.u32 %v5109, %v5110
  %v5112 = vsub.s32 4294967266, %v5107
  %v5113 = vadd.s32 %v5112, 127
  %v5114 = vshll.u32 %v5113, 23
  %v5115 = vor.u32 4788187, %v5114
  %v5116 = vand.u32 2147483647, %v5115
  %v5118 = vcvt.s32.f32 %v5111
  %v5119 = vmul.f32 %v5118, %v5116
  %v5120 = vxor.u32 %v5119, 2147483648
  %v5121 = vsel %vm5000, %v5120, %v5119
  %v5122 = vsub.s32 4, %v5098
  %v5123 = vsel %vm5000, %v5122, %v5098
  %v5124 = vsel %vm4999, %v4833, %v5121
  %v5125 = vsel %vm4999, 0, %v5123
  %v5126 = vmul.f32 %v5124, %v5124
  %v5127 = vmul.f32 %v5126, -0.001358992
  %v5128 = vadd.f32 %v5127, 0.041655596
  %v5129 = vmul.f32 %v5126, %v5128
  %v5130 = vadd.f32 %v5129, -0.4999988
  %v5131 = vmul.f32 %v5126, %v5130
  %v5132 = vadd.f32 1.0, %v5131
  %v5133 = vmul.f32 %v5124, %v5124
  %v5134 = vmul.f32 %v5133, -0.00019511016
  %v5135 = vadd.f32 %v5134, 0.008332121
  %v5136 = vmul.f32 %v5133, %v5135
  %v5137 = vadd.f32 %v5136, -0.16666654
  %v5138 = vmul.f32 %v5133, %v5137
  %v5139 = vadd.f32 %v5138, 1.0
  %v5140 = vmul.f32 %v5139, %v5124
  %vm5141 = vweird.f32 %v4833
  %v5142 = vand.u32 %v5125, 3
  %vm5143 = vcmp.lt.s32.totalorder %v5142, 2
  %vm5144 = vcmp.eq.s32.totalorder %v5142, 0
  %v5145 = vxor.u32 %v5140, 2147483648
  %v5146 = vsel %vm5144, %v5132, %v5145
  %vm5147 = vcmp.eq.s32.totalorder %v5142, 2
  %v5148 = vxor.u32 %v5132, 2147483648
  %v5149 = vsel %vm5147, %v5148, %v5140
  %v5150 = vsel %vm5143, %v5146, %v5149
  %v5151 = vsel %vm5141, nan, %v5150
  %v5152 = vand.u32 2147483647, %v4834
  %vm5153 = vcmp.le.f32.partialorder %v5152, 0.7853982
  %vm5154 = vcmp.lt.s32.totalorder %v4834, 0
  %v5155 = vand.u32 %v4834, 2139095040
  %v5156 = vshrl.u32 %v5155, 23
  %v5157 = vsub.s32 %v5156, 127
  %v5158 = vand.u32 2147483647, %v4834
  %v5159 = vand.u32 %v5158, 8388607
  %v5160 = vor.u32 %v5159, 8388608
  %v5161 = vsub.s32 0, %v5160
  %v5162 = vadd.s32 %v5157, 1
  %vm5163 = vcmp.gt.s32.totalorder %v5162, 0
  %v5164 = vsel %vm5163, %v5162, 0
  %v5165 = vshrl.u32 %v5164, 5
  %v5166 = vand.u32 %v5164, 31
  %v5167 = vsub.s32 32, %v5166
  %v5168 = vshrl.u32 683565275, %v5167
  %v5169 = vshll.u32 683565275, %v5166
  %v5170 = vshrl.u32 2475754826, %v5167
  %v5171 = vor.u32 %v5169, %v5170
  %v5172 = vshll.u32 2475754826, %v5166
  %v5173 = vshrl.u32 2131351028, %v5167
  %v5174 = vor.u32 %v5172, %v5173
  %v5175 = vshll.u32 2131351028, %v5166
  %v5176 = vshrl.u32 2102212464, %v5167
  %v5177 = vor.u32 %v5175, %v5176
  %v5178 = vshll.u32 2102212464, %v5166
  %v5179 = vshrl.u32 920167782, %v5167
  %v5180 = vor.u32 %v5178, %v5179
  %v5181 = vshll.u32 920167782, %v5166
  %v5182 = vshrl.u32 1326507024, %v5167
  %v5183 = vor.u32 %v5181, %v5182
  %vm5184 = vcmp.lt.s32.totalorder %v5165, 1
  %vm5185 = vcmp.lt.s32.totalorder %v5165, 2
  %vm5186 = vcmp.lt.s32.totalorder %v5165, 3
  %vm5187 = vcmp.lt.s32.totalorder %v5165, 4
  %v5188 = vsel %vm5184, %v5168, %v5171
  %v5189 = vsel %vm5187, %v5177, 2102212464
  %v5190 = vsel %vm5186, %v5174, %v5189
  %v5191 = vsel %vm5185, %v5188, %v5190
  %v5192 = vsel %vm5184, %v5171, %v5174
  %v5193 = vsel %vm5187, %v5180, 920167782
  %v5194 = vsel %vm5186, %v5177, %v5193
  %v5195 = vsel %vm5185, %v5192, %v5194
  %v5196 = vsel %vm5184, %v5174, %v5177
  %v5197 = vsel %vm5187, %v5183, 1326507024
  %v5198 = vsel %vm5186, %v5180, %v5197
  %v5199 = vsel %vm5185, %v5196, %v5198
  %v5200 = vshll.u32 %v5160, 8
  %v5201 = vand.u32 %v5200, 65535
  %v5202 = vshrl.u32 %v5200, 16
  %v5203 = vand.u32 %v5199, 65535
  %v5204 = vshrl.u32 %v5199, 16
  %v5205 = vmul.u32 %v5201, %v5203
  %v5206 = vmul.u32 %v5201, %v5204
  %v5207 = vmul.u32 %v5202, %v5203
  %v5208 = vmul.u32 %v5202, %v5204
  %v5209 = vshll.u32 %v5206, 16
  %v5210 = vshrl.u32 %v5206, 16
  %v5211 = vshll.u32 %v5207, 16
  %v5212 = vshrl.u32 %v5207, 16
  %vm5213 = vc.u32 %v5205, %v5209
  %v5214 = vsel %vm5213, 1, 0
  %v5215 = vadd.s32 %v5205, %v5209
  %v5216 = vadd.s32 %v5208, %v5214
  %vm5217 = vc.u32 %v5215, %v5211
  %v5218 = vsel %vm5217, 1, 0
  %v5219 = vadd.s32 %v5215, %v5211
  %v5220 = vadd.s32 %v5216, %v5218
  %v5221 = vadd.s32 %v5220, %v5210
  %v5222 = vadd.s32 %v5221, %v5212
  %v5223 = vand.u32 %v5200, 65535
  %v5224 = vshrl.u32 %v5200, 16
  %v5225 = vand.u32 %v5195, 65535
  %v5226 = vshrl.u32 %v5195, 16
  %v5227 = vmul.u32 %v5223, %v5225
  %v5228 = vmul.u32 %v5223, %v5226
  %v5229 = vmul.u32 %v5224, %v5225
  %v5230 = vmul.u32 %v5224, %v5226
  %v5231 = vshll.u32 %v5228, 16
  %v5232 = vshrl.u32 %v5228, 16
  %v5233 = vshll.u32 %v5229, 16
  %v5234 = vshrl.u32 %v5229, 16
  %vm5235 = vc.u32 %v5227, %v5231
  %v5236 = vsel %vm5235, 1, 0
  %v5237 = vadd.s32 %v5227, %v5231
  %v5238 = vadd.s32 %v5230, %v5236
  %vm5239 = vc.u32 %v5237, %v5233
  %v5240 = vsel %vm5239, 1, 0
  %v5241 = vadd.s32 %v5237, %v5233
  %v5242 = vadd.s32 %v5238, %v5240
  %v5243 = vadd.s32 %v5242, %v5232
  %v5244 = vadd.s32 %v5243, %v5234
  %v5245 = vmul.u32 %v5200, %v5191
  %v5246 = vadd.s32 %v5222, %v5241
  %vm5247 = vc.u32 %v5222, %v5241
  %v5248 = vadd.s32 %v5244, 1
  %v5249 = vsel %vm5247, %v5248, %v5244
  %v5250 = vadd.s32 %v5245, %v5249
  %v5251 = vadd.s32 %v5250, 536870912
  %v5252 = vshrl.u32 %v5251, 30
  %v5253 = vshll.u32 %v5252, 30
  %v5254 = vsub.s32 %v5250, %v5253
  %vm5255 = vcmp.lt.s32.totalorder %v5254, 0
  %v5256 = vsub.s32 0, %v5254
  %v5257 = vsel %vm5255, %v5256, %v5254
  %v5258 = vclz %v5257
  %v5259 = vsub.s32 %v5258, 2
  %vm5260 = vcmp.gt.s32.totalorder 0, %v5259
  %v5261 = vsel %vm5260, 0, %v5259
  %v5262 = vsub.s32 32, %v5261
  %v5263 = vshll.u32 %v5254, %v5261
  %v5264 = vshrl.u32 %v5246, %v5262
  %v5265 = vor.u32 %v5263, %v5264
  %v5266 = vsub.s32 4294967266, %v5261
  %v5267 = vadd.s32 %v5266, 127
  %v5268 = vshll.u32 %v5267, 23
  %v5269 = vor.u32 4788187, %v5268
  %v5270 = vand.u32 2147483647, %v5269
  %v5272 = vcvt.s32.f32 %v5265
  %v5273 = vmul.f32 %v5272, %v5270
  %v5274 = vxor.u32 %v5273, 2147483648
  %v5275 = vsel %vm5154, %v5274, %v5273
  %v5276 = vsub.s32 4, %v5252
  %v5277 = vsel %vm5154, %v5276, %v5252
  %v5278 = vsel %vm5153, %v4834, %v5275
  %v5279 = vsel %vm5153, 0, %v5277
  %v5280 = vmul.f32 %v5278, %v5278
  %v5281 = vmul.f32 %v5280, -0.001358992
  %v5282 = vadd.f32 %v5281, 0.041655596
  %v5283 = vmul.f32 %v5280, %v5282
  %v5284 = vadd.f32 %v5283, -0.4999988
  %v5285 = vmul.f32 %v5280, %v5284
  %v5286 = vadd.f32 1.0, %v5285
  %v5287 = vmul.f32 %v5278, %v5278
  %v5288 = vmul.f32 %v5287, -0.00019511016
  %v5289 = vadd.f32 %v5288, 0.008332121
  %v5290 = vmul.f32 %v5287, %v5289
  %v5291 = vadd.f32 %v5290, -0.16666654
  %v5292 = vmul.f32 %v5287, %v5291
  %v5293 = vadd.f32 %v5292, 1.0
  %v5294 = vmul.f32 %v5293, %v5278
  %vm5295 = vweird.f32 %v4834
  %v5296 = vand.u32 %v5279, 3
  %vm5297 = vcmp.lt.s32.totalorder %v5296, 2
  %vm5298 = vcmp.eq.s32.totalorder %v5296, 0
  %v5299 = vxor.u32 %v5294, 2147483648
  %v5300 = vsel %vm5298, %v5286, %v5299
  %vm5301 = vcmp.eq.s32.totalorder %v5296, 2
  %v5302 = vxor.u32 %v5286, 2147483648
  %v5303 = vsel %vm5301, %v5302, %v5294
  %v5304 = vsel %vm5297, %v5300, %v5303
  %v5305 = vsel %vm5295, nan, %v5304
  %v5306 = vand.u32 2147483647, %v4835
  %vm5307 = vcmp.le.f32.partialorder %v5306, 0.7853982
  %vm5308 = vcmp.lt.s32.totalorder %v4835, 0
  %v5309 = vand.u32 %v4835, 2139095040
  %v5310 = vshrl.u32 %v5309, 23
  %v5311 = vsub.s32 %v5310, 127
  %v5312 = vand.u32 2147483647, %v4835
  %v5313 = vand.u32 %v5312, 8388607
  %v5314 = vor.u32 %v5313, 8388608
  %v5315 = vsub.s32 0, %v5314
  %v5316 = vadd.s32 %v5311, 1
  %vm5317 = vcmp.gt.s32.totalorder %v5316, 0
  %v5318 = vsel %vm5317, %v5316, 0
  %v5319 = vshrl.u32 %v5318, 5
  %v5320 = vand.u32 %v5318, 31
  %v5321 = vsub.s32 32, %v5320
  %v5322 = vshrl.u32 683565275, %v5321
  %v5323 = vshll.u32 683565275, %v5320
  %v5324 = vshrl.u32 2475754826, %v5321
  %v5325 = vor.u32 %v5323, %v5324
  %v5326 = vshll.u32 2475754826, %v5320
  %v5327 = vshrl.u32 2131351028, %v5321
  %v5328 = vor.u32 %v5326, %v5327
  %v5329 = vshll.u32 2131351028, %v5320
  %v5330 = vshrl.u32 2102212464, %v5321
  %v5331 = vor.u32 %v5329, %v5330
  %v5332 = vshll.u32 2102212464, %v5320
  %v5333 = vshrl.u32 920167782, %v5321
  %v5334 = vor.u32 %v5332, %v5333
  %v5335 = vshll.u32 920167782, %v5320
  %v5336 = vshrl.u32 1326507024, %v5321
  %v5337 = vor.u32 %v5335, %v5336
  %vm5338 = vcmp.lt.s32.totalorder %v5319, 1
  %vm5339 = vcmp.lt.s32.totalorder %v5319, 2
  %vm5340 = vcmp.lt.s32.totalorder %v5319, 3
  %vm5341 = vcmp.lt.s32.totalorder %v5319, 4
  %v5342 = vsel %vm5338, %v5322, %v5325
  %v5343 = vsel %vm5341, %v5331, 2102212464
  %v5344 = vsel %vm5340, %v5328, %v5343
  %v5345 = vsel %vm5339, %v5342, %v5344
  %v5346 = vsel %vm5338, %v5325, %v5328
  %v5347 = vsel %vm5341, %v5334, 920167782
  %v5348 = vsel %vm5340, %v5331, %v5347
  %v5349 = vsel %vm5339, %v5346, %v5348
  %v5350 = vsel %vm5338, %v5328, %v5331
  %v5351 = vsel %vm5341, %v5337, 1326507024
  %v5352 = vsel %vm5340, %v5334, %v5351
  %v5353 = vsel %vm5339, %v5350, %v5352
  %v5354 = vshll.u32 %v5314, 8
  %v5355 = vand.u32 %v5354, 65535
  %v5356 = vshrl.u32 %v5354, 16
  %v5357 = vand.u32 %v5353, 65535
  %v5358 = vshrl.u32 %v5353, 16
  %v5359 = vmul.u32 %v5355, %v5357
  %v5360 = vmul.u32 %v5355, %v5358
  %v5361 = vmul.u32 %v5356, %v5357
  %v5362 = vmul.u32 %v5356, %v5358
  %v5363 = vshll.u32 %v5360, 16
  %v5364 = vshrl.u32 %v5360, 16
  %v5365 = vshll.u32 %v5361, 16
  %v5366 = vshrl.u32 %v5361, 16
  %vm5367 = vc.u32 %v5359, %v5363
  %v5368 = vsel %vm5367, 1, 0
  %v5369 = vadd.s32 %v5359, %v5363
  %v5370 = vadd.s32 %v5362, %v5368
  %vm5371 = vc.u32 %v5369, %v5365
  %v5372 = vsel %vm5371, 1, 0
  %v5373 = vadd.s32 %v5369, %v5365
  %v5374 = vadd.s32 %v5370, %v5372
  %v5375 = vadd.s32 %v5374, %v5364
  %v5376 = vadd.s32 %v5375, %v5366
  %v5377 = vand.u32 %v5354, 65535
  %v5378 = vshrl.u32 %v5354, 16
  %v5379 = vand.u32 %v5349, 65535
  %v5380 = vshrl.u32 %v5349, 16
  %v5381 = vmul.u32 %v5377, %v5379
  %v5382 = vmul.u32 %v5377, %v5380
  %v5383 = vmul.u32 %v5378, %v5379
  %v5384 = vmul.u32 %v5378, %v5380
  %v5385 = vshll.u32 %v5382, 16
  %v5386 = vshrl.u32 %v5382, 16
  %v5387 = vshll.u32 %v5383, 16
  %v5388 = vshrl.u32 %v5383, 16
  %vm5389 = vc.u32 %v5381, %v5385
  %v5390 = vsel %vm5389, 1, 0
  %v5391 = vadd.s32 %v5381, %v5385
  %v5392 = vadd.s32 %v5384, %v5390
  %vm5393 = vc.u32 %v5391, %v5387
  %v5394 = vsel %vm5393, 1, 0
  %v5395 = vadd.s32 %v5391, %v5387
  %v5396 = vadd.s32 %v5392, %v5394
  %v5397 = vadd.s32 %v5396, %v5386
  %v5398 = vadd.s32 %v5397, %v5388
  %v5399 = vmul.u32 %v5354, %v5345
  %v5400 = vadd.s32 %v5376, %v5395
  %vm5401 = vc.u32 %v5376, %v5395
  %v5402 = vadd.s32 %v5398, 1
  %v5403 = vsel %vm5401, %v5402, %v5398
  %v5404 = vadd.s32 %v5399, %v5403
  %v5405 = vadd.s32 %v5404, 536870912
  %v5406 = vshrl.u32 %v5405, 30
  %v5407 = vshll.u32 %v5406, 30
  %v5408 = vsub.s32 %v5404, %v5407
  %vm5409 = vcmp.lt.s32.totalorder %v5408, 0
  %v5410 = vsub.s32 0, %v5408
  %v5411 = vsel %vm5409, %v5410, %v5408
  %v5412 = vclz %v5411
  %v5413 = vsub.s32 %v5412, 2
  %vm5414 = vcmp.gt.s32.totalorder 0, %v5413
  %v5415 = vsel %vm5414, 0, %v5413
  %v5416 = vsub.s32 32, %v5415
  %v5417 = vshll.u32 %v5408, %v5415
  %v5418 = vshrl.u32 %v5400, %v5416
  %v5419 = vor.u32 %v5417, %v5418
  %v5420 = vsub.s32 4294967266, %v5415
  %v5421 = vadd.s32 %v5420, 127
  %v5422 = vshll.u32 %v5421, 23
  %v5423 = vor.u32 4788187, %v5422
  %v5424 = vand.u32 2147483647, %v5423
  %v5426 = vcvt.s32.f32 %v5419
  %v5427 = vmul.f32 %v5426, %v5424
  %v5428 = vxor.u32 %v5427, 2147483648
  %v5429 = vsel %vm5308, %v5428, %v5427
  %v5430 = vsub.s32 4, %v5406
  %v5431 = vsel %vm5308, %v5430, %v5406
  %v5432 = vsel %vm5307, %v4835, %v5429
  %v5433 = vsel %vm5307, 0, %v5431
  %v5434 = vmul.f32 %v5432, %v5432
  %v5435 = vmul.f32 %v5434, -0.001358992
  %v5436 = vadd.f32 %v5435, 0.041655596
  %v5437 = vmul.f32 %v5434, %v5436
  %v5438 = vadd.f32 %v5437, -0.4999988
  %v5439 = vmul.f32 %v5434, %v5438
  %v5440 = vadd.f32 1.0, %v5439
  %v5441 = vmul.f32 %v5432, %v5432
  %v5442 = vmul.f32 %v5441, -0.00019511016
  %v5443 = vadd.f32 %v5442, 0.008332121
  %v5444 = vmul.f32 %v5441, %v5443
  %v5445 = vadd.f32 %v5444, -0.16666654
  %v5446 = vmul.f32 %v5441, %v5445
  %v5447 = vadd.f32 %v5446, 1.0
  %v5448 = vmul.f32 %v5447, %v5432
  %vm5449 = vweird.f32 %v4835
  %v5450 = vand.u32 %v5433, 3
  %vm5451 = vcmp.lt.s32.totalorder %v5450, 2
  %vm5452 = vcmp.eq.s32.totalorder %v5450, 0
  %v5453 = vxor.u32 %v5448, 2147483648
  %v5454 = vsel %vm5452, %v5440, %v5453
  %vm5455 = vcmp.eq.s32.totalorder %v5450, 2
  %v5456 = vxor.u32 %v5440, 2147483648
  %v5457 = vsel %vm5455, %v5456, %v5448
  %v5458 = vsel %vm5451, %v5454, %v5457
  %v5459 = vsel %vm5449, nan, %v5458
  %v5460 = vand.u32 2147483647, %v4836
  %vm5461 = vcmp.le.f32.partialorder %v5460, 0.7853982
  %vm5462 = vcmp.lt.s32.totalorder %v4836, 0
  %v5463 = vand.u32 %v4836, 2139095040
  %v5464 = vshrl.u32 %v5463, 23
  %v5465 = vsub.s32 %v5464, 127
  %v5466 = vand.u32 2147483647, %v4836
  %v5467 = vand.u32 %v5466, 8388607
  %v5468 = vor.u32 %v5467, 8388608
  %v5469 = vsub.s32 0, %v5468
  %v5470 = vadd.s32 %v5465, 1
  %vm5471 = vcmp.gt.s32.totalorder %v5470, 0
  %v5472 = vsel %vm5471, %v5470, 0
  %v5473 = vshrl.u32 %v5472, 5
  %v5474 = vand.u32 %v5472, 31
  %v5475 = vsub.s32 32, %v5474
  %v5476 = vshrl.u32 683565275, %v5475
  %v5477 = vshll.u32 683565275, %v5474
  %v5478 = vshrl.u32 2475754826, %v5475
  %v5479 = vor.u32 %v5477, %v5478
  %v5480 = vshll.u32 2475754826, %v5474
  %v5481 = vshrl.u32 2131351028, %v5475
  %v5482 = vor.u32 %v5480, %v5481
  %v5483 = vshll.u32 2131351028, %v5474
  %v5484 = vshrl.u32 2102212464, %v5475
  %v5485 = vor.u32 %v5483, %v5484
  %v5486 = vshll.u32 2102212464, %v5474
  %v5487 = vshrl.u32 920167782, %v5475
  %v5488 = vor.u32 %v5486, %v5487
  %v5489 = vshll.u32 920167782, %v5474
  %v5490 = vshrl.u32 1326507024, %v5475
  %v5491 = vor.u32 %v5489, %v5490
  %vm5492 = vcmp.lt.s32.totalorder %v5473, 1
  %vm5493 = vcmp.lt.s32.totalorder %v5473, 2
  %vm5494 = vcmp.lt.s32.totalorder %v5473, 3
  %vm5495 = vcmp.lt.s32.totalorder %v5473, 4
  %v5496 = vsel %vm5492, %v5476, %v5479
  %v5497 = vsel %vm5495, %v5485, 2102212464
  %v5498 = vsel %vm5494, %v5482, %v5497
  %v5499 = vsel %vm5493, %v5496, %v5498
  %v5500 = vsel %vm5492, %v5479, %v5482
  %v5501 = vsel %vm5495, %v5488, 920167782
  %v5502 = vsel %vm5494, %v5485, %v5501
  %v5503 = vsel %vm5493, %v5500, %v5502
  %v5504 = vsel %vm5492, %v5482, %v5485
  %v5505 = vsel %vm5495, %v5491, 1326507024
  %v5506 = vsel %vm5494, %v5488, %v5505
  %v5507 = vsel %vm5493, %v5504, %v5506
  %v5508 = vshll.u32 %v5468, 8
  %v5509 = vand.u32 %v5508, 65535
  %v5510 = vshrl.u32 %v5508, 16
  %v5511 = vand.u32 %v5507, 65535
  %v5512 = vshrl.u32 %v5507, 16
  %v5513 = vmul.u32 %v5509, %v5511
  %v5514 = vmul.u32 %v5509, %v5512
  %v5515 = vmul.u32 %v5510, %v5511
  %v5516 = vmul.u32 %v5510, %v5512
  %v5517 = vshll.u32 %v5514, 16
  %v5518 = vshrl.u32 %v5514, 16
  %v5519 = vshll.u32 %v5515, 16
  %v5520 = vshrl.u32 %v5515, 16
  %vm5521 = vc.u32 %v5513, %v5517
  %v5522 = vsel %vm5521, 1, 0
  %v5523 = vadd.s32 %v5513, %v5517
  %v5524 = vadd.s32 %v5516, %v5522
  %vm5525 = vc.u32 %v5523, %v5519
  %v5526 = vsel %vm5525, 1, 0
  %v5527 = vadd.s32 %v5523, %v5519
  %v5528 = vadd.s32 %v5524, %v5526
  %v5529 = vadd.s32 %v5528, %v5518
  %v5530 = vadd.s32 %v5529, %v5520
  %v5531 = vand.u32 %v5508, 65535
  %v5532 = vshrl.u32 %v5508, 16
  %v5533 = vand.u32 %v5503, 65535
  %v5534 = vshrl.u32 %v5503, 16
  %v5535 = vmul.u32 %v5531, %v5533
  %v5536 = vmul.u32 %v5531, %v5534
  %v5537 = vmul.u32 %v5532, %v5533
  %v5538 = vmul.u32 %v5532, %v5534
  %v5539 = vshll.u32 %v5536, 16
  %v5540 = vshrl.u32 %v5536, 16
  %v5541 = vshll.u32 %v5537, 16
  %v5542 = vshrl.u32 %v5537, 16
  %vm5543 = vc.u32 %v5535, %v5539
  %v5544 = vsel %vm5543, 1, 0
  %v5545 = vadd.s32 %v5535, %v5539
  %v5546 = vadd.s32 %v5538, %v5544
  %vm5547 = vc.u32 %v5545, %v5541
  %v5548 = vsel %vm5547, 1, 0
  %v5549 = vadd.s32 %v5545, %v5541
  %v5550 = vadd.s32 %v5546, %v5548
  %v5551 = vadd.s32 %v5550, %v5540
  %v5552 = vadd.s32 %v5551, %v5542
  %v5553 = vmul.u32 %v5508, %v5499
  %v5554 = vadd.s32 %v5530, %v5549
  %vm5555 = vc.u32 %v5530, %v5549
  %v5556 = vadd.s32 %v5552, 1
  %v5557 = vsel %vm5555, %v5556, %v5552
  %v5558 = vadd.s32 %v5553, %v5557
  %v5559 = vadd.s32 %v5558, 536870912
  %v5560 = vshrl.u32 %v5559, 30
  %v5561 = vshll.u32 %v5560, 30
  %v5562 = vsub.s32 %v5558, %v5561
  %vm5563 = vcmp.lt.s32.totalorder %v5562, 0
  %v5564 = vsub.s32 0, %v5562
  %v5565 = vsel %vm5563, %v5564, %v5562
  %v5566 = vclz %v5565
  %v5567 = vsub.s32 %v5566, 2
  %vm5568 = vcmp.gt.s32.totalorder 0, %v5567
  %v5569 = vsel %vm5568, 0, %v5567
  %v5570 = vsub.s32 32, %v5569
  %v5571 = vshll.u32 %v5562, %v5569
  %v5572 = vshrl.u32 %v5554, %v5570
  %v5573 = vor.u32 %v5571, %v5572
  %v5574 = vsub.s32 4294967266, %v5569
  %v5575 = vadd.s32 %v5574, 127
  %v5576 = vshll.u32 %v5575, 23
  %v5577 = vor.u32 4788187, %v5576
  %v5578 = vand.u32 2147483647, %v5577
  %v5580 = vcvt.s32.f32 %v5573
  %v5581 = vmul.f32 %v5580, %v5578
  %v5582 = vxor.u32 %v5581, 2147483648
  %v5583 = vsel %vm5462, %v5582, %v5581
  %v5584 = vsub.s32 4, %v5560
  %v5585 = vsel %vm5462, %v5584, %v5560
  %v5586 = vsel %vm5461, %v4836, %v5583
  %v5587 = vsel %vm5461, 0, %v5585
  %v5588 = vmul.f32 %v5586, %v5586
  %v5589 = vmul.f32 %v5588, -0.001358992
  %v5590 = vadd.f32 %v5589, 0.041655596
  %v5591 = vmul.f32 %v5588, %v5590
  %v5592 = vadd.f32 %v5591, -0.4999988
  %v5593 = vmul.f32 %v5588, %v5592
  %v5594 = vadd.f32 1.0, %v5593
  %v5595 = vmul.f32 %v5586, %v5586
  %v5596 = vmul.f32 %v5595, -0.00019511016
  %v5597 = vadd.f32 %v5596, 0.008332121
  %v5598 = vmul.f32 %v5595, %v5597
  %v5599 = vadd.f32 %v5598, -0.16666654
  %v5600 = vmul.f32 %v5595, %v5599
  %v5601 = vadd.f32 %v5600, 1.0
  %v5602 = vmul.f32 %v5601, %v5586
  %vm5603 = vweird.f32 %v4836
  %v5604 = vand.u32 %v5587, 3
  %vm5605 = vcmp.lt.s32.totalorder %v5604, 2
  %vm5606 = vcmp.eq.s32.totalorder %v5604, 0
  %v5607 = vxor.u32 %v5602, 2147483648
  %v5608 = vsel %vm5606, %v5594, %v5607
  %vm5609 = vcmp.eq.s32.totalorder %v5604, 2
  %v5610 = vxor.u32 %v5594, 2147483648
  %v5611 = vsel %vm5609, %v5610, %v5602
  %v5612 = vsel %vm5605, %v5608, %v5611
  %v5613 = vsel %vm5603, nan, %v5612
  %v5614 = vand.u32 2147483647, %v4837
  %vm5615 = vcmp.le.f32.partialorder %v5614, 0.7853982
  %vm5616 = vcmp.lt.s32.totalorder %v4837, 0
  %v5617 = vand.u32 %v4837, 2139095040
  %v5618 = vshrl.u32 %v5617, 23
  %v5619 = vsub.s32 %v5618, 127
  %v5620 = vand.u32 2147483647, %v4837
  %v5621 = vand.u32 %v5620, 8388607
  %v5622 = vor.u32 %v5621, 8388608
  %v5623 = vsub.s32 0, %v5622
  %v5624 = vadd.s32 %v5619, 1
  %vm5625 = vcmp.gt.s32.totalorder %v5624, 0
  %v5626 = vsel %vm5625, %v5624, 0
  %v5627 = vshrl.u32 %v5626, 5
  %v5628 = vand.u32 %v5626, 31
  %v5629 = vsub.s32 32, %v5628
  %v5630 = vshrl.u32 683565275, %v5629
  %v5631 = vshll.u32 683565275, %v5628
  %v5632 = vshrl.u32 2475754826, %v5629
  %v5633 = vor.u32 %v5631, %v5632
  %v5634 = vshll.u32 2475754826, %v5628
  %v5635 = vshrl.u32 2131351028, %v5629
  %v5636 = vor.u32 %v5634, %v5635
  %v5637 = vshll.u32 2131351028, %v5628
  %v5638 = vshrl.u32 2102212464, %v5629
  %v5639 = vor.u32 %v5637, %v5638
  %v5640 = vshll.u32 2102212464, %v5628
  %v5641 = vshrl.u32 920167782, %v5629
  %v5642 = vor.u32 %v5640, %v5641
  %v5643 = vshll.u32 920167782, %v5628
  %v5644 = vshrl.u32 1326507024, %v5629
  %v5645 = vor.u32 %v5643, %v5644
  %vm5646 = vcmp.lt.s32.totalorder %v5627, 1
  %vm5647 = vcmp.lt.s32.totalorder %v5627, 2
  %vm5648 = vcmp.lt.s32.totalorder %v5627, 3
  %vm5649 = vcmp.lt.s32.totalorder %v5627, 4
  %v5650 = vsel %vm5646, %v5630, %v5633
  %v5651 = vsel %vm5649, %v5639, 2102212464
  %v5652 = vsel %vm5648, %v5636, %v5651
  %v5653 = vsel %vm5647, %v5650, %v5652
  %v5654 = vsel %vm5646, %v5633, %v5636
  %v5655 = vsel %vm5649, %v5642, 920167782
  %v5656 = vsel %vm5648, %v5639, %v5655
  %v5657 = vsel %vm5647, %v5654, %v5656
  %v5658 = vsel %vm5646, %v5636, %v5639
  %v5659 = vsel %vm5649, %v5645, 1326507024
  %v5660 = vsel %vm5648, %v5642, %v5659
  %v5661 = vsel %vm5647, %v5658, %v5660
  %v5662 = vshll.u32 %v5622, 8
  %v5663 = vand.u32 %v5662, 65535
  %v5664 = vshrl.u32 %v5662, 16
  %v5665 = vand.u32 %v5661, 65535
  %v5666 = vshrl.u32 %v5661, 16
  %v5667 = vmul.u32 %v5663, %v5665
  %v5668 = vmul.u32 %v5663, %v5666
  %v5669 = vmul.u32 %v5664, %v5665
  %v5670 = vmul.u32 %v5664, %v5666
  %v5671 = vshll.u32 %v5668, 16
  %v5672 = vshrl.u32 %v5668, 16
  %v5673 = vshll.u32 %v5669, 16
  %v5674 = vshrl.u32 %v5669, 16
  %vm5675 = vc.u32 %v5667, %v5671
  %v5676 = vsel %vm5675, 1, 0
  %v5677 = vadd.s32 %v5667, %v5671
  %v5678 = vadd.s32 %v5670, %v5676
  %vm5679 = vc.u32 %v5677, %v5673
  %v5680 = vsel %vm5679, 1, 0
  %v5681 = vadd.s32 %v5677, %v5673
  %v5682 = vadd.s32 %v5678, %v5680
  %v5683 = vadd.s32 %v5682, %v5672
  %v5684 = vadd.s32 %v5683, %v5674
  %v5685 = vand.u32 %v5662, 65535
  %v5686 = vshrl.u32 %v5662, 16
  %v5687 = vand.u32 %v5657, 65535
  %v5688 = vshrl.u32 %v5657, 16
  %v5689 = vmul.u32 %v5685, %v5687
  %v5690 = vmul.u32 %v5685, %v5688
  %v5691 = vmul.u32 %v5686, %v5687
  %v5692 = vmul.u32 %v5686, %v5688
  %v5693 = vshll.u32 %v5690, 16
  %v5694 = vshrl.u32 %v5690, 16
  %v5695 = vshll.u32 %v5691, 16
  %v5696 = vshrl.u32 %v5691, 16
  %vm5697 = vc.u32 %v5689, %v5693
  %v5698 = vsel %vm5697, 1, 0
  %v5699 = vadd.s32 %v5689, %v5693
  %v5700 = vadd.s32 %v5692, %v5698
  %vm5701 = vc.u32 %v5699, %v5695
  %v5702 = vsel %vm5701, 1, 0
  %v5703 = vadd.s32 %v5699, %v5695
  %v5704 = vadd.s32 %v5700, %v5702
  %v5705 = vadd.s32 %v5704, %v5694
  %v5706 = vadd.s32 %v5705, %v5696
  %v5707 = vmul.u32 %v5662, %v5653
  %v5708 = vadd.s32 %v5684, %v5703
  %vm5709 = vc.u32 %v5684, %v5703
  %v5710 = vadd.s32 %v5706, 1
  %v5711 = vsel %vm5709, %v5710, %v5706
  %v5712 = vadd.s32 %v5707, %v5711
  %v5713 = vadd.s32 %v5712, 536870912
  %v5714 = vshrl.u32 %v5713, 30
  %v5715 = vshll.u32 %v5714, 30
  %v5716 = vsub.s32 %v5712, %v5715
  %vm5717 = vcmp.lt.s32.totalorder %v5716, 0
  %v5718 = vsub.s32 0, %v5716
  %v5719 = vsel %vm5717, %v5718, %v5716
  %v5720 = vclz %v5719
  %v5721 = vsub.s32 %v5720, 2
  %vm5722 = vcmp.gt.s32.totalorder 0, %v5721
  %v5723 = vsel %vm5722, 0, %v5721
  %v5724 = vsub.s32 32, %v5723
  %v5725 = vshll.u32 %v5716, %v5723
  %v5726 = vshrl.u32 %v5708, %v5724
  %v5727 = vor.u32 %v5725, %v5726
  %v5728 = vsub.s32 4294967266, %v5723
  %v5729 = vadd.s32 %v5728, 127
  %v5730 = vshll.u32 %v5729, 23
  %v5731 = vor.u32 4788187, %v5730
  %v5732 = vand.u32 2147483647, %v5731
  %v5734 = vcvt.s32.f32 %v5727
  %v5735 = vmul.f32 %v5734, %v5732
  %v5736 = vxor.u32 %v5735, 2147483648
  %v5737 = vsel %vm5616, %v5736, %v5735
  %v5738 = vsub.s32 4, %v5714
  %v5739 = vsel %vm5616, %v5738, %v5714
  %v5740 = vsel %vm5615, %v4837, %v5737
  %v5741 = vsel %vm5615, 0, %v5739
  %v5742 = vmul.f32 %v5740, %v5740
  %v5743 = vmul.f32 %v5742, -0.001358992
  %v5744 = vadd.f32 %v5743, 0.041655596
  %v5745 = vmul.f32 %v5742, %v5744
  %v5746 = vadd.f32 %v5745, -0.4999988
  %v5747 = vmul.f32 %v5742, %v5746
  %v5748 = vadd.f32 1.0, %v5747
  %v5749 = vmul.f32 %v5740, %v5740
  %v5750 = vmul.f32 %v5749, -0.00019511016
  %v5751 = vadd.f32 %v5750, 0.008332121
  %v5752 = vmul.f32 %v5749, %v5751
  %v5753 = vadd.f32 %v5752, -0.16666654
  %v5754 = vmul.f32 %v5749, %v5753
  %v5755 = vadd.f32 %v5754, 1.0
  %v5756 = vmul.f32 %v5755, %v5740
  %vm5757 = vweird.f32 %v4837
  %v5758 = vand.u32 %v5741, 3
  %vm5759 = vcmp.lt.s32.totalorder %v5758, 2
  %vm5760 = vcmp.eq.s32.totalorder %v5758, 0
  %v5761 = vxor.u32 %v5756, 2147483648
  %v5762 = vsel %vm5760, %v5748, %v5761
  %vm5763 = vcmp.eq.s32.totalorder %v5758, 2
  %v5764 = vxor.u32 %v5748, 2147483648
  %v5765 = vsel %vm5763, %v5764, %v5756
  %v5766 = vsel %vm5759, %v5762, %v5765
  %v5767 = vsel %vm5757, nan, %v5766
  %v5768 = vand.u32 2147483647, %v4838
  %vm5769 = vcmp.le.f32.partialorder %v5768, 0.7853982
  %vm5770 = vcmp.lt.s32.totalorder %v4838, 0
  %v5771 = vand.u32 %v4838, 2139095040
  %v5772 = vshrl.u32 %v5771, 23
  %v5773 = vsub.s32 %v5772, 127
  %v5774 = vand.u32 2147483647, %v4838
  %v5775 = vand.u32 %v5774, 8388607
  %v5776 = vor.u32 %v5775, 8388608
  %v5777 = vsub.s32 0, %v5776
  %v5778 = vadd.s32 %v5773, 1
  %vm5779 = vcmp.gt.s32.totalorder %v5778, 0
  %v5780 = vsel %vm5779, %v5778, 0
  %v5781 = vshrl.u32 %v5780, 5
  %v5782 = vand.u32 %v5780, 31
  %v5783 = vsub.s32 32, %v5782
  %v5784 = vshrl.u32 683565275, %v5783
  %v5785 = vshll.u32 683565275, %v5782
  %v5786 = vshrl.u32 2475754826, %v5783
  %v5787 = vor.u32 %v5785, %v5786
  %v5788 = vshll.u32 2475754826, %v5782
  %v5789 = vshrl.u32 2131351028, %v5783
  %v5790 = vor.u32 %v5788, %v5789
  %v5791 = vshll.u32 2131351028, %v5782
  %v5792 = vshrl.u32 2102212464, %v5783
  %v5793 = vor.u32 %v5791, %v5792
  %v5794 = vshll.u32 2102212464, %v5782
  %v5795 = vshrl.u32 920167782, %v5783
  %v5796 = vor.u32 %v5794, %v5795
  %v5797 = vshll.u32 920167782, %v5782
  %v5798 = vshrl.u32 1326507024, %v5783
  %v5799 = vor.u32 %v5797, %v5798
  %vm5800 = vcmp.lt.s32.totalorder %v5781, 1
  %vm5801 = vcmp.lt.s32.totalorder %v5781, 2
  %vm5802 = vcmp.lt.s32.totalorder %v5781, 3
  %vm5803 = vcmp.lt.s32.totalorder %v5781, 4
  %v5804 = vsel %vm5800, %v5784, %v5787
  %v5805 = vsel %vm5803, %v5793, 2102212464
  %v5806 = vsel %vm5802, %v5790, %v5805
  %v5807 = vsel %vm5801, %v5804, %v5806
  %v5808 = vsel %vm5800, %v5787, %v5790
  %v5809 = vsel %vm5803, %v5796, 920167782
  %v5810 = vsel %vm5802, %v5793, %v5809
  %v5811 = vsel %vm5801, %v5808, %v5810
  %v5812 = vsel %vm5800, %v5790, %v5793
  %v5813 = vsel %vm5803, %v5799, 1326507024
  %v5814 = vsel %vm5802, %v5796, %v5813
  %v5815 = vsel %vm5801, %v5812, %v5814
  %v5816 = vshll.u32 %v5776, 8
  %v5817 = vand.u32 %v5816, 65535
  %v5818 = vshrl.u32 %v5816, 16
  %v5819 = vand.u32 %v5815, 65535
  %v5820 = vshrl.u32 %v5815, 16
  %v5821 = vmul.u32 %v5817, %v5819
  %v5822 = vmul.u32 %v5817, %v5820
  %v5823 = vmul.u32 %v5818, %v5819
  %v5824 = vmul.u32 %v5818, %v5820
  %v5825 = vshll.u32 %v5822, 16
  %v5826 = vshrl.u32 %v5822, 16
  %v5827 = vshll.u32 %v5823, 16
  %v5828 = vshrl.u32 %v5823, 16
  %vm5829 = vc.u32 %v5821, %v5825
  %v5830 = vsel %vm5829, 1, 0
  %v5831 = vadd.s32 %v5821, %v5825
  %v5832 = vadd.s32 %v5824, %v5830
  %vm5833 = vc.u32 %v5831, %v5827
  %v5834 = vsel %vm5833, 1, 0
  %v5835 = vadd.s32 %v5831, %v5827
  %v5836 = vadd.s32 %v5832, %v5834
  %v5837 = vadd.s32 %v5836, %v5826
  %v5838 = vadd.s32 %v5837, %v5828
  %v5839 = vand.u32 %v5816, 65535
  %v5840 = vshrl.u32 %v5816, 16
  %v5841 = vand.u32 %v5811, 65535
  %v5842 = vshrl.u32 %v5811, 16
  %v5843 = vmul.u32 %v5839, %v5841
  %v5844 = vmul.u32 %v5839, %v5842
  %v5845 = vmul.u32 %v5840, %v5841
  %v5846 = vmul.u32 %v5840, %v5842
  %v5847 = vshll.u32 %v5844, 16
  %v5848 = vshrl.u32 %v5844, 16
  %v5849 = vshll.u32 %v5845, 16
  %v5850 = vshrl.u32 %v5845, 16
  %vm5851 = vc.u32 %v5843, %v5847
  %v5852 = vsel %vm5851, 1, 0
  %v5853 = vadd.s32 %v5843, %v5847
  %v5854 = vadd.s32 %v5846, %v5852
  %vm5855 = vc.u32 %v5853, %v5849
  %v5856 = vsel %vm5855, 1, 0
  %v5857 = vadd.s32 %v5853, %v5849
  %v5858 = vadd.s32 %v5854, %v5856
  %v5859 = vadd.s32 %v5858, %v5848
  %v5860 = vadd.s32 %v5859, %v5850
  %v5861 = vmul.u32 %v5816, %v5807
  %v5862 = vadd.s32 %v5838, %v5857
  %vm5863 = vc.u32 %v5838, %v5857
  %v5864 = vadd.s32 %v5860, 1
  %v5865 = vsel %vm5863, %v5864, %v5860
  %v5866 = vadd.s32 %v5861, %v5865
  %v5867 = vadd.s32 %v5866, 536870912
  %v5868 = vshrl.u32 %v5867, 30
  %v5869 = vshll.u32 %v5868, 30
  %v5870 = vsub.s32 %v5866, %v5869
  %vm5871 = vcmp.lt.s32.totalorder %v5870, 0
  %v5872 = vsub.s32 0, %v5870
  %v5873 = vsel %vm5871, %v5872, %v5870
  %v5874 = vclz %v5873
  %v5875 = vsub.s32 %v5874, 2
  %vm5876 = vcmp.gt.s32.totalorder 0, %v5875
  %v5877 = vsel %vm5876, 0, %v5875
  %v5878 = vsub.s32 32, %v5877
  %v5879 = vshll.u32 %v5870, %v5877
  %v5880 = vshrl.u32 %v5862, %v5878
  %v5881 = vor.u32 %v5879, %v5880
  %v5882 = vsub.s32 4294967266, %v5877
  %v5883 = vadd.s32 %v5882, 127
  %v5884 = vshll.u32 %v5883, 23
  %v5885 = vor.u32 4788187, %v5884
  %v5886 = vand.u32 2147483647, %v5885
  %v5888 = vcvt.s32.f32 %v5881
  %v5889 = vmul.f32 %v5888, %v5886
  %v5890 = vxor.u32 %v5889, 2147483648
  %v5891 = vsel %vm5770, %v5890, %v5889
  %v5892 = vsub.s32 4, %v5868
  %v5893 = vsel %vm5770, %v5892, %v5868
  %v5894 = vsel %vm5769, %v4838, %v5891
  %v5895 = vsel %vm5769, 0, %v5893
  %v5896 = vmul.f32 %v5894, %v5894
  %v5897 = vmul.f32 %v5896, -0.001358992
  %v5898 = vadd.f32 %v5897, 0.041655596
  %v5899 = vmul.f32 %v5896, %v5898
  %v5900 = vadd.f32 %v5899, -0.4999988
  %v5901 = vmul.f32 %v5896, %v5900
  %v5902 = vadd.f32 1.0, %v5901
  %v5903 = vmul.f32 %v5894, %v5894
  %v5904 = vmul.f32 %v5903, -0.00019511016
  %v5905 = vadd.f32 %v5904, 0.008332121
  %v5906 = vmul.f32 %v5903, %v5905
  %v5907 = vadd.f32 %v5906, -0.16666654
  %v5908 = vmul.f32 %v5903, %v5907
  %v5909 = vadd.f32 %v5908, 1.0
  %v5910 = vmul.f32 %v5909, %v5894
  %vm5911 = vweird.f32 %v4838
  %v5912 = vand.u32 %v5895, 3
  %vm5913 = vcmp.lt.s32.totalorder %v5912, 2
  %vm5914 = vcmp.eq.s32.totalorder %v5912, 0
  %v5915 = vxor.u32 %v5910, 2147483648
  %v5916 = vsel %vm5914, %v5902, %v5915
  %vm5917 = vcmp.eq.s32.totalorder %v5912, 2
  %v5918 = vxor.u32 %v5902, 2147483648
  %v5919 = vsel %vm5917, %v5918, %v5910
  %v5920 = vsel %vm5913, %v5916, %v5919
  %v5921 = vsel %vm5911, nan, %v5920
  %v5922 = vand.u32 2147483647, %v4839
  %vm5923 = vcmp.le.f32.partialorder %v5922, 0.7853982
  %vm5924 = vcmp.lt.s32.totalorder %v4839, 0
  %v5925 = vand.u32 %v4839, 2139095040
  %v5926 = vshrl.u32 %v5925, 23
  %v5927 = vsub.s32 %v5926, 127
  %v5928 = vand.u32 2147483647, %v4839
  %v5929 = vand.u32 %v5928, 8388607
  %v5930 = vor.u32 %v5929, 8388608
  %v5931 = vsub.s32 0, %v5930
  %v5932 = vadd.s32 %v5927, 1
  %vm5933 = vcmp.gt.s32.totalorder %v5932, 0
  %v5934 = vsel %vm5933, %v5932, 0
  %v5935 = vshrl.u32 %v5934, 5
  %v5936 = vand.u32 %v5934, 31
  %v5937 = vsub.s32 32, %v5936
  %v5938 = vshrl.u32 683565275, %v5937
  %v5939 = vshll.u32 683565275, %v5936
  %v5940 = vshrl.u32 2475754826, %v5937
  %v5941 = vor.u32 %v5939, %v5940
  %v5942 = vshll.u32 2475754826, %v5936
  %v5943 = vshrl.u32 2131351028, %v5937
  %v5944 = vor.u32 %v5942, %v5943
  %v5945 = vshll.u32 2131351028, %v5936
  %v5946 = vshrl.u32 2102212464, %v5937
  %v5947 = vor.u32 %v5945, %v5946
  %v5948 = vshll.u32 2102212464, %v5936
  %v5949 = vshrl.u32 920167782, %v5937
  %v5950 = vor.u32 %v5948, %v5949
  %v5951 = vshll.u32 920167782, %v5936
  %v5952 = vshrl.u32 1326507024, %v5937
  %v5953 = vor.u32 %v5951, %v5952
  %vm5954 = vcmp.lt.s32.totalorder %v5935, 1
  %vm5955 = vcmp.lt.s32.totalorder %v5935, 2
  %vm5956 = vcmp.lt.s32.totalorder %v5935, 3
  %vm5957 = vcmp.lt.s32.totalorder %v5935, 4
  %v5958 = vsel %vm5954, %v5938, %v5941
  %v5959 = vsel %vm5957, %v5947, 2102212464
  %v5960 = vsel %vm5956, %v5944, %v5959
  %v5961 = vsel %vm5955, %v5958, %v5960
  %v5962 = vsel %vm5954, %v5941, %v5944
  %v5963 = vsel %vm5957, %v5950, 920167782
  %v5964 = vsel %vm5956, %v5947, %v5963
  %v5965 = vsel %vm5955, %v5962, %v5964
  %v5966 = vsel %vm5954, %v5944, %v5947
  %v5967 = vsel %vm5957, %v5953, 1326507024
  %v5968 = vsel %vm5956, %v5950, %v5967
  %v5969 = vsel %vm5955, %v5966, %v5968
  %v5970 = vshll.u32 %v5930, 8
  %v5971 = vand.u32 %v5970, 65535
  %v5972 = vshrl.u32 %v5970, 16
  %v5973 = vand.u32 %v5969, 65535
  %v5974 = vshrl.u32 %v5969, 16
  %v5975 = vmul.u32 %v5971, %v5973
  %v5976 = vmul.u32 %v5971, %v5974
  %v5977 = vmul.u32 %v5972, %v5973
  %v5978 = vmul.u32 %v5972, %v5974
  %v5979 = vshll.u32 %v5976, 16
  %v5980 = vshrl.u32 %v5976, 16
  %v5981 = vshll.u32 %v5977, 16
  %v5982 = vshrl.u32 %v5977, 16
  %vm5983 = vc.u32 %v5975, %v5979
  %v5984 = vsel %vm5983, 1, 0
  %v5985 = vadd.s32 %v5975, %v5979
  %v5986 = vadd.s32 %v5978, %v5984
  %vm5987 = vc.u32 %v5985, %v5981
  %v5988 = vsel %vm5987, 1, 0
  %v5989 = vadd.s32 %v5985, %v5981
  %v5990 = vadd.s32 %v5986, %v5988
  %v5991 = vadd.s32 %v5990, %v5980
  %v5992 = vadd.s32 %v5991, %v5982
  %v5993 = vand.u32 %v5970, 65535
  %v5994 = vshrl.u32 %v5970, 16
  %v5995 = vand.u32 %v5965, 65535
  %v5996 = vshrl.u32 %v5965, 16
  %v5997 = vmul.u32 %v5993, %v5995
  %v5998 = vmul.u32 %v5993, %v5996
  %v5999 = vmul.u32 %v5994, %v5995
  %v6000 = vmul.u32 %v5994, %v5996
  %v6001 = vshll.u32 %v5998, 16
  %v6002 = vshrl.u32 %v5998, 16
  %v6003 = vshll.u32 %v5999, 16
  %v6004 = vshrl.u32 %v5999, 16
  %vm6005 = vc.u32 %v5997, %v6001
  %v6006 = vsel %vm6005, 1, 0
  %v6007 = vadd.s32 %v5997, %v6001
  %v6008 = vadd.s32 %v6000, %v6006
  %vm6009 = vc.u32 %v6007, %v6003
  %v6010 = vsel %vm6009, 1, 0
  %v6011 = vadd.s32 %v6007, %v6003
  %v6012 = vadd.s32 %v6008, %v6010
  %v6013 = vadd.s32 %v6012, %v6002
  %v6014 = vadd.s32 %v6013, %v6004
  %v6015 = vmul.u32 %v5970, %v5961
  %v6016 = vadd.s32 %v5992, %v6011
  %vm6017 = vc.u32 %v5992, %v6011
  %v6018 = vadd.s32 %v6014, 1
  %v6019 = vsel %vm6017, %v6018, %v6014
  %v6020 = vadd.s32 %v6015, %v6019
  %v6021 = vadd.s32 %v6020, 536870912
  %v6022 = vshrl.u32 %v6021, 30
  %v6023 = vshll.u32 %v6022, 30
  %v6024 = vsub.s32 %v6020, %v6023
  %vm6025 = vcmp.lt.s32.totalorder %v6024, 0
  %v6026 = vsub.s32 0, %v6024
  %v6027 = vsel %vm6025, %v6026, %v6024
  %v6028 = vclz %v6027
  %v6029 = vsub.s32 %v6028, 2
  %vm6030 = vcmp.gt.s32.totalorder 0, %v6029
  %v6031 = vsel %vm6030, 0, %v6029
  %v6032 = vsub.s32 32, %v6031
  %v6033 = vshll.u32 %v6024, %v6031
  %v6034 = vshrl.u32 %v6016, %v6032
  %v6035 = vor.u32 %v6033, %v6034
  %v6036 = vsub.s32 4294967266, %v6031
  %v6037 = vadd.s32 %v6036, 127
  %v6038 = vshll.u32 %v6037, 23
  %v6039 = vor.u32 4788187, %v6038
  %v6040 = vand.u32 2147483647, %v6039
  %v6042 = vcvt.s32.f32 %v6035
  %v6043 = vmul.f32 %v6042, %v6040
  %v6044 = vxor.u32 %v6043, 2147483648
  %v6045 = vsel %vm5924, %v6044, %v6043
  %v6046 = vsub.s32 4, %v6022
  %v6047 = vsel %vm5924, %v6046, %v6022
  %v6048 = vsel %vm5923, %v4839, %v6045
  %v6049 = vsel %vm5923, 0, %v6047
  %v6050 = vmul.f32 %v6048, %v6048
  %v6051 = vmul.f32 %v6050, -0.001358992
  %v6052 = vadd.f32 %v6051, 0.041655596
  %v6053 = vmul.f32 %v6050, %v6052
  %v6054 = vadd.f32 %v6053, -0.4999988
  %v6055 = vmul.f32 %v6050, %v6054
  %v6056 = vadd.f32 1.0, %v6055
  %v6057 = vmul.f32 %v6048, %v6048
  %v6058 = vmul.f32 %v6057, -0.00019511016
  %v6059 = vadd.f32 %v6058, 0.008332121
  %v6060 = vmul.f32 %v6057, %v6059
  %v6061 = vadd.f32 %v6060, -0.16666654
  %v6062 = vmul.f32 %v6057, %v6061
  %v6063 = vadd.f32 %v6062, 1.0
  %v6064 = vmul.f32 %v6063, %v6048
  %vm6065 = vweird.f32 %v4839
  %v6066 = vand.u32 %v6049, 3
  %vm6067 = vcmp.lt.s32.totalorder %v6066, 2
  %vm6068 = vcmp.eq.s32.totalorder %v6066, 0
  %v6069 = vxor.u32 %v6064, 2147483648
  %v6070 = vsel %vm6068, %v6056, %v6069
  %vm6071 = vcmp.eq.s32.totalorder %v6066, 2
  %v6072 = vxor.u32 %v6056, 2147483648
  %v6073 = vsel %vm6071, %v6072, %v6064
  %v6074 = vsel %vm6067, %v6070, %v6073
  %v6075 = vsel %vm6065, nan, %v6074
  %v6076 = vand.u32 2147483647, %v4840
  %vm6077 = vcmp.le.f32.partialorder %v6076, 0.7853982
  %vm6078 = vcmp.lt.s32.totalorder %v4840, 0
  %v6079 = vand.u32 %v4840, 2139095040
  %v6080 = vshrl.u32 %v6079, 23
  %v6081 = vsub.s32 %v6080, 127
  %v6082 = vand.u32 2147483647, %v4840
  %v6083 = vand.u32 %v6082, 8388607
  %v6084 = vor.u32 %v6083, 8388608
  %v6085 = vsub.s32 0, %v6084
  %v6086 = vadd.s32 %v6081, 1
  %vm6087 = vcmp.gt.s32.totalorder %v6086, 0
  %v6088 = vsel %vm6087, %v6086, 0
  %v6089 = vshrl.u32 %v6088, 5
  %v6090 = vand.u32 %v6088, 31
  %v6091 = vsub.s32 32, %v6090
  %v6092 = vshrl.u32 683565275, %v6091
  %v6093 = vshll.u32 683565275, %v6090
  %v6094 = vshrl.u32 2475754826, %v6091
  %v6095 = vor.u32 %v6093, %v6094
  %v6096 = vshll.u32 2475754826, %v6090
  %v6097 = vshrl.u32 2131351028, %v6091
  %v6098 = vor.u32 %v6096, %v6097
  %v6099 = vshll.u32 2131351028, %v6090
  %v6100 = vshrl.u32 2102212464, %v6091
  %v6101 = vor.u32 %v6099, %v6100
  %v6102 = vshll.u32 2102212464, %v6090
  %v6103 = vshrl.u32 920167782, %v6091
  %v6104 = vor.u32 %v6102, %v6103
  %v6105 = vshll.u32 920167782, %v6090
  %v6106 = vshrl.u32 1326507024, %v6091
  %v6107 = vor.u32 %v6105, %v6106
  %vm6108 = vcmp.lt.s32.totalorder %v6089, 1
  %vm6109 = vcmp.lt.s32.totalorder %v6089, 2
  %vm6110 = vcmp.lt.s32.totalorder %v6089, 3
  %vm6111 = vcmp.lt.s32.totalorder %v6089, 4
  %v6112 = vsel %vm6108, %v6092, %v6095
  %v6113 = vsel %vm6111, %v6101, 2102212464
  %v6114 = vsel %vm6110, %v6098, %v6113
  %v6115 = vsel %vm6109, %v6112, %v6114
  %v6116 = vsel %vm6108, %v6095, %v6098
  %v6117 = vsel %vm6111, %v6104, 920167782
  %v6118 = vsel %vm6110, %v6101, %v6117
  %v6119 = vsel %vm6109, %v6116, %v6118
  %v6120 = vsel %vm6108, %v6098, %v6101
  %v6121 = vsel %vm6111, %v6107, 1326507024
  %v6122 = vsel %vm6110, %v6104, %v6121
  %v6123 = vsel %vm6109, %v6120, %v6122
  %v6124 = vshll.u32 %v6084, 8
  %v6125 = vand.u32 %v6124, 65535
  %v6126 = vshrl.u32 %v6124, 16
  %v6127 = vand.u32 %v6123, 65535
  %v6128 = vshrl.u32 %v6123, 16
  %v6129 = vmul.u32 %v6125, %v6127
  %v6130 = vmul.u32 %v6125, %v6128
  %v6131 = vmul.u32 %v6126, %v6127
  %v6132 = vmul.u32 %v6126, %v6128
  %v6133 = vshll.u32 %v6130, 16
  %v6134 = vshrl.u32 %v6130, 16
  %v6135 = vshll.u32 %v6131, 16
  %v6136 = vshrl.u32 %v6131, 16
  %vm6137 = vc.u32 %v6129, %v6133
  %v6138 = vsel %vm6137, 1, 0
  %v6139 = vadd.s32 %v6129, %v6133
  %v6140 = vadd.s32 %v6132, %v6138
  %vm6141 = vc.u32 %v6139, %v6135
  %v6142 = vsel %vm6141, 1, 0
  %v6143 = vadd.s32 %v6139, %v6135
  %v6144 = vadd.s32 %v6140, %v6142
  %v6145 = vadd.s32 %v6144, %v6134
  %v6146 = vadd.s32 %v6145, %v6136
  %v6147 = vand.u32 %v6124, 65535
  %v6148 = vshrl.u32 %v6124, 16
  %v6149 = vand.u32 %v6119, 65535
  %v6150 = vshrl.u32 %v6119, 16
  %v6151 = vmul.u32 %v6147, %v6149
  %v6152 = vmul.u32 %v6147, %v6150
  %v6153 = vmul.u32 %v6148, %v6149
  %v6154 = vmul.u32 %v6148, %v6150
  %v6155 = vshll.u32 %v6152, 16
  %v6156 = vshrl.u32 %v6152, 16
  %v6157 = vshll.u32 %v6153, 16
  %v6158 = vshrl.u32 %v6153, 16
  %vm6159 = vc.u32 %v6151, %v6155
  %v6160 = vsel %vm6159, 1, 0
  %v6161 = vadd.s32 %v6151, %v6155
  %v6162 = vadd.s32 %v6154, %v6160
  %vm6163 = vc.u32 %v6161, %v6157
  %v6164 = vsel %vm6163, 1, 0
  %v6165 = vadd.s32 %v6161, %v6157
  %v6166 = vadd.s32 %v6162, %v6164
  %v6167 = vadd.s32 %v6166, %v6156
  %v6168 = vadd.s32 %v6167, %v6158
  %v6169 = vmul.u32 %v6124, %v6115
  %v6170 = vadd.s32 %v6146, %v6165
  %vm6171 = vc.u32 %v6146, %v6165
  %v6172 = vadd.s32 %v6168, 1
  %v6173 = vsel %vm6171, %v6172, %v6168
  %v6174 = vadd.s32 %v6169, %v6173
  %v6175 = vadd.s32 %v6174, 536870912
  %v6176 = vshrl.u32 %v6175, 30
  %v6177 = vshll.u32 %v6176, 30
  %v6178 = vsub.s32 %v6174, %v6177
  %vm6179 = vcmp.lt.s32.totalorder %v6178, 0
  %v6180 = vsub.s32 0, %v6178
  %v6181 = vsel %vm6179, %v6180, %v6178
  %v6182 = vclz %v6181
  %v6183 = vsub.s32 %v6182, 2
  %vm6184 = vcmp.gt.s32.totalorder 0, %v6183
  %v6185 = vsel %vm6184, 0, %v6183
  %v6186 = vsub.s32 32, %v6185
  %v6187 = vshll.u32 %v6178, %v6185
  %v6188 = vshrl.u32 %v6170, %v6186
  %v6189 = vor.u32 %v6187, %v6188
  %v6190 = vsub.s32 4294967266, %v6185
  %v6191 = vadd.s32 %v6190, 127
  %v6192 = vshll.u32 %v6191, 23
  %v6193 = vor.u32 4788187, %v6192
  %v6194 = vand.u32 2147483647, %v6193
  %v6196 = vcvt.s32.f32 %v6189
  %v6197 = vmul.f32 %v6196, %v6194
  %v6198 = vxor.u32 %v6197, 2147483648
  %v6199 = vsel %vm6078, %v6198, %v6197
  %v6200 = vsub.s32 4, %v6176
  %v6201 = vsel %vm6078, %v6200, %v6176
  %v6202 = vsel %vm6077, %v4840, %v6199
  %v6203 = vsel %vm6077, 0, %v6201
  %v6204 = vmul.f32 %v6202, %v6202
  %v6205 = vmul.f32 %v6204, -0.001358992
  %v6206 = vadd.f32 %v6205, 0.041655596
  %v6207 = vmul.f32 %v6204, %v6206
  %v6208 = vadd.f32 %v6207, -0.4999988
  %v6209 = vmul.f32 %v6204, %v6208
  %v6210 = vadd.f32 1.0, %v6209
  %v6211 = vmul.f32 %v6202, %v6202
  %v6212 = vmul.f32 %v6211, -0.00019511016
  %v6213 = vadd.f32 %v6212, 0.008332121
  %v6214 = vmul.f32 %v6211, %v6213
  %v6215 = vadd.f32 %v6214, -0.16666654
  %v6216 = vmul.f32 %v6211, %v6215
  %v6217 = vadd.f32 %v6216, 1.0
  %v6218 = vmul.f32 %v6217, %v6202
  %vm6219 = vweird.f32 %v4840
  %v6220 = vand.u32 %v6203, 3
  %vm6221 = vcmp.lt.s32.totalorder %v6220, 2
  %vm6222 = vcmp.eq.s32.totalorder %v6220, 0
  %v6223 = vxor.u32 %v6218, 2147483648
  %v6224 = vsel %vm6222, %v6210, %v6223
  %vm6225 = vcmp.eq.s32.totalorder %v6220, 2
  %v6226 = vxor.u32 %v6210, 2147483648
  %v6227 = vsel %vm6225, %v6226, %v6218
  %v6228 = vsel %vm6221, %v6224, %v6227
  %v6229 = vsel %vm6219, nan, %v6228
  %v6230 = vand.u32 2147483647, %v4841
  %vm6231 = vcmp.le.f32.partialorder %v6230, 0.7853982
  %vm6232 = vcmp.lt.s32.totalorder %v4841, 0
  %v6233 = vand.u32 %v4841, 2139095040
  %v6234 = vshrl.u32 %v6233, 23
  %v6235 = vsub.s32 %v6234, 127
  %v6236 = vand.u32 2147483647, %v4841
  %v6237 = vand.u32 %v6236, 8388607
  %v6238 = vor.u32 %v6237, 8388608
  %v6239 = vsub.s32 0, %v6238
  %v6240 = vadd.s32 %v6235, 1
  %vm6241 = vcmp.gt.s32.totalorder %v6240, 0
  %v6242 = vsel %vm6241, %v6240, 0
  %v6243 = vshrl.u32 %v6242, 5
  %v6244 = vand.u32 %v6242, 31
  %v6245 = vsub.s32 32, %v6244
  %v6246 = vshrl.u32 683565275, %v6245
  %v6247 = vshll.u32 683565275, %v6244
  %v6248 = vshrl.u32 2475754826, %v6245
  %v6249 = vor.u32 %v6247, %v6248
  %v6250 = vshll.u32 2475754826, %v6244
  %v6251 = vshrl.u32 2131351028, %v6245
  %v6252 = vor.u32 %v6250, %v6251
  %v6253 = vshll.u32 2131351028, %v6244
  %v6254 = vshrl.u32 2102212464, %v6245
  %v6255 = vor.u32 %v6253, %v6254
  %v6256 = vshll.u32 2102212464, %v6244
  %v6257 = vshrl.u32 920167782, %v6245
  %v6258 = vor.u32 %v6256, %v6257
  %v6259 = vshll.u32 920167782, %v6244
  %v6260 = vshrl.u32 1326507024, %v6245
  %v6261 = vor.u32 %v6259, %v6260
  %vm6262 = vcmp.lt.s32.totalorder %v6243, 1
  %vm6263 = vcmp.lt.s32.totalorder %v6243, 2
  %vm6264 = vcmp.lt.s32.totalorder %v6243, 3
  %vm6265 = vcmp.lt.s32.totalorder %v6243, 4
  %v6266 = vsel %vm6262, %v6246, %v6249
  %v6267 = vsel %vm6265, %v6255, 2102212464
  %v6268 = vsel %vm6264, %v6252, %v6267
  %v6269 = vsel %vm6263, %v6266, %v6268
  %v6270 = vsel %vm6262, %v6249, %v6252
  %v6271 = vsel %vm6265, %v6258, 920167782
  %v6272 = vsel %vm6264, %v6255, %v6271
  %v6273 = vsel %vm6263, %v6270, %v6272
  %v6274 = vsel %vm6262, %v6252, %v6255
  %v6275 = vsel %vm6265, %v6261, 1326507024
  %v6276 = vsel %vm6264, %v6258, %v6275
  %v6277 = vsel %vm6263, %v6274, %v6276
  %v6278 = vshll.u32 %v6238, 8
  %v6279 = vand.u32 %v6278, 65535
  %v6280 = vshrl.u32 %v6278, 16
  %v6281 = vand.u32 %v6277, 65535
  %v6282 = vshrl.u32 %v6277, 16
  %v6283 = vmul.u32 %v6279, %v6281
  %v6284 = vmul.u32 %v6279, %v6282
  %v6285 = vmul.u32 %v6280, %v6281
  %v6286 = vmul.u32 %v6280, %v6282
  %v6287 = vshll.u32 %v6284, 16
  %v6288 = vshrl.u32 %v6284, 16
  %v6289 = vshll.u32 %v6285, 16
  %v6290 = vshrl.u32 %v6285, 16
  %vm6291 = vc.u32 %v6283, %v6287
  %v6292 = vsel %vm6291, 1, 0
  %v6293 = vadd.s32 %v6283, %v6287
  %v6294 = vadd.s32 %v6286, %v6292
  %vm6295 = vc.u32 %v6293, %v6289
  %v6296 = vsel %vm6295, 1, 0
  %v6297 = vadd.s32 %v6293, %v6289
  %v6298 = vadd.s32 %v6294, %v6296
  %v6299 = vadd.s32 %v6298, %v6288
  %v6300 = vadd.s32 %v6299, %v6290
  %v6301 = vand.u32 %v6278, 65535
  %v6302 = vshrl.u32 %v6278, 16
  %v6303 = vand.u32 %v6273, 65535
  %v6304 = vshrl.u32 %v6273, 16
  %v6305 = vmul.u32 %v6301, %v6303
  %v6306 = vmul.u32 %v6301, %v6304
  %v6307 = vmul.u32 %v6302, %v6303
  %v6308 = vmul.u32 %v6302, %v6304
  %v6309 = vshll.u32 %v6306, 16
  %v6310 = vshrl.u32 %v6306, 16
  %v6311 = vshll.u32 %v6307, 16
  %v6312 = vshrl.u32 %v6307, 16
  %vm6313 = vc.u32 %v6305, %v6309
  %v6314 = vsel %vm6313, 1, 0
  %v6315 = vadd.s32 %v6305, %v6309
  %v6316 = vadd.s32 %v6308, %v6314
  %vm6317 = vc.u32 %v6315, %v6311
  %v6318 = vsel %vm6317, 1, 0
  %v6319 = vadd.s32 %v6315, %v6311
  %v6320 = vadd.s32 %v6316, %v6318
  %v6321 = vadd.s32 %v6320, %v6310
  %v6322 = vadd.s32 %v6321, %v6312
  %v6323 = vmul.u32 %v6278, %v6269
  %v6324 = vadd.s32 %v6300, %v6319
  %vm6325 = vc.u32 %v6300, %v6319
  %v6326 = vadd.s32 %v6322, 1
  %v6327 = vsel %vm6325, %v6326, %v6322
  %v6328 = vadd.s32 %v6323, %v6327
  %v6329 = vadd.s32 %v6328, 536870912
  %v6330 = vshrl.u32 %v6329, 30
  %v6331 = vshll.u32 %v6330, 30
  %v6332 = vsub.s32 %v6328, %v6331
  %vm6333 = vcmp.lt.s32.totalorder %v6332, 0
  %v6334 = vsub.s32 0, %v6332
  %v6335 = vsel %vm6333, %v6334, %v6332
  %v6336 = vclz %v6335
  %v6337 = vsub.s32 %v6336, 2
  %vm6338 = vcmp.gt.s32.totalorder 0, %v6337
  %v6339 = vsel %vm6338, 0, %v6337
  %v6340 = vsub.s32 32, %v6339
  %v6341 = vshll.u32 %v6332, %v6339
  %v6342 = vshrl.u32 %v6324, %v6340
  %v6343 = vor.u32 %v6341, %v6342
  %v6344 = vsub.s32 4294967266, %v6339
  %v6345 = vadd.s32 %v6344, 127
  %v6346 = vshll.u32 %v6345, 23
  %v6347 = vor.u32 4788187, %v6346
  %v6348 = vand.u32 2147483647, %v6347
  %v6350 = vcvt.s32.f32 %v6343
  %v6351 = vmul.f32 %v6350, %v6348
  %v6352 = vxor.u32 %v6351, 2147483648
  %v6353 = vsel %vm6232, %v6352, %v6351
  %v6354 = vsub.s32 4, %v6330
  %v6355 = vsel %vm6232, %v6354, %v6330
  %v6356 = vsel %vm6231, %v4841, %v6353
  %v6357 = vsel %vm6231, 0, %v6355
  %v6358 = vmul.f32 %v6356, %v6356
  %v6359 = vmul.f32 %v6358, -0.001358992
  %v6360 = vadd.f32 %v6359, 0.041655596
  %v6361 = vmul.f32 %v6358, %v6360
  %v6362 = vadd.f32 %v6361, -0.4999988
  %v6363 = vmul.f32 %v6358, %v6362
  %v6364 = vadd.f32 1.0, %v6363
  %v6365 = vmul.f32 %v6356, %v6356
  %v6366 = vmul.f32 %v6365, -0.00019511016
  %v6367 = vadd.f32 %v6366, 0.008332121
  %v6368 = vmul.f32 %v6365, %v6367
  %v6369 = vadd.f32 %v6368, -0.16666654
  %v6370 = vmul.f32 %v6365, %v6369
  %v6371 = vadd.f32 %v6370, 1.0
  %v6372 = vmul.f32 %v6371, %v6356
  %vm6373 = vweird.f32 %v4841
  %v6374 = vand.u32 %v6357, 3
  %vm6375 = vcmp.lt.s32.totalorder %v6374, 2
  %vm6376 = vcmp.eq.s32.totalorder %v6374, 0
  %v6377 = vxor.u32 %v6372, 2147483648
  %v6378 = vsel %vm6376, %v6364, %v6377
  %vm6379 = vcmp.eq.s32.totalorder %v6374, 2
  %v6380 = vxor.u32 %v6364, 2147483648
  %v6381 = vsel %vm6379, %v6380, %v6372
  %v6382 = vsel %vm6375, %v6378, %v6381
  %v6383 = vsel %vm6373, nan, %v6382
  %v6384 = vand.u32 2147483647, %v4842
  %vm6385 = vcmp.le.f32.partialorder %v6384, 0.7853982
  %vm6386 = vcmp.lt.s32.totalorder %v4842, 0
  %v6387 = vand.u32 %v4842, 2139095040
  %v6388 = vshrl.u32 %v6387, 23
  %v6389 = vsub.s32 %v6388, 127
  %v6390 = vand.u32 2147483647, %v4842
  %v6391 = vand.u32 %v6390, 8388607
  %v6392 = vor.u32 %v6391, 8388608
  %v6393 = vsub.s32 0, %v6392
  %v6394 = vadd.s32 %v6389, 1
  %vm6395 = vcmp.gt.s32.totalorder %v6394, 0
  %v6396 = vsel %vm6395, %v6394, 0
  %v6397 = vshrl.u32 %v6396, 5
  %v6398 = vand.u32 %v6396, 31
  %v6399 = vsub.s32 32, %v6398
  %v6400 = vshrl.u32 683565275, %v6399
  %v6401 = vshll.u32 683565275, %v6398
  %v6402 = vshrl.u32 2475754826, %v6399
  %v6403 = vor.u32 %v6401, %v6402
  %v6404 = vshll.u32 2475754826, %v6398
  %v6405 = vshrl.u32 2131351028, %v6399
  %v6406 = vor.u32 %v6404, %v6405
  %v6407 = vshll.u32 2131351028, %v6398
  %v6408 = vshrl.u32 2102212464, %v6399
  %v6409 = vor.u32 %v6407, %v6408
  %v6410 = vshll.u32 2102212464, %v6398
  %v6411 = vshrl.u32 920167782, %v6399
  %v6412 = vor.u32 %v6410, %v6411
  %v6413 = vshll.u32 920167782, %v6398
  %v6414 = vshrl.u32 1326507024, %v6399
  %v6415 = vor.u32 %v6413, %v6414
  %vm6416 = vcmp.lt.s32.totalorder %v6397, 1
  %vm6417 = vcmp.lt.s32.totalorder %v6397, 2
  %vm6418 = vcmp.lt.s32.totalorder %v6397, 3
  %vm6419 = vcmp.lt.s32.totalorder %v6397, 4
  %v6420 = vsel %vm6416, %v6400, %v6403
  %v6421 = vsel %vm6419, %v6409, 2102212464
  %v6422 = vsel %vm6418, %v6406, %v6421
  %v6423 = vsel %vm6417, %v6420, %v6422
  %v6424 = vsel %vm6416, %v6403, %v6406
  %v6425 = vsel %vm6419, %v6412, 920167782
  %v6426 = vsel %vm6418, %v6409, %v6425
  %v6427 = vsel %vm6417, %v6424, %v6426
  %v6428 = vsel %vm6416, %v6406, %v6409
  %v6429 = vsel %vm6419, %v6415, 1326507024
  %v6430 = vsel %vm6418, %v6412, %v6429
  %v6431 = vsel %vm6417, %v6428, %v6430
  %v6432 = vshll.u32 %v6392, 8
  %v6433 = vand.u32 %v6432, 65535
  %v6434 = vshrl.u32 %v6432, 16
  %v6435 = vand.u32 %v6431, 65535
  %v6436 = vshrl.u32 %v6431, 16
  %v6437 = vmul.u32 %v6433, %v6435
  %v6438 = vmul.u32 %v6433, %v6436
  %v6439 = vmul.u32 %v6434, %v6435
  %v6440 = vmul.u32 %v6434, %v6436
  %v6441 = vshll.u32 %v6438, 16
  %v6442 = vshrl.u32 %v6438, 16
  %v6443 = vshll.u32 %v6439, 16
  %v6444 = vshrl.u32 %v6439, 16
  %vm6445 = vc.u32 %v6437, %v6441
  %v6446 = vsel %vm6445, 1, 0
  %v6447 = vadd.s32 %v6437, %v6441
  %v6448 = vadd.s32 %v6440, %v6446
  %vm6449 = vc.u32 %v6447, %v6443
  %v6450 = vsel %vm6449, 1, 0
  %v6451 = vadd.s32 %v6447, %v6443
  %v6452 = vadd.s32 %v6448, %v6450
  %v6453 = vadd.s32 %v6452, %v6442
  %v6454 = vadd.s32 %v6453, %v6444
  %v6455 = vand.u32 %v6432, 65535
  %v6456 = vshrl.u32 %v6432, 16
  %v6457 = vand.u32 %v6427, 65535
  %v6458 = vshrl.u32 %v6427, 16
  %v6459 = vmul.u32 %v6455, %v6457
  %v6460 = vmul.u32 %v6455, %v6458
  %v6461 = vmul.u32 %v6456, %v6457
  %v6462 = vmul.u32 %v6456, %v6458
  %v6463 = vshll.u32 %v6460, 16
  %v6464 = vshrl.u32 %v6460, 16
  %v6465 = vshll.u32 %v6461, 16
  %v6466 = vshrl.u32 %v6461, 16
  %vm6467 = vc.u32 %v6459, %v6463
  %v6468 = vsel %vm6467, 1, 0
  %v6469 = vadd.s32 %v6459, %v6463
  %v6470 = vadd.s32 %v6462, %v6468
  %vm6471 = vc.u32 %v6469, %v6465
  %v6472 = vsel %vm6471, 1, 0
  %v6473 = vadd.s32 %v6469, %v6465
  %v6474 = vadd.s32 %v6470, %v6472
  %v6475 = vadd.s32 %v6474, %v6464
  %v6476 = vadd.s32 %v6475, %v6466
  %v6477 = vmul.u32 %v6432, %v6423
  %v6478 = vadd.s32 %v6454, %v6473
  %vm6479 = vc.u32 %v6454, %v6473
  %v6480 = vadd.s32 %v6476, 1
  %v6481 = vsel %vm6479, %v6480, %v6476
  %v6482 = vadd.s32 %v6477, %v6481
  %v6483 = vadd.s32 %v6482, 536870912
  %v6484 = vshrl.u32 %v6483, 30
  %v6485 = vshll.u32 %v6484, 30
  %v6486 = vsub.s32 %v6482, %v6485
  %vm6487 = vcmp.lt.s32.totalorder %v6486, 0
  %v6488 = vsub.s32 0, %v6486
  %v6489 = vsel %vm6487, %v6488, %v6486
  %v6490 = vclz %v6489
  %v6491 = vsub.s32 %v6490, 2
  %vm6492 = vcmp.gt.s32.totalorder 0, %v6491
  %v6493 = vsel %vm6492, 0, %v6491
  %v6494 = vsub.s32 32, %v6493
  %v6495 = vshll.u32 %v6486, %v6493
  %v6496 = vshrl.u32 %v6478, %v6494
  %v6497 = vor.u32 %v6495, %v6496
  %v6498 = vsub.s32 4294967266, %v6493
  %v6499 = vadd.s32 %v6498, 127
  %v6500 = vshll.u32 %v6499, 23
  %v6501 = vor.u32 4788187, %v6500
  %v6502 = vand.u32 2147483647, %v6501
  %v6504 = vcvt.s32.f32 %v6497
  %v6505 = vmul.f32 %v6504, %v6502
  %v6506 = vxor.u32 %v6505, 2147483648
  %v6507 = vsel %vm6386, %v6506, %v6505
  %v6508 = vsub.s32 4, %v6484
  %v6509 = vsel %vm6386, %v6508, %v6484
  %v6510 = vsel %vm6385, %v4842, %v6507
  %v6511 = vsel %vm6385, 0, %v6509
  %v6512 = vmul.f32 %v6510, %v6510
  %v6513 = vmul.f32 %v6512, -0.001358992
  %v6514 = vadd.f32 %v6513, 0.041655596
  %v6515 = vmul.f32 %v6512, %v6514
  %v6516 = vadd.f32 %v6515, -0.4999988
  %v6517 = vmul.f32 %v6512, %v6516
  %v6518 = vadd.f32 1.0, %v6517
  %v6519 = vmul.f32 %v6510, %v6510
  %v6520 = vmul.f32 %v6519, -0.00019511016
  %v6521 = vadd.f32 %v6520, 0.008332121
  %v6522 = vmul.f32 %v6519, %v6521
  %v6523 = vadd.f32 %v6522, -0.16666654
  %v6524 = vmul.f32 %v6519, %v6523
  %v6525 = vadd.f32 %v6524, 1.0
  %v6526 = vmul.f32 %v6525, %v6510
  %vm6527 = vweird.f32 %v4842
  %v6528 = vand.u32 %v6511, 3
  %vm6529 = vcmp.lt.s32.totalorder %v6528, 2
  %vm6530 = vcmp.eq.s32.totalorder %v6528, 0
  %v6531 = vxor.u32 %v6526, 2147483648
  %v6532 = vsel %vm6530, %v6518, %v6531
  %vm6533 = vcmp.eq.s32.totalorder %v6528, 2
  %v6534 = vxor.u32 %v6518, 2147483648
  %v6535 = vsel %vm6533, %v6534, %v6526
  %v6536 = vsel %vm6529, %v6532, %v6535
  %v6537 = vsel %vm6527, nan, %v6536
  %v6538 = vand.u32 2147483647, %v4843
  %vm6539 = vcmp.le.f32.partialorder %v6538, 0.7853982
  %vm6540 = vcmp.lt.s32.totalorder %v4843, 0
  %v6541 = vand.u32 %v4843, 2139095040
  %v6542 = vshrl.u32 %v6541, 23
  %v6543 = vsub.s32 %v6542, 127
  %v6544 = vand.u32 2147483647, %v4843
  %v6545 = vand.u32 %v6544, 8388607
  %v6546 = vor.u32 %v6545, 8388608
  %v6547 = vsub.s32 0, %v6546
  %v6548 = vadd.s32 %v6543, 1
  %vm6549 = vcmp.gt.s32.totalorder %v6548, 0
  %v6550 = vsel %vm6549, %v6548, 0
  %v6551 = vshrl.u32 %v6550, 5
  %v6552 = vand.u32 %v6550, 31
  %v6553 = vsub.s32 32, %v6552
  %v6554 = vshrl.u32 683565275, %v6553
  %v6555 = vshll.u32 683565275, %v6552
  %v6556 = vshrl.u32 2475754826, %v6553
  %v6557 = vor.u32 %v6555, %v6556
  %v6558 = vshll.u32 2475754826, %v6552
  %v6559 = vshrl.u32 2131351028, %v6553
  %v6560 = vor.u32 %v6558, %v6559
  %v6561 = vshll.u32 2131351028, %v6552
  %v6562 = vshrl.u32 2102212464, %v6553
  %v6563 = vor.u32 %v6561, %v6562
  %v6564 = vshll.u32 2102212464, %v6552
  %v6565 = vshrl.u32 920167782, %v6553
  %v6566 = vor.u32 %v6564, %v6565
  %v6567 = vshll.u32 920167782, %v6552
  %v6568 = vshrl.u32 1326507024, %v6553
  %v6569 = vor.u32 %v6567, %v6568
  %vm6570 = vcmp.lt.s32.totalorder %v6551, 1
  %vm6571 = vcmp.lt.s32.totalorder %v6551, 2
  %vm6572 = vcmp.lt.s32.totalorder %v6551, 3
  %vm6573 = vcmp.lt.s32.totalorder %v6551, 4
  %v6574 = vsel %vm6570, %v6554, %v6557
  %v6575 = vsel %vm6573, %v6563, 2102212464
  %v6576 = vsel %vm6572, %v6560, %v6575
  %v6577 = vsel %vm6571, %v6574, %v6576
  %v6578 = vsel %vm6570, %v6557, %v6560
  %v6579 = vsel %vm6573, %v6566, 920167782
  %v6580 = vsel %vm6572, %v6563, %v6579
  %v6581 = vsel %vm6571, %v6578, %v6580
  %v6582 = vsel %vm6570, %v6560, %v6563
  %v6583 = vsel %vm6573, %v6569, 1326507024
  %v6584 = vsel %vm6572, %v6566, %v6583
  %v6585 = vsel %vm6571, %v6582, %v6584
  %v6586 = vshll.u32 %v6546, 8
  %v6587 = vand.u32 %v6586, 65535
  %v6588 = vshrl.u32 %v6586, 16
  %v6589 = vand.u32 %v6585, 65535
  %v6590 = vshrl.u32 %v6585, 16
  %v6591 = vmul.u32 %v6587, %v6589
  %v6592 = vmul.u32 %v6587, %v6590
  %v6593 = vmul.u32 %v6588, %v6589
  %v6594 = vmul.u32 %v6588, %v6590
  %v6595 = vshll.u32 %v6592, 16
  %v6596 = vshrl.u32 %v6592, 16
  %v6597 = vshll.u32 %v6593, 16
  %v6598 = vshrl.u32 %v6593, 16
  %vm6599 = vc.u32 %v6591, %v6595
  %v6600 = vsel %vm6599, 1, 0
  %v6601 = vadd.s32 %v6591, %v6595
  %v6602 = vadd.s32 %v6594, %v6600
  %vm6603 = vc.u32 %v6601, %v6597
  %v6604 = vsel %vm6603, 1, 0
  %v6605 = vadd.s32 %v6601, %v6597
  %v6606 = vadd.s32 %v6602, %v6604
  %v6607 = vadd.s32 %v6606, %v6596
  %v6608 = vadd.s32 %v6607, %v6598
  %v6609 = vand.u32 %v6586, 65535
  %v6610 = vshrl.u32 %v6586, 16
  %v6611 = vand.u32 %v6581, 65535
  %v6612 = vshrl.u32 %v6581, 16
  %v6613 = vmul.u32 %v6609, %v6611
  %v6614 = vmul.u32 %v6609, %v6612
  %v6615 = vmul.u32 %v6610, %v6611
  %v6616 = vmul.u32 %v6610, %v6612
  %v6617 = vshll.u32 %v6614, 16
  %v6618 = vshrl.u32 %v6614, 16
  %v6619 = vshll.u32 %v6615, 16
  %v6620 = vshrl.u32 %v6615, 16
  %vm6621 = vc.u32 %v6613, %v6617
  %v6622 = vsel %vm6621, 1, 0
  %v6623 = vadd.s32 %v6613, %v6617
  %v6624 = vadd.s32 %v6616, %v6622
  %vm6625 = vc.u32 %v6623, %v6619
  %v6626 = vsel %vm6625, 1, 0
  %v6627 = vadd.s32 %v6623, %v6619
  %v6628 = vadd.s32 %v6624, %v6626
  %v6629 = vadd.s32 %v6628, %v6618
  %v6630 = vadd.s32 %v6629, %v6620
  %v6631 = vmul.u32 %v6586, %v6577
  %v6632 = vadd.s32 %v6608, %v6627
  %vm6633 = vc.u32 %v6608, %v6627
  %v6634 = vadd.s32 %v6630, 1
  %v6635 = vsel %vm6633, %v6634, %v6630
  %v6636 = vadd.s32 %v6631, %v6635
  %v6637 = vadd.s32 %v6636, 536870912
  %v6638 = vshrl.u32 %v6637, 30
  %v6639 = vshll.u32 %v6638, 30
  %v6640 = vsub.s32 %v6636, %v6639
  %vm6641 = vcmp.lt.s32.totalorder %v6640, 0
  %v6642 = vsub.s32 0, %v6640
  %v6643 = vsel %vm6641, %v6642, %v6640
  %v6644 = vclz %v6643
  %v6645 = vsub.s32 %v6644, 2
  %vm6646 = vcmp.gt.s32.totalorder 0, %v6645
  %v6647 = vsel %vm6646, 0, %v6645
  %v6648 = vsub.s32 32, %v6647
  %v6649 = vshll.u32 %v6640, %v6647
  %v6650 = vshrl.u32 %v6632, %v6648
  %v6651 = vor.u32 %v6649, %v6650
  %v6652 = vsub.s32 4294967266, %v6647
  %v6653 = vadd.s32 %v6652, 127
  %v6654 = vshll.u32 %v6653, 23
  %v6655 = vor.u32 4788187, %v6654
  %v6656 = vand.u32 2147483647, %v6655
  %v6658 = vcvt.s32.f32 %v6651
  %v6659 = vmul.f32 %v6658, %v6656
  %v6660 = vxor.u32 %v6659, 2147483648
  %v6661 = vsel %vm6540, %v6660, %v6659
  %v6662 = vsub.s32 4, %v6638
  %v6663 = vsel %vm6540, %v6662, %v6638
  %v6664 = vsel %vm6539, %v4843, %v6661
  %v6665 = vsel %vm6539, 0, %v6663
  %v6666 = vmul.f32 %v6664, %v6664
  %v6667 = vmul.f32 %v6666, -0.001358992
  %v6668 = vadd.f32 %v6667, 0.041655596
  %v6669 = vmul.f32 %v6666, %v6668
  %v6670 = vadd.f32 %v6669, -0.4999988
  %v6671 = vmul.f32 %v6666, %v6670
  %v6672 = vadd.f32 1.0, %v6671
  %v6673 = vmul.f32 %v6664, %v6664
  %v6674 = vmul.f32 %v6673, -0.00019511016
  %v6675 = vadd.f32 %v6674, 0.008332121
  %v6676 = vmul.f32 %v6673, %v6675
  %v6677 = vadd.f32 %v6676, -0.16666654
  %v6678 = vmul.f32 %v6673, %v6677
  %v6679 = vadd.f32 %v6678, 1.0
  %v6680 = vmul.f32 %v6679, %v6664
  %vm6681 = vweird.f32 %v4843
  %v6682 = vand.u32 %v6665, 3
  %vm6683 = vcmp.lt.s32.totalorder %v6682, 2
  %vm6684 = vcmp.eq.s32.totalorder %v6682, 0
  %v6685 = vxor.u32 %v6680, 2147483648
  %v6686 = vsel %vm6684, %v6672, %v6685
  %vm6687 = vcmp.eq.s32.totalorder %v6682, 2
  %v6688 = vxor.u32 %v6672, 2147483648
  %v6689 = vsel %vm6687, %v6688, %v6680
  %v6690 = vsel %vm6683, %v6686, %v6689
  %v6691 = vsel %vm6681, nan, %v6690
  %v6692 = vand.u32 2147483647, %v4832
  %vm6693 = vcmp.le.f32.partialorder %v6692, 0.7853982
  %vm6694 = vcmp.lt.s32.totalorder %v4832, 0
  %v6695 = vand.u32 %v4832, 2139095040
  %v6696 = vshrl.u32 %v6695, 23
  %v6697 = vsub.s32 %v6696, 127
  %v6698 = vand.u32 2147483647, %v4832
  %v6699 = vand.u32 %v6698, 8388607
  %v6700 = vor.u32 %v6699, 8388608
  %v6701 = vsub.s32 0, %v6700
  %v6702 = vadd.s32 %v6697, 1
  %vm6703 = vcmp.gt.s32.totalorder %v6702, 0
  %v6704 = vsel %vm6703, %v6702, 0
  %v6705 = vshrl.u32 %v6704, 5
  %v6706 = vand.u32 %v6704, 31
  %v6707 = vsub.s32 32, %v6706
  %v6708 = vshrl.u32 683565275, %v6707
  %v6709 = vshll.u32 683565275, %v6706
  %v6710 = vshrl.u32 2475754826, %v6707
  %v6711 = vor.u32 %v6709, %v6710
  %v6712 = vshll.u32 2475754826, %v6706
  %v6713 = vshrl.u32 2131351028, %v6707
  %v6714 = vor.u32 %v6712, %v6713
  %v6715 = vshll.u32 2131351028, %v6706
  %v6716 = vshrl.u32 2102212464, %v6707
  %v6717 = vor.u32 %v6715, %v6716
  %v6718 = vshll.u32 2102212464, %v6706
  %v6719 = vshrl.u32 920167782, %v6707
  %v6720 = vor.u32 %v6718, %v6719
  %v6721 = vshll.u32 920167782, %v6706
  %v6722 = vshrl.u32 1326507024, %v6707
  %v6723 = vor.u32 %v6721, %v6722
  %vm6724 = vcmp.lt.s32.totalorder %v6705, 1
  %vm6725 = vcmp.lt.s32.totalorder %v6705, 2
  %vm6726 = vcmp.lt.s32.totalorder %v6705, 3
  %vm6727 = vcmp.lt.s32.totalorder %v6705, 4
  %v6728 = vsel %vm6724, %v6708, %v6711
  %v6729 = vsel %vm6727, %v6717, 2102212464
  %v6730 = vsel %vm6726, %v6714, %v6729
  %v6731 = vsel %vm6725, %v6728, %v6730
  %v6732 = vsel %vm6724, %v6711, %v6714
  %v6733 = vsel %vm6727, %v6720, 920167782
  %v6734 = vsel %vm6726, %v6717, %v6733
  %v6735 = vsel %vm6725, %v6732, %v6734
  %v6736 = vsel %vm6724, %v6714, %v6717
  %v6737 = vsel %vm6727, %v6723, 1326507024
  %v6738 = vsel %vm6726, %v6720, %v6737
  %v6739 = vsel %vm6725, %v6736, %v6738
  %v6740 = vshll.u32 %v6700, 8
  %v6741 = vand.u32 %v6740, 65535
  %v6742 = vshrl.u32 %v6740, 16
  %v6743 = vand.u32 %v6739, 65535
  %v6744 = vshrl.u32 %v6739, 16
  %v6745 = vmul.u32 %v6741, %v6743
  %v6746 = vmul.u32 %v6741, %v6744
  %v6747 = vmul.u32 %v6742, %v6743
  %v6748 = vmul.u32 %v6742, %v6744
  %v6749 = vshll.u32 %v6746, 16
  %v6750 = vshrl.u32 %v6746, 16
  %v6751 = vshll.u32 %v6747, 16
  %v6752 = vshrl.u32 %v6747, 16
  %vm6753 = vc.u32 %v6745, %v6749
  %v6754 = vsel %vm6753, 1, 0
  %v6755 = vadd.s32 %v6745, %v6749
  %v6756 = vadd.s32 %v6748, %v6754
  %vm6757 = vc.u32 %v6755, %v6751
  %v6758 = vsel %vm6757, 1, 0
  %v6759 = vadd.s32 %v6755, %v6751
  %v6760 = vadd.s32 %v6756, %v6758
  %v6761 = vadd.s32 %v6760, %v6750
  %v6762 = vadd.s32 %v6761, %v6752
  %v6763 = vand.u32 %v6740, 65535
  %v6764 = vshrl.u32 %v6740, 16
  %v6765 = vand.u32 %v6735, 65535
  %v6766 = vshrl.u32 %v6735, 16
  %v6767 = vmul.u32 %v6763, %v6765
  %v6768 = vmul.u32 %v6763, %v6766
  %v6769 = vmul.u32 %v6764, %v6765
  %v6770 = vmul.u32 %v6764, %v6766
  %v6771 = vshll.u32 %v6768, 16
  %v6772 = vshrl.u32 %v6768, 16
  %v6773 = vshll.u32 %v6769, 16
  %v6774 = vshrl.u32 %v6769, 16
  %vm6775 = vc.u32 %v6767, %v6771
  %v6776 = vsel %vm6775, 1, 0
  %v6777 = vadd.s32 %v6767, %v6771
  %v6778 = vadd.s32 %v6770, %v6776
  %vm6779 = vc.u32 %v6777, %v6773
  %v6780 = vsel %vm6779, 1, 0
  %v6781 = vadd.s32 %v6777, %v6773
  %v6782 = vadd.s32 %v6778, %v6780
  %v6783 = vadd.s32 %v6782, %v6772
  %v6784 = vadd.s32 %v6783, %v6774
  %v6785 = vmul.u32 %v6740, %v6731
  %v6786 = vadd.s32 %v6762, %v6781
  %vm6787 = vc.u32 %v6762, %v6781
  %v6788 = vadd.s32 %v6784, 1
  %v6789 = vsel %vm6787, %v6788, %v6784
  %v6790 = vadd.s32 %v6785, %v6789
  %v6791 = vadd.s32 %v6790, 536870912
  %v6792 = vshrl.u32 %v6791, 30
  %v6793 = vshll.u32 %v6792, 30
  %v6794 = vsub.s32 %v6790, %v6793
  %vm6795 = vcmp.lt.s32.totalorder %v6794, 0
  %v6796 = vsub.s32 0, %v6794
  %v6797 = vsel %vm6795, %v6796, %v6794
  %v6798 = vclz %v6797
  %v6799 = vsub.s32 %v6798, 2
  %vm6800 = vcmp.gt.s32.totalorder 0, %v6799
  %v6801 = vsel %vm6800, 0, %v6799
  %v6802 = vsub.s32 32, %v6801
  %v6803 = vshll.u32 %v6794, %v6801
  %v6804 = vshrl.u32 %v6786, %v6802
  %v6805 = vor.u32 %v6803, %v6804
  %v6806 = vsub.s32 4294967266, %v6801
  %v6807 = vadd.s32 %v6806, 127
  %v6808 = vshll.u32 %v6807, 23
  %v6809 = vor.u32 4788187, %v6808
  %v6810 = vand.u32 2147483647, %v6809
  %v6812 = vcvt.s32.f32 %v6805
  %v6813 = vmul.f32 %v6812, %v6810
  %v6814 = vxor.u32 %v6813, 2147483648
  %v6815 = vsel %vm6694, %v6814, %v6813
  %v6816 = vsub.s32 4, %v6792
  %v6817 = vsel %vm6694, %v6816, %v6792
  %v6818 = vsel %vm6693, %v4832, %v6815
  %v6819 = vsel %vm6693, 0, %v6817
  %v6820 = vmul.f32 %v6818, %v6818
  %v6821 = vmul.f32 %v6820, -0.001358992
  %v6822 = vadd.f32 %v6821, 0.041655596
  %v6823 = vmul.f32 %v6820, %v6822
  %v6824 = vadd.f32 %v6823, -0.4999988
  %v6825 = vmul.f32 %v6820, %v6824
  %v6826 = vadd.f32 1.0, %v6825
  %v6827 = vmul.f32 %v6818, %v6818
  %v6828 = vmul.f32 %v6827, -0.00019511016
  %v6829 = vadd.f32 %v6828, 0.008332121
  %v6830 = vmul.f32 %v6827, %v6829
  %v6831 = vadd.f32 %v6830, -0.16666654
  %v6832 = vmul.f32 %v6827, %v6831
  %v6833 = vadd.f32 %v6832, 1.0
  %v6834 = vmul.f32 %v6833, %v6818
  %vm6835 = vweird.f32 %v4832
  %v6836 = vadd.s32 %v6819, 3
  %v6837 = vand.u32 %v6836, 3
  %vm6838 = vcmp.lt.s32.totalorder %v6837, 2
  %vm6839 = vcmp.eq.s32.totalorder %v6837, 0
  %v6840 = vxor.u32 %v6834, 2147483648
  %v6841 = vsel %vm6839, %v6826, %v6840
  %vm6842 = vcmp.eq.s32.totalorder %v6837, 2
  %v6843 = vxor.u32 %v6826, 2147483648
  %v6844 = vsel %vm6842, %v6843, %v6834
  %v6845 = vsel %vm6838, %v6841, %v6844
  %v6846 = vsel %vm6835, nan, %v6845
  %v6847 = vand.u32 2147483647, %v4833
  %vm6848 = vcmp.le.f32.partialorder %v6847, 0.7853982
  %vm6849 = vcmp.lt.s32.totalorder %v4833, 0
  %v6850 = vand.u32 %v4833, 2139095040
  %v6851 = vshrl.u32 %v6850, 23
  %v6852 = vsub.s32 %v6851, 127
  %v6853 = vand.u32 2147483647, %v4833
  %v6854 = vand.u32 %v6853, 8388607
  %v6855 = vor.u32 %v6854, 8388608
  %v6856 = vsub.s32 0, %v6855
  %v6857 = vadd.s32 %v6852, 1
  %vm6858 = vcmp.gt.s32.totalorder %v6857, 0
  %v6859 = vsel %vm6858, %v6857, 0
  %v6860 = vshrl.u32 %v6859, 5
  %v6861 = vand.u32 %v6859, 31
  %v6862 = vsub.s32 32, %v6861
  %v6863 = vshrl.u32 683565275, %v6862
  %v6864 = vshll.u32 683565275, %v6861
  %v6865 = vshrl.u32 2475754826, %v6862
  %v6866 = vor.u32 %v6864, %v6865
  %v6867 = vshll.u32 2475754826, %v6861
  %v6868 = vshrl.u32 2131351028, %v6862
  %v6869 = vor.u32 %v6867, %v6868
  %v6870 = vshll.u32 2131351028, %v6861
  %v6871 = vshrl.u32 2102212464, %v6862
  %v6872 = vor.u32 %v6870, %v6871
  %v6873 = vshll.u32 2102212464, %v6861
  %v6874 = vshrl.u32 920167782, %v6862
  %v6875 = vor.u32 %v6873, %v6874
  %v6876 = vshll.u32 920167782, %v6861
  %v6877 = vshrl.u32 1326507024, %v6862
  %v6878 = vor.u32 %v6876, %v6877
  %vm6879 = vcmp.lt.s32.totalorder %v6860, 1
  %vm6880 = vcmp.lt.s32.totalorder %v6860, 2
  %vm6881 = vcmp.lt.s32.totalorder %v6860, 3
  %vm6882 = vcmp.lt.s32.totalorder %v6860, 4
  %v6883 = vsel %vm6879, %v6863, %v6866
  %v6884 = vsel %vm6882, %v6872, 2102212464
  %v6885 = vsel %vm6881, %v6869, %v6884
  %v6886 = vsel %vm6880, %v6883, %v6885
  %v6887 = vsel %vm6879, %v6866, %v6869
  %v6888 = vsel %vm6882, %v6875, 920167782
  %v6889 = vsel %vm6881, %v6872, %v6888
  %v6890 = vsel %vm6880, %v6887, %v6889
  %v6891 = vsel %vm6879, %v6869, %v6872
  %v6892 = vsel %vm6882, %v6878, 1326507024
  %v6893 = vsel %vm6881, %v6875, %v6892
  %v6894 = vsel %vm6880, %v6891, %v6893
  %v6895 = vshll.u32 %v6855, 8
  %v6896 = vand.u32 %v6895, 65535
  %v6897 = vshrl.u32 %v6895, 16
  %v6898 = vand.u32 %v6894, 65535
  %v6899 = vshrl.u32 %v6894, 16
  %v6900 = vmul.u32 %v6896, %v6898
  %v6901 = vmul.u32 %v6896, %v6899
  %v6902 = vmul.u32 %v6897, %v6898
  %v6903 = vmul.u32 %v6897, %v6899
  %v6904 = vshll.u32 %v6901, 16
  %v6905 = vshrl.u32 %v6901, 16
  %v6906 = vshll.u32 %v6902, 16
  %v6907 = vshrl.u32 %v6902, 16
  %vm6908 = vc.u32 %v6900, %v6904
  %v6909 = vsel %vm6908, 1, 0
  %v6910 = vadd.s32 %v6900, %v6904
  %v6911 = vadd.s32 %v6903, %v6909
  %vm6912 = vc.u32 %v6910, %v6906
  %v6913 = vsel %vm6912, 1, 0
  %v6914 = vadd.s32 %v6910, %v6906
  %v6915 = vadd.s32 %v6911, %v6913
  %v6916 = vadd.s32 %v6915, %v6905
  %v6917 = vadd.s32 %v6916, %v6907
  %v6918 = vand.u32 %v6895, 65535
  %v6919 = vshrl.u32 %v6895, 16
  %v6920 = vand.u32 %v6890, 65535
  %v6921 = vshrl.u32 %v6890, 16
  %v6922 = vmul.u32 %v6918, %v6920
  %v6923 = vmul.u32 %v6918, %v6921
  %v6924 = vmul.u32 %v6919, %v6920
  %v6925 = vmul.u32 %v6919, %v6921
  %v6926 = vshll.u32 %v6923, 16
  %v6927 = vshrl.u32 %v6923, 16
  %v6928 = vshll.u32 %v6924, 16
  %v6929 = vshrl.u32 %v6924, 16
  %vm6930 = vc.u32 %v6922, %v6926
  %v6931 = vsel %vm6930, 1, 0
  %v6932 = vadd.s32 %v6922, %v6926
  %v6933 = vadd.s32 %v6925, %v6931
  %vm6934 = vc.u32 %v6932, %v6928
  %v6935 = vsel %vm6934, 1, 0
  %v6936 = vadd.s32 %v6932, %v6928
  %v6937 = vadd.s32 %v6933, %v6935
  %v6938 = vadd.s32 %v6937, %v6927
  %v6939 = vadd.s32 %v6938, %v6929
  %v6940 = vmul.u32 %v6895, %v6886
  %v6941 = vadd.s32 %v6917, %v6936
  %vm6942 = vc.u32 %v6917, %v6936
  %v6943 = vadd.s32 %v6939, 1
  %v6944 = vsel %vm6942, %v6943, %v6939
  %v6945 = vadd.s32 %v6940, %v6944
  %v6946 = vadd.s32 %v6945, 536870912
  %v6947 = vshrl.u32 %v6946, 30
  %v6948 = vshll.u32 %v6947, 30
  %v6949 = vsub.s32 %v6945, %v6948
  %vm6950 = vcmp.lt.s32.totalorder %v6949, 0
  %v6951 = vsub.s32 0, %v6949
  %v6952 = vsel %vm6950, %v6951, %v6949
  %v6953 = vclz %v6952
  %v6954 = vsub.s32 %v6953, 2
  %vm6955 = vcmp.gt.s32.totalorder 0, %v6954
  %v6956 = vsel %vm6955, 0, %v6954
  %v6957 = vsub.s32 32, %v6956
  %v6958 = vshll.u32 %v6949, %v6956
  %v6959 = vshrl.u32 %v6941, %v6957
  %v6960 = vor.u32 %v6958, %v6959
  %v6961 = vsub.s32 4294967266, %v6956
  %v6962 = vadd.s32 %v6961, 127
  %v6963 = vshll.u32 %v6962, 23
  %v6964 = vor.u32 4788187, %v6963
  %v6965 = vand.u32 2147483647, %v6964
  %v6967 = vcvt.s32.f32 %v6960
  %v6968 = vmul.f32 %v6967, %v6965
  %v6969 = vxor.u32 %v6968, 2147483648
  %v6970 = vsel %vm6849, %v6969, %v6968
  %v6971 = vsub.s32 4, %v6947
  %v6972 = vsel %vm6849, %v6971, %v6947
  %v6973 = vsel %vm6848, %v4833, %v6970
  %v6974 = vsel %vm6848, 0, %v6972
  %v6975 = vmul.f32 %v6973, %v6973
  %v6976 = vmul.f32 %v6975, -0.001358992
  %v6977 = vadd.f32 %v6976, 0.041655596
  %v6978 = vmul.f32 %v6975, %v6977
  %v6979 = vadd.f32 %v6978, -0.4999988
  %v6980 = vmul.f32 %v6975, %v6979
  %v6981 = vadd.f32 1.0, %v6980
  %v6982 = vmul.f32 %v6973, %v6973
  %v6983 = vmul.f32 %v6982, -0.00019511016
  %v6984 = vadd.f32 %v6983, 0.008332121
  %v6985 = vmul.f32 %v6982, %v6984
  %v6986 = vadd.f32 %v6985, -0.16666654
  %v6987 = vmul.f32 %v6982, %v6986
  %v6988 = vadd.f32 %v6987, 1.0
  %v6989 = vmul.f32 %v6988, %v6973
  %vm6990 = vweird.f32 %v4833
  %v6991 = vadd.s32 %v6974, 3
  %v6992 = vand.u32 %v6991, 3
  %vm6993 = vcmp.lt.s32.totalorder %v6992, 2
  %vm6994 = vcmp.eq.s32.totalorder %v6992, 0
  %v6995 = vxor.u32 %v6989, 2147483648
  %v6996 = vsel %vm6994, %v6981, %v6995
  %vm6997 = vcmp.eq.s32.totalorder %v6992, 2
  %v6998 = vxor.u32 %v6981, 2147483648
  %v6999 = vsel %vm6997, %v6998, %v6989
  %v7000 = vsel %vm6993, %v6996, %v6999
  %v7001 = vsel %vm6990, nan, %v7000
  %v7002 = vand.u32 2147483647, %v4834
  %vm7003 = vcmp.le.f32.partialorder %v7002, 0.7853982
  %vm7004 = vcmp.lt.s32.totalorder %v4834, 0
  %v7005 = vand.u32 %v4834, 2139095040
  %v7006 = vshrl.u32 %v7005, 23
  %v7007 = vsub.s32 %v7006, 127
  %v7008 = vand.u32 2147483647, %v4834
  %v7009 = vand.u32 %v7008, 8388607
  %v7010 = vor.u32 %v7009, 8388608
  %v7011 = vsub.s32 0, %v7010
  %v7012 = vadd.s32 %v7007, 1
  %vm7013 = vcmp.gt.s32.totalorder %v7012, 0
  %v7014 = vsel %vm7013, %v7012, 0
  %v7015 = vshrl.u32 %v7014, 5
  %v7016 = vand.u32 %v7014, 31
  %v7017 = vsub.s32 32, %v7016
  %v7018 = vshrl.u32 683565275, %v7017
  %v7019 = vshll.u32 683565275, %v7016
  %v7020 = vshrl.u32 2475754826, %v7017
  %v7021 = vor.u32 %v7019, %v7020
  %v7022 = vshll.u32 2475754826, %v7016
  %v7023 = vshrl.u32 2131351028, %v7017
  %v7024 = vor.u32 %v7022, %v7023
  %v7025 = vshll.u32 2131351028, %v7016
  %v7026 = vshrl.u32 2102212464, %v7017
  %v7027 = vor.u32 %v7025, %v7026
  %v7028 = vshll.u32 2102212464, %v7016
  %v7029 = vshrl.u32 920167782, %v7017
  %v7030 = vor.u32 %v7028, %v7029
  %v7031 = vshll.u32 920167782, %v7016
  %v7032 = vshrl.u32 1326507024, %v7017
  %v7033 = vor.u32 %v7031, %v7032
  %vm7034 = vcmp.lt.s32.totalorder %v7015, 1
  %vm7035 = vcmp.lt.s32.totalorder %v7015, 2
  %vm7036 = vcmp.lt.s32.totalorder %v7015, 3
  %vm7037 = vcmp.lt.s32.totalorder %v7015, 4
  %v7038 = vsel %vm7034, %v7018, %v7021
  %v7039 = vsel %vm7037, %v7027, 2102212464
  %v7040 = vsel %vm7036, %v7024, %v7039
  %v7041 = vsel %vm7035, %v7038, %v7040
  %v7042 = vsel %vm7034, %v7021, %v7024
  %v7043 = vsel %vm7037, %v7030, 920167782
  %v7044 = vsel %vm7036, %v7027, %v7043
  %v7045 = vsel %vm7035, %v7042, %v7044
  %v7046 = vsel %vm7034, %v7024, %v7027
  %v7047 = vsel %vm7037, %v7033, 1326507024
  %v7048 = vsel %vm7036, %v7030, %v7047
  %v7049 = vsel %vm7035, %v7046, %v7048
  %v7050 = vshll.u32 %v7010, 8
  %v7051 = vand.u32 %v7050, 65535
  %v7052 = vshrl.u32 %v7050, 16
  %v7053 = vand.u32 %v7049, 65535
  %v7054 = vshrl.u32 %v7049, 16
  %v7055 = vmul.u32 %v7051, %v7053
  %v7056 = vmul.u32 %v7051, %v7054
  %v7057 = vmul.u32 %v7052, %v7053
  %v7058 = vmul.u32 %v7052, %v7054
  %v7059 = vshll.u32 %v7056, 16
  %v7060 = vshrl.u32 %v7056, 16
  %v7061 = vshll.u32 %v7057, 16
  %v7062 = vshrl.u32 %v7057, 16
  %vm7063 = vc.u32 %v7055, %v7059
  %v7064 = vsel %vm7063, 1, 0
  %v7065 = vadd.s32 %v7055, %v7059
  %v7066 = vadd.s32 %v7058, %v7064
  %vm7067 = vc.u32 %v7065, %v7061
  %v7068 = vsel %vm7067, 1, 0
  %v7069 = vadd.s32 %v7065, %v7061
  %v7070 = vadd.s32 %v7066, %v7068
  %v7071 = vadd.s32 %v7070, %v7060
  %v7072 = vadd.s32 %v7071, %v7062
  %v7073 = vand.u32 %v7050, 65535
  %v7074 = vshrl.u32 %v7050, 16
  %v7075 = vand.u32 %v7045, 65535
  %v7076 = vshrl.u32 %v7045, 16
  %v7077 = vmul.u32 %v7073, %v7075
  %v7078 = vmul.u32 %v7073, %v7076
  %v7079 = vmul.u32 %v7074, %v7075
  %v7080 = vmul.u32 %v7074, %v7076
  %v7081 = vshll.u32 %v7078, 16
  %v7082 = vshrl.u32 %v7078, 16
  %v7083 = vshll.u32 %v7079, 16
  %v7084 = vshrl.u32 %v7079, 16
  %vm7085 = vc.u32 %v7077, %v7081
  %v7086 = vsel %vm7085, 1, 0
  %v7087 = vadd.s32 %v7077, %v7081
  %v7088 = vadd.s32 %v7080, %v7086
  %vm7089 = vc.u32 %v7087, %v7083
  %v7090 = vsel %vm7089, 1, 0
  %v7091 = vadd.s32 %v7087, %v7083
  %v7092 = vadd.s32 %v7088, %v7090
  %v7093 = vadd.s32 %v7092, %v7082
  %v7094 = vadd.s32 %v7093, %v7084
  %v7095 = vmul.u32 %v7050, %v7041
  %v7096 = vadd.s32 %v7072, %v7091
  %vm7097 = vc.u32 %v7072, %v7091
  %v7098 = vadd.s32 %v7094, 1
  %v7099 = vsel %vm7097, %v7098, %v7094
  %v7100 = vadd.s32 %v7095, %v7099
  %v7101 = vadd.s32 %v7100, 536870912
  %v7102 = vshrl.u32 %v7101, 30
  %v7103 = vshll.u32 %v7102, 30
  %v7104 = vsub.s32 %v7100, %v7103
  %vm7105 = vcmp.lt.s32.totalorder %v7104, 0
  %v7106 = vsub.s32 0, %v7104
  %v7107 = vsel %vm7105, %v7106, %v7104
  %v7108 = vclz %v7107
  %v7109 = vsub.s32 %v7108, 2
  %vm7110 = vcmp.gt.s32.totalorder 0, %v7109
  %v7111 = vsel %vm7110, 0, %v7109
  %v7112 = vsub.s32 32, %v7111
  %v7113 = vshll.u32 %v7104, %v7111
  %v7114 = vshrl.u32 %v7096, %v7112
  %v7115 = vor.u32 %v7113, %v7114
  %v7116 = vsub.s32 4294967266, %v7111
  %v7117 = vadd.s32 %v7116, 127
  %v7118 = vshll.u32 %v7117, 23
  %v7119 = vor.u32 4788187, %v7118
  %v7120 = vand.u32 2147483647, %v7119
  %v7122 = vcvt.s32.f32 %v7115
  %v7123 = vmul.f32 %v7122, %v7120
  %v7124 = vxor.u32 %v7123, 2147483648
  %v7125 = vsel %vm7004, %v7124, %v7123
  %v7126 = vsub.s32 4, %v7102
  %v7127 = vsel %vm7004, %v7126, %v7102
  %v7128 = vsel %vm7003, %v4834, %v7125
  %v7129 = vsel %vm7003, 0, %v7127
  %v7130 = vmul.f32 %v7128, %v7128
  %v7131 = vmul.f32 %v7130, -0.001358992
  %v7132 = vadd.f32 %v7131, 0.041655596
  %v7133 = vmul.f32 %v7130, %v7132
  %v7134 = vadd.f32 %v7133, -0.4999988
  %v7135 = vmul.f32 %v7130, %v7134
  %v7136 = vadd.f32 1.0, %v7135
  %v7137 = vmul.f32 %v7128, %v7128
  %v7138 = vmul.f32 %v7137, -0.00019511016
  %v7139 = vadd.f32 %v7138, 0.008332121
  %v7140 = vmul.f32 %v7137, %v7139
  %v7141 = vadd.f32 %v7140, -0.16666654
  %v7142 = vmul.f32 %v7137, %v7141
  %v7143 = vadd.f32 %v7142, 1.0
  %v7144 = vmul.f32 %v7143, %v7128
  %vm7145 = vweird.f32 %v4834
  %v7146 = vadd.s32 %v7129, 3
  %v7147 = vand.u32 %v7146, 3
  %vm7148 = vcmp.lt.s32.totalorder %v7147, 2
  %vm7149 = vcmp.eq.s32.totalorder %v7147, 0
  %v7150 = vxor.u32 %v7144, 2147483648
  %v7151 = vsel %vm7149, %v7136, %v7150
  %vm7152 = vcmp.eq.s32.totalorder %v7147, 2
  %v7153 = vxor.u32 %v7136, 2147483648
  %v7154 = vsel %vm7152, %v7153, %v7144
  %v7155 = vsel %vm7148, %v7151, %v7154
  %v7156 = vsel %vm7145, nan, %v7155
  %v7157 = vand.u32 2147483647, %v4835
  %vm7158 = vcmp.le.f32.partialorder %v7157, 0.7853982
  %vm7159 = vcmp.lt.s32.totalorder %v4835, 0
  %v7160 = vand.u32 %v4835, 2139095040
  %v7161 = vshrl.u32 %v7160, 23
  %v7162 = vsub.s32 %v7161, 127
  %v7163 = vand.u32 2147483647, %v4835
  %v7164 = vand.u32 %v7163, 8388607
  %v7165 = vor.u32 %v7164, 8388608
  %v7166 = vsub.s32 0, %v7165
  %v7167 = vadd.s32 %v7162, 1
  %vm7168 = vcmp.gt.s32.totalorder %v7167, 0
  %v7169 = vsel %vm7168, %v7167, 0
  %v7170 = vshrl.u32 %v7169, 5
  %v7171 = vand.u32 %v7169, 31
  %v7172 = vsub.s32 32, %v7171
  %v7173 = vshrl.u32 683565275, %v7172
  %v7174 = vshll.u32 683565275, %v7171
  %v7175 = vshrl.u32 2475754826, %v7172
  %v7176 = vor.u32 %v7174, %v7175
  %v7177 = vshll.u32 2475754826, %v7171
  %v7178 = vshrl.u32 2131351028, %v7172
  %v7179 = vor.u32 %v7177, %v7178
  %v7180 = vshll.u32 2131351028, %v7171
  %v7181 = vshrl.u32 2102212464, %v7172
  %v7182 = vor.u32 %v7180, %v7181
  %v7183 = vshll.u32 2102212464, %v7171
  %v7184 = vshrl.u32 920167782, %v7172
  %v7185 = vor.u32 %v7183, %v7184
  %v7186 = vshll.u32 920167782, %v7171
  %v7187 = vshrl.u32 1326507024, %v7172
  %v7188 = vor.u32 %v7186, %v7187
  %vm7189 = vcmp.lt.s32.totalorder %v7170, 1
  %vm7190 = vcmp.lt.s32.totalorder %v7170, 2
  %vm7191 = vcmp.lt.s32.totalorder %v7170, 3
  %vm7192 = vcmp.lt.s32.totalorder %v7170, 4
  %v7193 = vsel %vm7189, %v7173, %v7176
  %v7194 = vsel %vm7192, %v7182, 2102212464
  %v7195 = vsel %vm7191, %v7179, %v7194
  %v7196 = vsel %vm7190, %v7193, %v7195
  %v7197 = vsel %vm7189, %v7176, %v7179
  %v7198 = vsel %vm7192, %v7185, 920167782
  %v7199 = vsel %vm7191, %v7182, %v7198
  %v7200 = vsel %vm7190, %v7197, %v7199
  %v7201 = vsel %vm7189, %v7179, %v7182
  %v7202 = vsel %vm7192, %v7188, 1326507024
  %v7203 = vsel %vm7191, %v7185, %v7202
  %v7204 = vsel %vm7190, %v7201, %v7203
  %v7205 = vshll.u32 %v7165, 8
  %v7206 = vand.u32 %v7205, 65535
  %v7207 = vshrl.u32 %v7205, 16
  %v7208 = vand.u32 %v7204, 65535
  %v7209 = vshrl.u32 %v7204, 16
  %v7210 = vmul.u32 %v7206, %v7208
  %v7211 = vmul.u32 %v7206, %v7209
  %v7212 = vmul.u32 %v7207, %v7208
  %v7213 = vmul.u32 %v7207, %v7209
  %v7214 = vshll.u32 %v7211, 16
  %v7215 = vshrl.u32 %v7211, 16
  %v7216 = vshll.u32 %v7212, 16
  %v7217 = vshrl.u32 %v7212, 16
  %vm7218 = vc.u32 %v7210, %v7214
  %v7219 = vsel %vm7218, 1, 0
  %v7220 = vadd.s32 %v7210, %v7214
  %v7221 = vadd.s32 %v7213, %v7219
  %vm7222 = vc.u32 %v7220, %v7216
  %v7223 = vsel %vm7222, 1, 0
  %v7224 = vadd.s32 %v7220, %v7216
  %v7225 = vadd.s32 %v7221, %v7223
  %v7226 = vadd.s32 %v7225, %v7215
  %v7227 = vadd.s32 %v7226, %v7217
  %v7228 = vand.u32 %v7205, 65535
  %v7229 = vshrl.u32 %v7205, 16
  %v7230 = vand.u32 %v7200, 65535
  %v7231 = vshrl.u32 %v7200, 16
  %v7232 = vmul.u32 %v7228, %v7230
  %v7233 = vmul.u32 %v7228, %v7231
  %v7234 = vmul.u32 %v7229, %v7230
  %v7235 = vmul.u32 %v7229, %v7231
  %v7236 = vshll.u32 %v7233, 16
  %v7237 = vshrl.u32 %v7233, 16
  %v7238 = vshll.u32 %v7234, 16
  %v7239 = vshrl.u32 %v7234, 16
  %vm7240 = vc.u32 %v7232, %v7236
  %v7241 = vsel %vm7240, 1, 0
  %v7242 = vadd.s32 %v7232, %v7236
  %v7243 = vadd.s32 %v7235, %v7241
  %vm7244 = vc.u32 %v7242, %v7238
  %v7245 = vsel %vm7244, 1, 0
  %v7246 = vadd.s32 %v7242, %v7238
  %v7247 = vadd.s32 %v7243, %v7245
  %v7248 = vadd.s32 %v7247, %v7237
  %v7249 = vadd.s32 %v7248, %v7239
  %v7250 = vmul.u32 %v7205, %v7196
  %v7251 = vadd.s32 %v7227, %v7246
  %vm7252 = vc.u32 %v7227, %v7246
  %v7253 = vadd.s32 %v7249, 1
  %v7254 = vsel %vm7252, %v7253, %v7249
  %v7255 = vadd.s32 %v7250, %v7254
  %v7256 = vadd.s32 %v7255, 536870912
  %v7257 = vshrl.u32 %v7256, 30
  %v7258 = vshll.u32 %v7257, 30
  %v7259 = vsub.s32 %v7255, %v7258
  %vm7260 = vcmp.lt.s32.totalorder %v7259, 0
  %v7261 = vsub.s32 0, %v7259
  %v7262 = vsel %vm7260, %v7261, %v7259
  %v7263 = vclz %v7262
  %v7264 = vsub.s32 %v7263, 2
  %vm7265 = vcmp.gt.s32.totalorder 0, %v7264
  %v7266 = vsel %vm7265, 0, %v7264
  %v7267 = vsub.s32 32, %v7266
  %v7268 = vshll.u32 %v7259, %v7266
  %v7269 = vshrl.u32 %v7251, %v7267
  %v7270 = vor.u32 %v7268, %v7269
  %v7271 = vsub.s32 4294967266, %v7266
  %v7272 = vadd.s32 %v7271, 127
  %v7273 = vshll.u32 %v7272, 23
  %v7274 = vor.u32 4788187, %v7273
  %v7275 = vand.u32 2147483647, %v7274
  %v7277 = vcvt.s32.f32 %v7270
  %v7278 = vmul.f32 %v7277, %v7275
  %v7279 = vxor.u32 %v7278, 2147483648
  %v7280 = vsel %vm7159, %v7279, %v7278
  %v7281 = vsub.s32 4, %v7257
  %v7282 = vsel %vm7159, %v7281, %v7257
  %v7283 = vsel %vm7158, %v4835, %v7280
  %v7284 = vsel %vm7158, 0, %v7282
  %v7285 = vmul.f32 %v7283, %v7283
  %v7286 = vmul.f32 %v7285, -0.001358992
  %v7287 = vadd.f32 %v7286, 0.041655596
  %v7288 = vmul.f32 %v7285, %v7287
  %v7289 = vadd.f32 %v7288, -0.4999988
  %v7290 = vmul.f32 %v7285, %v7289
  %v7291 = vadd.f32 1.0, %v7290
  %v7292 = vmul.f32 %v7283, %v7283
  %v7293 = vmul.f32 %v7292, -0.00019511016
  %v7294 = vadd.f32 %v7293, 0.008332121
  %v7295 = vmul.f32 %v7292, %v7294
  %v7296 = vadd.f32 %v7295, -0.16666654
  %v7297 = vmul.f32 %v7292, %v7296
  %v7298 = vadd.f32 %v7297, 1.0
  %v7299 = vmul.f32 %v7298, %v7283
  %vm7300 = vweird.f32 %v4835
  %v7301 = vadd.s32 %v7284, 3
  %v7302 = vand.u32 %v7301, 3
  %vm7303 = vcmp.lt.s32.totalorder %v7302, 2
  %vm7304 = vcmp.eq.s32.totalorder %v7302, 0
  %v7305 = vxor.u32 %v7299, 2147483648
  %v7306 = vsel %vm7304, %v7291, %v7305
  %vm7307 = vcmp.eq.s32.totalorder %v7302, 2
  %v7308 = vxor.u32 %v7291, 2147483648
  %v7309 = vsel %vm7307, %v7308, %v7299
  %v7310 = vsel %vm7303, %v7306, %v7309
  %v7311 = vsel %vm7300, nan, %v7310
  %v7312 = vand.u32 2147483647, %v4836
  %vm7313 = vcmp.le.f32.partialorder %v7312, 0.7853982
  %vm7314 = vcmp.lt.s32.totalorder %v4836, 0
  %v7315 = vand.u32 %v4836, 2139095040
  %v7316 = vshrl.u32 %v7315, 23
  %v7317 = vsub.s32 %v7316, 127
  %v7318 = vand.u32 2147483647, %v4836
  %v7319 = vand.u32 %v7318, 8388607
  %v7320 = vor.u32 %v7319, 8388608
  %v7321 = vsub.s32 0, %v7320
  %v7322 = vadd.s32 %v7317, 1
  %vm7323 = vcmp.gt.s32.totalorder %v7322, 0
  %v7324 = vsel %vm7323, %v7322, 0
  %v7325 = vshrl.u32 %v7324, 5
  %v7326 = vand.u32 %v7324, 31
  %v7327 = vsub.s32 32, %v7326
  %v7328 = vshrl.u32 683565275, %v7327
  %v7329 = vshll.u32 683565275, %v7326
  %v7330 = vshrl.u32 2475754826, %v7327
  %v7331 = vor.u32 %v7329, %v7330
  %v7332 = vshll.u32 2475754826, %v7326
  %v7333 = vshrl.u32 2131351028, %v7327
  %v7334 = vor.u32 %v7332, %v7333
  %v7335 = vshll.u32 2131351028, %v7326
  %v7336 = vshrl.u32 2102212464, %v7327
  %v7337 = vor.u32 %v7335, %v7336
  %v7338 = vshll.u32 2102212464, %v7326
  %v7339 = vshrl.u32 920167782, %v7327
  %v7340 = vor.u32 %v7338, %v7339
  %v7341 = vshll.u32 920167782, %v7326
  %v7342 = vshrl.u32 1326507024, %v7327
  %v7343 = vor.u32 %v7341, %v7342
  %vm7344 = vcmp.lt.s32.totalorder %v7325, 1
  %vm7345 = vcmp.lt.s32.totalorder %v7325, 2
  %vm7346 = vcmp.lt.s32.totalorder %v7325, 3
  %vm7347 = vcmp.lt.s32.totalorder %v7325, 4
  %v7348 = vsel %vm7344, %v7328, %v7331
  %v7349 = vsel %vm7347, %v7337, 2102212464
  %v7350 = vsel %vm7346, %v7334, %v7349
  %v7351 = vsel %vm7345, %v7348, %v7350
  %v7352 = vsel %vm7344, %v7331, %v7334
  %v7353 = vsel %vm7347, %v7340, 920167782
  %v7354 = vsel %vm7346, %v7337, %v7353
  %v7355 = vsel %vm7345, %v7352, %v7354
  %v7356 = vsel %vm7344, %v7334, %v7337
  %v7357 = vsel %vm7347, %v7343, 1326507024
  %v7358 = vsel %vm7346, %v7340, %v7357
  %v7359 = vsel %vm7345, %v7356, %v7358
  %v7360 = vshll.u32 %v7320, 8
  %v7361 = vand.u32 %v7360, 65535
  %v7362 = vshrl.u32 %v7360, 16
  %v7363 = vand.u32 %v7359, 65535
  %v7364 = vshrl.u32 %v7359, 16
  %v7365 = vmul.u32 %v7361, %v7363
  %v7366 = vmul.u32 %v7361, %v7364
  %v7367 = vmul.u32 %v7362, %v7363
  %v7368 = vmul.u32 %v7362, %v7364
  %v7369 = vshll.u32 %v7366, 16
  %v7370 = vshrl.u32 %v7366, 16
  %v7371 = vshll.u32 %v7367, 16
  %v7372 = vshrl.u32 %v7367, 16
  %vm7373 = vc.u32 %v7365, %v7369
  %v7374 = vsel %vm7373, 1, 0
  %v7375 = vadd.s32 %v7365, %v7369
  %v7376 = vadd.s32 %v7368, %v7374
  %vm7377 = vc.u32 %v7375, %v7371
  %v7378 = vsel %vm7377, 1, 0
  %v7379 = vadd.s32 %v7375, %v7371
  %v7380 = vadd.s32 %v7376, %v7378
  %v7381 = vadd.s32 %v7380, %v7370
  %v7382 = vadd.s32 %v7381, %v7372
  %v7383 = vand.u32 %v7360, 65535
  %v7384 = vshrl.u32 %v7360, 16
  %v7385 = vand.u32 %v7355, 65535
  %v7386 = vshrl.u32 %v7355, 16
  %v7387 = vmul.u32 %v7383, %v7385
  %v7388 = vmul.u32 %v7383, %v7386
  %v7389 = vmul.u32 %v7384, %v7385
  %v7390 = vmul.u32 %v7384, %v7386
  %v7391 = vshll.u32 %v7388, 16
  %v7392 = vshrl.u32 %v7388, 16
  %v7393 = vshll.u32 %v7389, 16
  %v7394 = vshrl.u32 %v7389, 16
  %vm7395 = vc.u32 %v7387, %v7391
  %v7396 = vsel %vm7395, 1, 0
  %v7397 = vadd.s32 %v7387, %v7391
  %v7398 = vadd.s32 %v7390, %v7396
  %vm7399 = vc.u32 %v7397, %v7393
  %v7400 = vsel %vm7399, 1, 0
  %v7401 = vadd.s32 %v7397, %v7393
  %v7402 = vadd.s32 %v7398, %v7400
  %v7403 = vadd.s32 %v7402, %v7392
  %v7404 = vadd.s32 %v7403, %v7394
  %v7405 = vmul.u32 %v7360, %v7351
  %v7406 = vadd.s32 %v7382, %v7401
  %vm7407 = vc.u32 %v7382, %v7401
  %v7408 = vadd.s32 %v7404, 1
  %v7409 = vsel %vm7407, %v7408, %v7404
  %v7410 = vadd.s32 %v7405, %v7409
  %v7411 = vadd.s32 %v7410, 536870912
  %v7412 = vshrl.u32 %v7411, 30
  %v7413 = vshll.u32 %v7412, 30
  %v7414 = vsub.s32 %v7410, %v7413
  %vm7415 = vcmp.lt.s32.totalorder %v7414, 0
  %v7416 = vsub.s32 0, %v7414
  %v7417 = vsel %vm7415, %v7416, %v7414
  %v7418 = vclz %v7417
  %v7419 = vsub.s32 %v7418, 2
  %vm7420 = vcmp.gt.s32.totalorder 0, %v7419
  %v7421 = vsel %vm7420, 0, %v7419
  %v7422 = vsub.s32 32, %v7421
  %v7423 = vshll.u32 %v7414, %v7421
  %v7424 = vshrl.u32 %v7406, %v7422
  %v7425 = vor.u32 %v7423, %v7424
  %v7426 = vsub.s32 4294967266, %v7421
  %v7427 = vadd.s32 %v7426, 127
  %v7428 = vshll.u32 %v7427, 23
  %v7429 = vor.u32 4788187, %v7428
  %v7430 = vand.u32 2147483647, %v7429
  %v7432 = vcvt.s32.f32 %v7425
  %v7433 = vmul.f32 %v7432, %v7430
  %v7434 = vxor.u32 %v7433, 2147483648
  %v7435 = vsel %vm7314, %v7434, %v7433
  %v7436 = vsub.s32 4, %v7412
  %v7437 = vsel %vm7314, %v7436, %v7412
  %v7438 = vsel %vm7313, %v4836, %v7435
  %v7439 = vsel %vm7313, 0, %v7437
  %v7440 = vmul.f32 %v7438, %v7438
  %v7441 = vmul.f32 %v7440, -0.001358992
  %v7442 = vadd.f32 %v7441, 0.041655596
  %v7443 = vmul.f32 %v7440, %v7442
  %v7444 = vadd.f32 %v7443, -0.4999988
  %v7445 = vmul.f32 %v7440, %v7444
  %v7446 = vadd.f32 1.0, %v7445
  %v7447 = vmul.f32 %v7438, %v7438
  %v7448 = vmul.f32 %v7447, -0.00019511016
  %v7449 = vadd.f32 %v7448, 0.008332121
  %v7450 = vmul.f32 %v7447, %v7449
  %v7451 = vadd.f32 %v7450, -0.16666654
  %v7452 = vmul.f32 %v7447, %v7451
  %v7453 = vadd.f32 %v7452, 1.0
  %v7454 = vmul.f32 %v7453, %v7438
  %vm7455 = vweird.f32 %v4836
  %v7456 = vadd.s32 %v7439, 3
  %v7457 = vand.u32 %v7456, 3
  %vm7458 = vcmp.lt.s32.totalorder %v7457, 2
  %vm7459 = vcmp.eq.s32.totalorder %v7457, 0
  %v7460 = vxor.u32 %v7454, 2147483648
  %v7461 = vsel %vm7459, %v7446, %v7460
  %vm7462 = vcmp.eq.s32.totalorder %v7457, 2
  %v7463 = vxor.u32 %v7446, 2147483648
  %v7464 = vsel %vm7462, %v7463, %v7454
  %v7465 = vsel %vm7458, %v7461, %v7464
  %v7466 = vsel %vm7455, nan, %v7465
  %v7467 = vand.u32 2147483647, %v4837
  %vm7468 = vcmp.le.f32.partialorder %v7467, 0.7853982
  %vm7469 = vcmp.lt.s32.totalorder %v4837, 0
  %v7470 = vand.u32 %v4837, 2139095040
  %v7471 = vshrl.u32 %v7470, 23
  %v7472 = vsub.s32 %v7471, 127
  %v7473 = vand.u32 2147483647, %v4837
  %v7474 = vand.u32 %v7473, 8388607
  %v7475 = vor.u32 %v7474, 8388608
  %v7476 = vsub.s32 0, %v7475
  %v7477 = vadd.s32 %v7472, 1
  %vm7478 = vcmp.gt.s32.totalorder %v7477, 0
  %v7479 = vsel %vm7478, %v7477, 0
  %v7480 = vshrl.u32 %v7479, 5
  %v7481 = vand.u32 %v7479, 31
  %v7482 = vsub.s32 32, %v7481
  %v7483 = vshrl.u32 683565275, %v7482
  %v7484 = vshll.u32 683565275, %v7481
  %v7485 = vshrl.u32 2475754826, %v7482
  %v7486 = vor.u32 %v7484, %v7485
  %v7487 = vshll.u32 2475754826, %v7481
  %v7488 = vshrl.u32 2131351028, %v7482
  %v7489 = vor.u32 %v7487, %v7488
  %v7490 = vshll.u32 2131351028, %v7481
  %v7491 = vshrl.u32 2102212464, %v7482
  %v7492 = vor.u32 %v7490, %v7491
  %v7493 = vshll.u32 2102212464, %v7481
  %v7494 = vshrl.u32 920167782, %v7482
  %v7495 = vor.u32 %v7493, %v7494
  %v7496 = vshll.u32 920167782, %v7481
  %v7497 = vshrl.u32 1326507024, %v7482
  %v7498 = vor.u32 %v7496, %v7497
  %vm7499 = vcmp.lt.s32.totalorder %v7480, 1
  %vm7500 = vcmp.lt.s32.totalorder %v7480, 2
  %vm7501 = vcmp.lt.s32.totalorder %v7480, 3
  %vm7502 = vcmp.lt.s32.totalorder %v7480, 4
  %v7503 = vsel %vm7499, %v7483, %v7486
  %v7504 = vsel %vm7502, %v7492, 2102212464
  %v7505 = vsel %vm7501, %v7489, %v7504
  %v7506 = vsel %vm7500, %v7503, %v7505
  %v7507 = vsel %vm7499, %v7486, %v7489
  %v7508 = vsel %vm7502, %v7495, 920167782
  %v7509 = vsel %vm7501, %v7492, %v7508
  %v7510 = vsel %vm7500, %v7507, %v7509
  %v7511 = vsel %vm7499, %v7489, %v7492
  %v7512 = vsel %vm7502, %v7498, 1326507024
  %v7513 = vsel %vm7501, %v7495, %v7512
  %v7514 = vsel %vm7500, %v7511, %v7513
  %v7515 = vshll.u32 %v7475, 8
  %v7516 = vand.u32 %v7515, 65535
  %v7517 = vshrl.u32 %v7515, 16
  %v7518 = vand.u32 %v7514, 65535
  %v7519 = vshrl.u32 %v7514, 16
  %v7520 = vmul.u32 %v7516, %v7518
  %v7521 = vmul.u32 %v7516, %v7519
  %v7522 = vmul.u32 %v7517, %v7518
  %v7523 = vmul.u32 %v7517, %v7519
  %v7524 = vshll.u32 %v7521, 16
  %v7525 = vshrl.u32 %v7521, 16
  %v7526 = vshll.u32 %v7522, 16
  %v7527 = vshrl.u32 %v7522, 16
  %vm7528 = vc.u32 %v7520, %v7524
  %v7529 = vsel %vm7528, 1, 0
  %v7530 = vadd.s32 %v7520, %v7524
  %v7531 = vadd.s32 %v7523, %v7529
  %vm7532 = vc.u32 %v7530, %v7526
  %v7533 = vsel %vm7532, 1, 0
  %v7534 = vadd.s32 %v7530, %v7526
  %v7535 = vadd.s32 %v7531, %v7533
  %v7536 = vadd.s32 %v7535, %v7525
  %v7537 = vadd.s32 %v7536, %v7527
  %v7538 = vand.u32 %v7515, 65535
  %v7539 = vshrl.u32 %v7515, 16
  %v7540 = vand.u32 %v7510, 65535
  %v7541 = vshrl.u32 %v7510, 16
  %v7542 = vmul.u32 %v7538, %v7540
  %v7543 = vmul.u32 %v7538, %v7541
  %v7544 = vmul.u32 %v7539, %v7540
  %v7545 = vmul.u32 %v7539, %v7541
  %v7546 = vshll.u32 %v7543, 16
  %v7547 = vshrl.u32 %v7543, 16
  %v7548 = vshll.u32 %v7544, 16
  %v7549 = vshrl.u32 %v7544, 16
  %vm7550 = vc.u32 %v7542, %v7546
  %v7551 = vsel %vm7550, 1, 0
  %v7552 = vadd.s32 %v7542, %v7546
  %v7553 = vadd.s32 %v7545, %v7551
  %vm7554 = vc.u32 %v7552, %v7548
  %v7555 = vsel %vm7554, 1, 0
  %v7556 = vadd.s32 %v7552, %v7548
  %v7557 = vadd.s32 %v7553, %v7555
  %v7558 = vadd.s32 %v7557, %v7547
  %v7559 = vadd.s32 %v7558, %v7549
  %v7560 = vmul.u32 %v7515, %v7506
  %v7561 = vadd.s32 %v7537, %v7556
  %vm7562 = vc.u32 %v7537, %v7556
  %v7563 = vadd.s32 %v7559, 1
  %v7564 = vsel %vm7562, %v7563, %v7559
  %v7565 = vadd.s32 %v7560, %v7564
  %v7566 = vadd.s32 %v7565, 536870912
  %v7567 = vshrl.u32 %v7566, 30
  %v7568 = vshll.u32 %v7567, 30
  %v7569 = vsub.s32 %v7565, %v7568
  %vm7570 = vcmp.lt.s32.totalorder %v7569, 0
  %v7571 = vsub.s32 0, %v7569
  %v7572 = vsel %vm7570, %v7571, %v7569
  %v7573 = vclz %v7572
  %v7574 = vsub.s32 %v7573, 2
  %vm7575 = vcmp.gt.s32.totalorder 0, %v7574
  %v7576 = vsel %vm7575, 0, %v7574
  %v7577 = vsub.s32 32, %v7576
  %v7578 = vshll.u32 %v7569, %v7576
  %v7579 = vshrl.u32 %v7561, %v7577
  %v7580 = vor.u32 %v7578, %v7579
  %v7581 = vsub.s32 4294967266, %v7576
  %v7582 = vadd.s32 %v7581, 127
  %v7583 = vshll.u32 %v7582, 23
  %v7584 = vor.u32 4788187, %v7583
  %v7585 = vand.u32 2147483647, %v7584
  %v7587 = vcvt.s32.f32 %v7580
  %v7588 = vmul.f32 %v7587, %v7585
  %v7589 = vxor.u32 %v7588, 2147483648
  %v7590 = vsel %vm7469, %v7589, %v7588
  %v7591 = vsub.s32 4, %v7567
  %v7592 = vsel %vm7469, %v7591, %v7567
  %v7593 = vsel %vm7468, %v4837, %v7590
  %v7594 = vsel %vm7468, 0, %v7592
  %v7595 = vmul.f32 %v7593, %v7593
  %v7596 = vmul.f32 %v7595, -0.001358992
  %v7597 = vadd.f32 %v7596, 0.041655596
  %v7598 = vmul.f32 %v7595, %v7597
  %v7599 = vadd.f32 %v7598, -0.4999988
  %v7600 = vmul.f32 %v7595, %v7599
  %v7601 = vadd.f32 1.0, %v7600
  %v7602 = vmul.f32 %v7593, %v7593
  %v7603 = vmul.f32 %v7602, -0.00019511016
  %v7604 = vadd.f32 %v7603, 0.008332121
  %v7605 = vmul.f32 %v7602, %v7604
  %v7606 = vadd.f32 %v7605, -0.16666654
  %v7607 = vmul.f32 %v7602, %v7606
  %v7608 = vadd.f32 %v7607, 1.0
  %v7609 = vmul.f32 %v7608, %v7593
  %vm7610 = vweird.f32 %v4837
  %v7611 = vadd.s32 %v7594, 3
  %v7612 = vand.u32 %v7611, 3
  %vm7613 = vcmp.lt.s32.totalorder %v7612, 2
  %vm7614 = vcmp.eq.s32.totalorder %v7612, 0
  %v7615 = vxor.u32 %v7609, 2147483648
  %v7616 = vsel %vm7614, %v7601, %v7615
  %vm7617 = vcmp.eq.s32.totalorder %v7612, 2
  %v7618 = vxor.u32 %v7601, 2147483648
  %v7619 = vsel %vm7617, %v7618, %v7609
  %v7620 = vsel %vm7613, %v7616, %v7619
  %v7621 = vsel %vm7610, nan, %v7620
  %v7622 = vand.u32 2147483647, %v4838
  %vm7623 = vcmp.le.f32.partialorder %v7622, 0.7853982
  %vm7624 = vcmp.lt.s32.totalorder %v4838, 0
  %v7625 = vand.u32 %v4838, 2139095040
  %v7626 = vshrl.u32 %v7625, 23
  %v7627 = vsub.s32 %v7626, 127
  %v7628 = vand.u32 2147483647, %v4838
  %v7629 = vand.u32 %v7628, 8388607
  %v7630 = vor.u32 %v7629, 8388608
  %v7631 = vsub.s32 0, %v7630
  %v7632 = vadd.s32 %v7627, 1
  %vm7633 = vcmp.gt.s32.totalorder %v7632, 0
  %v7634 = vsel %vm7633, %v7632, 0
  %v7635 = vshrl.u32 %v7634, 5
  %v7636 = vand.u32 %v7634, 31
  %v7637 = vsub.s32 32, %v7636
  %v7638 = vshrl.u32 683565275, %v7637
  %v7639 = vshll.u32 683565275, %v7636
  %v7640 = vshrl.u32 2475754826, %v7637
  %v7641 = vor.u32 %v7639, %v7640
  %v7642 = vshll.u32 2475754826, %v7636
  %v7643 = vshrl.u32 2131351028, %v7637
  %v7644 = vor.u32 %v7642, %v7643
  %v7645 = vshll.u32 2131351028, %v7636
  %v7646 = vshrl.u32 2102212464, %v7637
  %v7647 = vor.u32 %v7645, %v7646
  %v7648 = vshll.u32 2102212464, %v7636
  %v7649 = vshrl.u32 920167782, %v7637
  %v7650 = vor.u32 %v7648, %v7649
  %v7651 = vshll.u32 920167782, %v7636
  %v7652 = vshrl.u32 1326507024, %v7637
  %v7653 = vor.u32 %v7651, %v7652
  %vm7654 = vcmp.lt.s32.totalorder %v7635, 1
  %vm7655 = vcmp.lt.s32.totalorder %v7635, 2
  %vm7656 = vcmp.lt.s32.totalorder %v7635, 3
  %vm7657 = vcmp.lt.s32.totalorder %v7635, 4
  %v7658 = vsel %vm7654, %v7638, %v7641
  %v7659 = vsel %vm7657, %v7647, 2102212464
  %v7660 = vsel %vm7656, %v7644, %v7659
  %v7661 = vsel %vm7655, %v7658, %v7660
  %v7662 = vsel %vm7654, %v7641, %v7644
  %v7663 = vsel %vm7657, %v7650, 920167782
  %v7664 = vsel %vm7656, %v7647, %v7663
  %v7665 = vsel %vm7655, %v7662, %v7664
  %v7666 = vsel %vm7654, %v7644, %v7647
  %v7667 = vsel %vm7657, %v7653, 1326507024
  %v7668 = vsel %vm7656, %v7650, %v7667
  %v7669 = vsel %vm7655, %v7666, %v7668
  %v7670 = vshll.u32 %v7630, 8
  %v7671 = vand.u32 %v7670, 65535
  %v7672 = vshrl.u32 %v7670, 16
  %v7673 = vand.u32 %v7669, 65535
  %v7674 = vshrl.u32 %v7669, 16
  %v7675 = vmul.u32 %v7671, %v7673
  %v7676 = vmul.u32 %v7671, %v7674
  %v7677 = vmul.u32 %v7672, %v7673
  %v7678 = vmul.u32 %v7672, %v7674
  %v7679 = vshll.u32 %v7676, 16
  %v7680 = vshrl.u32 %v7676, 16
  %v7681 = vshll.u32 %v7677, 16
  %v7682 = vshrl.u32 %v7677, 16
  %vm7683 = vc.u32 %v7675, %v7679
  %v7684 = vsel %vm7683, 1, 0
  %v7685 = vadd.s32 %v7675, %v7679
  %v7686 = vadd.s32 %v7678, %v7684
  %vm7687 = vc.u32 %v7685, %v7681
  %v7688 = vsel %vm7687, 1, 0
  %v7689 = vadd.s32 %v7685, %v7681
  %v7690 = vadd.s32 %v7686, %v7688
  %v7691 = vadd.s32 %v7690, %v7680
  %v7692 = vadd.s32 %v7691, %v7682
  %v7693 = vand.u32 %v7670, 65535
  %v7694 = vshrl.u32 %v7670, 16
  %v7695 = vand.u32 %v7665, 65535
  %v7696 = vshrl.u32 %v7665, 16
  %v7697 = vmul.u32 %v7693, %v7695
  %v7698 = vmul.u32 %v7693, %v7696
  %v7699 = vmul.u32 %v7694, %v7695
  %v7700 = vmul.u32 %v7694, %v7696
  %v7701 = vshll.u32 %v7698, 16
  %v7702 = vshrl.u32 %v7698, 16
  %v7703 = vshll.u32 %v7699, 16
  %v7704 = vshrl.u32 %v7699, 16
  %vm7705 = vc.u32 %v7697, %v7701
  %v7706 = vsel %vm7705, 1, 0
  %v7707 = vadd.s32 %v7697, %v7701
  %v7708 = vadd.s32 %v7700, %v7706
  %vm7709 = vc.u32 %v7707, %v7703
  %v7710 = vsel %vm7709, 1, 0
  %v7711 = vadd.s32 %v7707, %v7703
  %v7712 = vadd.s32 %v7708, %v7710
  %v7713 = vadd.s32 %v7712, %v7702
  %v7714 = vadd.s32 %v7713, %v7704
  %v7715 = vmul.u32 %v7670, %v7661
  %v7716 = vadd.s32 %v7692, %v7711
  %vm7717 = vc.u32 %v7692, %v7711
  %v7718 = vadd.s32 %v7714, 1
  %v7719 = vsel %vm7717, %v7718, %v7714
  %v7720 = vadd.s32 %v7715, %v7719
  %v7721 = vadd.s32 %v7720, 536870912
  %v7722 = vshrl.u32 %v7721, 30
  %v7723 = vshll.u32 %v7722, 30
  %v7724 = vsub.s32 %v7720, %v7723
  %vm7725 = vcmp.lt.s32.totalorder %v7724, 0
  %v7726 = vsub.s32 0, %v7724
  %v7727 = vsel %vm7725, %v7726, %v7724
  %v7728 = vclz %v7727
  %v7729 = vsub.s32 %v7728, 2
  %vm7730 = vcmp.gt.s32.totalorder 0, %v7729
  %v7731 = vsel %vm7730, 0, %v7729
  %v7732 = vsub.s32 32, %v7731
  %v7733 = vshll.u32 %v7724, %v7731
  %v7734 = vshrl.u32 %v7716, %v7732
  %v7735 = vor.u32 %v7733, %v7734
  %v7736 = vsub.s32 4294967266, %v7731
  %v7737 = vadd.s32 %v7736, 127
  %v7738 = vshll.u32 %v7737, 23
  %v7739 = vor.u32 4788187, %v7738
  %v7740 = vand.u32 2147483647, %v7739
  %v7742 = vcvt.s32.f32 %v7735
  %v7743 = vmul.f32 %v7742, %v7740
  %v7744 = vxor.u32 %v7743, 2147483648
  %v7745 = vsel %vm7624, %v7744, %v7743
  %v7746 = vsub.s32 4, %v7722
  %v7747 = vsel %vm7624, %v7746, %v7722
  %v7748 = vsel %vm7623, %v4838, %v7745
  %v7749 = vsel %vm7623, 0, %v7747
  %v7750 = vmul.f32 %v7748, %v7748
  %v7751 = vmul.f32 %v7750, -0.001358992
  %v7752 = vadd.f32 %v7751, 0.041655596
  %v7753 = vmul.f32 %v7750, %v7752
  %v7754 = vadd.f32 %v7753, -0.4999988
  %v7755 = vmul.f32 %v7750, %v7754
  %v7756 = vadd.f32 1.0, %v7755
  %v7757 = vmul.f32 %v7748, %v7748
  %v7758 = vmul.f32 %v7757, -0.00019511016
  %v7759 = vadd.f32 %v7758, 0.008332121
  %v7760 = vmul.f32 %v7757, %v7759
  %v7761 = vadd.f32 %v7760, -0.16666654
  %v7762 = vmul.f32 %v7757, %v7761
  %v7763 = vadd.f32 %v7762, 1.0
  %v7764 = vmul.f32 %v7763, %v7748
  %vm7765 = vweird.f32 %v4838
  %v7766 = vadd.s32 %v7749, 3
  %v7767 = vand.u32 %v7766, 3
  %vm7768 = vcmp.lt.s32.totalorder %v7767, 2
  %vm7769 = vcmp.eq.s32.totalorder %v7767, 0
  %v7770 = vxor.u32 %v7764, 2147483648
  %v7771 = vsel %vm7769, %v7756, %v7770
  %vm7772 = vcmp.eq.s32.totalorder %v7767, 2
  %v7773 = vxor.u32 %v7756, 2147483648
  %v7774 = vsel %vm7772, %v7773, %v7764
  %v7775 = vsel %vm7768, %v7771, %v7774
  %v7776 = vsel %vm7765, nan, %v7775
  %v7777 = vand.u32 2147483647, %v4839
  %vm7778 = vcmp.le.f32.partialorder %v7777, 0.7853982
  %vm7779 = vcmp.lt.s32.totalorder %v4839, 0
  %v7780 = vand.u32 %v4839, 2139095040
  %v7781 = vshrl.u32 %v7780, 23
  %v7782 = vsub.s32 %v7781, 127
  %v7783 = vand.u32 2147483647, %v4839
  %v7784 = vand.u32 %v7783, 8388607
  %v7785 = vor.u32 %v7784, 8388608
  %v7786 = vsub.s32 0, %v7785
  %v7787 = vadd.s32 %v7782, 1
  %vm7788 = vcmp.gt.s32.totalorder %v7787, 0
  %v7789 = vsel %vm7788, %v7787, 0
  %v7790 = vshrl.u32 %v7789, 5
  %v7791 = vand.u32 %v7789, 31
  %v7792 = vsub.s32 32, %v7791
  %v7793 = vshrl.u32 683565275, %v7792
  %v7794 = vshll.u32 683565275, %v7791
  %v7795 = vshrl.u32 2475754826, %v7792
  %v7796 = vor.u32 %v7794, %v7795
  %v7797 = vshll.u32 2475754826, %v7791
  %v7798 = vshrl.u32 2131351028, %v7792
  %v7799 = vor.u32 %v7797, %v7798
  %v7800 = vshll.u32 2131351028, %v7791
  %v7801 = vshrl.u32 2102212464, %v7792
  %v7802 = vor.u32 %v7800, %v7801
  %v7803 = vshll.u32 2102212464, %v7791
  %v7804 = vshrl.u32 920167782, %v7792
  %v7805 = vor.u32 %v7803, %v7804
  %v7806 = vshll.u32 920167782, %v7791
  %v7807 = vshrl.u32 1326507024, %v7792
  %v7808 = vor.u32 %v7806, %v7807
  %vm7809 = vcmp.lt.s32.totalorder %v7790, 1
  %vm7810 = vcmp.lt.s32.totalorder %v7790, 2
  %vm7811 = vcmp.lt.s32.totalorder %v7790, 3
  %vm7812 = vcmp.lt.s32.totalorder %v7790, 4
  %v7813 = vsel %vm7809, %v7793, %v7796
  %v7814 = vsel %vm7812, %v7802, 2102212464
  %v7815 = vsel %vm7811, %v7799, %v7814
  %v7816 = vsel %vm7810, %v7813, %v7815
  %v7817 = vsel %vm7809, %v7796, %v7799
  %v7818 = vsel %vm7812, %v7805, 920167782
  %v7819 = vsel %vm7811, %v7802, %v7818
  %v7820 = vsel %vm7810, %v7817, %v7819
  %v7821 = vsel %vm7809, %v7799, %v7802
  %v7822 = vsel %vm7812, %v7808, 1326507024
  %v7823 = vsel %vm7811, %v7805, %v7822
  %v7824 = vsel %vm7810, %v7821, %v7823
  %v7825 = vshll.u32 %v7785, 8
  %v7826 = vand.u32 %v7825, 65535
  %v7827 = vshrl.u32 %v7825, 16
  %v7828 = vand.u32 %v7824, 65535
  %v7829 = vshrl.u32 %v7824, 16
  %v7830 = vmul.u32 %v7826, %v7828
  %v7831 = vmul.u32 %v7826, %v7829
  %v7832 = vmul.u32 %v7827, %v7828
  %v7833 = vmul.u32 %v7827, %v7829
  %v7834 = vshll.u32 %v7831, 16
  %v7835 = vshrl.u32 %v7831, 16
  %v7836 = vshll.u32 %v7832, 16
  %v7837 = vshrl.u32 %v7832, 16
  %vm7838 = vc.u32 %v7830, %v7834
  %v7839 = vsel %vm7838, 1, 0
  %v7840 = vadd.s32 %v7830, %v7834
  %v7841 = vadd.s32 %v7833, %v7839
  %vm7842 = vc.u32 %v7840, %v7836
  %v7843 = vsel %vm7842, 1, 0
  %v7844 = vadd.s32 %v7840, %v7836
  %v7845 = vadd.s32 %v7841, %v7843
  %v7846 = vadd.s32 %v7845, %v7835
  %v7847 = vadd.s32 %v7846, %v7837
  %v7848 = vand.u32 %v7825, 65535
  %v7849 = vshrl.u32 %v7825, 16
  %v7850 = vand.u32 %v7820, 65535
  %v7851 = vshrl.u32 %v7820, 16
  %v7852 = vmul.u32 %v7848, %v7850
  %v7853 = vmul.u32 %v7848, %v7851
  %v7854 = vmul.u32 %v7849, %v7850
  %v7855 = vmul.u32 %v7849, %v7851
  %v7856 = vshll.u32 %v7853, 16
  %v7857 = vshrl.u32 %v7853, 16
  %v7858 = vshll.u32 %v7854, 16
  %v7859 = vshrl.u32 %v7854, 16
  %vm7860 = vc.u32 %v7852, %v7856
  %v7861 = vsel %vm7860, 1, 0
  %v7862 = vadd.s32 %v7852, %v7856
  %v7863 = vadd.s32 %v7855, %v7861
  %vm7864 = vc.u32 %v7862, %v7858
  %v7865 = vsel %vm7864, 1, 0
  %v7866 = vadd.s32 %v7862, %v7858
  %v7867 = vadd.s32 %v7863, %v7865
  %v7868 = vadd.s32 %v7867, %v7857
  %v7869 = vadd.s32 %v7868, %v7859
  %v7870 = vmul.u32 %v7825, %v7816
  %v7871 = vadd.s32 %v7847, %v7866
  %vm7872 = vc.u32 %v7847, %v7866
  %v7873 = vadd.s32 %v7869, 1
  %v7874 = vsel %vm7872, %v7873, %v7869
  %v7875 = vadd.s32 %v7870, %v7874
  %v7876 = vadd.s32 %v7875, 536870912
  %v7877 = vshrl.u32 %v7876, 30
  %v7878 = vshll.u32 %v7877, 30
  %v7879 = vsub.s32 %v7875, %v7878
  %vm7880 = vcmp.lt.s32.totalorder %v7879, 0
  %v7881 = vsub.s32 0, %v7879
  %v7882 = vsel %vm7880, %v7881, %v7879
  %v7883 = vclz %v7882
  %v7884 = vsub.s32 %v7883, 2
  %vm7885 = vcmp.gt.s32.totalorder 0, %v7884
  %v7886 = vsel %vm7885, 0, %v7884
  %v7887 = vsub.s32 32, %v7886
  %v7888 = vshll.u32 %v7879, %v7886
  %v7889 = vshrl.u32 %v7871, %v7887
  %v7890 = vor.u32 %v7888, %v7889
  %v7891 = vsub.s32 4294967266, %v7886
  %v7892 = vadd.s32 %v7891, 127
  %v7893 = vshll.u32 %v7892, 23
  %v7894 = vor.u32 4788187, %v7893
  %v7895 = vand.u32 2147483647, %v7894
  %v7897 = vcvt.s32.f32 %v7890
  %v7898 = vmul.f32 %v7897, %v7895
  %v7899 = vxor.u32 %v7898, 2147483648
  %v7900 = vsel %vm7779, %v7899, %v7898
  %v7901 = vsub.s32 4, %v7877
  %v7902 = vsel %vm7779, %v7901, %v7877
  %v7903 = vsel %vm7778, %v4839, %v7900
  %v7904 = vsel %vm7778, 0, %v7902
  %v7905 = vmul.f32 %v7903, %v7903
  %v7906 = vmul.f32 %v7905, -0.001358992
  %v7907 = vadd.f32 %v7906, 0.041655596
  %v7908 = vmul.f32 %v7905, %v7907
  %v7909 = vadd.f32 %v7908, -0.4999988
  %v7910 = vmul.f32 %v7905, %v7909
  %v7911 = vadd.f32 1.0, %v7910
  %v7912 = vmul.f32 %v7903, %v7903
  %v7913 = vmul.f32 %v7912, -0.00019511016
  %v7914 = vadd.f32 %v7913, 0.008332121
  %v7915 = vmul.f32 %v7912, %v7914
  %v7916 = vadd.f32 %v7915, -0.16666654
  %v7917 = vmul.f32 %v7912, %v7916
  %v7918 = vadd.f32 %v7917, 1.0
  %v7919 = vmul.f32 %v7918, %v7903
  %vm7920 = vweird.f32 %v4839
  %v7921 = vadd.s32 %v7904, 3
  %v7922 = vand.u32 %v7921, 3
  %vm7923 = vcmp.lt.s32.totalorder %v7922, 2
  %vm7924 = vcmp.eq.s32.totalorder %v7922, 0
  %v7925 = vxor.u32 %v7919, 2147483648
  %v7926 = vsel %vm7924, %v7911, %v7925
  %vm7927 = vcmp.eq.s32.totalorder %v7922, 2
  %v7928 = vxor.u32 %v7911, 2147483648
  %v7929 = vsel %vm7927, %v7928, %v7919
  %v7930 = vsel %vm7923, %v7926, %v7929
  %v7931 = vsel %vm7920, nan, %v7930
  %v7932 = vand.u32 2147483647, %v4840
  %vm7933 = vcmp.le.f32.partialorder %v7932, 0.7853982
  %vm7934 = vcmp.lt.s32.totalorder %v4840, 0
  %v7935 = vand.u32 %v4840, 2139095040
  %v7936 = vshrl.u32 %v7935, 23
  %v7937 = vsub.s32 %v7936, 127
  %v7938 = vand.u32 2147483647, %v4840
  %v7939 = vand.u32 %v7938, 8388607
  %v7940 = vor.u32 %v7939, 8388608
  %v7941 = vsub.s32 0, %v7940
  %v7942 = vadd.s32 %v7937, 1
  %vm7943 = vcmp.gt.s32.totalorder %v7942, 0
  %v7944 = vsel %vm7943, %v7942, 0
  %v7945 = vshrl.u32 %v7944, 5
  %v7946 = vand.u32 %v7944, 31
  %v7947 = vsub.s32 32, %v7946
  %v7948 = vshrl.u32 683565275, %v7947
  %v7949 = vshll.u32 683565275, %v7946
  %v7950 = vshrl.u32 2475754826, %v7947
  %v7951 = vor.u32 %v7949, %v7950
  %v7952 = vshll.u32 2475754826, %v7946
  %v7953 = vshrl.u32 2131351028, %v7947
  %v7954 = vor.u32 %v7952, %v7953
  %v7955 = vshll.u32 2131351028, %v7946
  %v7956 = vshrl.u32 2102212464, %v7947
  %v7957 = vor.u32 %v7955, %v7956
  %v7958 = vshll.u32 2102212464, %v7946
  %v7959 = vshrl.u32 920167782, %v7947
  %v7960 = vor.u32 %v7958, %v7959
  %v7961 = vshll.u32 920167782, %v7946
  %v7962 = vshrl.u32 1326507024, %v7947
  %v7963 = vor.u32 %v7961, %v7962
  %vm7964 = vcmp.lt.s32.totalorder %v7945, 1
  %vm7965 = vcmp.lt.s32.totalorder %v7945, 2
  %vm7966 = vcmp.lt.s32.totalorder %v7945, 3
  %vm7967 = vcmp.lt.s32.totalorder %v7945, 4
  %v7968 = vsel %vm7964, %v7948, %v7951
  %v7969 = vsel %vm7967, %v7957, 2102212464
  %v7970 = vsel %vm7966, %v7954, %v7969
  %v7971 = vsel %vm7965, %v7968, %v7970
  %v7972 = vsel %vm7964, %v7951, %v7954
  %v7973 = vsel %vm7967, %v7960, 920167782
  %v7974 = vsel %vm7966, %v7957, %v7973
  %v7975 = vsel %vm7965, %v7972, %v7974
  %v7976 = vsel %vm7964, %v7954, %v7957
  %v7977 = vsel %vm7967, %v7963, 1326507024
  %v7978 = vsel %vm7966, %v7960, %v7977
  %v7979 = vsel %vm7965, %v7976, %v7978
  %v7980 = vshll.u32 %v7940, 8
  %v7981 = vand.u32 %v7980, 65535
  %v7982 = vshrl.u32 %v7980, 16
  %v7983 = vand.u32 %v7979, 65535
  %v7984 = vshrl.u32 %v7979, 16
  %v7985 = vmul.u32 %v7981, %v7983
  %v7986 = vmul.u32 %v7981, %v7984
  %v7987 = vmul.u32 %v7982, %v7983
  %v7988 = vmul.u32 %v7982, %v7984
  %v7989 = vshll.u32 %v7986, 16
  %v7990 = vshrl.u32 %v7986, 16
  %v7991 = vshll.u32 %v7987, 16
  %v7992 = vshrl.u32 %v7987, 16
  %vm7993 = vc.u32 %v7985, %v7989
  %v7994 = vsel %vm7993, 1, 0
  %v7995 = vadd.s32 %v7985, %v7989
  %v7996 = vadd.s32 %v7988, %v7994
  %vm7997 = vc.u32 %v7995, %v7991
  %v7998 = vsel %vm7997, 1, 0
  %v7999 = vadd.s32 %v7995, %v7991
  %v8000 = vadd.s32 %v7996, %v7998
  %v8001 = vadd.s32 %v8000, %v7990
  %v8002 = vadd.s32 %v8001, %v7992
  %v8003 = vand.u32 %v7980, 65535
  %v8004 = vshrl.u32 %v7980, 16
  %v8005 = vand.u32 %v7975, 65535
  %v8006 = vshrl.u32 %v7975, 16
  %v8007 = vmul.u32 %v8003, %v8005
  %v8008 = vmul.u32 %v8003, %v8006
  %v8009 = vmul.u32 %v8004, %v8005
  %v8010 = vmul.u32 %v8004, %v8006
  %v8011 = vshll.u32 %v8008, 16
  %v8012 = vshrl.u32 %v8008, 16
  %v8013 = vshll.u32 %v8009, 16
  %v8014 = vshrl.u32 %v8009, 16
  %vm8015 = vc.u32 %v8007, %v8011
  %v8016 = vsel %vm8015, 1, 0
  %v8017 = vadd.s32 %v8007, %v8011
  %v8018 = vadd.s32 %v8010, %v8016
  %vm8019 = vc.u32 %v8017, %v8013
  %v8020 = vsel %vm8019, 1, 0
  %v8021 = vadd.s32 %v8017, %v8013
  %v8022 = vadd.s32 %v8018, %v8020
  %v8023 = vadd.s32 %v8022, %v8012
  %v8024 = vadd.s32 %v8023, %v8014
  %v8025 = vmul.u32 %v7980, %v7971
  %v8026 = vadd.s32 %v8002, %v8021
  %vm8027 = vc.u32 %v8002, %v8021
  %v8028 = vadd.s32 %v8024, 1
  %v8029 = vsel %vm8027, %v8028, %v8024
  %v8030 = vadd.s32 %v8025, %v8029
  %v8031 = vadd.s32 %v8030, 536870912
  %v8032 = vshrl.u32 %v8031, 30
  %v8033 = vshll.u32 %v8032, 30
  %v8034 = vsub.s32 %v8030, %v8033
  %vm8035 = vcmp.lt.s32.totalorder %v8034, 0
  %v8036 = vsub.s32 0, %v8034
  %v8037 = vsel %vm8035, %v8036, %v8034
  %v8038 = vclz %v8037
  %v8039 = vsub.s32 %v8038, 2
  %vm8040 = vcmp.gt.s32.totalorder 0, %v8039
  %v8041 = vsel %vm8040, 0, %v8039
  %v8042 = vsub.s32 32, %v8041
  %v8043 = vshll.u32 %v8034, %v8041
  %v8044 = vshrl.u32 %v8026, %v8042
  %v8045 = vor.u32 %v8043, %v8044
  %v8046 = vsub.s32 4294967266, %v8041
  %v8047 = vadd.s32 %v8046, 127
  %v8048 = vshll.u32 %v8047, 23
  %v8049 = vor.u32 4788187, %v8048
  %v8050 = vand.u32 2147483647, %v8049
  %v8052 = vcvt.s32.f32 %v8045
  %v8053 = vmul.f32 %v8052, %v8050
  %v8054 = vxor.u32 %v8053, 2147483648
  %v8055 = vsel %vm7934, %v8054, %v8053
  %v8056 = vsub.s32 4, %v8032
  %v8057 = vsel %vm7934, %v8056, %v8032
  %v8058 = vsel %vm7933, %v4840, %v8055
  %v8059 = vsel %vm7933, 0, %v8057
  %v8060 = vmul.f32 %v8058, %v8058
  %v8061 = vmul.f32 %v8060, -0.001358992
  %v8062 = vadd.f32 %v8061, 0.041655596
  %v8063 = vmul.f32 %v8060, %v8062
  %v8064 = vadd.f32 %v8063, -0.4999988
  %v8065 = vmul.f32 %v8060, %v8064
  %v8066 = vadd.f32 1.0, %v8065
  %v8067 = vmul.f32 %v8058, %v8058
  %v8068 = vmul.f32 %v8067, -0.00019511016
  %v8069 = vadd.f32 %v8068, 0.008332121
  %v8070 = vmul.f32 %v8067, %v8069
  %v8071 = vadd.f32 %v8070, -0.16666654
  %v8072 = vmul.f32 %v8067, %v8071
  %v8073 = vadd.f32 %v8072, 1.0
  %v8074 = vmul.f32 %v8073, %v8058
  %vm8075 = vweird.f32 %v4840
  %v8076 = vadd.s32 %v8059, 3
  %v8077 = vand.u32 %v8076, 3
  %vm8078 = vcmp.lt.s32.totalorder %v8077, 2
  %vm8079 = vcmp.eq.s32.totalorder %v8077, 0
  %v8080 = vxor.u32 %v8074, 2147483648
  %v8081 = vsel %vm8079, %v8066, %v8080
  %vm8082 = vcmp.eq.s32.totalorder %v8077, 2
  %v8083 = vxor.u32 %v8066, 2147483648
  %v8084 = vsel %vm8082, %v8083, %v8074
  %v8085 = vsel %vm8078, %v8081, %v8084
  %v8086 = vsel %vm8075, nan, %v8085
  %v8087 = vand.u32 2147483647, %v4841
  %vm8088 = vcmp.le.f32.partialorder %v8087, 0.7853982
  %vm8089 = vcmp.lt.s32.totalorder %v4841, 0
  %v8090 = vand.u32 %v4841, 2139095040
  %v8091 = vshrl.u32 %v8090, 23
  %v8092 = vsub.s32 %v8091, 127
  %v8093 = vand.u32 2147483647, %v4841
  %v8094 = vand.u32 %v8093, 8388607
  %v8095 = vor.u32 %v8094, 8388608
  %v8096 = vsub.s32 0, %v8095
  %v8097 = vadd.s32 %v8092, 1
  %vm8098 = vcmp.gt.s32.totalorder %v8097, 0
  %v8099 = vsel %vm8098, %v8097, 0
  %v8100 = vshrl.u32 %v8099, 5
  %v8101 = vand.u32 %v8099, 31
  %v8102 = vsub.s32 32, %v8101
  %v8103 = vshrl.u32 683565275, %v8102
  %v8104 = vshll.u32 683565275, %v8101
  %v8105 = vshrl.u32 2475754826, %v8102
  %v8106 = vor.u32 %v8104, %v8105
  %v8107 = vshll.u32 2475754826, %v8101
  %v8108 = vshrl.u32 2131351028, %v8102
  %v8109 = vor.u32 %v8107, %v8108
  %v8110 = vshll.u32 2131351028, %v8101
  %v8111 = vshrl.u32 2102212464, %v8102
  %v8112 = vor.u32 %v8110, %v8111
  %v8113 = vshll.u32 2102212464, %v8101
  %v8114 = vshrl.u32 920167782, %v8102
  %v8115 = vor.u32 %v8113, %v8114
  %v8116 = vshll.u32 920167782, %v8101
  %v8117 = vshrl.u32 1326507024, %v8102
  %v8118 = vor.u32 %v8116, %v8117
  %vm8119 = vcmp.lt.s32.totalorder %v8100, 1
  %vm8120 = vcmp.lt.s32.totalorder %v8100, 2
  %vm8121 = vcmp.lt.s32.totalorder %v8100, 3
  %vm8122 = vcmp.lt.s32.totalorder %v8100, 4
  %v8123 = vsel %vm8119, %v8103, %v8106
  %v8124 = vsel %vm8122, %v8112, 2102212464
  %v8125 = vsel %vm8121, %v8109, %v8124
  %v8126 = vsel %vm8120, %v8123, %v8125
  %v8127 = vsel %vm8119, %v8106, %v8109
  %v8128 = vsel %vm8122, %v8115, 920167782
  %v8129 = vsel %vm8121, %v8112, %v8128
  %v8130 = vsel %vm8120, %v8127, %v8129
  %v8131 = vsel %vm8119, %v8109, %v8112
  %v8132 = vsel %vm8122, %v8118, 1326507024
  %v8133 = vsel %vm8121, %v8115, %v8132
  %v8134 = vsel %vm8120, %v8131, %v8133
  %v8135 = vshll.u32 %v8095, 8
  %v8136 = vand.u32 %v8135, 65535
  %v8137 = vshrl.u32 %v8135, 16
  %v8138 = vand.u32 %v8134, 65535
  %v8139 = vshrl.u32 %v8134, 16
  %v8140 = vmul.u32 %v8136, %v8138
  %v8141 = vmul.u32 %v8136, %v8139
  %v8142 = vmul.u32 %v8137, %v8138
  %v8143 = vmul.u32 %v8137, %v8139
  %v8144 = vshll.u32 %v8141, 16
  %v8145 = vshrl.u32 %v8141, 16
  %v8146 = vshll.u32 %v8142, 16
  %v8147 = vshrl.u32 %v8142, 16
  %vm8148 = vc.u32 %v8140, %v8144
  %v8149 = vsel %vm8148, 1, 0
  %v8150 = vadd.s32 %v8140, %v8144
  %v8151 = vadd.s32 %v8143, %v8149
  %vm8152 = vc.u32 %v8150, %v8146
  %v8153 = vsel %vm8152, 1, 0
  %v8154 = vadd.s32 %v8150, %v8146
  %v8155 = vadd.s32 %v8151, %v8153
  %v8156 = vadd.s32 %v8155, %v8145
  %v8157 = vadd.s32 %v8156, %v8147
  %v8158 = vand.u32 %v8135, 65535
  %v8159 = vshrl.u32 %v8135, 16
  %v8160 = vand.u32 %v8130, 65535
  %v8161 = vshrl.u32 %v8130, 16
  %v8162 = vmul.u32 %v8158, %v8160
  %v8163 = vmul.u32 %v8158, %v8161
  %v8164 = vmul.u32 %v8159, %v8160
  %v8165 = vmul.u32 %v8159, %v8161
  %v8166 = vshll.u32 %v8163, 16
  %v8167 = vshrl.u32 %v8163, 16
  %v8168 = vshll.u32 %v8164, 16
  %v8169 = vshrl.u32 %v8164, 16
  %vm8170 = vc.u32 %v8162, %v8166
  %v8171 = vsel %vm8170, 1, 0
  %v8172 = vadd.s32 %v8162, %v8166
  %v8173 = vadd.s32 %v8165, %v8171
  %vm8174 = vc.u32 %v8172, %v8168
  %v8175 = vsel %vm8174, 1, 0
  %v8176 = vadd.s32 %v8172, %v8168
  %v8177 = vadd.s32 %v8173, %v8175
  %v8178 = vadd.s32 %v8177, %v8167
  %v8179 = vadd.s32 %v8178, %v8169
  %v8180 = vmul.u32 %v8135, %v8126
  %v8181 = vadd.s32 %v8157, %v8176
  %vm8182 = vc.u32 %v8157, %v8176
  %v8183 = vadd.s32 %v8179, 1
  %v8184 = vsel %vm8182, %v8183, %v8179
  %v8185 = vadd.s32 %v8180, %v8184
  %v8186 = vadd.s32 %v8185, 536870912
  %v8187 = vshrl.u32 %v8186, 30
  %v8188 = vshll.u32 %v8187, 30
  %v8189 = vsub.s32 %v8185, %v8188
  %vm8190 = vcmp.lt.s32.totalorder %v8189, 0
  %v8191 = vsub.s32 0, %v8189
  %v8192 = vsel %vm8190, %v8191, %v8189
  %v8193 = vclz %v8192
  %v8194 = vsub.s32 %v8193, 2
  %vm8195 = vcmp.gt.s32.totalorder 0, %v8194
  %v8196 = vsel %vm8195, 0, %v8194
  %v8197 = vsub.s32 32, %v8196
  %v8198 = vshll.u32 %v8189, %v8196
  %v8199 = vshrl.u32 %v8181, %v8197
  %v8200 = vor.u32 %v8198, %v8199
  %v8201 = vsub.s32 4294967266, %v8196
  %v8202 = vadd.s32 %v8201, 127
  %v8203 = vshll.u32 %v8202, 23
  %v8204 = vor.u32 4788187, %v8203
  %v8205 = vand.u32 2147483647, %v8204
  %v8207 = vcvt.s32.f32 %v8200
  %v8208 = vmul.f32 %v8207, %v8205
  %v8209 = vxor.u32 %v8208, 2147483648
  %v8210 = vsel %vm8089, %v8209, %v8208
  %v8211 = vsub.s32 4, %v8187
  %v8212 = vsel %vm8089, %v8211, %v8187
  %v8213 = vsel %vm8088, %v4841, %v8210
  %v8214 = vsel %vm8088, 0, %v8212
  %v8215 = vmul.f32 %v8213, %v8213
  %v8216 = vmul.f32 %v8215, -0.001358992
  %v8217 = vadd.f32 %v8216, 0.041655596
  %v8218 = vmul.f32 %v8215, %v8217
  %v8219 = vadd.f32 %v8218, -0.4999988
  %v8220 = vmul.f32 %v8215, %v8219
  %v8221 = vadd.f32 1.0, %v8220
  %v8222 = vmul.f32 %v8213, %v8213
  %v8223 = vmul.f32 %v8222, -0.00019511016
  %v8224 = vadd.f32 %v8223, 0.008332121
  %v8225 = vmul.f32 %v8222, %v8224
  %v8226 = vadd.f32 %v8225, -0.16666654
  %v8227 = vmul.f32 %v8222, %v8226
  %v8228 = vadd.f32 %v8227, 1.0
  %v8229 = vmul.f32 %v8228, %v8213
  %vm8230 = vweird.f32 %v4841
  %v8231 = vadd.s32 %v8214, 3
  %v8232 = vand.u32 %v8231, 3
  %vm8233 = vcmp.lt.s32.totalorder %v8232, 2
  %vm8234 = vcmp.eq.s32.totalorder %v8232, 0
  %v8235 = vxor.u32 %v8229, 2147483648
  %v8236 = vsel %vm8234, %v8221, %v8235
  %vm8237 = vcmp.eq.s32.totalorder %v8232, 2
  %v8238 = vxor.u32 %v8221, 2147483648
  %v8239 = vsel %vm8237, %v8238, %v8229
  %v8240 = vsel %vm8233, %v8236, %v8239
  %v8241 = vsel %vm8230, nan, %v8240
  %v8242 = vand.u32 2147483647, %v4842
  %vm8243 = vcmp.le.f32.partialorder %v8242, 0.7853982
  %vm8244 = vcmp.lt.s32.totalorder %v4842, 0
  %v8245 = vand.u32 %v4842, 2139095040
  %v8246 = vshrl.u32 %v8245, 23
  %v8247 = vsub.s32 %v8246, 127
  %v8248 = vand.u32 2147483647, %v4842
  %v8249 = vand.u32 %v8248, 8388607
  %v8250 = vor.u32 %v8249, 8388608
  %v8251 = vsub.s32 0, %v8250
  %v8252 = vadd.s32 %v8247, 1
  %vm8253 = vcmp.gt.s32.totalorder %v8252, 0
  %v8254 = vsel %vm8253, %v8252, 0
  %v8255 = vshrl.u32 %v8254, 5
  %v8256 = vand.u32 %v8254, 31
  %v8257 = vsub.s32 32, %v8256
  %v8258 = vshrl.u32 683565275, %v8257
  %v8259 = vshll.u32 683565275, %v8256
  %v8260 = vshrl.u32 2475754826, %v8257
  %v8261 = vor.u32 %v8259, %v8260
  %v8262 = vshll.u32 2475754826, %v8256
  %v8263 = vshrl.u32 2131351028, %v8257
  %v8264 = vor.u32 %v8262, %v8263
  %v8265 = vshll.u32 2131351028, %v8256
  %v8266 = vshrl.u32 2102212464, %v8257
  %v8267 = vor.u32 %v8265, %v8266
  %v8268 = vshll.u32 2102212464, %v8256
  %v8269 = vshrl.u32 920167782, %v8257
  %v8270 = vor.u32 %v8268, %v8269
  %v8271 = vshll.u32 920167782, %v8256
  %v8272 = vshrl.u32 1326507024, %v8257
  %v8273 = vor.u32 %v8271, %v8272
  %vm8274 = vcmp.lt.s32.totalorder %v8255, 1
  %vm8275 = vcmp.lt.s32.totalorder %v8255, 2
  %vm8276 = vcmp.lt.s32.totalorder %v8255, 3
  %vm8277 = vcmp.lt.s32.totalorder %v8255, 4
  %v8278 = vsel %vm8274, %v8258, %v8261
  %v8279 = vsel %vm8277, %v8267, 2102212464
  %v8280 = vsel %vm8276, %v8264, %v8279
  %v8281 = vsel %vm8275, %v8278, %v8280
  %v8282 = vsel %vm8274, %v8261, %v8264
  %v8283 = vsel %vm8277, %v8270, 920167782
  %v8284 = vsel %vm8276, %v8267, %v8283
  %v8285 = vsel %vm8275, %v8282, %v8284
  %v8286 = vsel %vm8274, %v8264, %v8267
  %v8287 = vsel %vm8277, %v8273, 1326507024
  %v8288 = vsel %vm8276, %v8270, %v8287
  %v8289 = vsel %vm8275, %v8286, %v8288
  %v8290 = vshll.u32 %v8250, 8
  %v8291 = vand.u32 %v8290, 65535
  %v8292 = vshrl.u32 %v8290, 16
  %v8293 = vand.u32 %v8289, 65535
  %v8294 = vshrl.u32 %v8289, 16
  %v8295 = vmul.u32 %v8291, %v8293
  %v8296 = vmul.u32 %v8291, %v8294
  %v8297 = vmul.u32 %v8292, %v8293
  %v8298 = vmul.u32 %v8292, %v8294
  %v8299 = vshll.u32 %v8296, 16
  %v8300 = vshrl.u32 %v8296, 16
  %v8301 = vshll.u32 %v8297, 16
  %v8302 = vshrl.u32 %v8297, 16
  %vm8303 = vc.u32 %v8295, %v8299
  %v8304 = vsel %vm8303, 1, 0
  %v8305 = vadd.s32 %v8295, %v8299
  %v8306 = vadd.s32 %v8298, %v8304
  %vm8307 = vc.u32 %v8305, %v8301
  %v8308 = vsel %vm8307, 1, 0
  %v8309 = vadd.s32 %v8305, %v8301
  %v8310 = vadd.s32 %v8306, %v8308
  %v8311 = vadd.s32 %v8310, %v8300
  %v8312 = vadd.s32 %v8311, %v8302
  %v8313 = vand.u32 %v8290, 65535
  %v8314 = vshrl.u32 %v8290, 16
  %v8315 = vand.u32 %v8285, 65535
  %v8316 = vshrl.u32 %v8285, 16
  %v8317 = vmul.u32 %v8313, %v8315
  %v8318 = vmul.u32 %v8313, %v8316
  %v8319 = vmul.u32 %v8314, %v8315
  %v8320 = vmul.u32 %v8314, %v8316
  %v8321 = vshll.u32 %v8318, 16
  %v8322 = vshrl.u32 %v8318, 16
  %v8323 = vshll.u32 %v8319, 16
  %v8324 = vshrl.u32 %v8319, 16
  %vm8325 = vc.u32 %v8317, %v8321
  %v8326 = vsel %vm8325, 1, 0
  %v8327 = vadd.s32 %v8317, %v8321
  %v8328 = vadd.s32 %v8320, %v8326
  %vm8329 = vc.u32 %v8327, %v8323
  %v8330 = vsel %vm8329, 1, 0
  %v8331 = vadd.s32 %v8327, %v8323
  %v8332 = vadd.s32 %v8328, %v8330
  %v8333 = vadd.s32 %v8332, %v8322
  %v8334 = vadd.s32 %v8333, %v8324
  %v8335 = vmul.u32 %v8290, %v8281
  %v8336 = vadd.s32 %v8312, %v8331
  %vm8337 = vc.u32 %v8312, %v8331
  %v8338 = vadd.s32 %v8334, 1
  %v8339 = vsel %vm8337, %v8338, %v8334
  %v8340 = vadd.s32 %v8335, %v8339
  %v8341 = vadd.s32 %v8340, 536870912
  %v8342 = vshrl.u32 %v8341, 30
  %v8343 = vshll.u32 %v8342, 30
  %v8344 = vsub.s32 %v8340, %v8343
  %vm8345 = vcmp.lt.s32.totalorder %v8344, 0
  %v8346 = vsub.s32 0, %v8344
  %v8347 = vsel %vm8345, %v8346, %v8344
  %v8348 = vclz %v8347
  %v8349 = vsub.s32 %v8348, 2
  %vm8350 = vcmp.gt.s32.totalorder 0, %v8349
  %v8351 = vsel %vm8350, 0, %v8349
  %v8352 = vsub.s32 32, %v8351
  %v8353 = vshll.u32 %v8344, %v8351
  %v8354 = vshrl.u32 %v8336, %v8352
  %v8355 = vor.u32 %v8353, %v8354
  %v8356 = vsub.s32 4294967266, %v8351
  %v8357 = vadd.s32 %v8356, 127
  %v8358 = vshll.u32 %v8357, 23
  %v8359 = vor.u32 4788187, %v8358
  %v8360 = vand.u32 2147483647, %v8359
  %v8362 = vcvt.s32.f32 %v8355
  %v8363 = vmul.f32 %v8362, %v8360
  %v8364 = vxor.u32 %v8363, 2147483648
  %v8365 = vsel %vm8244, %v8364, %v8363
  %v8366 = vsub.s32 4, %v8342
  %v8367 = vsel %vm8244, %v8366, %v8342
  %v8368 = vsel %vm8243, %v4842, %v8365
  %v8369 = vsel %vm8243, 0, %v8367
  %v8370 = vmul.f32 %v8368, %v8368
  %v8371 = vmul.f32 %v8370, -0.001358992
  %v8372 = vadd.f32 %v8371, 0.041655596
  %v8373 = vmul.f32 %v8370, %v8372
  %v8374 = vadd.f32 %v8373, -0.4999988
  %v8375 = vmul.f32 %v8370, %v8374
  %v8376 = vadd.f32 1.0, %v8375
  %v8377 = vmul.f32 %v8368, %v8368
  %v8378 = vmul.f32 %v8377, -0.00019511016
  %v8379 = vadd.f32 %v8378, 0.008332121
  %v8380 = vmul.f32 %v8377, %v8379
  %v8381 = vadd.f32 %v8380, -0.16666654
  %v8382 = vmul.f32 %v8377, %v8381
  %v8383 = vadd.f32 %v8382, 1.0
  %v8384 = vmul.f32 %v8383, %v8368
  %vm8385 = vweird.f32 %v4842
  %v8386 = vadd.s32 %v8369, 3
  %v8387 = vand.u32 %v8386, 3
  %vm8388 = vcmp.lt.s32.totalorder %v8387, 2
  %vm8389 = vcmp.eq.s32.totalorder %v8387, 0
  %v8390 = vxor.u32 %v8384, 2147483648
  %v8391 = vsel %vm8389, %v8376, %v8390
  %vm8392 = vcmp.eq.s32.totalorder %v8387, 2
  %v8393 = vxor.u32 %v8376, 2147483648
  %v8394 = vsel %vm8392, %v8393, %v8384
  %v8395 = vsel %vm8388, %v8391, %v8394
  %v8396 = vsel %vm8385, nan, %v8395
  %v8397 = vand.u32 2147483647, %v4843
  %vm8398 = vcmp.le.f32.partialorder %v8397, 0.7853982
  %vm8399 = vcmp.lt.s32.totalorder %v4843, 0
  %v8400 = vand.u32 %v4843, 2139095040
  %v8401 = vshrl.u32 %v8400, 23
  %v8402 = vsub.s32 %v8401, 127
  %v8403 = vand.u32 2147483647, %v4843
  %v8404 = vand.u32 %v8403, 8388607
  %v8405 = vor.u32 %v8404, 8388608
  %v8406 = vsub.s32 0, %v8405
  %v8407 = vadd.s32 %v8402, 1
  %vm8408 = vcmp.gt.s32.totalorder %v8407, 0
  %v8409 = vsel %vm8408, %v8407, 0
  %v8410 = vshrl.u32 %v8409, 5
  %v8411 = vand.u32 %v8409, 31
  %v8412 = vsub.s32 32, %v8411
  %v8413 = vshrl.u32 683565275, %v8412
  %v8414 = vshll.u32 683565275, %v8411
  %v8415 = vshrl.u32 2475754826, %v8412
  %v8416 = vor.u32 %v8414, %v8415
  %v8417 = vshll.u32 2475754826, %v8411
  %v8418 = vshrl.u32 2131351028, %v8412
  %v8419 = vor.u32 %v8417, %v8418
  %v8420 = vshll.u32 2131351028, %v8411
  %v8421 = vshrl.u32 2102212464, %v8412
  %v8422 = vor.u32 %v8420, %v8421
  %v8423 = vshll.u32 2102212464, %v8411
  %v8424 = vshrl.u32 920167782, %v8412
  %v8425 = vor.u32 %v8423, %v8424
  %v8426 = vshll.u32 920167782, %v8411
  %v8427 = vshrl.u32 1326507024, %v8412
  %v8428 = vor.u32 %v8426, %v8427
  %vm8429 = vcmp.lt.s32.totalorder %v8410, 1
  %vm8430 = vcmp.lt.s32.totalorder %v8410, 2
  %vm8431 = vcmp.lt.s32.totalorder %v8410, 3
  %vm8432 = vcmp.lt.s32.totalorder %v8410, 4
  %v8433 = vsel %vm8429, %v8413, %v8416
  %v8434 = vsel %vm8432, %v8422, 2102212464
  %v8435 = vsel %vm8431, %v8419, %v8434
  %v8436 = vsel %vm8430, %v8433, %v8435
  %v8437 = vsel %vm8429, %v8416, %v8419
  %v8438 = vsel %vm8432, %v8425, 920167782
  %v8439 = vsel %vm8431, %v8422, %v8438
  %v8440 = vsel %vm8430, %v8437, %v8439
  %v8441 = vsel %vm8429, %v8419, %v8422
  %v8442 = vsel %vm8432, %v8428, 1326507024
  %v8443 = vsel %vm8431, %v8425, %v8442
  %v8444 = vsel %vm8430, %v8441, %v8443
  %v8445 = vshll.u32 %v8405, 8
  %v8446 = vand.u32 %v8445, 65535
  %v8447 = vshrl.u32 %v8445, 16
  %v8448 = vand.u32 %v8444, 65535
  %v8449 = vshrl.u32 %v8444, 16
  %v8450 = vmul.u32 %v8446, %v8448
  %v8451 = vmul.u32 %v8446, %v8449
  %v8452 = vmul.u32 %v8447, %v8448
  %v8453 = vmul.u32 %v8447, %v8449
  %v8454 = vshll.u32 %v8451, 16
  %v8455 = vshrl.u32 %v8451, 16
  %v8456 = vshll.u32 %v8452, 16
  %v8457 = vshrl.u32 %v8452, 16
  %vm8458 = vc.u32 %v8450, %v8454
  %v8459 = vsel %vm8458, 1, 0
  %v8460 = vadd.s32 %v8450, %v8454
  %v8461 = vadd.s32 %v8453, %v8459
  %vm8462 = vc.u32 %v8460, %v8456
  %v8463 = vsel %vm8462, 1, 0
  %v8464 = vadd.s32 %v8460, %v8456
  %v8465 = vadd.s32 %v8461, %v8463
  %v8466 = vadd.s32 %v8465, %v8455
  %v8467 = vadd.s32 %v8466, %v8457
  %v8468 = vand.u32 %v8445, 65535
  %v8469 = vshrl.u32 %v8445, 16
  %v8470 = vand.u32 %v8440, 65535
  %v8471 = vshrl.u32 %v8440, 16
  %v8472 = vmul.u32 %v8468, %v8470
  %v8473 = vmul.u32 %v8468, %v8471
  %v8474 = vmul.u32 %v8469, %v8470
  %v8475 = vmul.u32 %v8469, %v8471
  %v8476 = vshll.u32 %v8473, 16
  %v8477 = vshrl.u32 %v8473, 16
  %v8478 = vshll.u32 %v8474, 16
  %v8479 = vshrl.u32 %v8474, 16
  %vm8480 = vc.u32 %v8472, %v8476
  %v8481 = vsel %vm8480, 1, 0
  %v8482 = vadd.s32 %v8472, %v8476
  %v8483 = vadd.s32 %v8475, %v8481
  %vm8484 = vc.u32 %v8482, %v8478
  %v8485 = vsel %vm8484, 1, 0
  %v8486 = vadd.s32 %v8482, %v8478
  %v8487 = vadd.s32 %v8483, %v8485
  %v8488 = vadd.s32 %v8487, %v8477
  %v8489 = vadd.s32 %v8488, %v8479
  %v8490 = vmul.u32 %v8445, %v8436
  %v8491 = vadd.s32 %v8467, %v8486
  %vm8492 = vc.u32 %v8467, %v8486
  %v8493 = vadd.s32 %v8489, 1
  %v8494 = vsel %vm8492, %v8493, %v8489
  %v8495 = vadd.s32 %v8490, %v8494
  %v8496 = vadd.s32 %v8495, 536870912
  %v8497 = vshrl.u32 %v8496, 30
  %v8498 = vshll.u32 %v8497, 30
  %v8499 = vsub.s32 %v8495, %v8498
  %vm8500 = vcmp.lt.s32.totalorder %v8499, 0
  %v8501 = vsub.s32 0, %v8499
  %v8502 = vsel %vm8500, %v8501, %v8499
  %v8503 = vclz %v8502
  %v8504 = vsub.s32 %v8503, 2
  %vm8505 = vcmp.gt.s32.totalorder 0, %v8504
  %v8506 = vsel %vm8505, 0, %v8504
  %v8507 = vsub.s32 32, %v8506
  %v8508 = vshll.u32 %v8499, %v8506
  %v8509 = vshrl.u32 %v8491, %v8507
  %v8510 = vor.u32 %v8508, %v8509
  %v8511 = vsub.s32 4294967266, %v8506
  %v8512 = vadd.s32 %v8511, 127
  %v8513 = vshll.u32 %v8512, 23
  %v8514 = vor.u32 4788187, %v8513
  %v8515 = vand.u32 2147483647, %v8514
  %v8517 = vcvt.s32.f32 %v8510
  %v8518 = vmul.f32 %v8517, %v8515
  %v8519 = vxor.u32 %v8518, 2147483648
  %v8520 = vsel %vm8399, %v8519, %v8518
  %v8521 = vsub.s32 4, %v8497
  %v8522 = vsel %vm8399, %v8521, %v8497
  %v8523 = vsel %vm8398, %v4843, %v8520
  %v8524 = vsel %vm8398, 0, %v8522
  %v8525 = vmul.f32 %v8523, %v8523
  %v8526 = vmul.f32 %v8525, -0.001358992
  %v8527 = vadd.f32 %v8526, 0.041655596
  %v8528 = vmul.f32 %v8525, %v8527
  %v8529 = vadd.f32 %v8528, -0.4999988
  %v8530 = vmul.f32 %v8525, %v8529
  %v8531 = vadd.f32 1.0, %v8530
  %v8532 = vmul.f32 %v8523, %v8523
  %v8533 = vmul.f32 %v8532, -0.00019511016
  %v8534 = vadd.f32 %v8533, 0.008332121
  %v8535 = vmul.f32 %v8532, %v8534
  %v8536 = vadd.f32 %v8535, -0.16666654
  %v8537 = vmul.f32 %v8532, %v8536
  %v8538 = vadd.f32 %v8537, 1.0
  %v8539 = vmul.f32 %v8538, %v8523
  %vm8540 = vweird.f32 %v4843
  %v8541 = vadd.s32 %v8524, 3
  %v8542 = vand.u32 %v8541, 3
  %vm8543 = vcmp.lt.s32.totalorder %v8542, 2
  %vm8544 = vcmp.eq.s32.totalorder %v8542, 0
  %v8545 = vxor.u32 %v8539, 2147483648
  %v8546 = vsel %vm8544, %v8531, %v8545
  %vm8547 = vcmp.eq.s32.totalorder %v8542, 2
  %v8548 = vxor.u32 %v8531, 2147483648
  %v8549 = vsel %vm8547, %v8548, %v8539
  %v8550 = vsel %vm8543, %v8546, %v8549
  %v8551 = vsel %vm8540, nan, %v8550
  %8552 = vmatpush.msra.mxu0 0.0
  %8553 = vmatpush.msra.mxu0 0.0
  %8554 = vmatpush.msra.mxu0 0.0
  %8555 = vmatpush.msra.mxu0 0.0
  %8556 = vmatpush.msra.mxu0 %v8551
  %8557 = vmatpush.msra.mxu0 %v8396
  %8558 = vmatpush.msra.mxu0 %v8241
  %8559 = vmatpush.msra.mxu0 %v8086
  %8560 = vmatpush.msra.mxu0 %v7931
  %8561 = vmatpush.msra.mxu0 %v7776
  %8562 = vmatpush.msra.mxu0 %v7621
  %8563 = vmatpush.msra.mxu0 %v7466
  %8564 = vmatpush.msra.mxu0 %v7311
  %8565 = vmatpush.msra.mxu0 %v7156
  %8566 = vmatpush.msra.mxu0 %v7001
  %8567 = vmatpush.msra.mxu0 %v6846
  %8568 = vmatmul.f32.gmra.mxu0 %v4784
  %v8569 = vpop.f32.mrf.mxu0
  %v8570 = vadd.f32 0.0, %v8569
  %8571 = vdwg.mxu0
  %8572 = vmatpush.msra.mxu0 0.0
  %8573 = vmatpush.msra.mxu0 0.0
  %8574 = vmatpush.msra.mxu0 0.0
  %8575 = vmatpush.msra.mxu0 0.0
  %8576 = vmatpush.msra.mxu0 %v6691
  %8577 = vmatpush.msra.mxu0 %v6537
  %8578 = vmatpush.msra.mxu0 %v6383
  %8579 = vmatpush.msra.mxu0 %v6229
  %8580 = vmatpush.msra.mxu0 %v6075
  %8581 = vmatpush.msra.mxu0 %v5921
  %8582 = vmatpush.msra.mxu0 %v5767
  %8583 = vmatpush.msra.mxu0 %v5613
  %8584 = vmatpush.msra.mxu0 %v5459
  %8585 = vmatpush.msra.mxu0 %v5305
  %8586 = vmatpush.msra.mxu0 %v5151
  %8587 = vmatpush.msra.mxu0 %v4997
  %8588 = vmatmul.f32.gmra.mxu0 %v4807
  %v8589 = vpop.f32.mrf.mxu0
  %v8590 = vadd.f32 %v8570, %v8589
  %8591 = vdwg.mxu0
  %v8592 = vadd.f32 %v8590, %v1061
  %s8593 = scalar_lea.vmem %s18, 1
  %8594 = vst.msk [vmem:[%s8593] sm:$0x1] %vm4830, %v8592
  // Predicated region
  $region74: #{tpu_custom_call.1} parent=0 // pred_check
    _
  $region75: #{tpu_custom_call.1} parent=0 // pred_check_branch
    %8596 = sbr.rel (0) target = $region77
  $region76: #{tpu_custom_call.1} parent=0 // pred_region
    _
  $region77: #{tpu_custom_call.1} parent=0 // pred_fallthru
    _
  // Predicated region
  $region78: #{tpu_custom_call.1} parent=0 // pred_check
    _
  $region79: #{tpu_custom_call.1} parent=0 // pred_check_branch
    %8598 = sbr.rel (0) target = $region81
  $region80: #{tpu_custom_call.1} parent=0 // pred_region
    _
  $region81: #{tpu_custom_call.1} parent=0 // pred_fallthru
    _

</llo_original>
